<compile_context>
chip_gen: v5e
topology: v5e:2x2
jax: 0.10.0
libtpu: 0.0.40
codegen_flags: <defaults>
</compile_context>

<pallas_src>
import numpy as np

import jax
import jax.numpy as jnp
from jax.experimental import pallas as pl
from jax.experimental.pallas import tpu as pltpu


# ---------------------------------------------------------------------------
# One-time weight prepacking (host-side numpy on tiny weights, done at init).
#
#   A1[di, wi, wo*16+co]      = w1[co, 0, di, wi-wo]          (0 <= wi-wo < 5)
#   A2[di, u*16+ci, wo*64+co] = w2[co, ci, di, u//2 - wo]     (u even, banded)
#   Wf1[ph, u*64+c, o]        = wfc1[o, c*16 + ph*4 + u//2]   (u even)
#   wfc2p / bfc2p             = fc2 weight/bias padded to 128 output lanes
# ---------------------------------------------------------------------------
def prepack_params(p):
    w1 = np.asarray(p["w1"], np.float32)      # (16, 1, 5, 5)  torch Conv2d layout
    b1 = np.asarray(p["b1"], np.float32)      # (16,)
    w2 = np.asarray(p["w2"], np.float32)      # (64, 16, 5, 5)
    b2 = np.asarray(p["b2"], np.float32)      # (64,)
    wfc1 = np.asarray(p["wfc1"], np.float32)  # (256, 1024), cols ordered (c, h, w)
    bfc1 = np.asarray(p["bfc1"], np.float32)  # (256,)
    wfc2 = np.asarray(p["wfc2"], np.float32)  # (10, 256)
    bfc2 = np.asarray(p["bfc2"], np.float32)  # (10,)

    # conv1 band matrices: out rows = output h, cols = wo*16 + co
    A1 = np.zeros((5, 28, 24, 16), np.float32)
    for di in range(5):
        for dj in range(5):
            for wo in range(24):
                A1[di, wo + dj, wo, :] = w1[:, 0, di, dj]
    A1 = A1.reshape(5, 28, 24 * 16)                                   # (5, 28, 384)

    # conv2 band matrices over the W-uncompacted pooled map (23 width blocks;
    # odd blocks are all-zero and absorb the uncompacted-pool junk).
    A2 = np.zeros((5, 23, 16, 8, 64), np.float32)
    for di in range(5):
        for dj in range(5):
            for wo in range(8):
                A2[di, 2 * (wo + dj), :, wo, :] = w2[:, :, di, dj].T  # (ci, co)
    A2 = A2.reshape(5, 23 * 16, 8 * 64)                               # (5, 368, 512)

    # fc1 weight with the PyTorch NCHW-flatten permutation and the
    # W-uncompacted pool-2 layout folded in (zero rows at odd width blocks).
    wfc1_r = wfc1.reshape(256, 64, 4, 4)                              # (o, c, h, w)
    Wf1 = np.zeros((4, 7, 64, 256), np.float32)
    for ph in range(4):
        for pw in range(4):
            Wf1[ph, 2 * pw, :, :] = wfc1_r[:, :, ph, pw].T            # (c, o)
    Wf1 = Wf1.reshape(4, 7 * 64, 256)                                 # (4, 448, 256)

    # fc2 pre-transposed and padded to a lane-dense 128-wide output.
    wfc2p = np.zeros((256, 128), np.float32)
    wfc2p[:, :10] = wfc2.T
    bfc2p = np.zeros((1, 128), np.float32)
    bfc2p[0, :10] = bfc2

    bf16 = jnp.bfloat16
    return {
        "A1": jnp.asarray(A1, bf16),
        "b1p": jnp.asarray(np.tile(b1, 24)[None, :], jnp.float32),    # (1, 384)
        "A2": jnp.asarray(A2, bf16),
        "b2t": jnp.asarray(np.tile(b2, 7)[None, :], jnp.float32),     # (1, 448)
        "Wf1": jnp.asarray(Wf1, bf16),
        "bfc1": jnp.asarray(bfc1[None, :], jnp.float32),              # (1, 256)
        "wfc2p": jnp.asarray(wfc2p, bf16),
        "bfc2p": jnp.asarray(bfc2p, jnp.float32),                     # (1, 128)
    }


# ---------------------------------------------------------------------------
# Fused kernel: one grid step = `bt` images, everything stays in VMEM.
# ---------------------------------------------------------------------------
def _convnet_kernel(x_ref, a1_ref, b1_ref, a2_ref, b2_ref, wf1_ref, bf1_ref,
                    wf2_ref, bf2_ref, o_ref, p1_ref):
    f32 = jnp.float32
    bf16 = jnp.bfloat16
    bt = x_ref.shape[0]

    # ---- conv1 (5x5, 1->16) as 5 shifted band matmuls + bias + ReLU --------
    x = x_ref[...].astype(bf16)                               # (bt, 28, 28)
    acc1 = jnp.dot(x[:, 0:24, :].reshape(bt * 24, 28), a1_ref[0],
                   preferred_element_type=f32)                # (bt*24, 384)
    for di in range(1, 5):
        xs = x[:, di:di + 24, :].reshape(bt * 24, 28)
        acc1 = acc1 + jnp.dot(xs, a1_ref[di], preferred_element_type=f32)
    a1 = jnp.maximum(acc1 + b1_ref[...], 0.0)                 # cols = wo*16 + c

    # ---- 2x2 max-pool #1 ----------------------------------------------------
    # W direction, uncompacted: block u = max over widths (u, u+1); odd-u junk
    # is killed by the all-zero rows of the conv2 band matrices.
    wmax1 = jnp.maximum(a1[:, 0:368], a1[:, 16:384])          # (bt*24, 368)
    w3 = wmax1.reshape(bt, 24, 368)
    # H direction: compact rows (2r, 2r+1) -> bf16 VMEM scratch row r.
    for r in range(12):
        p1_ref[:, r:r + 1, :] = jnp.maximum(
            w3[:, 2 * r:2 * r + 1, :], w3[:, 2 * r + 1:2 * r + 2, :]).astype(bf16)

    # ---- conv2 (5x5, 16->64) as 5 shifted band matmuls ----------------------
    acc2 = jnp.dot(p1_ref[:, 0:8, :].reshape(bt * 8, 368), a2_ref[0],
                   preferred_element_type=f32)                # (bt*8, 512)
    for di in range(1, 5):
        ps = p1_ref[:, di:di + 8, :].reshape(bt * 8, 368)
        acc2 = acc2 + jnp.dot(ps, a2_ref[di], preferred_element_type=f32)
    # (conv2 bias + ReLU are applied after pooling below; they commute with max)

    # ---- 2x2 max-pool #2 + bias + ReLU + fc1, fused per pooled row ----------
    wmax2 = jnp.maximum(acc2[:, 0:448], acc2[:, 64:512])      # (bt*8, 448)
    w23 = wmax2.reshape(bt, 8, 448)
    acc_f = jnp.zeros((bt, 256), f32)
    for ph in range(4):
        hrow = jnp.maximum(w23[:, 2 * ph, :], w23[:, 2 * ph + 1, :])  # (bt, 448)
        m = jnp.maximum(hrow + b2_ref[...], 0.0)              # pooled + bias + ReLU
        acc_f = acc_f + jnp.dot(m.astype(bf16), wf1_ref[ph],
                                preferred_element_type=f32)   # (bt, 256)
    h1 = jnp.maximum(acc_f + bf1_ref[...], 0.0)               # fc1 bias + ReLU

    # ---- fc2 (output padded to 128 lanes; sliced to 10 outside) -------------
    out = jnp.dot(h1.astype(bf16), wf2_ref[...],
                  preferred_element_type=f32) + bf2_ref[...]  # (bt, 128)
    o_ref[...] = out


def convnet_forward_impl(x_nchw, prep):
    N = x_nchw.shape[0]
    bt = max(1, min(8, N))                       # images per grid step
    n_pad = ((N + bt - 1) // bt) * bt

    x = x_nchw.reshape(N, 28, 28)                # squeeze the single channel
    if n_pad != N:
        x = jnp.pad(x, ((0, n_pad - N), (0, 0), (0, 0)))

    out = pl.pallas_call(
        _convnet_kernel,
        out_shape=jax.ShapeDtypeStruct((n_pad, 128), jnp.float32),
        grid_spec=pltpu.PrefetchScalarGridSpec(
            num_scalar_prefetch=0,
            grid=(n_pad // bt,),
            in_specs=[
                pl.BlockSpec((bt, 28, 28), lambda i: (i, 0, 0)),       # images
                pl.BlockSpec((5, 28, 384), lambda i: (0, 0, 0)),       # conv1 bands
                pl.BlockSpec((1, 384), lambda i: (0, 0)),              # conv1 bias
                pl.BlockSpec((5, 368, 512), lambda i: (0, 0, 0)),      # conv2 bands
                pl.BlockSpec((1, 448), lambda i: (0, 0)),              # conv2 bias
                pl.BlockSpec((4, 448, 256), lambda i: (0, 0, 0)),      # fc1 blocks
                pl.BlockSpec((1, 256), lambda i: (0, 0)),              # fc1 bias
                pl.BlockSpec((256, 128), lambda i: (0, 0)),            # fc2 (padded)
                pl.BlockSpec((1, 128), lambda i: (0, 0)),              # fc2 bias
            ],
            out_specs=pl.BlockSpec((bt, 128), lambda i: (i, 0)),       # lane-dense
            scratch_shapes=[pltpu.VMEM((bt, 12, 368), jnp.bfloat16)],  # pooled map
        ),
        compiler_params=pltpu.CompilerParams(
            dimension_semantics=("parallel",),          # batch tiles across TCs
            vmem_limit_bytes=32 * 1024 * 1024,          # ~7 MiB used; headroom
        ),
    )(x, prep["A1"], prep["b1p"], prep["A2"], prep["b2t"],
      prep["Wf1"], prep["bfc1"], prep["wfc2p"], prep["bfc2p"])
    return out[:N, :10]


convnet_forward = jax.jit(convnet_forward_impl)


# ---------------------------------------------------------------------------
# Pure-JAX f32 reference (matches the PyTorch ConvNet.forward semantics)
# ---------------------------------------------------------------------------
def convnet_ref(x_nchw, p):
    def conv(x, w, b):
        w_hwio = jnp.transpose(w, (2, 3, 1, 0))
        y = jax.lax.conv_general_dilated(
            x, w_hwio, (1, 1), "VALID",
            dimension_numbers=("NHWC", "HWIO", "NHWC"))
        return jax.nn.relu(y + b)

    def pool(x):
        N, H, W, C = x.shape
        return x.reshape(N, H // 2, 2, W // 2, 2, C).max(axis=(2, 4))

    x = jnp.transpose(x_nchw, (0, 2, 3, 1))
    h = pool(conv(x, p["w1"], p["b1"]))
    h = pool(conv(h, p["w2"], p["b2"]))
    h = jnp.transpose(h, (0, 3, 1, 2)).reshape(h.shape[0], -1)   # NCHW flatten
    h = jax.nn.relu(h @ p["wfc1"].T + p["bfc1"])
    return h @ p["wfc2"].T + p["bfc2"]


def init_params(key):
    ks = jax.random.split(key, 8)
    s = 0.05
    return {
        # nn.Conv2d weight layout: (out_channels, in_channels, kh, kw)
        "w1": jax.random.normal(ks[0], (16, 1, 5, 5), jnp.float32) * s,
        "b1": jax.random.normal(ks[1], (16,), jnp.float32) * s,
        "w2": jax.random.normal(ks[2], (64, 16, 5, 5), jnp.float32) * s,
        "b2": jax.random.normal(ks[3], (64,), jnp.float32) * s,
        # nn.Linear weight layout: (out_features, in_features)
        "wfc1": jax.random.normal(ks[4], (256, 4 * 4 * 64), jnp.float32) * s,
        "bfc1": jax.random.normal(ks[5], (256,), jnp.float32) * s,
        "wfc2": jax.random.normal(ks[6], (10, 256), jnp.float32) * s,
        "bfc2": jax.random.normal(ks[7], (10,), jnp.float32) * s,
    }


if __name__ == "__main__":
    key = jax.random.PRNGKey(0)
    kx, kp = jax.random.split(key)
    # Spatial size must be 28x28 so the flatten matches 4*4*64 (LeNet / MNIST).
    x = jax.random.normal(kx, (2, 1, 28, 28), jnp.float32)
    params = init_params(kp)
    prep = prepack_params(params)        # one-time weight repacking

    out = jax.block_until_ready(convnet_forward(x, prep))
    assert out.shape == (2, 10), out.shape

    ref = jax.block_until_ready(convnet_ref(x, params))
    # bf16 MXU inputs with f32 accumulation -> compare at bf16-level tolerance.
    max_err = float(jnp.max(jnp.abs(out - ref)))
    assert jnp.allclose(out, ref, atol=2e-2, rtol=2e-2), max_err

    print("KERNEL_OK")
</pallas_src>

<mosaic_0001>
module attributes {stable_mosaic.version = 11 : i64} {
  func.func @_convnet_kernel(%arg0: i32, %arg1: memref<2x28x28xf32, #tpu.memory_space<vmem>>, %arg2: memref<5x28x384xbf16, #tpu.memory_space<vmem>>, %arg3: memref<1x384xf32, #tpu.memory_space<vmem>>, %arg4: memref<5x368x512xbf16, #tpu.memory_space<vmem>>, %arg5: memref<1x448xf32, #tpu.memory_space<vmem>>, %arg6: memref<4x448x256xbf16, #tpu.memory_space<vmem>>, %arg7: memref<1x256xf32, #tpu.memory_space<vmem>>, %arg8: memref<256x128xbf16, #tpu.memory_space<vmem>>, %arg9: memref<1x128xf32, #tpu.memory_space<vmem>>, %arg10: memref<2x128xf32, #tpu.memory_space<vmem>>, %arg11: memref<2x12x368xbf16, #tpu.memory_space<vmem>>) attributes {dimension_semantics = [#tpu.dimension_semantics<parallel>], iteration_bounds = array<i64: 1>, scalar_prefetch = 0 : i64, scratch_operands = 1 : i64, tpu.core_type = #tpu.core_type<tc>, window_params = [{transform_indices = @transform_0, window_bounds = array<i64: 2, 28, 28>}, {pipeline_mode = #tpu.pipeline_mode<synchronous>, transform_indices = @transform_1, window_bounds = array<i64: 5, 28, 384>}, {pipeline_mode = #tpu.pipeline_mode<synchronous>, transform_indices = @transform_2, window_bounds = array<i64: 1, 384>}, {pipeline_mode = #tpu.pipeline_mode<synchronous>, transform_indices = @transform_3, window_bounds = array<i64: 5, 368, 512>}, {pipeline_mode = #tpu.pipeline_mode<synchronous>, transform_indices = @transform_4, window_bounds = array<i64: 1, 448>}, {pipeline_mode = #tpu.pipeline_mode<synchronous>, transform_indices = @transform_5, window_bounds = array<i64: 4, 448, 256>}, {pipeline_mode = #tpu.pipeline_mode<synchronous>, transform_indices = @transform_6, window_bounds = array<i64: 1, 256>}, {pipeline_mode = #tpu.pipeline_mode<synchronous>, transform_indices = @transform_7, window_bounds = array<i64: 256, 128>}, {pipeline_mode = #tpu.pipeline_mode<synchronous>, transform_indices = @transform_8, window_bounds = array<i64: 1, 128>}, {transform_indices = @transform_9, window_bounds = array<i64: 2, 128>}]} {
    %c0 = arith.constant 0 : index
    %c0_0 = arith.constant 0 : index
    %c0_1 = arith.constant 0 : index
    %0 = vector.load %arg1[%c0, %c0_0, %c0_1] : memref<2x28x28xf32, #tpu.memory_space<vmem>>, vector<2x28x28xf32>
    %1 = arith.truncf %0 : vector<2x28x28xf32> to vector<2x28x28xbf16>
    %2 = vector.extract_strided_slice %1 {offsets = [0, 0, 0], sizes = [2, 24, 28], strides = [1, 1, 1]} : vector<2x28x28xbf16> to vector<2x24x28xbf16>
    %3 = vector.shape_cast %2 : vector<2x24x28xbf16> to vector<48x28xbf16>
    %c0_2 = arith.constant 0 : index
    %c0_3 = arith.constant 0 : index
    %c0_4 = arith.constant 0 : index
    %4 = vector.load %arg2[%c0_2, %c0_3, %c0_4] : memref<5x28x384xbf16, #tpu.memory_space<vmem>>, vector<1x28x384xbf16>
    %5 = vector.shape_cast %4 : vector<1x28x384xbf16> to vector<28x384xbf16>
    %cst = arith.constant dense<0.000000e+00> : vector<48x384xf32>
    %6 = tpu.matmul %3, %5, %cst {dimension_numbers = #tpu.dot_dimension_numbers<[1], [0], [0], [1], [0, 0, 1, 1], [], []>} : vector<48x28xbf16>, vector<28x384xbf16>, vector<48x384xf32> -> vector<48x384xf32>
    %7 = vector.extract_strided_slice %1 {offsets = [0, 1, 0], sizes = [2, 24, 28], strides = [1, 1, 1]} : vector<2x28x28xbf16> to vector<2x24x28xbf16>
    %8 = vector.shape_cast %7 : vector<2x24x28xbf16> to vector<48x28xbf16>
    %c1 = arith.constant 1 : index
    %c0_5 = arith.constant 0 : index
    %c0_6 = arith.constant 0 : index
    %9 = vector.load %arg2[%c1, %c0_5, %c0_6] : memref<5x28x384xbf16, #tpu.memory_space<vmem>>, vector<1x28x384xbf16>
    %10 = vector.shape_cast %9 : vector<1x28x384xbf16> to vector<28x384xbf16>
    %cst_7 = arith.constant dense<0.000000e+00> : vector<48x384xf32>
    %11 = tpu.matmul %8, %10, %cst_7 {dimension_numbers = #tpu.dot_dimension_numbers<[1], [0], [0], [1], [0, 0, 1, 1], [], []>} : vector<48x28xbf16>, vector<28x384xbf16>, vector<48x384xf32> -> vector<48x384xf32>
    %12 = arith.addf %6, %11 : vector<48x384xf32>
    %13 = vector.extract_strided_slice %1 {offsets = [0, 2, 0], sizes = [2, 24, 28], strides = [1, 1, 1]} : vector<2x28x28xbf16> to vector<2x24x28xbf16>
    %14 = vector.shape_cast %13 : vector<2x24x28xbf16> to vector<48x28xbf16>
    %c2 = arith.constant 2 : index
    %c0_8 = arith.constant 0 : index
    %c0_9 = arith.constant 0 : index
    %15 = vector.load %arg2[%c2, %c0_8, %c0_9] : memref<5x28x384xbf16, #tpu.memory_space<vmem>>, vector<1x28x384xbf16>
    %16 = vector.shape_cast %15 : vector<1x28x384xbf16> to vector<28x384xbf16>
    %cst_10 = arith.constant dense<0.000000e+00> : vector<48x384xf32>
    %17 = tpu.matmul %14, %16, %cst_10 {dimension_numbers = #tpu.dot_dimension_numbers<[1], [0], [0], [1], [0, 0, 1, 1], [], []>} : vector<48x28xbf16>, vector<28x384xbf16>, vector<48x384xf32> -> vector<48x384xf32>
    %18 = arith.addf %12, %17 : vector<48x384xf32>
    %19 = vector.extract_strided_slice %1 {offsets = [0, 3, 0], sizes = [2, 24, 28], strides = [1, 1, 1]} : vector<2x28x28xbf16> to vector<2x24x28xbf16>
    %20 = vector.shape_cast %19 : vector<2x24x28xbf16> to vector<48x28xbf16>
    %c3 = arith.constant 3 : index
    %c0_11 = arith.constant 0 : index
    %c0_12 = arith.constant 0 : index
    %21 = vector.load %arg2[%c3, %c0_11, %c0_12] : memref<5x28x384xbf16, #tpu.memory_space<vmem>>, vector<1x28x384xbf16>
    %22 = vector.shape_cast %21 : vector<1x28x384xbf16> to vector<28x384xbf16>
    %cst_13 = arith.constant dense<0.000000e+00> : vector<48x384xf32>
    %23 = tpu.matmul %20, %22, %cst_13 {dimension_numbers = #tpu.dot_dimension_numbers<[1], [0], [0], [1], [0, 0, 1, 1], [], []>} : vector<48x28xbf16>, vector<28x384xbf16>, vector<48x384xf32> -> vector<48x384xf32>
    %24 = arith.addf %18, %23 : vector<48x384xf32>
    %25 = vector.extract_strided_slice %1 {offsets = [0, 4, 0], sizes = [2, 24, 28], strides = [1, 1, 1]} : vector<2x28x28xbf16> to vector<2x24x28xbf16>
    %26 = vector.shape_cast %25 : vector<2x24x28xbf16> to vector<48x28xbf16>
    %c4 = arith.constant 4 : index
    %c0_14 = arith.constant 0 : index
    %c0_15 = arith.constant 0 : index
    %27 = vector.load %arg2[%c4, %c0_14, %c0_15] : memref<5x28x384xbf16, #tpu.memory_space<vmem>>, vector<1x28x384xbf16>
    %28 = vector.shape_cast %27 : vector<1x28x384xbf16> to vector<28x384xbf16>
    %cst_16 = arith.constant dense<0.000000e+00> : vector<48x384xf32>
    %29 = tpu.matmul %26, %28, %cst_16 {dimension_numbers = #tpu.dot_dimension_numbers<[1], [0], [0], [1], [0, 0, 1, 1], [], []>} : vector<48x28xbf16>, vector<28x384xbf16>, vector<48x384xf32> -> vector<48x384xf32>
    %30 = arith.addf %24, %29 : vector<48x384xf32>
    %c0_17 = arith.constant 0 : index
    %c0_18 = arith.constant 0 : index
    %31 = vector.load %arg3[%c0_17, %c0_18] : memref<1x384xf32, #tpu.memory_space<vmem>>, vector<1x384xf32>
    %32 = vector.broadcast %31 : vector<1x384xf32> to vector<48x384xf32>
    %33 = arith.addf %30, %32 : vector<48x384xf32>
    %cst_19 = arith.constant 0.000000e+00 : f32
    %34 = vector.broadcast %cst_19 : f32 to vector<48x384xf32>
    %35 = arith.maximumf %33, %34 : vector<48x384xf32>
    %36 = vector.extract_strided_slice %35 {offsets = [0, 0], sizes = [48, 368], strides = [1, 1]} : vector<48x384xf32> to vector<48x368xf32>
    %37 = vector.extract_strided_slice %35 {offsets = [0, 16], sizes = [48, 368], strides = [1, 1]} : vector<48x384xf32> to vector<48x368xf32>
    %38 = arith.maximumf %36, %37 : vector<48x368xf32>
    %39 = vector.shape_cast %38 : vector<48x368xf32> to vector<2x24x368xf32>
    %40 = vector.extract_strided_slice %39 {offsets = [0, 0, 0], sizes = [2, 1, 368], strides = [1, 1, 1]} : vector<2x24x368xf32> to vector<2x1x368xf32>
    %41 = vector.extract_strided_slice %39 {offsets = [0, 1, 0], sizes = [2, 1, 368], strides = [1, 1, 1]} : vector<2x24x368xf32> to vector<2x1x368xf32>
    %42 = arith.maximumf %40, %41 : vector<2x1x368xf32>
    %43 = arith.truncf %42 : vector<2x1x368xf32> to vector<2x1x368xbf16>
    %c0_20 = arith.constant 0 : index
    %c0_21 = arith.constant 0 : index
    %c0_22 = arith.constant 0 : index
    %44 = vector.load %arg11[%c0_20, %c0_21, %c0_22] : memref<2x12x368xbf16, #tpu.memory_space<vmem>>, vector<2x1x368xbf16>
    tpu.vector_store %arg11[%c0_20, %c0_21, %c0_22], %43 {strides = array<i32>} : memref<2x12x368xbf16, #tpu.memory_space<vmem>>, vector<2x1x368xbf16>,
    %45 = vector.extract_strided_slice %39 {offsets = [0, 2, 0], sizes = [2, 1, 368], strides = [1, 1, 1]} : vector<2x24x368xf32> to vector<2x1x368xf32>
    %46 = vector.extract_strided_slice %39 {offsets = [0, 3, 0], sizes = [2, 1, 368], strides = [1, 1, 1]} : vector<2x24x368xf32> to vector<2x1x368xf32>
    %47 = arith.maximumf %45, %46 : vector<2x1x368xf32>
    %48 = arith.truncf %47 : vector<2x1x368xf32> to vector<2x1x368xbf16>
    %c0_23 = arith.constant 0 : index
    %c1_24 = arith.constant 1 : index
    %c0_25 = arith.constant 0 : index
    %49 = vector.load %arg11[%c0_23, %c1_24, %c0_25] : memref<2x12x368xbf16, #tpu.memory_space<vmem>>, vector<2x1x368xbf16>
    tpu.vector_store %arg11[%c0_23, %c1_24, %c0_25], %48 {strides = array<i32>} : memref<2x12x368xbf16, #tpu.memory_space<vmem>>, vector<2x1x368xbf16>,
    %50 = vector.extract_strided_slice %39 {offsets = [0, 4, 0], sizes = [2, 1, 368], strides = [1, 1, 1]} : vector<2x24x368xf32> to vector<2x1x368xf32>
    %51 = vector.extract_strided_slice %39 {offsets = [0, 5, 0], sizes = [2, 1, 368], strides = [1, 1, 1]} : vector<2x24x368xf32> to vector<2x1x368xf32>
    %52 = arith.maximumf %50, %51 : vector<2x1x368xf32>
    %53 = arith.truncf %52 : vector<2x1x368xf32> to vector<2x1x368xbf16>
    %c0_26 = arith.constant 0 : index
    %c2_27 = arith.constant 2 : index
    %c0_28 = arith.constant 0 : index
    %54 = vector.load %arg11[%c0_26, %c2_27, %c0_28] : memref<2x12x368xbf16, #tpu.memory_space<vmem>>, vector<2x1x368xbf16>
    tpu.vector_store %arg11[%c0_26, %c2_27, %c0_28], %53 {strides = array<i32>} : memref<2x12x368xbf16, #tpu.memory_space<vmem>>, vector<2x1x368xbf16>,
    %55 = vector.extract_strided_slice %39 {offsets = [0, 6, 0], sizes = [2, 1, 368], strides = [1, 1, 1]} : vector<2x24x368xf32> to vector<2x1x368xf32>
    %56 = vector.extract_strided_slice %39 {offsets = [0, 7, 0], sizes = [2, 1, 368], strides = [1, 1, 1]} : vector<2x24x368xf32> to vector<2x1x368xf32>
    %57 = arith.maximumf %55, %56 : vector<2x1x368xf32>
    %58 = arith.truncf %57 : vector<2x1x368xf32> to vector<2x1x368xbf16>
    %c0_29 = arith.constant 0 : index
    %c3_30 = arith.constant 3 : index
    %c0_31 = arith.constant 0 : index
    %59 = vector.load %arg11[%c0_29, %c3_30, %c0_31] : memref<2x12x368xbf16, #tpu.memory_space<vmem>>, vector<2x1x368xbf16>
    tpu.vector_store %arg11[%c0_29, %c3_30, %c0_31], %58 {strides = array<i32>} : memref<2x12x368xbf16, #tpu.memory_space<vmem>>, vector<2x1x368xbf16>,
    %60 = vector.extract_strided_slice %39 {offsets = [0, 8, 0], sizes = [2, 1, 368], strides = [1, 1, 1]} : vector<2x24x368xf32> to vector<2x1x368xf32>
    %61 = vector.extract_strided_slice %39 {offsets = [0, 9, 0], sizes = [2, 1, 368], strides = [1, 1, 1]} : vector<2x24x368xf32> to vector<2x1x368xf32>
    %62 = arith.maximumf %60, %61 : vector<2x1x368xf32>
    %63 = arith.truncf %62 : vector<2x1x368xf32> to vector<2x1x368xbf16>
    %c0_32 = arith.constant 0 : index
    %c4_33 = arith.constant 4 : index
    %c0_34 = arith.constant 0 : index
    %64 = vector.load %arg11[%c0_32, %c4_33, %c0_34] : memref<2x12x368xbf16, #tpu.memory_space<vmem>>, vector<2x1x368xbf16>
    tpu.vector_store %arg11[%c0_32, %c4_33, %c0_34], %63 {strides = array<i32>} : memref<2x12x368xbf16, #tpu.memory_space<vmem>>, vector<2x1x368xbf16>,
    %65 = vector.extract_strided_slice %39 {offsets = [0, 10, 0], sizes = [2, 1, 368], strides = [1, 1, 1]} : vector<2x24x368xf32> to vector<2x1x368xf32>
    %66 = vector.extract_strided_slice %39 {offsets = [0, 11, 0], sizes = [2, 1, 368], strides = [1, 1, 1]} : vector<2x24x368xf32> to vector<2x1x368xf32>
    %67 = arith.maximumf %65, %66 : vector<2x1x368xf32>
    %68 = arith.truncf %67 : vector<2x1x368xf32> to vector<2x1x368xbf16>
    %c0_35 = arith.constant 0 : index
    %c5 = arith.constant 5 : index
    %c0_36 = arith.constant 0 : index
    %69 = vector.load %arg11[%c0_35, %c5, %c0_36] : memref<2x12x368xbf16, #tpu.memory_space<vmem>>, vector<2x1x368xbf16>
    tpu.vector_store %arg11[%c0_35, %c5, %c0_36], %68 {strides = array<i32>} : memref<2x12x368xbf16, #tpu.memory_space<vmem>>, vector<2x1x368xbf16>,
    %70 = vector.extract_strided_slice %39 {offsets = [0, 12, 0], sizes = [2, 1, 368], strides = [1, 1, 1]} : vector<2x24x368xf32> to vector<2x1x368xf32>
    %71 = vector.extract_strided_slice %39 {offsets = [0, 13, 0], sizes = [2, 1, 368], strides = [1, 1, 1]} : vector<2x24x368xf32> to vector<2x1x368xf32>
    %72 = arith.maximumf %70, %71 : vector<2x1x368xf32>
    %73 = arith.truncf %72 : vector<2x1x368xf32> to vector<2x1x368xbf16>
    %c0_37 = arith.constant 0 : index
    %c6 = arith.constant 6 : index
    %c0_38 = arith.constant 0 : index
    %74 = vector.load %arg11[%c0_37, %c6, %c0_38] : memref<2x12x368xbf16, #tpu.memory_space<vmem>>, vector<2x1x368xbf16>
    tpu.vector_store %arg11[%c0_37, %c6, %c0_38], %73 {strides = array<i32>} : memref<2x12x368xbf16, #tpu.memory_space<vmem>>, vector<2x1x368xbf16>,
    %75 = vector.extract_strided_slice %39 {offsets = [0, 14, 0], sizes = [2, 1, 368], strides = [1, 1, 1]} : vector<2x24x368xf32> to vector<2x1x368xf32>
    %76 = vector.extract_strided_slice %39 {offsets = [0, 15, 0], sizes = [2, 1, 368], strides = [1, 1, 1]} : vector<2x24x368xf32> to vector<2x1x368xf32>
    %77 = arith.maximumf %75, %76 : vector<2x1x368xf32>
    %78 = arith.truncf %77 : vector<2x1x368xf32> to vector<2x1x368xbf16>
    %c0_39 = arith.constant 0 : index
    %c7 = arith.constant 7 : index
    %c0_40 = arith.constant 0 : index
    %79 = vector.load %arg11[%c0_39, %c7, %c0_40] : memref<2x12x368xbf16, #tpu.memory_space<vmem>>, vector<2x1x368xbf16>
    tpu.vector_store %arg11[%c0_39, %c7, %c0_40], %78 {strides = array<i32>} : memref<2x12x368xbf16, #tpu.memory_space<vmem>>, vector<2x1x368xbf16>,
    %80 = vector.extract_strided_slice %39 {offsets = [0, 16, 0], sizes = [2, 1, 368], strides = [1, 1, 1]} : vector<2x24x368xf32> to vector<2x1x368xf32>
    %81 = vector.extract_strided_slice %39 {offsets = [0, 17, 0], sizes = [2, 1, 368], strides = [1, 1, 1]} : vector<2x24x368xf32> to vector<2x1x368xf32>
    %82 = arith.maximumf %80, %81 : vector<2x1x368xf32>
    %83 = arith.truncf %82 : vector<2x1x368xf32> to vector<2x1x368xbf16>
    %c0_41 = arith.constant 0 : index
    %c8 = arith.constant 8 : index
    %c0_42 = arith.constant 0 : index
    %84 = vector.load %arg11[%c0_41, %c8, %c0_42] : memref<2x12x368xbf16, #tpu.memory_space<vmem>>, vector<2x1x368xbf16>
    tpu.vector_store %arg11[%c0_41, %c8, %c0_42], %83 {strides = array<i32>} : memref<2x12x368xbf16, #tpu.memory_space<vmem>>, vector<2x1x368xbf16>,
    %85 = vector.extract_strided_slice %39 {offsets = [0, 18, 0], sizes = [2, 1, 368], strides = [1, 1, 1]} : vector<2x24x368xf32> to vector<2x1x368xf32>
    %86 = vector.extract_strided_slice %39 {offsets = [0, 19, 0], sizes = [2, 1, 368], strides = [1, 1, 1]} : vector<2x24x368xf32> to vector<2x1x368xf32>
    %87 = arith.maximumf %85, %86 : vector<2x1x368xf32>
    %88 = arith.truncf %87 : vector<2x1x368xf32> to vector<2x1x368xbf16>
    %c0_43 = arith.constant 0 : index
    %c9 = arith.constant 9 : index
    %c0_44 = arith.constant 0 : index
    %89 = vector.load %arg11[%c0_43, %c9, %c0_44] : memref<2x12x368xbf16, #tpu.memory_space<vmem>>, vector<2x1x368xbf16>
    tpu.vector_store %arg11[%c0_43, %c9, %c0_44], %88 {strides = array<i32>} : memref<2x12x368xbf16, #tpu.memory_space<vmem>>, vector<2x1x368xbf16>,
    %90 = vector.extract_strided_slice %39 {offsets = [0, 20, 0], sizes = [2, 1, 368], strides = [1, 1, 1]} : vector<2x24x368xf32> to vector<2x1x368xf32>
    %91 = vector.extract_strided_slice %39 {offsets = [0, 21, 0], sizes = [2, 1, 368], strides = [1, 1, 1]} : vector<2x24x368xf32> to vector<2x1x368xf32>
    %92 = arith.maximumf %90, %91 : vector<2x1x368xf32>
    %93 = arith.truncf %92 : vector<2x1x368xf32> to vector<2x1x368xbf16>
    %c0_45 = arith.constant 0 : index
    %c10 = arith.constant 10 : index
    %c0_46 = arith.constant 0 : index
    %94 = vector.load %arg11[%c0_45, %c10, %c0_46] : memref<2x12x368xbf16, #tpu.memory_space<vmem>>, vector<2x1x368xbf16>
    tpu.vector_store %arg11[%c0_45, %c10, %c0_46], %93 {strides = array<i32>} : memref<2x12x368xbf16, #tpu.memory_space<vmem>>, vector<2x1x368xbf16>,
    %95 = vector.extract_strided_slice %39 {offsets = [0, 22, 0], sizes = [2, 1, 368], strides = [1, 1, 1]} : vector<2x24x368xf32> to vector<2x1x368xf32>
    %96 = vector.extract_strided_slice %39 {offsets = [0, 23, 0], sizes = [2, 1, 368], strides = [1, 1, 1]} : vector<2x24x368xf32> to vector<2x1x368xf32>
    %97 = arith.maximumf %95, %96 : vector<2x1x368xf32>
    %98 = arith.truncf %97 : vector<2x1x368xf32> to vector<2x1x368xbf16>
    %c0_47 = arith.constant 0 : index
    %c11 = arith.constant 11 : index
    %c0_48 = arith.constant 0 : index
    %99 = vector.load %arg11[%c0_47, %c11, %c0_48] : memref<2x12x368xbf16, #tpu.memory_space<vmem>>, vector<2x1x368xbf16>
    tpu.vector_store %arg11[%c0_47, %c11, %c0_48], %98 {strides = array<i32>} : memref<2x12x368xbf16, #tpu.memory_space<vmem>>, vector<2x1x368xbf16>,
    %c0_49 = arith.constant 0 : index
    %c0_50 = arith.constant 0 : index
    %c0_51 = arith.constant 0 : index
    %100 = vector.load %arg11[%c0_49, %c0_50, %c0_51] : memref<2x12x368xbf16, #tpu.memory_space<vmem>>, vector<2x8x368xbf16>
    %101 = vector.shape_cast %100 : vector<2x8x368xbf16> to vector<16x368xbf16>
    %c0_52 = arith.constant 0 : index
    %c0_53 = arith.constant 0 : index
    %c0_54 = arith.constant 0 : index
    %102 = vector.load %arg4[%c0_52, %c0_53, %c0_54] : memref<5x368x512xbf16, #tpu.memory_space<vmem>>, vector<1x368x512xbf16>
    %103 = vector.shape_cast %102 : vector<1x368x512xbf16> to vector<368x512xbf16>
    %cst_55 = arith.constant dense<0.000000e+00> : vector<16x512xf32>
    %104 = tpu.matmul %101, %103, %cst_55 {dimension_numbers = #tpu.dot_dimension_numbers<[1], [0], [0], [1], [0, 0, 1, 1], [], []>} : vector<16x368xbf16>, vector<368x512xbf16>, vector<16x512xf32> -> vector<16x512xf32>
    %c0_56 = arith.constant 0 : index
    %c1_57 = arith.constant 1 : index
    %c0_58 = arith.constant 0 : index
    %105 = vector.load %arg11[%c0_56, %c1_57, %c0_58] : memref<2x12x368xbf16, #tpu.memory_space<vmem>>, vector<2x8x368xbf16>
    %106 = vector.shape_cast %105 : vector<2x8x368xbf16> to vector<16x368xbf16>
    %c1_59 = arith.constant 1 : index
    %c0_60 = arith.constant 0 : index
    %c0_61 = arith.constant 0 : index
    %107 = vector.load %arg4[%c1_59, %c0_60, %c0_61] : memref<5x368x512xbf16, #tpu.memory_space<vmem>>, vector<1x368x512xbf16>
    %108 = vector.shape_cast %107 : vector<1x368x512xbf16> to vector<368x512xbf16>
    %cst_62 = arith.constant dense<0.000000e+00> : vector<16x512xf32>
    %109 = tpu.matmul %106, %108, %cst_62 {dimension_numbers = #tpu.dot_dimension_numbers<[1], [0], [0], [1], [0, 0, 1, 1], [], []>} : vector<16x368xbf16>, vector<368x512xbf16>, vector<16x512xf32> -> vector<16x512xf32>
    %110 = arith.addf %104, %109 : vector<16x512xf32>
    %c0_63 = arith.constant 0 : index
    %c2_64 = arith.constant 2 : index
    %c0_65 = arith.constant 0 : index
    %111 = vector.load %arg11[%c0_63, %c2_64, %c0_65] : memref<2x12x368xbf16, #tpu.memory_space<vmem>>, vector<2x8x368xbf16>
    %112 = vector.shape_cast %111 : vector<2x8x368xbf16> to vector<16x368xbf16>
    %c2_66 = arith.constant 2 : index
    %c0_67 = arith.constant 0 : index
    %c0_68 = arith.constant 0 : index
    %113 = vector.load %arg4[%c2_66, %c0_67, %c0_68] : memref<5x368x512xbf16, #tpu.memory_space<vmem>>, vector<1x368x512xbf16>
    %114 = vector.shape_cast %113 : vector<1x368x512xbf16> to vector<368x512xbf16>
    %cst_69 = arith.constant dense<0.000000e+00> : vector<16x512xf32>
    %115 = tpu.matmul %112, %114, %cst_69 {dimension_numbers = #tpu.dot_dimension_numbers<[1], [0], [0], [1], [0, 0, 1, 1], [], []>} : vector<16x368xbf16>, vector<368x512xbf16>, vector<16x512xf32> -> vector<16x512xf32>
    %116 = arith.addf %110, %115 : vector<16x512xf32>
    %c0_70 = arith.constant 0 : index
    %c3_71 = arith.constant 3 : index
    %c0_72 = arith.constant 0 : index
    %117 = vector.load %arg11[%c0_70, %c3_71, %c0_72] : memref<2x12x368xbf16, #tpu.memory_space<vmem>>, vector<2x8x368xbf16>
    %118 = vector.shape_cast %117 : vector<2x8x368xbf16> to vector<16x368xbf16>
    %c3_73 = arith.constant 3 : index
    %c0_74 = arith.constant 0 : index
    %c0_75 = arith.constant 0 : index
    %119 = vector.load %arg4[%c3_73, %c0_74, %c0_75] : memref<5x368x512xbf16, #tpu.memory_space<vmem>>, vector<1x368x512xbf16>
    %120 = vector.shape_cast %119 : vector<1x368x512xbf16> to vector<368x512xbf16>
    %cst_76 = arith.constant dense<0.000000e+00> : vector<16x512xf32>
    %121 = tpu.matmul %118, %120, %cst_76 {dimension_numbers = #tpu.dot_dimension_numbers<[1], [0], [0], [1], [0, 0, 1, 1], [], []>} : vector<16x368xbf16>, vector<368x512xbf16>, vector<16x512xf32> -> vector<16x512xf32>
    %122 = arith.addf %116, %121 : vector<16x512xf32>
    %c0_77 = arith.constant 0 : index
    %c4_78 = arith.constant 4 : index
    %c0_79 = arith.constant 0 : index
    %123 = vector.load %arg11[%c0_77, %c4_78, %c0_79] : memref<2x12x368xbf16, #tpu.memory_space<vmem>>, vector<2x8x368xbf16>
    %124 = vector.shape_cast %123 : vector<2x8x368xbf16> to vector<16x368xbf16>
    %c4_80 = arith.constant 4 : index
    %c0_81 = arith.constant 0 : index
    %c0_82 = arith.constant 0 : index
    %125 = vector.load %arg4[%c4_80, %c0_81, %c0_82] : memref<5x368x512xbf16, #tpu.memory_space<vmem>>, vector<1x368x512xbf16>
    %126 = vector.shape_cast %125 : vector<1x368x512xbf16> to vector<368x512xbf16>
    %cst_83 = arith.constant dense<0.000000e+00> : vector<16x512xf32>
    %127 = tpu.matmul %124, %126, %cst_83 {dimension_numbers = #tpu.dot_dimension_numbers<[1], [0], [0], [1], [0, 0, 1, 1], [], []>} : vector<16x368xbf16>, vector<368x512xbf16>, vector<16x512xf32> -> vector<16x512xf32>
    %128 = arith.addf %122, %127 : vector<16x512xf32>
    %129 = vector.extract_strided_slice %128 {offsets = [0, 0], sizes = [16, 448], strides = [1, 1]} : vector<16x512xf32> to vector<16x448xf32>
    %130 = vector.extract_strided_slice %128 {offsets = [0, 64], sizes = [16, 448], strides = [1, 1]} : vector<16x512xf32> to vector<16x448xf32>
    %131 = arith.maximumf %129, %130 : vector<16x448xf32>
    %132 = vector.shape_cast %131 : vector<16x448xf32> to vector<2x8x448xf32>
    %cst_84 = arith.constant 0.000000e+00 : f32
    %133 = vector.broadcast %cst_84 : f32 to vector<2x256xf32>
    %134 = vector.extract_strided_slice %132 {offsets = [0, 0, 0], sizes = [2, 1, 448], strides = [1, 1, 1]} : vector<2x8x448xf32> to vector<2x1x448xf32>
    %135 = vector.shape_cast %134 : vector<2x1x448xf32> to vector<2x448xf32>
    %136 = vector.extract_strided_slice %132 {offsets = [0, 1, 0], sizes = [2, 1, 448], strides = [1, 1, 1]} : vector<2x8x448xf32> to vector<2x1x448xf32>
    %137 = vector.shape_cast %136 : vector<2x1x448xf32> to vector<2x448xf32>
    %138 = arith.maximumf %135, %137 : vector<2x448xf32>
    %c0_85 = arith.constant 0 : index
    %c0_86 = arith.constant 0 : index
    %139 = vector.load %arg5[%c0_85, %c0_86] : memref<1x448xf32, #tpu.memory_space<vmem>>, vector<1x448xf32>
    %140 = vector.broadcast %139 : vector<1x448xf32> to vector<2x448xf32>
    %141 = arith.addf %138, %140 : vector<2x448xf32>
    %cst_87 = arith.constant 0.000000e+00 : f32
    %142 = vector.broadcast %cst_87 : f32 to vector<2x448xf32>
    %143 = arith.maximumf %141, %142 : vector<2x448xf32>
    %144 = arith.truncf %143 : vector<2x448xf32> to vector<2x448xbf16>
    %c0_88 = arith.constant 0 : index
    %c0_89 = arith.constant 0 : index
    %c0_90 = arith.constant 0 : index
    %145 = vector.load %arg6[%c0_88, %c0_89, %c0_90] : memref<4x448x256xbf16, #tpu.memory_space<vmem>>, vector<1x448x256xbf16>
    %146 = vector.shape_cast %145 : vector<1x448x256xbf16> to vector<448x256xbf16>
    %cst_91 = arith.constant dense<0.000000e+00> : vector<2x256xf32>
    %147 = tpu.matmul %144, %146, %cst_91 {dimension_numbers = #tpu.dot_dimension_numbers<[1], [0], [0], [1], [0, 0, 1, 1], [], []>} : vector<2x448xbf16>, vector<448x256xbf16>, vector<2x256xf32> -> vector<2x256xf32>
    %148 = arith.addf %133, %147 : vector<2x256xf32>
    %149 = vector.extract_strided_slice %132 {offsets = [0, 2, 0], sizes = [2, 1, 448], strides = [1, 1, 1]} : vector<2x8x448xf32> to vector<2x1x448xf32>
    %150 = vector.shape_cast %149 : vector<2x1x448xf32> to vector<2x448xf32>
    %151 = vector.extract_strided_slice %132 {offsets = [0, 3, 0], sizes = [2, 1, 448], strides = [1, 1, 1]} : vector<2x8x448xf32> to vector<2x1x448xf32>
    %152 = vector.shape_cast %151 : vector<2x1x448xf32> to vector<2x448xf32>
    %153 = arith.maximumf %150, %152 : vector<2x448xf32>
    %c0_92 = arith.constant 0 : index
    %c0_93 = arith.constant 0 : index
    %154 = vector.load %arg5[%c0_92, %c0_93] : memref<1x448xf32, #tpu.memory_space<vmem>>, vector<1x448xf32>
    %155 = vector.broadcast %154 : vector<1x448xf32> to vector<2x448xf32>
    %156 = arith.addf %153, %155 : vector<2x448xf32>
    %cst_94 = arith.constant 0.000000e+00 : f32
    %157 = vector.broadcast %cst_94 : f32 to vector<2x448xf32>
    %158 = arith.maximumf %156, %157 : vector<2x448xf32>
    %159 = arith.truncf %158 : vector<2x448xf32> to vector<2x448xbf16>
    %c1_95 = arith.constant 1 : index
    %c0_96 = arith.constant 0 : index
    %c0_97 = arith.constant 0 : index
    %160 = vector.load %arg6[%c1_95, %c0_96, %c0_97] : memref<4x448x256xbf16, #tpu.memory_space<vmem>>, vector<1x448x256xbf16>
    %161 = vector.shape_cast %160 : vector<1x448x256xbf16> to vector<448x256xbf16>
    %cst_98 = arith.constant dense<0.000000e+00> : vector<2x256xf32>
    %162 = tpu.matmul %159, %161, %cst_98 {dimension_numbers = #tpu.dot_dimension_numbers<[1], [0], [0], [1], [0, 0, 1, 1], [], []>} : vector<2x448xbf16>, vector<448x256xbf16>, vector<2x256xf32> -> vector<2x256xf32>
    %163 = arith.addf %148, %162 : vector<2x256xf32>
    %164 = vector.extract_strided_slice %132 {offsets = [0, 4, 0], sizes = [2, 1, 448], strides = [1, 1, 1]} : vector<2x8x448xf32> to vector<2x1x448xf32>
    %165 = vector.shape_cast %164 : vector<2x1x448xf32> to vector<2x448xf32>
    %166 = vector.extract_strided_slice %132 {offsets = [0, 5, 0], sizes = [2, 1, 448], strides = [1, 1, 1]} : vector<2x8x448xf32> to vector<2x1x448xf32>
    %167 = vector.shape_cast %166 : vector<2x1x448xf32> to vector<2x448xf32>
    %168 = arith.maximumf %165, %167 : vector<2x448xf32>
    %c0_99 = arith.constant 0 : index
    %c0_100 = arith.constant 0 : index
    %169 = vector.load %arg5[%c0_99, %c0_100] : memref<1x448xf32, #tpu.memory_space<vmem>>, vector<1x448xf32>
    %170 = vector.broadcast %169 : vector<1x448xf32> to vector<2x448xf32>
    %171 = arith.addf %168, %170 : vector<2x448xf32>
    %cst_101 = arith.constant 0.000000e+00 : f32
    %172 = vector.broadcast %cst_101 : f32 to vector<2x448xf32>
    %173 = arith.maximumf %171, %172 : vector<2x448xf32>
    %174 = arith.truncf %173 : vector<2x448xf32> to vector<2x448xbf16>
    %c2_102 = arith.constant 2 : index
    %c0_103 = arith.constant 0 : index
    %c0_104 = arith.constant 0 : index
    %175 = vector.load %arg6[%c2_102, %c0_103, %c0_104] : memref<4x448x256xbf16, #tpu.memory_space<vmem>>, vector<1x448x256xbf16>
    %176 = vector.shape_cast %175 : vector<1x448x256xbf16> to vector<448x256xbf16>
    %cst_105 = arith.constant dense<0.000000e+00> : vector<2x256xf32>
    %177 = tpu.matmul %174, %176, %cst_105 {dimension_numbers = #tpu.dot_dimension_numbers<[1], [0], [0], [1], [0, 0, 1, 1], [], []>} : vector<2x448xbf16>, vector<448x256xbf16>, vector<2x256xf32> -> vector<2x256xf32>
    %178 = arith.addf %163, %177 : vector<2x256xf32>
    %179 = vector.extract_strided_slice %132 {offsets = [0, 6, 0], sizes = [2, 1, 448], strides = [1, 1, 1]} : vector<2x8x448xf32> to vector<2x1x448xf32>
    %180 = vector.shape_cast %179 : vector<2x1x448xf32> to vector<2x448xf32>
    %181 = vector.extract_strided_slice %132 {offsets = [0, 7, 0], sizes = [2, 1, 448], strides = [1, 1, 1]} : vector<2x8x448xf32> to vector<2x1x448xf32>
    %182 = vector.shape_cast %181 : vector<2x1x448xf32> to vector<2x448xf32>
    %183 = arith.maximumf %180, %182 : vector<2x448xf32>
    %c0_106 = arith.constant 0 : index
    %c0_107 = arith.constant 0 : index
    %184 = vector.load %arg5[%c0_106, %c0_107] : memref<1x448xf32, #tpu.memory_space<vmem>>, vector<1x448xf32>
    %185 = vector.broadcast %184 : vector<1x448xf32> to vector<2x448xf32>
    %186 = arith.addf %183, %185 : vector<2x448xf32>
    %cst_108 = arith.constant 0.000000e+00 : f32
    %187 = vector.broadcast %cst_108 : f32 to vector<2x448xf32>
    %188 = arith.maximumf %186, %187 : vector<2x448xf32>
    %189 = arith.truncf %188 : vector<2x448xf32> to vector<2x448xbf16>
    %c3_109 = arith.constant 3 : index
    %c0_110 = arith.constant 0 : index
    %c0_111 = arith.constant 0 : index
    %190 = vector.load %arg6[%c3_109, %c0_110, %c0_111] : memref<4x448x256xbf16, #tpu.memory_space<vmem>>, vector<1x448x256xbf16>
    %191 = vector.shape_cast %190 : vector<1x448x256xbf16> to vector<448x256xbf16>
    %cst_112 = arith.constant dense<0.000000e+00> : vector<2x256xf32>
    %192 = tpu.matmul %189, %191, %cst_112 {dimension_numbers = #tpu.dot_dimension_numbers<[1], [0], [0], [1], [0, 0, 1, 1], [], []>} : vector<2x448xbf16>, vector<448x256xbf16>, vector<2x256xf32> -> vector<2x256xf32>
    %193 = arith.addf %178, %192 : vector<2x256xf32>
    %c0_113 = arith.constant 0 : index
    %c0_114 = arith.constant 0 : index
    %194 = vector.load %arg7[%c0_113, %c0_114] : memref<1x256xf32, #tpu.memory_space<vmem>>, vector<1x256xf32>
    %195 = vector.broadcast %194 : vector<1x256xf32> to vector<2x256xf32>
    %196 = arith.addf %193, %195 : vector<2x256xf32>
    %cst_115 = arith.constant 0.000000e+00 : f32
    %197 = vector.broadcast %cst_115 : f32 to vector<2x256xf32>
    %198 = arith.maximumf %196, %197 : vector<2x256xf32>
    %199 = arith.truncf %198 : vector<2x256xf32> to vector<2x256xbf16>
    %c0_116 = arith.constant 0 : index
    %c0_117 = arith.constant 0 : index
    %200 = vector.load %arg8[%c0_116, %c0_117] : memref<256x128xbf16, #tpu.memory_space<vmem>>, vector<256x128xbf16>
    %cst_118 = arith.constant dense<0.000000e+00> : vector<2x128xf32>
    %201 = tpu.matmul %199, %200, %cst_118 {dimension_numbers = #tpu.dot_dimension_numbers<[1], [0], [0], [1], [0, 0, 1, 1], [], []>} : vector<2x256xbf16>, vector<256x128xbf16>, vector<2x128xf32> -> vector<2x128xf32>
    %c0_119 = arith.constant 0 : index
    %c0_120 = arith.constant 0 : index
    %202 = vector.load %arg9[%c0_119, %c0_120] : memref<1x128xf32, #tpu.memory_space<vmem>>, vector<1x128xf32>
    %203 = vector.broadcast %202 : vector<1x128xf32> to vector<2x128xf32>
    %204 = arith.addf %201, %203 : vector<2x128xf32>
    %c0_121 = arith.constant 0 : index
    %c0_122 = arith.constant 0 : index
    %205 = vector.load %arg10[%c0_121, %c0_122] : memref<2x128xf32, #tpu.memory_space<vmem>>, vector<2x128xf32>
    tpu.vector_store %arg10[%c0_121, %c0_122], %204 {strides = array<i32>} : memref<2x128xf32, #tpu.memory_space<vmem>>, vector<2x128xf32>,
    return
  }
  func.func @transform_0(%arg0: i32) -> (i32, i32, i32) {
    %c0_i32 = arith.constant 0 : i32
    %c0_i32_0 = arith.constant 0 : i32
    %c0_i32_1 = arith.constant 0 : i32
    return %arg0, %c0_i32, %c0_i32_0 : i32, i32, i32
  }
  func.func @transform_1(%arg0: i32) -> (i32, i32, i32) {
    %c0_i32 = arith.constant 0 : i32
    %c0_i32_0 = arith.constant 0 : i32
    %c0_i32_1 = arith.constant 0 : i32
    %c0_i32_2 = arith.constant 0 : i32
    return %c0_i32, %c0_i32_0, %c0_i32_1 : i32, i32, i32
  }
  func.func @transform_2(%arg0: i32) -> (i32, i32) {
    %c0_i32 = arith.constant 0 : i32
    %c0_i32_0 = arith.constant 0 : i32
    %c0_i32_1 = arith.constant 0 : i32
    return %c0_i32, %c0_i32_0 : i32, i32
  }
  func.func @transform_3(%arg0: i32) -> (i32, i32, i32) {
    %c0_i32 = arith.constant 0 : i32
    %c0_i32_0 = arith.constant 0 : i32
    %c0_i32_1 = arith.constant 0 : i32
    %c0_i32_2 = arith.constant 0 : i32
    return %c0_i32, %c0_i32_0, %c0_i32_1 : i32, i32, i32
  }
  func.func @transform_4(%arg0: i32) -> (i32, i32) {
    %c0_i32 = arith.constant 0 : i32
    %c0_i32_0 = arith.constant 0 : i32
    %c0_i32_1 = arith.constant 0 : i32
    return %c0_i32, %c0_i32_0 : i32, i32
  }
  func.func @transform_5(%arg0: i32) -> (i32, i32, i32) {
    %c0_i32 = arith.constant 0 : i32
    %c0_i32_0 = arith.constant 0 : i32
    %c0_i32_1 = arith.constant 0 : i32
    %c0_i32_2 = arith.constant 0 : i32
    return %c0_i32, %c0_i32_0, %c0_i32_1 : i32, i32, i32
  }
  func.func @transform_6(%arg0: i32) -> (i32, i32) {
    %c0_i32 = arith.constant 0 : i32
    %c0_i32_0 = arith.constant 0 : i32
    %c0_i32_1 = arith.constant 0 : i32
    return %c0_i32, %c0_i32_0 : i32, i32
  }
  func.func @transform_7(%arg0: i32) -> (i32, i32) {
    %c0_i32 = arith.constant 0 : i32
    %c0_i32_0 = arith.constant 0 : i32
    %c0_i32_1 = arith.constant 0 : i32
    return %c0_i32, %c0_i32_0 : i32, i32
  }
  func.func @transform_8(%arg0: i32) -> (i32, i32) {
    %c0_i32 = arith.constant 0 : i32
    %c0_i32_0 = arith.constant 0 : i32
    %c0_i32_1 = arith.constant 0 : i32
    return %c0_i32, %c0_i32_0 : i32, i32
  }
  func.func @transform_9(%arg0: i32) -> (i32, i32) {
    %c0_i32 = arith.constant 0 : i32
    %c0_i32_0 = arith.constant 0 : i32
    return %arg0, %c0_i32 : i32, i32
  }
}

</mosaic_0001>

<llo_original>
// kernel: convnet_forward_impl.1
$region0: #{convnet_forward_impl.1}
  #allocation0 [shape = 'u32[]', space=smem, size = 0x4, offset = 0x4, fixed_abs, tag = 'smem constant byte address 0x4 - core index']
  #allocation1 [shape = 'u32[72,128]{1,0:T(1,128)}', space=vmem, size = 0x9000, scoped, tag = 'internal scratch']
  #allocation2 [shape = 'bf16[2,12,368]{2,1,0:T(8,128)(2,1)}', space=vmem, size = 0x6000, scoped, tag = 'scratch operand']
  %s0 = inlined_call_operand.vmem [shape: f32[2,28,28], index: 0, kind: input, shape index: {}]
  %s1 = inlined_call_operand.hbm [shape: bf16[5,28,384], index: 1, kind: input, shape index: {}]
  %s2 = inlined_call_operand.hbm [shape: f32[1,384], index: 2, kind: input, shape index: {}]
  %s3 = inlined_call_operand.hbm [shape: bf16[5,368,512], index: 3, kind: input, shape index: {}]
  %s4 = inlined_call_operand.hbm [shape: f32[1,448], index: 4, kind: input, shape index: {}]
  %s5 = inlined_call_operand.hbm [shape: bf16[4,448,256], index: 5, kind: input, shape index: {}]
  %s6 = inlined_call_operand.hbm [shape: f32[1,256], index: 6, kind: input, shape index: {}]
  %s7 = inlined_call_operand.hbm [shape: bf16[256,128], index: 7, kind: input, shape index: {}]
  %s8 = inlined_call_operand.hbm [shape: f32[1,128], index: 8, kind: input, shape index: {}]
  %s9 = inlined_call_operand.hbm [shape: f32[2,128], index: 9, kind: output, shape index: {}]
  %s10 = sld [smem:[#allocation0]]
  $region78: #{convnet_forward_impl.1} parent=0
    _
  %s12 = ssub.s32 1, %s10
  %s13 = scalar_select 0, %s12, %s10
  $region1: #{convnet_forward_impl.1} parent=0
    #allocation3 [shape = 'u8[122880]{0}', space=vmem, size = 0x1e000, scoped, tag = 'input window, operand 1, single buffered']
    #allocation4 [shape = 's32[1]{0}', space=sflag, size = 0x4, scoped, tag = 'scoped memory for convnet_forward_impl.1']
    #allocation5 [shape = 's32[1]{0}', space=sflag, size = 0x4, scoped, tag = 'scoped memory for convnet_forward_impl.1']
    #allocation6 [shape = 'u8[1536]{0}', space=vmem, size = 0x800, scoped, tag = 'input window, operand 2, single buffered']
    #allocation7 [shape = 's32[1]{0}', space=sflag, size = 0x4, scoped, tag = 'scoped memory for convnet_forward_impl.1']
    #allocation8 [shape = 'u8[1884160]{0}', space=vmem, size = 0x1cc000, scoped, tag = 'input window, operand 3, single buffered']
    #allocation9 [shape = 'u8[2048]{0}', space=vmem, size = 0x800, scoped, tag = 'input window, operand 4, single buffered']
    #allocation10 [shape = 's32[1]{0}', space=sflag, size = 0x4, scoped, tag = 'scoped memory for convnet_forward_impl.1']
    #allocation11 [shape = 'u8[917504]{0}', space=vmem, size = 0xe0000, scoped, tag = 'input window, operand 5, single buffered']
    #allocation12 [shape = 'u8[1024]{0}', space=vmem, size = 0x400, scoped, tag = 'input window, operand 6, single buffered']
    #allocation13 [shape = 's32[1]{0}', space=sflag, size = 0x4, scoped, tag = 'scoped memory for convnet_forward_impl.1']
    #allocation14 [shape = 'u8[65536]{0}', space=vmem, size = 0x10000, scoped, tag = 'input window, operand 7, single buffered']
    #allocation15 [shape = 'u8[512]{0}', space=vmem, size = 0x400, scoped, tag = 'input window, operand 8, single buffered']
    #allocation16 [shape = 's32[1]{0}', space=sflag, size = 0x4, scoped, tag = 'scoped memory for convnet_forward_impl.1']
    #allocation17 [shape = 'u8[1024]{0}', space=vmem, size = 0x400, scoped, tag = 'output window, operand 0, single buffered']
    %14 = vsyncpa [#allocation4], 0
    %15 = vsyncpa [#allocation7], 0
    %16 = vsyncpa [#allocation10], 0
    %17 = vsyncpa [#allocation13], 0
    %18 = vsyncpa [#allocation16], 0
    %19 = vsyncpa [#allocation5], 0
    // Predicated region
    $region2: #{convnet_forward_impl.1} parent=1 // pred_check
      _
    $region3: #{convnet_forward_impl.1} parent=1 // pred_check_branch
      %21 = sbr.rel (0) target = $region5
    $region4: #{convnet_forward_impl.1} parent=1 // pred_region
      _
    $region5: #{convnet_forward_impl.1} parent=1 // pred_fallthru
      _
    // Predicated region
    $region6: #{convnet_forward_impl.1} parent=1 // pred_check
      _
    $region7: #{convnet_forward_impl.1} parent=1 // pred_check_branch
      %23 = sbr.rel (0) target = $region9
    $region8: #{convnet_forward_impl.1} parent=1 // pred_region
      %25 = vsyncadd [#allocation4], 0
      %s26 = sshll.u32 %s1, 4
      %s27 = int_to_ptr.hbm [resolvable:$true] %s26
      %s28 = sshll.u32 [#allocation3], 4
      %s29 = int_to_ptr.vmem [resolvable:$true] %s28
      %34 = dma.hbm_to_vmem [thread:$0]  %s27, 3840, %s29, [#allocation4], 192, 192, 12
    $region9: #{convnet_forward_impl.1} parent=1 // pred_fallthru
      _
    // Predicated region
    $region10: #{convnet_forward_impl.1} parent=1 // pred_check
      _
    $region11: #{convnet_forward_impl.1} parent=1 // pred_check_branch
      %36 = sbr.rel (0) target = $region13
    $region12: #{convnet_forward_impl.1} parent=1 // pred_region
      %38 = vsyncadd [#allocation7], 0
      %s40 = sshll.u32 %s2, 4
      %s41 = int_to_ptr.hbm [resolvable:$true] %s40
      %s42 = sshll.u32 [#allocation6], 4
      %s43 = int_to_ptr.vmem [resolvable:$true] %s42
      %45 = dma.hbm_to_vmem [thread:$0]  %s41, 48, %s43, [#allocation7]
    $region13: #{convnet_forward_impl.1} parent=1 // pred_fallthru
      _
    // Predicated region
    $region14: #{convnet_forward_impl.1} parent=1 // pred_check
      _
    $region15: #{convnet_forward_impl.1} parent=1 // pred_check_branch
      %47 = sbr.rel (0) target = $region17
    $region16: #{convnet_forward_impl.1} parent=1 // pred_region
      %49 = vsyncadd [#allocation7], 0
      %s50 = sshll.u32 %s3, 4
      %s51 = int_to_ptr.hbm [resolvable:$true] %s50
      %s52 = sshll.u32 [#allocation8], 4
      %s53 = int_to_ptr.vmem [resolvable:$true] %s52
      %58 = dma.hbm_to_vmem [thread:$0]  %s51, 58880, %s53, [#allocation7], 256, 256, 16
    $region17: #{convnet_forward_impl.1} parent=1 // pred_fallthru
      _
    // Predicated region
    $region18: #{convnet_forward_impl.1} parent=1 // pred_check
      _
    $region19: #{convnet_forward_impl.1} parent=1 // pred_check_branch
      %60 = sbr.rel (0) target = $region21
    $region20: #{convnet_forward_impl.1} parent=1 // pred_region
      %62 = vsyncadd [#allocation10], 0
      %s64 = sshll.u32 %s4, 4
      %s65 = int_to_ptr.hbm [resolvable:$true] %s64
      %s66 = sshll.u32 [#allocation9], 4
      %s67 = int_to_ptr.vmem [resolvable:$true] %s66
      %69 = dma.hbm_to_vmem [thread:$0]  %s65, 64, %s67, [#allocation10]
    $region21: #{convnet_forward_impl.1} parent=1 // pred_fallthru
      _
    // Predicated region
    $region22: #{convnet_forward_impl.1} parent=1 // pred_check
      _
    $region23: #{convnet_forward_impl.1} parent=1 // pred_check_branch
      %71 = sbr.rel (0) target = $region25
    $region24: #{convnet_forward_impl.1} parent=1 // pred_region
      %73 = vsyncadd [#allocation10], 0
      %s74 = sshll.u32 %s5, 4
      %s75 = int_to_ptr.hbm [resolvable:$true] %s74
      %s76 = sshll.u32 [#allocation11], 4
      %s77 = int_to_ptr.vmem [resolvable:$true] %s76
      %82 = dma.hbm_to_vmem [thread:$0]  %s75, 28672, %s77, [#allocation10], 128, 128, 8
    $region25: #{convnet_forward_impl.1} parent=1 // pred_fallthru
      _
    // Predicated region
    $region26: #{convnet_forward_impl.1} parent=1 // pred_check
      _
    $region27: #{convnet_forward_impl.1} parent=1 // pred_check_branch
      %84 = sbr.rel (0) target = $region29
    $region28: #{convnet_forward_impl.1} parent=1 // pred_region
      %86 = vsyncadd [#allocation13], 0
      %s88 = sshll.u32 %s6, 4
      %s89 = int_to_ptr.hbm [resolvable:$true] %s88
      %s90 = sshll.u32 [#allocation12], 4
      %s91 = int_to_ptr.vmem [resolvable:$true] %s90
      %93 = dma.hbm_to_vmem [thread:$0]  %s89, 32, %s91, [#allocation13]
    $region29: #{convnet_forward_impl.1} parent=1 // pred_fallthru
      _
    // Predicated region
    $region30: #{convnet_forward_impl.1} parent=1 // pred_check
      _
    $region31: #{convnet_forward_impl.1} parent=1 // pred_check_branch
      %95 = sbr.rel (0) target = $region33
    $region32: #{convnet_forward_impl.1} parent=1 // pred_region
      %97 = vsyncadd [#allocation13], 0
      %s98 = sshll.u32 %s7, 4
      %s99 = int_to_ptr.hbm [resolvable:$true] %s98
      %s100 = sshll.u32 [#allocation14], 4
      %s101 = int_to_ptr.vmem [resolvable:$true] %s100
      %106 = dma.hbm_to_vmem [thread:$0]  %s99, 2048, %s101, [#allocation13], 64, 64, 4
    $region33: #{convnet_forward_impl.1} parent=1 // pred_fallthru
      _
    // Predicated region
    $region34: #{convnet_forward_impl.1} parent=1 // pred_check
      _
    $region35: #{convnet_forward_impl.1} parent=1 // pred_check_branch
      %108 = sbr.rel (0) target = $region37
    $region36: #{convnet_forward_impl.1} parent=1 // pred_region
      %110 = vsyncadd [#allocation16], 0
      %s112 = sshll.u32 %s8, 4
      %s113 = int_to_ptr.hbm [resolvable:$true] %s112
      %s114 = sshll.u32 [#allocation15], 4
      %s115 = int_to_ptr.vmem [resolvable:$true] %s114
      %117 = dma.hbm_to_vmem [thread:$0]  %s113, 16, %s115, [#allocation16]
    $region37: #{convnet_forward_impl.1} parent=1 // pred_fallthru
      _
    // Predicated region
    $region38: #{convnet_forward_impl.1} parent=1 // pred_check
      _
    $region39: #{convnet_forward_impl.1} parent=1 // pred_check_branch
      %119 = sbr.rel (0) target = $region41
    $region40: #{convnet_forward_impl.1} parent=1 // pred_region
      %121 = dma.done [#allocation4], 3840
    $region41: #{convnet_forward_impl.1} parent=1 // pred_fallthru
      _
    // Predicated region
    $region42: #{convnet_forward_impl.1} parent=1 // pred_check
      _
    $region43: #{convnet_forward_impl.1} parent=1 // pred_check_branch
      %123 = sbr.rel (0) target = $region45
    $region44: #{convnet_forward_impl.1} parent=1 // pred_region
      %125 = dma.done [#allocation7], 48
    $region45: #{convnet_forward_impl.1} parent=1 // pred_fallthru
      _
    // Predicated region
    $region46: #{convnet_forward_impl.1} parent=1 // pred_check
      _
    $region47: #{convnet_forward_impl.1} parent=1 // pred_check_branch
      %127 = sbr.rel (0) target = $region49
    $region48: #{convnet_forward_impl.1} parent=1 // pred_region
      %129 = dma.done [#allocation7], 58880
    $region49: #{convnet_forward_impl.1} parent=1 // pred_fallthru
      _
    // Predicated region
    $region50: #{convnet_forward_impl.1} parent=1 // pred_check
      _
    $region51: #{convnet_forward_impl.1} parent=1 // pred_check_branch
      %131 = sbr.rel (0) target = $region53
    $region52: #{convnet_forward_impl.1} parent=1 // pred_region
      %133 = dma.done [#allocation10], 64
    $region53: #{convnet_forward_impl.1} parent=1 // pred_fallthru
      _
    // Predicated region
    $region54: #{convnet_forward_impl.1} parent=1 // pred_check
      _
    $region55: #{convnet_forward_impl.1} parent=1 // pred_check_branch
      %135 = sbr.rel (0) target = $region57
    $region56: #{convnet_forward_impl.1} parent=1 // pred_region
      %137 = dma.done [#allocation10], 28672
    $region57: #{convnet_forward_impl.1} parent=1 // pred_fallthru
      _
    // Predicated region
    $region58: #{convnet_forward_impl.1} parent=1 // pred_check
      _
    $region59: #{convnet_forward_impl.1} parent=1 // pred_check_branch
      %139 = sbr.rel (0) target = $region61
    $region60: #{convnet_forward_impl.1} parent=1 // pred_region
      %141 = dma.done [#allocation13], 32
    $region61: #{convnet_forward_impl.1} parent=1 // pred_fallthru
      _
    // Predicated region
    $region62: #{convnet_forward_impl.1} parent=1 // pred_check
      _
    $region63: #{convnet_forward_impl.1} parent=1 // pred_check_branch
      %143 = sbr.rel (0) target = $region65
    $region64: #{convnet_forward_impl.1} parent=1 // pred_region
      %145 = dma.done [#allocation13], 2048
    $region65: #{convnet_forward_impl.1} parent=1 // pred_fallthru
      _
    // Predicated region
    $region66: #{convnet_forward_impl.1} parent=1 // pred_check
      _
    $region67: #{convnet_forward_impl.1} parent=1 // pred_check_branch
      %147 = sbr.rel (0) target = $region69
    $region68: #{convnet_forward_impl.1} parent=1 // pred_region
      %149 = dma.done [#allocation16], 16
    $region69: #{convnet_forward_impl.1} parent=1 // pred_fallthru
      _
    %v151 = vld [vmem:[%s0] sm:$0xff]
    %v152 = vld [vmem:[%s0 + $0x8] sm:$0xff]
    %v153 = vld [vmem:[%s0 + $0x10] sm:$0xff]
    %v154 = vld [vmem:[%s0 + $0x18] sm:$0xf]
    %v155 = vld [vmem:[%s0 + $0x20] sm:$0xff]
    %v156 = vld [vmem:[%s0 + $0x28] sm:$0xff]
    %v157 = vld [vmem:[%s0 + $0x30] sm:$0xff]
    %v158 = vld [vmem:[%s0 + $0x38] sm:$0xf]
    %v159 = vpack.c.bf16 %v151, %v151
    %v160 = vpack.c.bf16 %v152, %v152
    %v161 = vpack.c.bf16 %v153, %v153
    %v162 = vpack.c.bf16 %v154, %v154
    %v163 = vpack.c.bf16 %v155, %v155
    %v164 = vpack.c.bf16 %v156, %v156
    %v165 = vpack.c.bf16 %v157, %v157
    %v166 = vpack.c.bf16 %v158, %v158
    %v167 = vld [vmem:[#allocation3] sm:$0xff]
    %v168 = vld [vmem:[#allocation3 + $0x8] sm:$0xf]
    %v169 = vld [vmem:[#allocation3 + $0xc] sm:$0xff]
    %v170 = vld [vmem:[#allocation3 + $0x14] sm:$0xf]
    %v171 = vld [vmem:[#allocation3 + $0x18] sm:$0xff]
    %v172 = vld [vmem:[#allocation3 + $0x20] sm:$0xf]
    %v173 = vld [vmem:[#allocation3 + $0x24] sm:$0x33]
    %v174 = vld [vmem:[#allocation3 + $0x2c] sm:$0x3]
    %vm175 = vsmask.f32 3328
    %vm176 = vsmask.f32 7440
    %vm177 = vmor %vm175, %vm176
    %v179 = vshrl.u32 %v159, 16
    %v181 = vrot.slane %v179, 4
    %v182 = vshll.u32 %v159, 16
    %v184 = vrot.slane %v182, 5
    %v185 = vor.u32 %v181, %v184
    %v186 = vrot.slane %v185, 4
    %v188 = vshll.u32 %v160, 16
    %v190 = vrot.slane %v188, 5
    %v191 = vsel %vm177, %v186, %v190
    %v192 = vshrl.u32 %v160, 16
    %v194 = vrot.slane %v192, 4
    %v195 = vor.u32 %v194, %v190
    %v196 = vrot.slane %v195, 4
    %v198 = vshll.u32 %v161, 16
    %v200 = vrot.slane %v198, 5
    %v201 = vsel %vm177, %v196, %v200
    %v202 = vshrl.u32 %v161, 16
    %v204 = vrot.slane %v202, 4
    %v205 = vor.u32 %v204, %v200
    %v206 = vrot.slane %v205, 4
    %v208 = vshll.u32 %v162, 16
    %v210 = vrot.slane %v208, 5
    %v211 = vsel %vm177, %v206, %v210
    %v213 = vshrl.u32 %v163, 16
    %v215 = vrot.slane %v213, 4
    %v216 = vshll.u32 %v163, 16
    %v218 = vrot.slane %v216, 5
    %v219 = vor.u32 %v215, %v218
    %v220 = vrot.slane %v219, 4
    %v222 = vshll.u32 %v164, 16
    %v224 = vrot.slane %v222, 5
    %v225 = vsel %vm177, %v220, %v224
    %v226 = vshrl.u32 %v164, 16
    %v228 = vrot.slane %v226, 4
    %v229 = vor.u32 %v228, %v224
    %v230 = vrot.slane %v229, 4
    %v232 = vshll.u32 %v165, 16
    %v234 = vrot.slane %v232, 5
    %v235 = vsel %vm177, %v230, %v234
    %v236 = vshrl.u32 %v165, 16
    %v238 = vrot.slane %v236, 4
    %v239 = vor.u32 %v238, %v234
    %v240 = vrot.slane %v239, 4
    %v242 = vshll.u32 %v166, 16
    %v244 = vrot.slane %v242, 5
    %v245 = vsel %vm177, %v240, %v244
    %s246 = scalar_lea.vmem [#allocation3], 48
    %v247 = vld [vmem:[%s246] sm:$0xff]
    %v248 = vld [vmem:[%s246 + $0x8] sm:$0xf]
    %v249 = vld [vmem:[%s246 + $0xc] sm:$0xff]
    %v250 = vld [vmem:[%s246 + $0x14] sm:$0xf]
    %v251 = vld [vmem:[%s246 + $0x18] sm:$0xff]
    %v252 = vld [vmem:[%s246 + $0x20] sm:$0xf]
    %v253 = vld [vmem:[%s246 + $0x24] sm:$0x33]
    %v254 = vld [vmem:[%s246 + $0x2c] sm:$0x3]
    %v255 = vunpack.c.l.b16 %v191
    %v256 = vunpack.c.l.b16 %v201
    %v257 = vunpack.c.l.b16 %v211
    %v258 = vunpack.c.l.b16 %v225
    %v259 = vunpack.c.l.b16 %v235
    %v260 = vunpack.c.l.b16 %v245
    %v261 = vpack.c.b16 %v256, %v255
    %v262 = vpack.c.b16 %v258, %v257
    %v263 = vpack.c.b16 %v260, %v259
    %v272 = vunpack.c.l.b16 %v247
    %v273 = vunpack.c.h.b16 %v247
    %v274 = vunpack.c.l.b16 %v248
    %v275 = vunpack.c.l.b16 %v249
    %v276 = vunpack.c.h.b16 %v249
    %v277 = vunpack.c.l.b16 %v250
    %v278 = vunpack.c.l.b16 %v251
    %v279 = vunpack.c.h.b16 %v251
    %v280 = vunpack.c.l.b16 %v252
    %v281 = vunpack.c.l.b16 %v253
    %v282 = vunpack.c.h.b16 %v253
    %v283 = vunpack.c.l.b16 %v254
    %v284 = vpack.c.b16 %v275, %v272
    %v285 = vpack.c.b16 %v276, %v273
    %v286 = vpack.c.b16 %v277, %v274
    %v287 = vpack.c.b16 %v281, %v278
    %v288 = vpack.c.b16 %v282, %v279
    %v289 = vpack.c.b16 %v283, %v280
    %vm293 = vcmask 228352
    %v295 = vsel %vm293, %v261, 0
    %v298 = vsel %vm293, %v262, 0
    %v301 = vsel %vm293, %v263, 0
    %vm303 = vcmask 1045504
    %v305 = vsel %vm303, %v287, 0
    %v308 = vsel %vm303, %v288, 0
    %v311 = vsel %vm303, %v289, 0
    %313 = vmatpush.bf16.msra.mxu0 0
    %314 = vmatpush.bf16.msra.mxu0 0
    %315 = vmatpush.bf16.msra.mxu0 0
    %316 = vmatpush.bf16.msra.mxu0 0
    %317 = vmatpush.bf16.msra.mxu0 0
    %318 = vmatpush.bf16.msra.mxu0 0
    %319 = vmatpush.bf16.msra.mxu0 %v305
    %320 = vmatpush.bf16.msra.mxu0 %v284
    %321 = vmatmul.bf16.gmra.mxu0 %v295
    %v322 = vpop.f32.mrf.mxu0
    %v323 = vadd.f32 0.0, %v322
    %v324 = vpop.f32.mrf.mxu0
    %v325 = vadd.f32 0.0, %v324
    %326 = vmatmul.bf16.gmra.mxu0 %v298
    %v327 = vpop.f32.mrf.mxu0
    %v328 = vadd.f32 0.0, %v327
    %v329 = vpop.f32.mrf.mxu0
    %v330 = vadd.f32 0.0, %v329
    %331 = vmatmul.bf16.gmra.mxu0 %v301
    %v332 = vpop.f32.mrf.mxu0
    %v333 = vadd.f32 0.0, %v332
    %v334 = vpop.f32.mrf.mxu0
    %v335 = vadd.f32 0.0, %v334
    %336 = vdwg.mxu0
    %337 = vmatpush.bf16.msra.mxu0 0
    %338 = vmatpush.bf16.msra.mxu0 0
    %339 = vmatpush.bf16.msra.mxu0 0
    %340 = vmatpush.bf16.msra.mxu0 0
    %341 = vmatpush.bf16.msra.mxu0 0
    %342 = vmatpush.bf16.msra.mxu0 0
    %343 = vmatpush.bf16.msra.mxu0 %v308
    %344 = vmatpush.bf16.msra.mxu0 %v285
    %345 = vmatmul.bf16.gmra.mxu0 %v295
    %v346 = vpop.f32.mrf.mxu0
    %v347 = vadd.f32 0.0, %v346
    %v348 = vpop.f32.mrf.mxu0
    %v349 = vadd.f32 0.0, %v348
    %350 = vmatmul.bf16.gmra.mxu0 %v298
    %v351 = vpop.f32.mrf.mxu0
    %v352 = vadd.f32 0.0, %v351
    %v353 = vpop.f32.mrf.mxu0
    %v354 = vadd.f32 0.0, %v353
    %355 = vmatmul.bf16.gmra.mxu0 %v301
    %v356 = vpop.f32.mrf.mxu0
    %v357 = vadd.f32 0.0, %v356
    %v358 = vpop.f32.mrf.mxu0
    %v359 = vadd.f32 0.0, %v358
    %360 = vdwg.mxu0
    %361 = vmatpush.bf16.msra.mxu0 0
    %362 = vmatpush.bf16.msra.mxu0 0
    %363 = vmatpush.bf16.msra.mxu0 0
    %364 = vmatpush.bf16.msra.mxu0 0
    %365 = vmatpush.bf16.msra.mxu0 0
    %366 = vmatpush.bf16.msra.mxu0 0
    %367 = vmatpush.bf16.msra.mxu0 %v311
    %368 = vmatpush.bf16.msra.mxu0 %v286
    %369 = vmatmul.bf16.gmra.mxu0 %v295
    %v370 = vpop.f32.mrf.mxu0
    %v371 = vadd.f32 0.0, %v370
    %v372 = vpop.f32.mrf.mxu0
    %v373 = vadd.f32 0.0, %v372
    %374 = vmatmul.bf16.gmra.mxu0 %v298
    %v375 = vpop.f32.mrf.mxu0
    %v376 = vadd.f32 0.0, %v375
    %v377 = vpop.f32.mrf.mxu0
    %v378 = vadd.f32 0.0, %v377
    %379 = vmatmul.bf16.gmra.mxu0 %v301
    %v380 = vpop.f32.mrf.mxu0
    %v381 = vadd.f32 0.0, %v380
    %v382 = vpop.f32.mrf.mxu0
    %v383 = vadd.f32 0.0, %v382
    %384 = vdwg.mxu0
    %v391 = vunpack.c.l.b16 %v159
    %v392 = vunpack.c.l.b16 %v160
    %v393 = vunpack.c.l.b16 %v161
    %v394 = vunpack.c.l.b16 %v163
    %v395 = vunpack.c.l.b16 %v164
    %v396 = vunpack.c.l.b16 %v165
    %v397 = vpack.c.b16 %v392, %v391
    %v398 = vpack.c.b16 %v394, %v393
    %v399 = vpack.c.b16 %v396, %v395
    %v408 = vunpack.c.l.b16 %v167
    %v409 = vunpack.c.h.b16 %v167
    %v410 = vunpack.c.l.b16 %v168
    %v411 = vunpack.c.l.b16 %v169
    %v412 = vunpack.c.h.b16 %v169
    %v413 = vunpack.c.l.b16 %v170
    %v414 = vunpack.c.l.b16 %v171
    %v415 = vunpack.c.h.b16 %v171
    %v416 = vunpack.c.l.b16 %v172
    %v417 = vunpack.c.l.b16 %v173
    %v418 = vunpack.c.h.b16 %v173
    %v419 = vunpack.c.l.b16 %v174
    %v420 = vpack.c.b16 %v411, %v408
    %v421 = vpack.c.b16 %v412, %v409
    %v422 = vpack.c.b16 %v413, %v410
    %v423 = vpack.c.b16 %v417, %v414
    %v424 = vpack.c.b16 %v418, %v415
    %v425 = vpack.c.b16 %v419, %v416
    %v430 = vsel %vm293, %v397, 0
    %v433 = vsel %vm293, %v398, 0
    %v436 = vsel %vm293, %v399, 0
    %v439 = vsel %vm303, %v423, 0
    %v442 = vsel %vm303, %v424, 0
    %v445 = vsel %vm303, %v425, 0
    %447 = vmatpush.bf16.msra.mxu0 0
    %448 = vmatpush.bf16.msra.mxu0 0
    %449 = vmatpush.bf16.msra.mxu0 0
    %450 = vmatpush.bf16.msra.mxu0 0
    %451 = vmatpush.bf16.msra.mxu0 0
    %452 = vmatpush.bf16.msra.mxu0 0
    %453 = vmatpush.bf16.msra.mxu0 %v439
    %454 = vmatpush.bf16.msra.mxu0 %v420
    %455 = vmatmul.bf16.gmra.mxu0 %v430
    %v456 = vpop.f32.mrf.mxu0
    %v457 = vadd.f32 %v323, %v456
    %v458 = vpop.f32.mrf.mxu0
    %v459 = vadd.f32 %v325, %v458
    %460 = vmatmul.bf16.gmra.mxu0 %v433
    %v461 = vpop.f32.mrf.mxu0
    %v462 = vadd.f32 %v328, %v461
    %v463 = vpop.f32.mrf.mxu0
    %v464 = vadd.f32 %v330, %v463
    %465 = vmatmul.bf16.gmra.mxu0 %v436
    %v466 = vpop.f32.mrf.mxu0
    %v467 = vadd.f32 %v333, %v466
    %v468 = vpop.f32.mrf.mxu0
    %v469 = vadd.f32 %v335, %v468
    %470 = vdwg.mxu0
    %471 = vmatpush.bf16.msra.mxu0 0
    %472 = vmatpush.bf16.msra.mxu0 0
    %473 = vmatpush.bf16.msra.mxu0 0
    %474 = vmatpush.bf16.msra.mxu0 0
    %475 = vmatpush.bf16.msra.mxu0 0
    %476 = vmatpush.bf16.msra.mxu0 0
    %477 = vmatpush.bf16.msra.mxu0 %v442
    %478 = vmatpush.bf16.msra.mxu0 %v421
    %479 = vmatmul.bf16.gmra.mxu0 %v430
    %v480 = vpop.f32.mrf.mxu0
    %v481 = vadd.f32 %v347, %v480
    %v482 = vpop.f32.mrf.mxu0
    %v483 = vadd.f32 %v349, %v482
    %484 = vmatmul.bf16.gmra.mxu0 %v433
    %v485 = vpop.f32.mrf.mxu0
    %v486 = vadd.f32 %v352, %v485
    %v487 = vpop.f32.mrf.mxu0
    %v488 = vadd.f32 %v354, %v487
    %489 = vmatmul.bf16.gmra.mxu0 %v436
    %v490 = vpop.f32.mrf.mxu0
    %v491 = vadd.f32 %v357, %v490
    %v492 = vpop.f32.mrf.mxu0
    %v493 = vadd.f32 %v359, %v492
    %494 = vdwg.mxu0
    %495 = vmatpush.bf16.msra.mxu0 0
    %496 = vmatpush.bf16.msra.mxu0 0
    %497 = vmatpush.bf16.msra.mxu0 0
    %498 = vmatpush.bf16.msra.mxu0 0
    %499 = vmatpush.bf16.msra.mxu0 0
    %500 = vmatpush.bf16.msra.mxu0 0
    %501 = vmatpush.bf16.msra.mxu0 %v445
    %502 = vmatpush.bf16.msra.mxu0 %v422
    %503 = vmatmul.bf16.gmra.mxu0 %v430
    %v504 = vpop.f32.mrf.mxu0
    %v505 = vadd.f32 %v371, %v504
    %v506 = vpop.f32.mrf.mxu0
    %v507 = vadd.f32 %v373, %v506
    %508 = vmatmul.bf16.gmra.mxu0 %v433
    %v509 = vpop.f32.mrf.mxu0
    %v510 = vadd.f32 %v376, %v509
    %v511 = vpop.f32.mrf.mxu0
    %v512 = vadd.f32 %v378, %v511
    %513 = vmatmul.bf16.gmra.mxu0 %v436
    %v514 = vpop.f32.mrf.mxu0
    %v515 = vadd.f32 %v381, %v514
    %v516 = vpop.f32.mrf.mxu0
    %v517 = vadd.f32 %v383, %v516
    %518 = vdwg.mxu0
    %vm521 = vcmask 1042432
    %vm522 = vcmask 1046532
    %vm523 = vmor %vm521, %vm522
    %v524 = vrot.slane %v159, 5
    %v525 = vrot.slane %v524, 4
    %v526 = vrot.slane %v160, 5
    %v527 = vsel %vm523, %v525, %v526
    %v528 = vrot.slane %v526, 4
    %v529 = vrot.slane %v161, 5
    %v530 = vsel %vm523, %v528, %v529
    %v531 = vrot.slane %v529, 4
    %v532 = vrot.slane %v162, 5
    %v533 = vsel %vm523, %v531, %v532
    %v534 = vrot.slane %v163, 5
    %v535 = vrot.slane %v534, 4
    %v536 = vrot.slane %v164, 5
    %v537 = vsel %vm523, %v535, %v536
    %v538 = vrot.slane %v536, 4
    %v539 = vrot.slane %v165, 5
    %v540 = vsel %vm523, %v538, %v539
    %v541 = vrot.slane %v539, 4
    %v542 = vrot.slane %v166, 5
    %v543 = vsel %vm523, %v541, %v542
    %s544 = scalar_lea.vmem [#allocation3], 96
    %v545 = vld [vmem:[%s544] sm:$0xff]
    %v546 = vld [vmem:[%s544 + $0x8] sm:$0xf]
    %v547 = vld [vmem:[%s544 + $0xc] sm:$0xff]
    %v548 = vld [vmem:[%s544 + $0x14] sm:$0xf]
    %v549 = vld [vmem:[%s544 + $0x18] sm:$0xff]
    %v550 = vld [vmem:[%s544 + $0x20] sm:$0xf]
    %v551 = vld [vmem:[%s544 + $0x24] sm:$0x33]
    %v552 = vld [vmem:[%s544 + $0x2c] sm:$0x3]
    %v553 = vunpack.c.l.b16 %v527
    %v554 = vunpack.c.l.b16 %v530
    %v555 = vunpack.c.l.b16 %v533
    %v556 = vunpack.c.l.b16 %v537
    %v557 = vunpack.c.l.b16 %v540
    %v558 = vunpack.c.l.b16 %v543
    %v559 = vpack.c.b16 %v554, %v553
    %v560 = vpack.c.b16 %v556, %v555
    %v561 = vpack.c.b16 %v558, %v557
    %v570 = vunpack.c.l.b16 %v545
    %v571 = vunpack.c.h.b16 %v545
    %v572 = vunpack.c.l.b16 %v546
    %v573 = vunpack.c.l.b16 %v547
    %v574 = vunpack.c.h.b16 %v547
    %v575 = vunpack.c.l.b16 %v548
    %v576 = vunpack.c.l.b16 %v549
    %v577 = vunpack.c.h.b16 %v549
    %v578 = vunpack.c.l.b16 %v550
    %v579 = vunpack.c.l.b16 %v551
    %v580 = vunpack.c.h.b16 %v551
    %v581 = vunpack.c.l.b16 %v552
    %v582 = vpack.c.b16 %v573, %v570
    %v583 = vpack.c.b16 %v574, %v571
    %v584 = vpack.c.b16 %v575, %v572
    %v585 = vpack.c.b16 %v579, %v576
    %v586 = vpack.c.b16 %v580, %v577
    %v587 = vpack.c.b16 %v581, %v578
    %v592 = vsel %vm293, %v559, 0
    %v595 = vsel %vm293, %v560, 0
    %v598 = vsel %vm293, %v561, 0
    %v601 = vsel %vm303, %v585, 0
    %v604 = vsel %vm303, %v586, 0
    %v607 = vsel %vm303, %v587, 0
    %609 = vmatpush.bf16.msra.mxu0 0
    %610 = vmatpush.bf16.msra.mxu0 0
    %611 = vmatpush.bf16.msra.mxu0 0
    %612 = vmatpush.bf16.msra.mxu0 0
    %613 = vmatpush.bf16.msra.mxu0 0
    %614 = vmatpush.bf16.msra.mxu0 0
    %615 = vmatpush.bf16.msra.mxu0 %v601
    %616 = vmatpush.bf16.msra.mxu0 %v582
    %617 = vmatmul.bf16.gmra.mxu0 %v592
    %v618 = vpop.f32.mrf.mxu0
    %v619 = vadd.f32 0.0, %v618
    %v620 = vpop.f32.mrf.mxu0
    %v621 = vadd.f32 0.0, %v620
    %622 = vmatmul.bf16.gmra.mxu0 %v595
    %v623 = vpop.f32.mrf.mxu0
    %v624 = vadd.f32 0.0, %v623
    %v625 = vpop.f32.mrf.mxu0
    %v626 = vadd.f32 0.0, %v625
    %627 = vmatmul.bf16.gmra.mxu0 %v598
    %v628 = vpop.f32.mrf.mxu0
    %v629 = vadd.f32 0.0, %v628
    %v630 = vpop.f32.mrf.mxu0
    %v631 = vadd.f32 0.0, %v630
    %632 = vdwg.mxu0
    %633 = vmatpush.bf16.msra.mxu0 0
    %634 = vmatpush.bf16.msra.mxu0 0
    %635 = vmatpush.bf16.msra.mxu0 0
    %636 = vmatpush.bf16.msra.mxu0 0
    %637 = vmatpush.bf16.msra.mxu0 0
    %638 = vmatpush.bf16.msra.mxu0 0
    %639 = vmatpush.bf16.msra.mxu0 %v604
    %640 = vmatpush.bf16.msra.mxu0 %v583
    %641 = vmatmul.bf16.gmra.mxu0 %v592
    %v642 = vpop.f32.mrf.mxu0
    %v643 = vadd.f32 0.0, %v642
    %v644 = vpop.f32.mrf.mxu0
    %v645 = vadd.f32 0.0, %v644
    %646 = vmatmul.bf16.gmra.mxu0 %v595
    %v647 = vpop.f32.mrf.mxu0
    %v648 = vadd.f32 0.0, %v647
    %v649 = vpop.f32.mrf.mxu0
    %v650 = vadd.f32 0.0, %v649
    %651 = vmatmul.bf16.gmra.mxu0 %v598
    %v652 = vpop.f32.mrf.mxu0
    %v653 = vadd.f32 0.0, %v652
    %v654 = vpop.f32.mrf.mxu0
    %v655 = vadd.f32 0.0, %v654
    %656 = vdwg.mxu0
    %657 = vmatpush.bf16.msra.mxu0 0
    %658 = vmatpush.bf16.msra.mxu0 0
    %659 = vmatpush.bf16.msra.mxu0 0
    %660 = vmatpush.bf16.msra.mxu0 0
    %661 = vmatpush.bf16.msra.mxu0 0
    %662 = vmatpush.bf16.msra.mxu0 0
    %663 = vmatpush.bf16.msra.mxu0 %v607
    %664 = vmatpush.bf16.msra.mxu0 %v584
    %665 = vmatmul.bf16.gmra.mxu0 %v592
    %v666 = vpop.f32.mrf.mxu0
    %v667 = vadd.f32 0.0, %v666
    %v668 = vpop.f32.mrf.mxu0
    %v669 = vadd.f32 0.0, %v668
    %670 = vmatmul.bf16.gmra.mxu0 %v595
    %v671 = vpop.f32.mrf.mxu0
    %v672 = vadd.f32 0.0, %v671
    %v673 = vpop.f32.mrf.mxu0
    %v674 = vadd.f32 0.0, %v673
    %675 = vmatmul.bf16.gmra.mxu0 %v598
    %v676 = vpop.f32.mrf.mxu0
    %v677 = vadd.f32 0.0, %v676
    %v678 = vpop.f32.mrf.mxu0
    %v679 = vadd.f32 0.0, %v678
    %680 = vdwg.mxu0
    %v681 = vadd.f32 %v457, %v619
    %v682 = vadd.f32 %v481, %v643
    %v683 = vadd.f32 %v505, %v667
    %v684 = vadd.f32 %v459, %v621
    %v685 = vadd.f32 %v483, %v645
    %v686 = vadd.f32 %v507, %v669
    %v687 = vadd.f32 %v462, %v624
    %v688 = vadd.f32 %v486, %v648
    %v689 = vadd.f32 %v510, %v672
    %v690 = vadd.f32 %v464, %v626
    %v691 = vadd.f32 %v488, %v650
    %v692 = vadd.f32 %v512, %v674
    %v693 = vadd.f32 %v467, %v629
    %v694 = vadd.f32 %v491, %v653
    %v695 = vadd.f32 %v515, %v677
    %v696 = vadd.f32 %v469, %v631
    %v697 = vadd.f32 %v493, %v655
    %v698 = vadd.f32 %v517, %v679
    %vm699 = vsmask.f32 2304
    %vm700 = vsmask.f32 6416
    %vm701 = vmor %vm699, %vm700
    %v702 = vrot.slane %v179, 5
    %v703 = vrot.slane %v182, 6
    %v704 = vor.u32 %v702, %v703
    %v705 = vrot.slane %v704, 4
    %v706 = vrot.slane %v192, 5
    %v707 = vrot.slane %v188, 6
    %v708 = vor.u32 %v706, %v707
    %v709 = vsel %vm701, %v705, %v708
    %v710 = vrot.slane %v708, 4
    %v711 = vrot.slane %v202, 5
    %v712 = vrot.slane %v198, 6
    %v713 = vor.u32 %v711, %v712
    %v714 = vsel %vm701, %v710, %v713
    %v715 = vrot.slane %v713, 4
    %v716 = vshrl.u32 %v162, 16
    %v718 = vrot.slane %v716, 5
    %v719 = vrot.slane %v208, 6
    %v720 = vor.u32 %v718, %v719
    %v721 = vsel %vm701, %v715, %v720
    %v722 = vrot.slane %v213, 5
    %v723 = vrot.slane %v216, 6
    %v724 = vor.u32 %v722, %v723
    %v725 = vrot.slane %v724, 4
    %v726 = vrot.slane %v226, 5
    %v727 = vrot.slane %v222, 6
    %v728 = vor.u32 %v726, %v727
    %v729 = vsel %vm701, %v725, %v728
    %v730 = vrot.slane %v728, 4
    %v731 = vrot.slane %v236, 5
    %v732 = vrot.slane %v232, 6
    %v733 = vor.u32 %v731, %v732
    %v734 = vsel %vm701, %v730, %v733
    %v735 = vrot.slane %v733, 4
    %v736 = vshrl.u32 %v166, 16
    %v738 = vrot.slane %v736, 5
    %v739 = vrot.slane %v242, 6
    %v740 = vor.u32 %v738, %v739
    %v741 = vsel %vm701, %v735, %v740
    %s742 = scalar_lea.vmem [#allocation3], 144
    %v743 = vld [vmem:[%s742] sm:$0xff]
    %v744 = vld [vmem:[%s742 + $0x8] sm:$0xf]
    %v745 = vld [vmem:[%s742 + $0xc] sm:$0xff]
    %v746 = vld [vmem:[%s742 + $0x14] sm:$0xf]
    %v747 = vld [vmem:[%s742 + $0x18] sm:$0xff]
    %v748 = vld [vmem:[%s742 + $0x20] sm:$0xf]
    %v749 = vld [vmem:[%s742 + $0x24] sm:$0x33]
    %v750 = vld [vmem:[%s742 + $0x2c] sm:$0x3]
    %v751 = vunpack.c.l.b16 %v709
    %v752 = vunpack.c.l.b16 %v714
    %v753 = vunpack.c.l.b16 %v721
    %v754 = vunpack.c.l.b16 %v729
    %v755 = vunpack.c.l.b16 %v734
    %v756 = vunpack.c.l.b16 %v741
    %v757 = vpack.c.b16 %v752, %v751
    %v758 = vpack.c.b16 %v754, %v753
    %v759 = vpack.c.b16 %v756, %v755
    %v768 = vunpack.c.l.b16 %v743
    %v769 = vunpack.c.h.b16 %v743
    %v770 = vunpack.c.l.b16 %v744
    %v771 = vunpack.c.l.b16 %v745
    %v772 = vunpack.c.h.b16 %v745
    %v773 = vunpack.c.l.b16 %v746
    %v774 = vunpack.c.l.b16 %v747
    %v775 = vunpack.c.h.b16 %v747
    %v776 = vunpack.c.l.b16 %v748
    %v777 = vunpack.c.l.b16 %v749
    %v778 = vunpack.c.h.b16 %v749
    %v779 = vunpack.c.l.b16 %v750
    %v780 = vpack.c.b16 %v771, %v768
    %v781 = vpack.c.b16 %v772, %v769
    %v782 = vpack.c.b16 %v773, %v770
    %v783 = vpack.c.b16 %v777, %v774
    %v784 = vpack.c.b16 %v778, %v775
    %v785 = vpack.c.b16 %v779, %v776
    %v790 = vsel %vm293, %v757, 0
    %v793 = vsel %vm293, %v758, 0
    %v796 = vsel %vm293, %v759, 0
    %v799 = vsel %vm303, %v783, 0
    %v802 = vsel %vm303, %v784, 0
    %v805 = vsel %vm303, %v785, 0
    %807 = vmatpush.bf16.msra.mxu0 0
    %808 = vmatpush.bf16.msra.mxu0 0
    %809 = vmatpush.bf16.msra.mxu0 0
    %810 = vmatpush.bf16.msra.mxu0 0
    %811 = vmatpush.bf16.msra.mxu0 0
    %812 = vmatpush.bf16.msra.mxu0 0
    %813 = vmatpush.bf16.msra.mxu0 %v799
    %814 = vmatpush.bf16.msra.mxu0 %v780
    %815 = vmatmul.bf16.gmra.mxu0 %v790
    %v816 = vpop.f32.mrf.mxu0
    %v817 = vadd.f32 0.0, %v816
    %v818 = vpop.f32.mrf.mxu0
    %v819 = vadd.f32 0.0, %v818
    %820 = vmatmul.bf16.gmra.mxu0 %v793
    %v821 = vpop.f32.mrf.mxu0
    %v822 = vadd.f32 0.0, %v821
    %v823 = vpop.f32.mrf.mxu0
    %v824 = vadd.f32 0.0, %v823
    %825 = vmatmul.bf16.gmra.mxu0 %v796
    %v826 = vpop.f32.mrf.mxu0
    %v827 = vadd.f32 0.0, %v826
    %v828 = vpop.f32.mrf.mxu0
    %v829 = vadd.f32 0.0, %v828
    %830 = vdwg.mxu0
    %831 = vmatpush.bf16.msra.mxu0 0
    %832 = vmatpush.bf16.msra.mxu0 0
    %833 = vmatpush.bf16.msra.mxu0 0
    %834 = vmatpush.bf16.msra.mxu0 0
    %835 = vmatpush.bf16.msra.mxu0 0
    %836 = vmatpush.bf16.msra.mxu0 0
    %837 = vmatpush.bf16.msra.mxu0 %v802
    %838 = vmatpush.bf16.msra.mxu0 %v781
    %839 = vmatmul.bf16.gmra.mxu0 %v790
    %v840 = vpop.f32.mrf.mxu0
    %v841 = vadd.f32 0.0, %v840
    %v842 = vpop.f32.mrf.mxu0
    %v843 = vadd.f32 0.0, %v842
    %844 = vmatmul.bf16.gmra.mxu0 %v793
    %v845 = vpop.f32.mrf.mxu0
    %v846 = vadd.f32 0.0, %v845
    %v847 = vpop.f32.mrf.mxu0
    %v848 = vadd.f32 0.0, %v847
    %849 = vmatmul.bf16.gmra.mxu0 %v796
    %v850 = vpop.f32.mrf.mxu0
    %v851 = vadd.f32 0.0, %v850
    %v852 = vpop.f32.mrf.mxu0
    %v853 = vadd.f32 0.0, %v852
    %854 = vdwg.mxu0
    %855 = vmatpush.bf16.msra.mxu0 0
    %856 = vmatpush.bf16.msra.mxu0 0
    %857 = vmatpush.bf16.msra.mxu0 0
    %858 = vmatpush.bf16.msra.mxu0 0
    %859 = vmatpush.bf16.msra.mxu0 0
    %860 = vmatpush.bf16.msra.mxu0 0
    %861 = vmatpush.bf16.msra.mxu0 %v805
    %862 = vmatpush.bf16.msra.mxu0 %v782
    %863 = vmatmul.bf16.gmra.mxu0 %v790
    %v864 = vpop.f32.mrf.mxu0
    %v865 = vadd.f32 0.0, %v864
    %v866 = vpop.f32.mrf.mxu0
    %v867 = vadd.f32 0.0, %v866
    %868 = vmatmul.bf16.gmra.mxu0 %v793
    %v869 = vpop.f32.mrf.mxu0
    %v870 = vadd.f32 0.0, %v869
    %v871 = vpop.f32.mrf.mxu0
    %v872 = vadd.f32 0.0, %v871
    %873 = vmatmul.bf16.gmra.mxu0 %v796
    %v874 = vpop.f32.mrf.mxu0
    %v875 = vadd.f32 0.0, %v874
    %v876 = vpop.f32.mrf.mxu0
    %v877 = vadd.f32 0.0, %v876
    %878 = vdwg.mxu0
    %v879 = vadd.f32 %v681, %v817
    %v880 = vadd.f32 %v682, %v841
    %v881 = vadd.f32 %v683, %v865
    %v882 = vadd.f32 %v684, %v819
    %v883 = vadd.f32 %v685, %v843
    %v884 = vadd.f32 %v686, %v867
    %v885 = vadd.f32 %v687, %v822
    %v886 = vadd.f32 %v688, %v846
    %v887 = vadd.f32 %v689, %v870
    %v888 = vadd.f32 %v690, %v824
    %v889 = vadd.f32 %v691, %v848
    %v890 = vadd.f32 %v692, %v872
    %v891 = vadd.f32 %v693, %v827
    %v892 = vadd.f32 %v694, %v851
    %v893 = vadd.f32 %v695, %v875
    %v894 = vadd.f32 %v696, %v829
    %v895 = vadd.f32 %v697, %v853
    %v896 = vadd.f32 %v698, %v877
    %vm897 = vcmask 1041408
    %vm898 = vcmask 1045508
    %vm899 = vmor %vm897, %vm898
    %v900 = vrot.slane %v159, 6
    %v901 = vrot.slane %v900, 4
    %v902 = vrot.slane %v160, 6
    %v903 = vsel %vm899, %v901, %v902
    %v904 = vrot.slane %v902, 4
    %v905 = vrot.slane %v161, 6
    %v906 = vsel %vm899, %v904, %v905
    %v907 = vrot.slane %v905, 4
    %v908 = vrot.slane %v162, 6
    %v909 = vsel %vm899, %v907, %v908
    %v910 = vrot.slane %v163, 6
    %v911 = vrot.slane %v910, 4
    %v912 = vrot.slane %v164, 6
    %v913 = vsel %vm899, %v911, %v912
    %v914 = vrot.slane %v912, 4
    %v915 = vrot.slane %v165, 6
    %v916 = vsel %vm899, %v914, %v915
    %v917 = vrot.slane %v915, 4
    %v918 = vrot.slane %v166, 6
    %v919 = vsel %vm899, %v917, %v918
    %s920 = scalar_lea.vmem [#allocation3], 192
    %v921 = vld [vmem:[%s920] sm:$0xff]
    %v922 = vld [vmem:[%s920 + $0x8] sm:$0xf]
    %v923 = vld [vmem:[%s920 + $0xc] sm:$0xff]
    %v924 = vld [vmem:[%s920 + $0x14] sm:$0xf]
    %v925 = vld [vmem:[%s920 + $0x18] sm:$0xff]
    %v926 = vld [vmem:[%s920 + $0x20] sm:$0xf]
    %v927 = vld [vmem:[%s920 + $0x24] sm:$0x33]
    %v928 = vld [vmem:[%s920 + $0x2c] sm:$0x3]
    %v929 = vunpack.c.l.b16 %v903
    %v930 = vunpack.c.l.b16 %v906
    %v931 = vunpack.c.l.b16 %v909
    %v932 = vunpack.c.l.b16 %v913
    %v933 = vunpack.c.l.b16 %v916
    %v934 = vunpack.c.l.b16 %v919
    %v935 = vpack.c.b16 %v930, %v929
    %v936 = vpack.c.b16 %v932, %v931
    %v937 = vpack.c.b16 %v934, %v933
    %v946 = vunpack.c.l.b16 %v921
    %v947 = vunpack.c.h.b16 %v921
    %v948 = vunpack.c.l.b16 %v922
    %v949 = vunpack.c.l.b16 %v923
    %v950 = vunpack.c.h.b16 %v923
    %v951 = vunpack.c.l.b16 %v924
    %v952 = vunpack.c.l.b16 %v925
    %v953 = vunpack.c.h.b16 %v925
    %v954 = vunpack.c.l.b16 %v926
    %v955 = vunpack.c.l.b16 %v927
    %v956 = vunpack.c.h.b16 %v927
    %v957 = vunpack.c.l.b16 %v928
    %v958 = vpack.c.b16 %v949, %v946
    %v959 = vpack.c.b16 %v950, %v947
    %v960 = vpack.c.b16 %v951, %v948
    %v961 = vpack.c.b16 %v955, %v952
    %v962 = vpack.c.b16 %v956, %v953
    %v963 = vpack.c.b16 %v957, %v954
    %v968 = vsel %vm293, %v935, 0
    %v971 = vsel %vm293, %v936, 0
    %v974 = vsel %vm293, %v937, 0
    %v977 = vsel %vm303, %v961, 0
    %v980 = vsel %vm303, %v962, 0
    %v983 = vsel %vm303, %v963, 0
    %985 = vmatpush.bf16.msra.mxu0 0
    %986 = vmatpush.bf16.msra.mxu0 0
    %987 = vmatpush.bf16.msra.mxu0 0
    %988 = vmatpush.bf16.msra.mxu0 0
    %989 = vmatpush.bf16.msra.mxu0 0
    %990 = vmatpush.bf16.msra.mxu0 0
    %991 = vmatpush.bf16.msra.mxu0 %v977
    %992 = vmatpush.bf16.msra.mxu0 %v958
    %993 = vmatmul.bf16.gmra.mxu0 %v968
    %v994 = vpop.f32.mrf.mxu0
    %v995 = vadd.f32 0.0, %v994
    %v996 = vpop.f32.mrf.mxu0
    %v997 = vadd.f32 0.0, %v996
    %998 = vmatmul.bf16.gmra.mxu0 %v971
    %v999 = vpop.f32.mrf.mxu0
    %v1000 = vadd.f32 0.0, %v999
    %v1001 = vpop.f32.mrf.mxu0
    %v1002 = vadd.f32 0.0, %v1001
    %1003 = vmatmul.bf16.gmra.mxu0 %v974
    %v1004 = vpop.f32.mrf.mxu0
    %v1005 = vadd.f32 0.0, %v1004
    %v1006 = vpop.f32.mrf.mxu0
    %v1007 = vadd.f32 0.0, %v1006
    %1008 = vdwg.mxu0
    %1009 = vmatpush.bf16.msra.mxu0 0
    %1010 = vmatpush.bf16.msra.mxu0 0
    %1011 = vmatpush.bf16.msra.mxu0 0
    %1012 = vmatpush.bf16.msra.mxu0 0
    %1013 = vmatpush.bf16.msra.mxu0 0
    %1014 = vmatpush.bf16.msra.mxu0 0
    %1015 = vmatpush.bf16.msra.mxu0 %v980
    %1016 = vmatpush.bf16.msra.mxu0 %v959
    %1017 = vmatmul.bf16.gmra.mxu0 %v968
    %v1018 = vpop.f32.mrf.mxu0
    %v1019 = vadd.f32 0.0, %v1018
    %v1020 = vpop.f32.mrf.mxu0
    %v1021 = vadd.f32 0.0, %v1020
    %1022 = vmatmul.bf16.gmra.mxu0 %v971
    %v1023 = vpop.f32.mrf.mxu0
    %v1024 = vadd.f32 0.0, %v1023
    %v1025 = vpop.f32.mrf.mxu0
    %v1026 = vadd.f32 0.0, %v1025
    %1027 = vmatmul.bf16.gmra.mxu0 %v974
    %v1028 = vpop.f32.mrf.mxu0
    %v1029 = vadd.f32 0.0, %v1028
    %v1030 = vpop.f32.mrf.mxu0
    %v1031 = vadd.f32 0.0, %v1030
    %1032 = vdwg.mxu0
    %1033 = vmatpush.bf16.msra.mxu0 0
    %1034 = vmatpush.bf16.msra.mxu0 0
    %1035 = vmatpush.bf16.msra.mxu0 0
    %1036 = vmatpush.bf16.msra.mxu0 0
    %1037 = vmatpush.bf16.msra.mxu0 0
    %1038 = vmatpush.bf16.msra.mxu0 0
    %1039 = vmatpush.bf16.msra.mxu0 %v983
    %1040 = vmatpush.bf16.msra.mxu0 %v960
    %1041 = vmatmul.bf16.gmra.mxu0 %v968
    %v1042 = vpop.f32.mrf.mxu0
    %v1043 = vadd.f32 0.0, %v1042
    %v1044 = vpop.f32.mrf.mxu0
    %v1045 = vadd.f32 0.0, %v1044
    %1046 = vmatmul.bf16.gmra.mxu0 %v971
    %v1047 = vpop.f32.mrf.mxu0
    %v1048 = vadd.f32 0.0, %v1047
    %v1049 = vpop.f32.mrf.mxu0
    %v1050 = vadd.f32 0.0, %v1049
    %1051 = vmatmul.bf16.gmra.mxu0 %v974
    %v1052 = vpop.f32.mrf.mxu0
    %v1053 = vadd.f32 0.0, %v1052
    %v1054 = vpop.f32.mrf.mxu0
    %v1055 = vadd.f32 0.0, %v1054
    %1056 = vdwg.mxu0
    %v1057 = vadd.f32 %v879, %v995
    %v1058 = vadd.f32 %v880, %v1019
    %v1059 = vadd.f32 %v881, %v1043
    %v1060 = vadd.f32 %v882, %v997
    %v1061 = vadd.f32 %v883, %v1021
    %v1062 = vadd.f32 %v884, %v1045
    %v1063 = vadd.f32 %v885, %v1000
    %v1064 = vadd.f32 %v886, %v1024
    %v1065 = vadd.f32 %v887, %v1048
    %v1066 = vadd.f32 %v888, %v1002
    %v1067 = vadd.f32 %v889, %v1026
    %v1068 = vadd.f32 %v890, %v1050
    %v1069 = vadd.f32 %v891, %v1005
    %v1070 = vadd.f32 %v892, %v1029
    %v1071 = vadd.f32 %v893, %v1053
    %v1072 = vadd.f32 %v894, %v1007
    %v1073 = vadd.f32 %v895, %v1031
    %v1074 = vadd.f32 %v896, %v1055
    %v1075 = vld [vmem:[#allocation6] sm:$0x7]
    %v1077 = vperm.slane %v1075, 0
    %v1078 = vperm.slane %v1075, 1
    %v1079 = vperm.slane %v1075, 2
    %v1083 = vadd.f32 %v1057, %v1077
    %v1084 = vadd.f32 %v1058, %v1078
    %v1085 = vadd.f32 %v1059, %v1079
    %v1086 = vadd.f32 %v1060, %v1077
    %v1087 = vadd.f32 %v1061, %v1078
    %v1088 = vadd.f32 %v1062, %v1079
    %v1089 = vadd.f32 %v1063, %v1077
    %v1090 = vadd.f32 %v1064, %v1078
    %v1091 = vadd.f32 %v1065, %v1079
    %v1092 = vadd.f32 %v1066, %v1077
    %v1093 = vadd.f32 %v1067, %v1078
    %v1094 = vadd.f32 %v1068, %v1079
    %v1095 = vadd.f32 %v1069, %v1077
    %v1096 = vadd.f32 %v1070, %v1078
    %v1097 = vadd.f32 %v1071, %v1079
    %v1098 = vadd.f32 %v1072, %v1077
    %v1099 = vadd.f32 %v1073, %v1078
    %v1100 = vadd.f32 %v1074, %v1079
    %v1101 = vmax.f32 %v1083, 0.0
    %v1102 = vmax.f32 %v1084, 0.0
    %v1103 = vmax.f32 %v1085, 0.0
    %v1104 = vmax.f32 %v1086, 0.0
    %v1105 = vmax.f32 %v1087, 0.0
    %v1106 = vmax.f32 %v1088, 0.0
    %v1107 = vmax.f32 %v1089, 0.0
    %v1108 = vmax.f32 %v1090, 0.0
    %v1109 = vmax.f32 %v1091, 0.0
    %v1110 = vmax.f32 %v1092, 0.0
    %v1111 = vmax.f32 %v1093, 0.0
    %v1112 = vmax.f32 %v1094, 0.0
    %v1113 = vmax.f32 %v1095, 0.0
    %v1114 = vmax.f32 %v1096, 0.0
    %v1115 = vmax.f32 %v1097, 0.0
    %v1116 = vmax.f32 %v1098, 0.0
    %v1117 = vmax.f32 %v1099, 0.0
    %v1118 = vmax.f32 %v1100, 0.0
    %1137 = vrot.lane.b32.xlu0 %v1101, 112
    %v1138 = vpop.permute.xlu0 %1137
    %1139 = vrot.lane.b32.xlu0 %v1102, 112
    %v1140 = vpop.permute.xlu0 %1139
    %1141 = vrot.lane.b32.xlu0 %v1103, 112
    %v1142 = vpop.permute.xlu0 %1141
    %1143 = vrot.lane.b32.xlu0 %v1104, 112
    %v1144 = vpop.permute.xlu0 %1143
    %1145 = vrot.lane.b32.xlu0 %v1105, 112
    %v1146 = vpop.permute.xlu0 %1145
    %1147 = vrot.lane.b32.xlu0 %v1106, 112
    %v1148 = vpop.permute.xlu0 %1147
    %1149 = vrot.lane.b32.xlu0 %v1107, 112
    %v1150 = vpop.permute.xlu0 %1149
    %1151 = vrot.lane.b32.xlu0 %v1108, 112
    %v1152 = vpop.permute.xlu0 %1151
    %1153 = vrot.lane.b32.xlu0 %v1109, 112
    %v1154 = vpop.permute.xlu0 %1153
    %1155 = vrot.lane.b32.xlu0 %v1110, 112
    %v1156 = vpop.permute.xlu0 %1155
    %1157 = vrot.lane.b32.xlu0 %v1111, 112
    %v1158 = vpop.permute.xlu0 %1157
    %1159 = vrot.lane.b32.xlu0 %v1112, 112
    %v1160 = vpop.permute.xlu0 %1159
    %1161 = vrot.lane.b32.xlu0 %v1113, 112
    %v1162 = vpop.permute.xlu0 %1161
    %1163 = vrot.lane.b32.xlu0 %v1114, 112
    %v1164 = vpop.permute.xlu0 %1163
    %1165 = vrot.lane.b32.xlu0 %v1115, 112
    %v1166 = vpop.permute.xlu0 %1165
    %1167 = vrot.lane.b32.xlu0 %v1116, 112
    %v1168 = vpop.permute.xlu0 %1167
    %1169 = vrot.lane.b32.xlu0 %v1117, 112
    %v1170 = vpop.permute.xlu0 %1169
    %1171 = vrot.lane.b32.xlu0 %v1118, 112
    %v1172 = vpop.permute.xlu0 %1171
    %vm1173 = vcmask 916480
    %v1174 = vsel %vm1173, %v1138, %v1140
    %v1175 = vsel %vm1173, %v1140, %v1142
    %v1176 = vsel %vm1173, %v1144, %v1146
    %v1177 = vsel %vm1173, %v1146, %v1148
    %v1178 = vsel %vm1173, %v1150, %v1152
    %v1179 = vsel %vm1173, %v1152, %v1154
    %v1180 = vsel %vm1173, %v1156, %v1158
    %v1181 = vsel %vm1173, %v1158, %v1160
    %v1182 = vsel %vm1173, %v1162, %v1164
    %v1183 = vsel %vm1173, %v1164, %v1166
    %v1184 = vsel %vm1173, %v1168, %v1170
    %v1185 = vsel %vm1173, %v1170, %v1172
    %v1204 = vmax.f32 %v1101, %v1174
    %v1205 = vmax.f32 %v1102, %v1175
    %v1206 = vmax.f32 %v1103, %v1142
    %v1207 = vmax.f32 %v1104, %v1176
    %v1208 = vmax.f32 %v1105, %v1177
    %v1209 = vmax.f32 %v1106, %v1148
    %v1210 = vmax.f32 %v1107, %v1178
    %v1211 = vmax.f32 %v1108, %v1179
    %v1212 = vmax.f32 %v1109, %v1154
    %v1213 = vmax.f32 %v1110, %v1180
    %v1214 = vmax.f32 %v1111, %v1181
    %v1215 = vmax.f32 %v1112, %v1160
    %v1216 = vmax.f32 %v1113, %v1182
    %v1217 = vmax.f32 %v1114, %v1183
    %v1218 = vmax.f32 %v1115, %v1166
    %v1219 = vmax.f32 %v1116, %v1184
    %v1220 = vmax.f32 %v1117, %v1185
    %v1221 = vmax.f32 %v1118, %v1172
    %v1228 = vrot.slane %v1204, 1
    %v1229 = vrot.slane %v1205, 1
    %v1230 = vrot.slane %v1206, 1
    %v1231 = vrot.slane %v1213, 1
    %v1232 = vrot.slane %v1214, 1
    %v1233 = vrot.slane %v1215, 1
    %v1240 = vmax.f32 %v1204, %v1228
    %v1241 = vmax.f32 %v1205, %v1229
    %v1242 = vmax.f32 %v1206, %v1230
    %v1243 = vmax.f32 %v1213, %v1231
    %v1244 = vmax.f32 %v1214, %v1232
    %v1245 = vmax.f32 %v1215, %v1233
    %v1246 = vpack.c.bf16 %v1241, %v1240
    %v1247 = vpack.c.bf16 %v1242, %v1242
    %v1248 = vpack.c.bf16 %v1244, %v1243
    %v1249 = vpack.c.bf16 %v1245, %v1245
    %vm1250 = vcmask 1040384
    %vm1251 = vsmask.f32 256
    %vm1252 = vmand %vm1250, %vm1251
    %vm1253 = vcmask 1044484
    %vm1254 = vsmask.f32 4352
    %vm1255 = vmand %vm1253, %vm1254
    %vm1256 = vmor %vm1255, %vm1252
    %v1257 = vld [vmem:[#allocation2] sm:$0x11]
    %v1258 = vsel %vm1256, %v1246, %v1257
    %1259 = vst [vmem:[#allocation2] sm:$0x11] %v1258
    %vm1260 = vcmask 909312
    %vm1261 = vmand %vm1260, %vm1251
    %v1262 = vld [vmem:[#allocation2 + $0x8] sm:$0x1]
    %v1263 = vsel %vm1261, %v1247, %v1262
    %1264 = vst [vmem:[#allocation2 + $0x8] sm:$0x1] %v1263
    %v1265 = vld [vmem:[#allocation2 + $0x18] sm:$0x11]
    %v1266 = vsel %vm1256, %v1248, %v1265
    %1267 = vst [vmem:[#allocation2 + $0x18] sm:$0x11] %v1266
    %v1268 = vld [vmem:[#allocation2 + $0x20] sm:$0x1]
    %v1269 = vsel %vm1261, %v1249, %v1268
    %1270 = vst [vmem:[#allocation2 + $0x20] sm:$0x1] %v1269
    %v1272 = vshll.u32 %v1246, 16
    %v1274 = vrot.slane %v1272, 5
    %v1275 = vrot.slane %v1274, 4
    %v1277 = vshll.u32 %v1247, 16
    %v1279 = vrot.slane %v1277, 5
    %v1280 = vrot.slane %v1279, 4
    %v1282 = vshll.u32 %v1248, 16
    %v1284 = vrot.slane %v1282, 5
    %v1285 = vrot.slane %v1284, 4
    %v1287 = vshll.u32 %v1249, 16
    %v1289 = vrot.slane %v1287, 5
    %v1290 = vrot.slane %v1289, 4
    %vm1295 = vsmask.f32 7938
    %vm1296 = vmand %vm1250, %vm1295
    %vm1297 = vsmask.f32 7954
    %vm1298 = vmand %vm1253, %vm1297
    %vm1299 = vmor %vm1298, %vm1296
    %v1300 = vld [vmem:[#allocation2] sm:$0x11]
    %v1301 = vsel %vm1299, %v1275, %v1300
    %1302 = vst [vmem:[#allocation2] sm:$0x11] %v1301
    %vm1303 = vmand %vm1260, %vm1295
    %v1304 = vld [vmem:[#allocation2 + $0x8] sm:$0x1]
    %v1305 = vsel %vm1303, %v1280, %v1304
    %1306 = vst [vmem:[#allocation2 + $0x8] sm:$0x1] %v1305
    %v1307 = vld [vmem:[#allocation2 + $0x18] sm:$0x11]
    %v1308 = vsel %vm1299, %v1285, %v1307
    %1309 = vst [vmem:[#allocation2 + $0x18] sm:$0x11] %v1308
    %v1310 = vld [vmem:[#allocation2 + $0x20] sm:$0x1]
    %v1311 = vsel %vm1303, %v1290, %v1310
    %1312 = vst [vmem:[#allocation2 + $0x20] sm:$0x1] %v1311
    %v1317 = vrot.slane %v1246, 5
    %v1318 = vrot.slane %v1317, 4
    %v1319 = vrot.slane %v1247, 5
    %v1320 = vrot.slane %v1319, 4
    %v1321 = vrot.slane %v1248, 5
    %v1322 = vrot.slane %v1321, 4
    %v1323 = vrot.slane %v1249, 5
    %v1324 = vrot.slane %v1323, 4
    %vm1329 = vcmask 1041409
    %vm1330 = vsmask.f32 1280
    %vm1331 = vmand %vm1329, %vm1330
    %vm1332 = vcmask 1045509
    %vm1333 = vsmask.f32 5376
    %vm1334 = vmand %vm1332, %vm1333
    %vm1335 = vmor %vm1334, %vm1331
    %v1336 = vld [vmem:[#allocation2] sm:$0x22]
    %v1337 = vsel %vm1335, %v1318, %v1336
    %1338 = vst [vmem:[#allocation2] sm:$0x22] %v1337
    %vm1339 = vcmask 910337
    %vm1340 = vmand %vm1339, %vm1330
    %v1341 = vld [vmem:[#allocation2 + $0x8] sm:$0x2]
    %v1342 = vsel %vm1340, %v1320, %v1341
    %1343 = vst [vmem:[#allocation2 + $0x8] sm:$0x2] %v1342
    %v1344 = vld [vmem:[#allocation2 + $0x18] sm:$0x22]
    %v1345 = vsel %vm1335, %v1322, %v1344
    %1346 = vst [vmem:[#allocation2 + $0x18] sm:$0x22] %v1345
    %v1347 = vld [vmem:[#allocation2 + $0x20] sm:$0x2]
    %v1348 = vsel %vm1340, %v1324, %v1347
    %1349 = vst [vmem:[#allocation2 + $0x20] sm:$0x2] %v1348
    %v1350 = vrot.slane %v1272, 6
    %v1351 = vrot.slane %v1350, 4
    %v1352 = vrot.slane %v1277, 6
    %v1353 = vrot.slane %v1352, 4
    %v1354 = vrot.slane %v1282, 6
    %v1355 = vrot.slane %v1354, 4
    %v1356 = vrot.slane %v1287, 6
    %v1357 = vrot.slane %v1356, 4
    %vm1362 = vsmask.f32 7942
    %vm1363 = vmand %vm1329, %vm1362
    %vm1364 = vsmask.f32 7958
    %vm1365 = vmand %vm1332, %vm1364
    %vm1366 = vmor %vm1365, %vm1363
    %v1367 = vld [vmem:[#allocation2] sm:$0x22]
    %v1368 = vsel %vm1366, %v1351, %v1367
    %1369 = vst [vmem:[#allocation2] sm:$0x22] %v1368
    %vm1370 = vmand %vm1339, %vm1362
    %v1371 = vld [vmem:[#allocation2 + $0x8] sm:$0x2]
    %v1372 = vsel %vm1370, %v1353, %v1371
    %1373 = vst [vmem:[#allocation2 + $0x8] sm:$0x2] %v1372
    %v1374 = vld [vmem:[#allocation2 + $0x18] sm:$0x22]
    %v1375 = vsel %vm1366, %v1355, %v1374
    %1376 = vst [vmem:[#allocation2 + $0x18] sm:$0x22] %v1375
    %v1377 = vld [vmem:[#allocation2 + $0x20] sm:$0x2]
    %v1378 = vsel %vm1370, %v1357, %v1377
    %1379 = vst [vmem:[#allocation2 + $0x20] sm:$0x2] %v1378
    %v1386 = vrot.slane %v1207, 1
    %v1387 = vrot.slane %v1208, 1
    %v1388 = vrot.slane %v1209, 1
    %v1389 = vrot.slane %v1216, 1
    %v1390 = vrot.slane %v1217, 1
    %v1391 = vrot.slane %v1218, 1
    %v1398 = vmax.f32 %v1207, %v1386
    %v1399 = vmax.f32 %v1208, %v1387
    %v1400 = vmax.f32 %v1209, %v1388
    %v1401 = vmax.f32 %v1216, %v1389
    %v1402 = vmax.f32 %v1217, %v1390
    %v1403 = vmax.f32 %v1218, %v1391
    %v1404 = vpack.c.bf16 %v1399, %v1398
    %v1405 = vpack.c.bf16 %v1400, %v1400
    %v1406 = vpack.c.bf16 %v1402, %v1401
    %v1407 = vpack.c.bf16 %v1403, %v1403
    %v1412 = vrot.slane %v1404, 6
    %v1413 = vrot.slane %v1405, 6
    %v1414 = vrot.slane %v1406, 6
    %v1415 = vrot.slane %v1407, 6
    %vm1420 = vcmask 1042434
    %vm1421 = vmand %vm1420, %vm699
    %vm1422 = vcmask 1046534
    %vm1423 = vsmask.f32 6400
    %vm1424 = vmand %vm1422, %vm1423
    %vm1425 = vmor %vm1424, %vm1421
    %v1426 = vld [vmem:[#allocation2] sm:$0x44]
    %v1427 = vsel %vm1425, %v1412, %v1426
    %1428 = vst [vmem:[#allocation2] sm:$0x44] %v1427
    %vm1429 = vcmask 911362
    %vm1430 = vmand %vm1429, %vm699
    %v1431 = vld [vmem:[#allocation2 + $0x8] sm:$0x4]
    %v1432 = vsel %vm1430, %v1413, %v1431
    %1433 = vst [vmem:[#allocation2 + $0x8] sm:$0x4] %v1432
    %v1434 = vld [vmem:[#allocation2 + $0x18] sm:$0x44]
    %v1435 = vsel %vm1425, %v1414, %v1434
    %1436 = vst [vmem:[#allocation2 + $0x18] sm:$0x44] %v1435
    %v1437 = vld [vmem:[#allocation2 + $0x20] sm:$0x4]
    %v1438 = vsel %vm1430, %v1415, %v1437
    %1439 = vst [vmem:[#allocation2 + $0x20] sm:$0x4] %v1438
    %v1441 = vshll.u32 %v1404, 16
    %v1443 = vrot.slane %v1441, 7
    %v1445 = vshll.u32 %v1405, 16
    %v1447 = vrot.slane %v1445, 7
    %v1449 = vshll.u32 %v1406, 16
    %v1451 = vrot.slane %v1449, 7
    %v1453 = vshll.u32 %v1407, 16
    %v1455 = vrot.slane %v1453, 7
    %vm1460 = vsmask.f32 7946
    %vm1461 = vmand %vm1420, %vm1460
    %vm1462 = vsmask.f32 7962
    %vm1463 = vmand %vm1422, %vm1462
    %vm1464 = vmor %vm1463, %vm1461
    %v1465 = vld [vmem:[#allocation2] sm:$0x44]
    %v1466 = vsel %vm1464, %v1443, %v1465
    %1467 = vst [vmem:[#allocation2] sm:$0x44] %v1466
    %vm1468 = vmand %vm1429, %vm1460
    %v1469 = vld [vmem:[#allocation2 + $0x8] sm:$0x4]
    %v1470 = vsel %vm1468, %v1447, %v1469
    %1471 = vst [vmem:[#allocation2 + $0x8] sm:$0x4] %v1470
    %v1472 = vld [vmem:[#allocation2 + $0x18] sm:$0x44]
    %v1473 = vsel %vm1464, %v1451, %v1472
    %1474 = vst [vmem:[#allocation2 + $0x18] sm:$0x44] %v1473
    %v1475 = vld [vmem:[#allocation2 + $0x20] sm:$0x4]
    %v1476 = vsel %vm1468, %v1455, %v1475
    %1477 = vst [vmem:[#allocation2 + $0x20] sm:$0x4] %v1476
    %v1478 = vrot.slane %v1404, 7
    %v1479 = vrot.slane %v1405, 7
    %v1480 = vrot.slane %v1406, 7
    %v1481 = vrot.slane %v1407, 7
    %vm1486 = vcmask 1043459
    %vm1487 = vmand %vm1486, %vm175
    %vm1488 = vcmask 1047559
    %vm1489 = vsmask.f32 7424
    %vm1490 = vmand %vm1488, %vm1489
    %vm1491 = vmor %vm1490, %vm1487
    %v1492 = vld [vmem:[#allocation2] sm:$0x88]
    %v1493 = vsel %vm1491, %v1478, %v1492
    %1494 = vst [vmem:[#allocation2] sm:$0x88] %v1493
    %vm1495 = vcmask 912387
    %vm1496 = vmand %vm1495, %vm175
    %v1497 = vld [vmem:[#allocation2 + $0x8] sm:$0x8]
    %v1498 = vsel %vm1496, %v1479, %v1497
    %1499 = vst [vmem:[#allocation2 + $0x8] sm:$0x8] %v1498
    %v1500 = vld [vmem:[#allocation2 + $0x18] sm:$0x88]
    %v1501 = vsel %vm1491, %v1480, %v1500
    %1502 = vst [vmem:[#allocation2 + $0x18] sm:$0x88] %v1501
    %v1503 = vld [vmem:[#allocation2 + $0x20] sm:$0x8]
    %v1504 = vsel %vm1496, %v1481, %v1503
    %1505 = vst [vmem:[#allocation2 + $0x20] sm:$0x8] %v1504
    %vm1510 = vsmask.f32 7950
    %vm1511 = vmand %vm1486, %vm1510
    %vm1512 = vsmask.f32 7966
    %vm1513 = vmand %vm1488, %vm1512
    %vm1514 = vmor %vm1513, %vm1511
    %v1515 = vld [vmem:[#allocation2] sm:$0x88]
    %v1516 = vsel %vm1514, %v1441, %v1515
    %1517 = vst [vmem:[#allocation2] sm:$0x88] %v1516
    %vm1518 = vmand %vm1495, %vm1510
    %v1519 = vld [vmem:[#allocation2 + $0x8] sm:$0x8]
    %v1520 = vsel %vm1518, %v1445, %v1519
    %1521 = vst [vmem:[#allocation2 + $0x8] sm:$0x8] %v1520
    %v1522 = vld [vmem:[#allocation2 + $0x18] sm:$0x88]
    %v1523 = vsel %vm1514, %v1449, %v1522
    %1524 = vst [vmem:[#allocation2 + $0x18] sm:$0x88] %v1523
    %v1525 = vld [vmem:[#allocation2 + $0x20] sm:$0x8]
    %v1526 = vsel %vm1518, %v1453, %v1525
    %1527 = vst [vmem:[#allocation2 + $0x20] sm:$0x8] %v1526
    %v1534 = vrot.slane %v1210, 1
    %v1535 = vrot.slane %v1211, 1
    %v1536 = vrot.slane %v1212, 1
    %v1537 = vrot.slane %v1219, 1
    %v1538 = vrot.slane %v1220, 1
    %v1539 = vrot.slane %v1221, 1
    %v1546 = vmax.f32 %v1210, %v1534
    %v1547 = vmax.f32 %v1211, %v1535
    %v1548 = vmax.f32 %v1212, %v1536
    %v1549 = vmax.f32 %v1219, %v1537
    %v1550 = vmax.f32 %v1220, %v1538
    %v1551 = vmax.f32 %v1221, %v1539
    %v1552 = vpack.c.bf16 %v1547, %v1546
    %v1553 = vpack.c.bf16 %v1548, %v1548
    %v1554 = vpack.c.bf16 %v1550, %v1549
    %v1555 = vpack.c.bf16 %v1551, %v1551
    %v1556 = vld [vmem:[#allocation2 + $0xc] sm:$0x11]
    %v1557 = vsel %vm1256, %v1552, %v1556
    %1558 = vst [vmem:[#allocation2 + $0xc] sm:$0x11] %v1557
    %v1559 = vld [vmem:[#allocation2 + $0x14] sm:$0x1]
    %v1560 = vsel %vm1261, %v1553, %v1559
    %1561 = vst [vmem:[#allocation2 + $0x14] sm:$0x1] %v1560
    %v1562 = vld [vmem:[#allocation2 + $0x24] sm:$0x11]
    %v1563 = vsel %vm1256, %v1554, %v1562
    %1564 = vst [vmem:[#allocation2 + $0x24] sm:$0x11] %v1563
    %v1565 = vld [vmem:[#allocation2 + $0x2c] sm:$0x1]
    %v1566 = vsel %vm1261, %v1555, %v1565
    %1567 = vst [vmem:[#allocation2 + $0x2c] sm:$0x1] %v1566
    %v1569 = vshll.u32 %v1552, 16
    %v1571 = vrot.slane %v1569, 5
    %v1572 = vrot.slane %v1571, 4
    %v1574 = vshll.u32 %v1553, 16
    %v1576 = vrot.slane %v1574, 5
    %v1577 = vrot.slane %v1576, 4
    %v1579 = vshll.u32 %v1554, 16
    %v1581 = vrot.slane %v1579, 5
    %v1582 = vrot.slane %v1581, 4
    %v1584 = vshll.u32 %v1555, 16
    %v1586 = vrot.slane %v1584, 5
    %v1587 = vrot.slane %v1586, 4
    %v1592 = vld [vmem:[#allocation2 + $0xc] sm:$0x11]
    %v1593 = vsel %vm1299, %v1572, %v1592
    %1594 = vst [vmem:[#allocation2 + $0xc] sm:$0x11] %v1593
    %v1595 = vld [vmem:[#allocation2 + $0x14] sm:$0x1]
    %v1596 = vsel %vm1303, %v1577, %v1595
    %1597 = vst [vmem:[#allocation2 + $0x14] sm:$0x1] %v1596
    %v1598 = vld [vmem:[#allocation2 + $0x24] sm:$0x11]
    %v1599 = vsel %vm1299, %v1582, %v1598
    %1600 = vst [vmem:[#allocation2 + $0x24] sm:$0x11] %v1599
    %v1601 = vld [vmem:[#allocation2 + $0x2c] sm:$0x1]
    %v1602 = vsel %vm1303, %v1587, %v1601
    %1603 = vst [vmem:[#allocation2 + $0x2c] sm:$0x1] %v1602
    %v1608 = vrot.slane %v1552, 5
    %v1609 = vrot.slane %v1608, 4
    %v1610 = vrot.slane %v1553, 5
    %v1611 = vrot.slane %v1610, 4
    %v1612 = vrot.slane %v1554, 5
    %v1613 = vrot.slane %v1612, 4
    %v1614 = vrot.slane %v1555, 5
    %v1615 = vrot.slane %v1614, 4
    %v1620 = vld [vmem:[#allocation2 + $0xc] sm:$0x22]
    %v1621 = vsel %vm1335, %v1609, %v1620
    %1622 = vst [vmem:[#allocation2 + $0xc] sm:$0x22] %v1621
    %v1623 = vld [vmem:[#allocation2 + $0x14] sm:$0x2]
    %v1624 = vsel %vm1340, %v1611, %v1623
    %1625 = vst [vmem:[#allocation2 + $0x14] sm:$0x2] %v1624
    %v1626 = vld [vmem:[#allocation2 + $0x24] sm:$0x22]
    %v1627 = vsel %vm1335, %v1613, %v1626
    %1628 = vst [vmem:[#allocation2 + $0x24] sm:$0x22] %v1627
    %v1629 = vld [vmem:[#allocation2 + $0x2c] sm:$0x2]
    %v1630 = vsel %vm1340, %v1615, %v1629
    %1631 = vst [vmem:[#allocation2 + $0x2c] sm:$0x2] %v1630
    %v1632 = vrot.slane %v1569, 6
    %v1633 = vrot.slane %v1632, 4
    %v1634 = vrot.slane %v1574, 6
    %v1635 = vrot.slane %v1634, 4
    %v1636 = vrot.slane %v1579, 6
    %v1637 = vrot.slane %v1636, 4
    %v1638 = vrot.slane %v1584, 6
    %v1639 = vrot.slane %v1638, 4
    %v1644 = vld [vmem:[#allocation2 + $0xc] sm:$0x22]
    %v1645 = vsel %vm1366, %v1633, %v1644
    %1646 = vst [vmem:[#allocation2 + $0xc] sm:$0x22] %v1645
    %v1647 = vld [vmem:[#allocation2 + $0x14] sm:$0x2]
    %v1648 = vsel %vm1370, %v1635, %v1647
    %1649 = vst [vmem:[#allocation2 + $0x14] sm:$0x2] %v1648
    %v1650 = vld [vmem:[#allocation2 + $0x24] sm:$0x22]
    %v1651 = vsel %vm1366, %v1637, %v1650
    %1652 = vst [vmem:[#allocation2 + $0x24] sm:$0x22] %v1651
    %v1653 = vld [vmem:[#allocation2 + $0x2c] sm:$0x2]
    %v1654 = vsel %vm1370, %v1639, %v1653
    %1655 = vst [vmem:[#allocation2 + $0x2c] sm:$0x2] %v1654
    %v1656 = vld [vmem:[#allocation2] sm:$0xff]
    %v1657 = vld [vmem:[#allocation2 + $0x8] sm:$0xf]
    %v1658 = vld [vmem:[#allocation2 + $0x18] sm:$0xff]
    %v1659 = vld [vmem:[#allocation2 + $0x20] sm:$0xf]
    %v1660 = vld [vmem:[#allocation8] sm:$0xff]
    %v1661 = vld [vmem:[#allocation8 + $0x8] sm:$0xff]
    %v1662 = vld [vmem:[#allocation8 + $0x10] sm:$0xff]
    %v1663 = vld [vmem:[#allocation8 + $0x18] sm:$0xff]
    %v1664 = vld [vmem:[#allocation8 + $0x20] sm:$0xff]
    %v1665 = vld [vmem:[#allocation8 + $0x28] sm:$0xff]
    %v1666 = vld [vmem:[#allocation8 + $0x30] sm:$0xff]
    %v1667 = vld [vmem:[#allocation8 + $0x38] sm:$0xff]
    %v1668 = vld [vmem:[#allocation8 + $0x40] sm:$0xff]
    %v1669 = vld [vmem:[#allocation8 + $0x48] sm:$0xff]
    %v1670 = vld [vmem:[#allocation8 + $0x50] sm:$0xff]
    %v1671 = vld [vmem:[#allocation8 + $0x58] sm:$0xff]
    %v1672 = vld [vmem:[#allocation8 + $0x60] sm:$0xff]
    %v1673 = vld [vmem:[#allocation8 + $0x68] sm:$0xff]
    %v1674 = vld [vmem:[#allocation8 + $0x70] sm:$0xff]
    %v1675 = vld [vmem:[#allocation8 + $0x78] sm:$0xff]
    %v1676 = vld [vmem:[#allocation8 + $0x80] sm:$0xff]
    %v1677 = vld [vmem:[#allocation8 + $0x88] sm:$0xff]
    %v1678 = vld [vmem:[#allocation8 + $0x90] sm:$0xff]
    %v1679 = vld [vmem:[#allocation8 + $0x98] sm:$0xff]
    %v1680 = vld [vmem:[#allocation8 + $0xa0] sm:$0xff]
    %v1681 = vld [vmem:[#allocation8 + $0xa8] sm:$0xff]
    %v1682 = vld [vmem:[#allocation8 + $0xb0] sm:$0xff]
    %v1683 = vld [vmem:[#allocation8 + $0xb8] sm:$0xff]
    %v1684 = vld [vmem:[#allocation8 + $0xc0] sm:$0xff]
    %v1685 = vld [vmem:[#allocation8 + $0xc8] sm:$0xff]
    %v1686 = vld [vmem:[#allocation8 + $0xd0] sm:$0xff]
    %v1687 = vld [vmem:[#allocation8 + $0xd8] sm:$0xff]
    %v1688 = vld [vmem:[#allocation8 + $0xe0] sm:$0xff]
    %v1689 = vld [vmem:[#allocation8 + $0xe8] sm:$0xff]
    %v1690 = vld [vmem:[#allocation8 + $0xf0] sm:$0xff]
    %v1691 = vld [vmem:[#allocation8 + $0xf8] sm:$0xff]
    %v1692 = vld [vmem:[#allocation8 + $0x100] sm:$0xff]
    %v1693 = vld [vmem:[#allocation8 + $0x108] sm:$0xff]
    %v1694 = vld [vmem:[#allocation8 + $0x110] sm:$0xff]
    %v1695 = vld [vmem:[#allocation8 + $0x118] sm:$0xff]
    %v1696 = vld [vmem:[#allocation8 + $0x120] sm:$0xff]
    %v1697 = vld [vmem:[#allocation8 + $0x128] sm:$0xff]
    %v1698 = vld [vmem:[#allocation8 + $0x130] sm:$0xff]
    %v1699 = vld [vmem:[#allocation8 + $0x138] sm:$0xff]
    %v1700 = vld [vmem:[#allocation8 + $0x140] sm:$0xff]
    %v1701 = vld [vmem:[#allocation8 + $0x148] sm:$0xff]
    %v1702 = vld [vmem:[#allocation8 + $0x150] sm:$0xff]
    %v1703 = vld [vmem:[#allocation8 + $0x158] sm:$0xff]
    %v1704 = vld [vmem:[#allocation8 + $0x160] sm:$0xff]
    %v1705 = vld [vmem:[#allocation8 + $0x168] sm:$0xff]
    %v1706 = vld [vmem:[#allocation8 + $0x170] sm:$0xff]
    %v1707 = vld [vmem:[#allocation8 + $0x178] sm:$0xff]
    %v1708 = vld [vmem:[#allocation8 + $0x180] sm:$0xff]
    %v1709 = vld [vmem:[#allocation8 + $0x188] sm:$0xff]
    %v1710 = vld [vmem:[#allocation8 + $0x190] sm:$0xff]
    %v1711 = vld [vmem:[#allocation8 + $0x198] sm:$0xff]
    %v1712 = vld [vmem:[#allocation8 + $0x1a0] sm:$0xff]
    %v1713 = vld [vmem:[#allocation8 + $0x1a8] sm:$0xff]
    %v1714 = vld [vmem:[#allocation8 + $0x1b0] sm:$0xff]
    %v1715 = vld [vmem:[#allocation8 + $0x1b8] sm:$0xff]
    %v1716 = vld [vmem:[#allocation8 + $0x1c0] sm:$0xff]
    %v1717 = vld [vmem:[#allocation8 + $0x1c8] sm:$0xff]
    %v1718 = vld [vmem:[#allocation8 + $0x1d0] sm:$0xff]
    %v1719 = vld [vmem:[#allocation8 + $0x1d8] sm:$0xff]
    %v1720 = vld [vmem:[#allocation8 + $0x1e0] sm:$0xff]
    %v1721 = vld [vmem:[#allocation8 + $0x1e8] sm:$0xff]
    %v1722 = vld [vmem:[#allocation8 + $0x1f0] sm:$0xff]
    %v1723 = vld [vmem:[#allocation8 + $0x1f8] sm:$0xff]
    %v1724 = vld [vmem:[#allocation8 + $0x200] sm:$0xff]
    %v1725 = vld [vmem:[#allocation8 + $0x208] sm:$0xff]
    %v1726 = vld [vmem:[#allocation8 + $0x210] sm:$0xff]
    %v1727 = vld [vmem:[#allocation8 + $0x218] sm:$0xff]
    %v1728 = vld [vmem:[#allocation8 + $0x220] sm:$0xff]
    %v1729 = vld [vmem:[#allocation8 + $0x228] sm:$0xff]
    %v1730 = vld [vmem:[#allocation8 + $0x230] sm:$0xff]
    %v1731 = vld [vmem:[#allocation8 + $0x238] sm:$0xff]
    %v1732 = vld [vmem:[#allocation8 + $0x240] sm:$0xff]
    %v1733 = vld [vmem:[#allocation8 + $0x248] sm:$0xff]
    %v1734 = vld [vmem:[#allocation8 + $0x250] sm:$0xff]
    %v1735 = vld [vmem:[#allocation8 + $0x258] sm:$0xff]
    %v1736 = vld [vmem:[#allocation8 + $0x260] sm:$0xff]
    %v1737 = vld [vmem:[#allocation8 + $0x268] sm:$0xff]
    %v1738 = vld [vmem:[#allocation8 + $0x270] sm:$0xff]
    %v1739 = vld [vmem:[#allocation8 + $0x278] sm:$0xff]
    %v1740 = vld [vmem:[#allocation8 + $0x280] sm:$0xff]
    %v1741 = vld [vmem:[#allocation8 + $0x288] sm:$0xff]
    %v1742 = vld [vmem:[#allocation8 + $0x290] sm:$0xff]
    %v1743 = vld [vmem:[#allocation8 + $0x298] sm:$0xff]
    %v1744 = vld [vmem:[#allocation8 + $0x2a0] sm:$0xff]
    %v1745 = vld [vmem:[#allocation8 + $0x2a8] sm:$0xff]
    %v1746 = vld [vmem:[#allocation8 + $0x2b0] sm:$0xff]
    %v1747 = vld [vmem:[#allocation8 + $0x2b8] sm:$0xff]
    %v1748 = vld [vmem:[#allocation8 + $0x2c0] sm:$0xff]
    %v1749 = vld [vmem:[#allocation8 + $0x2c8] sm:$0xff]
    %v1750 = vld [vmem:[#allocation8 + $0x2d0] sm:$0xff]
    %v1751 = vld [vmem:[#allocation8 + $0x2d8] sm:$0xff]
    %v1752 = vld [vmem:[#allocation2 + $0xc] sm:$0x11]
    %v1753 = vld [vmem:[#allocation2 + $0x14] sm:$0x1]
    %v1754 = vld [vmem:[#allocation2 + $0x24] sm:$0x11]
    %v1755 = vld [vmem:[#allocation2 + $0x2c] sm:$0x1]
    %v1757 = vshrl.u32 %v1656, 16
    %v1759 = vrot.slane %v1757, 4
    %v1760 = vshll.u32 %v1656, 16
    %v1762 = vrot.slane %v1760, 5
    %v1763 = vor.u32 %v1759, %v1762
    %v1764 = vrot.slane %v1763, 4
    %v1766 = vshll.u32 %v1752, 16
    %v1768 = vrot.slane %v1766, 5
    %v1769 = vsel %vm177, %v1764, %v1768
    %v1771 = vshrl.u32 %v1657, 16
    %v1773 = vrot.slane %v1771, 4
    %v1774 = vshll.u32 %v1657, 16
    %v1776 = vrot.slane %v1774, 5
    %v1777 = vor.u32 %v1773, %v1776
    %v1778 = vrot.slane %v1777, 4
    %v1780 = vshll.u32 %v1753, 16
    %v1782 = vrot.slane %v1780, 5
    %v1783 = vsel %vm177, %v1778, %v1782
    %v1785 = vshrl.u32 %v1658, 16
    %v1787 = vrot.slane %v1785, 4
    %v1788 = vshll.u32 %v1658, 16
    %v1790 = vrot.slane %v1788, 5
    %v1791 = vor.u32 %v1787, %v1790
    %v1792 = vrot.slane %v1791, 4
    %v1794 = vshll.u32 %v1754, 16
    %v1796 = vrot.slane %v1794, 5
    %v1797 = vsel %vm177, %v1792, %v1796
    %v1799 = vshrl.u32 %v1659, 16
    %v1801 = vrot.slane %v1799, 4
    %v1802 = vshll.u32 %v1659, 16
    %v1804 = vrot.slane %v1802, 5
    %v1805 = vor.u32 %v1801, %v1804
    %v1806 = vrot.slane %v1805, 4
    %v1808 = vshll.u32 %v1755, 16
    %v1810 = vrot.slane %v1808, 5
    %v1811 = vsel %vm177, %v1806, %v1810
    %s1812 = scalar_lea.vmem [#allocation8], 736
    %v1813 = vld [vmem:[%s1812] sm:$0xff]
    %v1814 = vld [vmem:[%s1812 + $0x8] sm:$0xff]
    %v1815 = vld [vmem:[%s1812 + $0x10] sm:$0xff]
    %v1816 = vld [vmem:[%s1812 + $0x18] sm:$0xff]
    %v1817 = vld [vmem:[%s1812 + $0x20] sm:$0xff]
    %v1818 = vld [vmem:[%s1812 + $0x28] sm:$0xff]
    %v1819 = vld [vmem:[%s1812 + $0x30] sm:$0xff]
    %v1820 = vld [vmem:[%s1812 + $0x38] sm:$0xff]
    %v1821 = vld [vmem:[%s1812 + $0x40] sm:$0xff]
    %v1822 = vld [vmem:[%s1812 + $0x48] sm:$0xff]
    %v1823 = vld [vmem:[%s1812 + $0x50] sm:$0xff]
    %v1824 = vld [vmem:[%s1812 + $0x58] sm:$0xff]
    %v1825 = vld [vmem:[%s1812 + $0x60] sm:$0xff]
    %v1826 = vld [vmem:[%s1812 + $0x68] sm:$0xff]
    %v1827 = vld [vmem:[%s1812 + $0x70] sm:$0xff]
    %v1828 = vld [vmem:[%s1812 + $0x78] sm:$0xff]
    %v1829 = vld [vmem:[%s1812 + $0x80] sm:$0xff]
    %v1830 = vld [vmem:[%s1812 + $0x88] sm:$0xff]
    %v1831 = vld [vmem:[%s1812 + $0x90] sm:$0xff]
    %v1832 = vld [vmem:[%s1812 + $0x98] sm:$0xff]
    %v1833 = vld [vmem:[%s1812 + $0xa0] sm:$0xff]
    %v1834 = vld [vmem:[%s1812 + $0xa8] sm:$0xff]
    %v1835 = vld [vmem:[%s1812 + $0xb0] sm:$0xff]
    %v1836 = vld [vmem:[%s1812 + $0xb8] sm:$0xff]
    %v1837 = vld [vmem:[%s1812 + $0xc0] sm:$0xff]
    %v1838 = vld [vmem:[%s1812 + $0xc8] sm:$0xff]
    %v1839 = vld [vmem:[%s1812 + $0xd0] sm:$0xff]
    %v1840 = vld [vmem:[%s1812 + $0xd8] sm:$0xff]
    %v1841 = vld [vmem:[%s1812 + $0xe0] sm:$0xff]
    %v1842 = vld [vmem:[%s1812 + $0xe8] sm:$0xff]
    %v1843 = vld [vmem:[%s1812 + $0xf0] sm:$0xff]
    %v1844 = vld [vmem:[%s1812 + $0xf8] sm:$0xff]
    %v1845 = vld [vmem:[%s1812 + $0x100] sm:$0xff]
    %v1846 = vld [vmem:[%s1812 + $0x108] sm:$0xff]
    %v1847 = vld [vmem:[%s1812 + $0x110] sm:$0xff]
    %v1848 = vld [vmem:[%s1812 + $0x118] sm:$0xff]
    %v1849 = vld [vmem:[%s1812 + $0x120] sm:$0xff]
    %v1850 = vld [vmem:[%s1812 + $0x128] sm:$0xff]
    %v1851 = vld [vmem:[%s1812 + $0x130] sm:$0xff]
    %v1852 = vld [vmem:[%s1812 + $0x138] sm:$0xff]
    %v1853 = vld [vmem:[%s1812 + $0x140] sm:$0xff]
    %v1854 = vld [vmem:[%s1812 + $0x148] sm:$0xff]
    %v1855 = vld [vmem:[%s1812 + $0x150] sm:$0xff]
    %v1856 = vld [vmem:[%s1812 + $0x158] sm:$0xff]
    %v1857 = vld [vmem:[%s1812 + $0x160] sm:$0xff]
    %v1858 = vld [vmem:[%s1812 + $0x168] sm:$0xff]
    %v1859 = vld [vmem:[%s1812 + $0x170] sm:$0xff]
    %v1860 = vld [vmem:[%s1812 + $0x178] sm:$0xff]
    %v1861 = vld [vmem:[%s1812 + $0x180] sm:$0xff]
    %v1862 = vld [vmem:[%s1812 + $0x188] sm:$0xff]
    %v1863 = vld [vmem:[%s1812 + $0x190] sm:$0xff]
    %v1864 = vld [vmem:[%s1812 + $0x198] sm:$0xff]
    %v1865 = vld [vmem:[%s1812 + $0x1a0] sm:$0xff]
    %v1866 = vld [vmem:[%s1812 + $0x1a8] sm:$0xff]
    %v1867 = vld [vmem:[%s1812 + $0x1b0] sm:$0xff]
    %v1868 = vld [vmem:[%s1812 + $0x1b8] sm:$0xff]
    %v1869 = vld [vmem:[%s1812 + $0x1c0] sm:$0xff]
    %v1870 = vld [vmem:[%s1812 + $0x1c8] sm:$0xff]
    %v1871 = vld [vmem:[%s1812 + $0x1d0] sm:$0xff]
    %v1872 = vld [vmem:[%s1812 + $0x1d8] sm:$0xff]
    %v1873 = vld [vmem:[%s1812 + $0x1e0] sm:$0xff]
    %v1874 = vld [vmem:[%s1812 + $0x1e8] sm:$0xff]
    %v1875 = vld [vmem:[%s1812 + $0x1f0] sm:$0xff]
    %v1876 = vld [vmem:[%s1812 + $0x1f8] sm:$0xff]
    %v1877 = vld [vmem:[%s1812 + $0x200] sm:$0xff]
    %v1878 = vld [vmem:[%s1812 + $0x208] sm:$0xff]
    %v1879 = vld [vmem:[%s1812 + $0x210] sm:$0xff]
    %v1880 = vld [vmem:[%s1812 + $0x218] sm:$0xff]
    %v1881 = vld [vmem:[%s1812 + $0x220] sm:$0xff]
    %v1882 = vld [vmem:[%s1812 + $0x228] sm:$0xff]
    %v1883 = vld [vmem:[%s1812 + $0x230] sm:$0xff]
    %v1884 = vld [vmem:[%s1812 + $0x238] sm:$0xff]
    %v1885 = vld [vmem:[%s1812 + $0x240] sm:$0xff]
    %v1886 = vld [vmem:[%s1812 + $0x248] sm:$0xff]
    %v1887 = vld [vmem:[%s1812 + $0x250] sm:$0xff]
    %v1888 = vld [vmem:[%s1812 + $0x258] sm:$0xff]
    %v1889 = vld [vmem:[%s1812 + $0x260] sm:$0xff]
    %v1890 = vld [vmem:[%s1812 + $0x268] sm:$0xff]
    %v1891 = vld [vmem:[%s1812 + $0x270] sm:$0xff]
    %v1892 = vld [vmem:[%s1812 + $0x278] sm:$0xff]
    %v1893 = vld [vmem:[%s1812 + $0x280] sm:$0xff]
    %v1894 = vld [vmem:[%s1812 + $0x288] sm:$0xff]
    %v1895 = vld [vmem:[%s1812 + $0x290] sm:$0xff]
    %v1896 = vld [vmem:[%s1812 + $0x298] sm:$0xff]
    %v1897 = vld [vmem:[%s1812 + $0x2a0] sm:$0xff]
    %v1898 = vld [vmem:[%s1812 + $0x2a8] sm:$0xff]
    %v1899 = vld [vmem:[%s1812 + $0x2b0] sm:$0xff]
    %v1900 = vld [vmem:[%s1812 + $0x2b8] sm:$0xff]
    %v1901 = vld [vmem:[%s1812 + $0x2c0] sm:$0xff]
    %v1902 = vld [vmem:[%s1812 + $0x2c8] sm:$0xff]
    %v1903 = vld [vmem:[%s1812 + $0x2d0] sm:$0xff]
    %v1904 = vld [vmem:[%s1812 + $0x2d8] sm:$0xff]
    %v1905 = vunpack.c.l.b16 %v1769
    %v1906 = vunpack.c.h.b16 %v1769
    %v1907 = vunpack.c.l.b16 %v1783
    %v1908 = vunpack.c.l.b16 %v1797
    %v1909 = vunpack.c.h.b16 %v1797
    %v1910 = vunpack.c.l.b16 %v1811
    %v1911 = vpack.c.b16 %v1908, %v1905
    %v1912 = vpack.c.b16 %v1909, %v1906
    %v1913 = vpack.c.b16 %v1910, %v1907
    %v2008 = vunpack.c.l.b16 %v1813
    %v2009 = vunpack.c.h.b16 %v1813
    %v2010 = vunpack.c.l.b16 %v1814
    %v2011 = vunpack.c.h.b16 %v1814
    %v2012 = vunpack.c.l.b16 %v1815
    %v2013 = vunpack.c.h.b16 %v1815
    %v2014 = vunpack.c.l.b16 %v1816
    %v2015 = vunpack.c.h.b16 %v1816
    %v2016 = vunpack.c.l.b16 %v1817
    %v2017 = vunpack.c.h.b16 %v1817
    %v2018 = vunpack.c.l.b16 %v1818
    %v2019 = vunpack.c.h.b16 %v1818
    %v2020 = vunpack.c.l.b16 %v1819
    %v2021 = vunpack.c.h.b16 %v1819
    %v2022 = vunpack.c.l.b16 %v1820
    %v2023 = vunpack.c.h.b16 %v1820
    %v2024 = vunpack.c.l.b16 %v1821
    %v2025 = vunpack.c.h.b16 %v1821
    %v2026 = vunpack.c.l.b16 %v1822
    %v2027 = vunpack.c.h.b16 %v1822
    %v2028 = vunpack.c.l.b16 %v1823
    %v2029 = vunpack.c.h.b16 %v1823
    %v2030 = vunpack.c.l.b16 %v1824
    %v2031 = vunpack.c.h.b16 %v1824
    %v2032 = vunpack.c.l.b16 %v1825
    %v2033 = vunpack.c.h.b16 %v1825
    %v2034 = vunpack.c.l.b16 %v1826
    %v2035 = vunpack.c.h.b16 %v1826
    %v2036 = vunpack.c.l.b16 %v1827
    %v2037 = vunpack.c.h.b16 %v1827
    %v2038 = vunpack.c.l.b16 %v1828
    %v2039 = vunpack.c.h.b16 %v1828
    %v2040 = vunpack.c.l.b16 %v1829
    %v2041 = vunpack.c.h.b16 %v1829
    %v2042 = vunpack.c.l.b16 %v1830
    %v2043 = vunpack.c.h.b16 %v1830
    %v2044 = vunpack.c.l.b16 %v1831
    %v2045 = vunpack.c.h.b16 %v1831
    %v2046 = vunpack.c.l.b16 %v1832
    %v2047 = vunpack.c.h.b16 %v1832
    %v2048 = vunpack.c.l.b16 %v1833
    %v2049 = vunpack.c.h.b16 %v1833
    %v2050 = vunpack.c.l.b16 %v1834
    %v2051 = vunpack.c.h.b16 %v1834
    %v2052 = vunpack.c.l.b16 %v1835
    %v2053 = vunpack.c.h.b16 %v1835
    %v2054 = vunpack.c.l.b16 %v1836
    %v2055 = vunpack.c.h.b16 %v1836
    %v2056 = vunpack.c.l.b16 %v1837
    %v2057 = vunpack.c.h.b16 %v1837
    %v2058 = vunpack.c.l.b16 %v1838
    %v2059 = vunpack.c.h.b16 %v1838
    %v2060 = vunpack.c.l.b16 %v1839
    %v2061 = vunpack.c.h.b16 %v1839
    %v2062 = vunpack.c.l.b16 %v1840
    %v2063 = vunpack.c.h.b16 %v1840
    %v2064 = vunpack.c.l.b16 %v1841
    %v2065 = vunpack.c.h.b16 %v1841
    %v2066 = vunpack.c.l.b16 %v1842
    %v2067 = vunpack.c.h.b16 %v1842
    %v2068 = vunpack.c.l.b16 %v1843
    %v2069 = vunpack.c.h.b16 %v1843
    %v2070 = vunpack.c.l.b16 %v1844
    %v2071 = vunpack.c.h.b16 %v1844
    %v2072 = vunpack.c.l.b16 %v1845
    %v2073 = vunpack.c.h.b16 %v1845
    %v2074 = vunpack.c.l.b16 %v1846
    %v2075 = vunpack.c.h.b16 %v1846
    %v2076 = vunpack.c.l.b16 %v1847
    %v2077 = vunpack.c.h.b16 %v1847
    %v2078 = vunpack.c.l.b16 %v1848
    %v2079 = vunpack.c.h.b16 %v1848
    %v2080 = vunpack.c.l.b16 %v1849
    %v2081 = vunpack.c.h.b16 %v1849
    %v2082 = vunpack.c.l.b16 %v1850
    %v2083 = vunpack.c.h.b16 %v1850
    %v2084 = vunpack.c.l.b16 %v1851
    %v2085 = vunpack.c.h.b16 %v1851
    %v2086 = vunpack.c.l.b16 %v1852
    %v2087 = vunpack.c.h.b16 %v1852
    %v2088 = vunpack.c.l.b16 %v1853
    %v2089 = vunpack.c.h.b16 %v1853
    %v2090 = vunpack.c.l.b16 %v1854
    %v2091 = vunpack.c.h.b16 %v1854
    %v2092 = vunpack.c.l.b16 %v1855
    %v2093 = vunpack.c.h.b16 %v1855
    %v2094 = vunpack.c.l.b16 %v1856
    %v2095 = vunpack.c.h.b16 %v1856
    %v2096 = vunpack.c.l.b16 %v1857
    %v2097 = vunpack.c.h.b16 %v1857
    %v2098 = vunpack.c.l.b16 %v1858
    %v2099 = vunpack.c.h.b16 %v1858
    %v2100 = vunpack.c.l.b16 %v1859
    %v2101 = vunpack.c.h.b16 %v1859
    %v2102 = vunpack.c.l.b16 %v1860
    %v2103 = vunpack.c.h.b16 %v1860
    %v2104 = vunpack.c.l.b16 %v1861
    %v2105 = vunpack.c.h.b16 %v1861
    %v2106 = vunpack.c.l.b16 %v1862
    %v2107 = vunpack.c.h.b16 %v1862
    %v2108 = vunpack.c.l.b16 %v1863
    %v2109 = vunpack.c.h.b16 %v1863
    %v2110 = vunpack.c.l.b16 %v1864
    %v2111 = vunpack.c.h.b16 %v1864
    %v2112 = vunpack.c.l.b16 %v1865
    %v2113 = vunpack.c.h.b16 %v1865
    %v2114 = vunpack.c.l.b16 %v1866
    %v2115 = vunpack.c.h.b16 %v1866
    %v2116 = vunpack.c.l.b16 %v1867
    %v2117 = vunpack.c.h.b16 %v1867
    %v2118 = vunpack.c.l.b16 %v1868
    %v2119 = vunpack.c.h.b16 %v1868
    %v2120 = vunpack.c.l.b16 %v1869
    %v2121 = vunpack.c.h.b16 %v1869
    %v2122 = vunpack.c.l.b16 %v1870
    %v2123 = vunpack.c.h.b16 %v1870
    %v2124 = vunpack.c.l.b16 %v1871
    %v2125 = vunpack.c.h.b16 %v1871
    %v2126 = vunpack.c.l.b16 %v1872
    %v2127 = vunpack.c.h.b16 %v1872
    %v2128 = vunpack.c.l.b16 %v1873
    %v2129 = vunpack.c.h.b16 %v1873
    %v2130 = vunpack.c.l.b16 %v1874
    %v2131 = vunpack.c.h.b16 %v1874
    %v2132 = vunpack.c.l.b16 %v1875
    %v2133 = vunpack.c.h.b16 %v1875
    %v2134 = vunpack.c.l.b16 %v1876
    %v2135 = vunpack.c.h.b16 %v1876
    %v2136 = vunpack.c.l.b16 %v1877
    %v2137 = vunpack.c.h.b16 %v1877
    %v2138 = vunpack.c.l.b16 %v1878
    %v2139 = vunpack.c.h.b16 %v1878
    %v2140 = vunpack.c.l.b16 %v1879
    %v2141 = vunpack.c.h.b16 %v1879
    %v2142 = vunpack.c.l.b16 %v1880
    %v2143 = vunpack.c.h.b16 %v1880
    %v2144 = vunpack.c.l.b16 %v1881
    %v2145 = vunpack.c.h.b16 %v1881
    %v2146 = vunpack.c.l.b16 %v1882
    %v2147 = vunpack.c.h.b16 %v1882
    %v2148 = vunpack.c.l.b16 %v1883
    %v2149 = vunpack.c.h.b16 %v1883
    %v2150 = vunpack.c.l.b16 %v1884
    %v2151 = vunpack.c.h.b16 %v1884
    %v2152 = vunpack.c.l.b16 %v1885
    %v2153 = vunpack.c.h.b16 %v1885
    %v2154 = vunpack.c.l.b16 %v1886
    %v2155 = vunpack.c.h.b16 %v1886
    %v2156 = vunpack.c.l.b16 %v1887
    %v2157 = vunpack.c.h.b16 %v1887
    %v2158 = vunpack.c.l.b16 %v1888
    %v2159 = vunpack.c.h.b16 %v1888
    %v2160 = vunpack.c.l.b16 %v1889
    %v2161 = vunpack.c.h.b16 %v1889
    %v2162 = vunpack.c.l.b16 %v1890
    %v2163 = vunpack.c.h.b16 %v1890
    %v2164 = vunpack.c.l.b16 %v1891
    %v2165 = vunpack.c.h.b16 %v1891
    %v2166 = vunpack.c.l.b16 %v1892
    %v2167 = vunpack.c.h.b16 %v1892
    %v2168 = vunpack.c.l.b16 %v1893
    %v2169 = vunpack.c.h.b16 %v1893
    %v2170 = vunpack.c.l.b16 %v1894
    %v2171 = vunpack.c.h.b16 %v1894
    %v2172 = vunpack.c.l.b16 %v1895
    %v2173 = vunpack.c.h.b16 %v1895
    %v2174 = vunpack.c.l.b16 %v1896
    %v2175 = vunpack.c.h.b16 %v1896
    %v2176 = vunpack.c.l.b16 %v1897
    %v2177 = vunpack.c.h.b16 %v1897
    %v2178 = vunpack.c.l.b16 %v1898
    %v2179 = vunpack.c.h.b16 %v1898
    %v2180 = vunpack.c.l.b16 %v1899
    %v2181 = vunpack.c.h.b16 %v1899
    %v2182 = vunpack.c.l.b16 %v1900
    %v2183 = vunpack.c.h.b16 %v1900
    %v2184 = vunpack.c.l.b16 %v1901
    %v2185 = vunpack.c.h.b16 %v1901
    %v2186 = vunpack.c.l.b16 %v1902
    %v2187 = vunpack.c.h.b16 %v1902
    %v2188 = vunpack.c.l.b16 %v1903
    %v2189 = vunpack.c.h.b16 %v1903
    %v2190 = vunpack.c.l.b16 %v1904
    %v2191 = vunpack.c.h.b16 %v1904
    %v2192 = vpack.c.b16 %v2012, %v2008
    %v2193 = vpack.c.b16 %v2013, %v2009
    %v2194 = vpack.c.b16 %v2014, %v2010
    %v2195 = vpack.c.b16 %v2015, %v2011
    %v2196 = vpack.c.b16 %v2020, %v2016
    %v2197 = vpack.c.b16 %v2021, %v2017
    %v2198 = vpack.c.b16 %v2022, %v2018
    %v2199 = vpack.c.b16 %v2023, %v2019
    %v2200 = vpack.c.b16 %v2028, %v2024
    %v2201 = vpack.c.b16 %v2029, %v2025
    %v2202 = vpack.c.b16 %v2030, %v2026
    %v2203 = vpack.c.b16 %v2031, %v2027
    %v2204 = vpack.c.b16 %v2036, %v2032
    %v2205 = vpack.c.b16 %v2037, %v2033
    %v2206 = vpack.c.b16 %v2038, %v2034
    %v2207 = vpack.c.b16 %v2039, %v2035
    %v2208 = vpack.c.b16 %v2044, %v2040
    %v2209 = vpack.c.b16 %v2045, %v2041
    %v2210 = vpack.c.b16 %v2046, %v2042
    %v2211 = vpack.c.b16 %v2047, %v2043
    %v2212 = vpack.c.b16 %v2052, %v2048
    %v2213 = vpack.c.b16 %v2053, %v2049
    %v2214 = vpack.c.b16 %v2054, %v2050
    %v2215 = vpack.c.b16 %v2055, %v2051
    %v2216 = vpack.c.b16 %v2060, %v2056
    %v2217 = vpack.c.b16 %v2061, %v2057
    %v2218 = vpack.c.b16 %v2062, %v2058
    %v2219 = vpack.c.b16 %v2063, %v2059
    %v2220 = vpack.c.b16 %v2068, %v2064
    %v2221 = vpack.c.b16 %v2069, %v2065
    %v2222 = vpack.c.b16 %v2070, %v2066
    %v2223 = vpack.c.b16 %v2071, %v2067
    %v2224 = vpack.c.b16 %v2076, %v2072
    %v2225 = vpack.c.b16 %v2077, %v2073
    %v2226 = vpack.c.b16 %v2078, %v2074
    %v2227 = vpack.c.b16 %v2079, %v2075
    %v2228 = vpack.c.b16 %v2084, %v2080
    %v2229 = vpack.c.b16 %v2085, %v2081
    %v2230 = vpack.c.b16 %v2086, %v2082
    %v2231 = vpack.c.b16 %v2087, %v2083
    %v2232 = vpack.c.b16 %v2092, %v2088
    %v2233 = vpack.c.b16 %v2093, %v2089
    %v2234 = vpack.c.b16 %v2094, %v2090
    %v2235 = vpack.c.b16 %v2095, %v2091
    %v2236 = vpack.c.b16 %v2100, %v2096
    %v2237 = vpack.c.b16 %v2101, %v2097
    %v2238 = vpack.c.b16 %v2102, %v2098
    %v2239 = vpack.c.b16 %v2103, %v2099
    %v2240 = vpack.c.b16 %v2108, %v2104
    %v2241 = vpack.c.b16 %v2109, %v2105
    %v2242 = vpack.c.b16 %v2110, %v2106
    %v2243 = vpack.c.b16 %v2111, %v2107
    %v2244 = vpack.c.b16 %v2116, %v2112
    %v2245 = vpack.c.b16 %v2117, %v2113
    %v2246 = vpack.c.b16 %v2118, %v2114
    %v2247 = vpack.c.b16 %v2119, %v2115
    %v2248 = vpack.c.b16 %v2124, %v2120
    %v2249 = vpack.c.b16 %v2125, %v2121
    %v2250 = vpack.c.b16 %v2126, %v2122
    %v2251 = vpack.c.b16 %v2127, %v2123
    %v2252 = vpack.c.b16 %v2132, %v2128
    %v2253 = vpack.c.b16 %v2133, %v2129
    %v2254 = vpack.c.b16 %v2134, %v2130
    %v2255 = vpack.c.b16 %v2135, %v2131
    %v2256 = vpack.c.b16 %v2140, %v2136
    %v2257 = vpack.c.b16 %v2141, %v2137
    %v2258 = vpack.c.b16 %v2142, %v2138
    %v2259 = vpack.c.b16 %v2143, %v2139
    %v2260 = vpack.c.b16 %v2148, %v2144
    %v2261 = vpack.c.b16 %v2149, %v2145
    %v2262 = vpack.c.b16 %v2150, %v2146
    %v2263 = vpack.c.b16 %v2151, %v2147
    %v2264 = vpack.c.b16 %v2156, %v2152
    %v2265 = vpack.c.b16 %v2157, %v2153
    %v2266 = vpack.c.b16 %v2158, %v2154
    %v2267 = vpack.c.b16 %v2159, %v2155
    %v2268 = vpack.c.b16 %v2164, %v2160
    %v2269 = vpack.c.b16 %v2165, %v2161
    %v2270 = vpack.c.b16 %v2166, %v2162
    %v2271 = vpack.c.b16 %v2167, %v2163
    %v2272 = vpack.c.b16 %v2172, %v2168
    %v2273 = vpack.c.b16 %v2173, %v2169
    %v2274 = vpack.c.b16 %v2174, %v2170
    %v2275 = vpack.c.b16 %v2175, %v2171
    %v2276 = vpack.c.b16 %v2180, %v2176
    %v2277 = vpack.c.b16 %v2181, %v2177
    %v2278 = vpack.c.b16 %v2182, %v2178
    %v2279 = vpack.c.b16 %v2183, %v2179
    %v2280 = vpack.c.b16 %v2188, %v2184
    %v2281 = vpack.c.b16 %v2189, %v2185
    %v2282 = vpack.c.b16 %v2190, %v2186
    %v2283 = vpack.c.b16 %v2191, %v2187
    %v2377 = vsel %vm1173, %v1913, 0
    %2379 = vmatpush.bf16.msra.mxu0 %v2220
    %2380 = vmatpush.bf16.msra.mxu0 %v2216
    %2381 = vmatpush.bf16.msra.mxu0 %v2212
    %2382 = vmatpush.bf16.msra.mxu0 %v2208
    %2383 = vmatpush.bf16.msra.mxu0 %v2204
    %2384 = vmatpush.bf16.msra.mxu0 %v2200
    %2385 = vmatpush.bf16.msra.mxu0 %v2196
    %2386 = vmatpush.bf16.msra.mxu0 %v2192
    %2387 = vmatmul.bf16.gmra.mxu0 %v1911
    %v2388 = vpop.f32.mrf.mxu0
    %v2389 = vadd.f32 0.0, %v2388
    %v2390 = vpop.f32.mrf.mxu0
    %v2391 = vadd.f32 0.0, %v2390
    %2392 = vdwg.mxu0
    %2393 = vmatpush.bf16.msra.mxu0 %v2252
    %2394 = vmatpush.bf16.msra.mxu0 %v2248
    %2395 = vmatpush.bf16.msra.mxu0 %v2244
    %2396 = vmatpush.bf16.msra.mxu0 %v2240
    %2397 = vmatpush.bf16.msra.mxu0 %v2236
    %2398 = vmatpush.bf16.msra.mxu0 %v2232
    %2399 = vmatpush.bf16.msra.mxu0 %v2228
    %2400 = vmatpush.bf16.msra.mxu0 %v2224
    %2401 = vmatmul.bf16.gmra.mxu0 %v1912
    %v2402 = vpop.f32.mrf.mxu0
    %v2403 = vadd.f32 %v2389, %v2402
    %v2404 = vpop.f32.mrf.mxu0
    %v2405 = vadd.f32 %v2391, %v2404
    %2406 = vdwg.mxu0
    %2407 = vmatpush.bf16.msra.mxu0 0
    %2408 = vmatpush.bf16.msra.mxu0 %v2280
    %2409 = vmatpush.bf16.msra.mxu0 %v2276
    %2410 = vmatpush.bf16.msra.mxu0 %v2272
    %2411 = vmatpush.bf16.msra.mxu0 %v2268
    %2412 = vmatpush.bf16.msra.mxu0 %v2264
    %2413 = vmatpush.bf16.msra.mxu0 %v2260
    %2414 = vmatpush.bf16.msra.mxu0 %v2256
    %2415 = vmatmul.bf16.gmra.mxu0 %v2377
    %v2416 = vpop.f32.mrf.mxu0
    %v2417 = vadd.f32 %v2403, %v2416
    %v2418 = vpop.f32.mrf.mxu0
    %v2419 = vadd.f32 %v2405, %v2418
    %2420 = vdwg.mxu0
    %2421 = vmatpush.bf16.msra.mxu0 %v2221
    %2422 = vmatpush.bf16.msra.mxu0 %v2217
    %2423 = vmatpush.bf16.msra.mxu0 %v2213
    %2424 = vmatpush.bf16.msra.mxu0 %v2209
    %2425 = vmatpush.bf16.msra.mxu0 %v2205
    %2426 = vmatpush.bf16.msra.mxu0 %v2201
    %2427 = vmatpush.bf16.msra.mxu0 %v2197
    %2428 = vmatpush.bf16.msra.mxu0 %v2193
    %2429 = vmatmul.bf16.gmra.mxu0 %v1911
    %v2430 = vpop.f32.mrf.mxu0
    %v2431 = vadd.f32 0.0, %v2430
    %v2432 = vpop.f32.mrf.mxu0
    %v2433 = vadd.f32 0.0, %v2432
    %2434 = vdwg.mxu0
    %2435 = vmatpush.bf16.msra.mxu0 %v2253
    %2436 = vmatpush.bf16.msra.mxu0 %v2249
    %2437 = vmatpush.bf16.msra.mxu0 %v2245
    %2438 = vmatpush.bf16.msra.mxu0 %v2241
    %2439 = vmatpush.bf16.msra.mxu0 %v2237
    %2440 = vmatpush.bf16.msra.mxu0 %v2233
    %2441 = vmatpush.bf16.msra.mxu0 %v2229
    %2442 = vmatpush.bf16.msra.mxu0 %v2225
    %2443 = vmatmul.bf16.gmra.mxu0 %v1912
    %v2444 = vpop.f32.mrf.mxu0
    %v2445 = vadd.f32 %v2431, %v2444
    %v2446 = vpop.f32.mrf.mxu0
    %v2447 = vadd.f32 %v2433, %v2446
    %2448 = vdwg.mxu0
    %2449 = vmatpush.bf16.msra.mxu0 0
    %2450 = vmatpush.bf16.msra.mxu0 %v2281
    %2451 = vmatpush.bf16.msra.mxu0 %v2277
    %2452 = vmatpush.bf16.msra.mxu0 %v2273
    %2453 = vmatpush.bf16.msra.mxu0 %v2269
    %2454 = vmatpush.bf16.msra.mxu0 %v2265
    %2455 = vmatpush.bf16.msra.mxu0 %v2261
    %2456 = vmatpush.bf16.msra.mxu0 %v2257
    %2457 = vmatmul.bf16.gmra.mxu0 %v2377
    %v2458 = vpop.f32.mrf.mxu0
    %v2459 = vadd.f32 %v2445, %v2458
    %v2460 = vpop.f32.mrf.mxu0
    %v2461 = vadd.f32 %v2447, %v2460
    %2462 = vdwg.mxu0
    %2463 = vmatpush.bf16.msra.mxu0 %v2222
    %2464 = vmatpush.bf16.msra.mxu0 %v2218
    %2465 = vmatpush.bf16.msra.mxu0 %v2214
    %2466 = vmatpush.bf16.msra.mxu0 %v2210
    %2467 = vmatpush.bf16.msra.mxu0 %v2206
    %2468 = vmatpush.bf16.msra.mxu0 %v2202
    %2469 = vmatpush.bf16.msra.mxu0 %v2198
    %2470 = vmatpush.bf16.msra.mxu0 %v2194
    %2471 = vmatmul.bf16.gmra.mxu0 %v1911
    %v2472 = vpop.f32.mrf.mxu0
    %v2473 = vadd.f32 0.0, %v2472
    %v2474 = vpop.f32.mrf.mxu0
    %v2475 = vadd.f32 0.0, %v2474
    %2476 = vdwg.mxu0
    %2477 = vmatpush.bf16.msra.mxu0 %v2254
    %2478 = vmatpush.bf16.msra.mxu0 %v2250
    %2479 = vmatpush.bf16.msra.mxu0 %v2246
    %2480 = vmatpush.bf16.msra.mxu0 %v2242
    %2481 = vmatpush.bf16.msra.mxu0 %v2238
    %2482 = vmatpush.bf16.msra.mxu0 %v2234
    %2483 = vmatpush.bf16.msra.mxu0 %v2230
    %2484 = vmatpush.bf16.msra.mxu0 %v2226
    %2485 = vmatmul.bf16.gmra.mxu0 %v1912
    %v2486 = vpop.f32.mrf.mxu0
    %v2487 = vadd.f32 %v2473, %v2486
    %v2488 = vpop.f32.mrf.mxu0
    %v2489 = vadd.f32 %v2475, %v2488
    %2490 = vdwg.mxu0
    %2491 = vmatpush.bf16.msra.mxu0 0
    %2492 = vmatpush.bf16.msra.mxu0 %v2282
    %2493 = vmatpush.bf16.msra.mxu0 %v2278
    %2494 = vmatpush.bf16.msra.mxu0 %v2274
    %2495 = vmatpush.bf16.msra.mxu0 %v2270
    %2496 = vmatpush.bf16.msra.mxu0 %v2266
    %2497 = vmatpush.bf16.msra.mxu0 %v2262
    %2498 = vmatpush.bf16.msra.mxu0 %v2258
    %2499 = vmatmul.bf16.gmra.mxu0 %v2377
    %v2500 = vpop.f32.mrf.mxu0
    %v2501 = vadd.f32 %v2487, %v2500
    %v2502 = vpop.f32.mrf.mxu0
    %v2503 = vadd.f32 %v2489, %v2502
    %2504 = vdwg.mxu0
    %2505 = vmatpush.bf16.msra.mxu0 %v2223
    %2506 = vmatpush.bf16.msra.mxu0 %v2219
    %2507 = vmatpush.bf16.msra.mxu0 %v2215
    %2508 = vmatpush.bf16.msra.mxu0 %v2211
    %2509 = vmatpush.bf16.msra.mxu0 %v2207
    %2510 = vmatpush.bf16.msra.mxu0 %v2203
    %2511 = vmatpush.bf16.msra.mxu0 %v2199
    %2512 = vmatpush.bf16.msra.mxu0 %v2195
    %2513 = vmatmul.bf16.gmra.mxu0 %v1911
    %v2514 = vpop.f32.mrf.mxu0
    %v2515 = vadd.f32 0.0, %v2514
    %v2516 = vpop.f32.mrf.mxu0
    %v2517 = vadd.f32 0.0, %v2516
    %2518 = vdwg.mxu0
    %2519 = vmatpush.bf16.msra.mxu0 %v2255
    %2520 = vmatpush.bf16.msra.mxu0 %v2251
    %2521 = vmatpush.bf16.msra.mxu0 %v2247
    %2522 = vmatpush.bf16.msra.mxu0 %v2243
    %2523 = vmatpush.bf16.msra.mxu0 %v2239
    %2524 = vmatpush.bf16.msra.mxu0 %v2235
    %2525 = vmatpush.bf16.msra.mxu0 %v2231
    %2526 = vmatpush.bf16.msra.mxu0 %v2227
    %2527 = vmatmul.bf16.gmra.mxu0 %v1912
    %v2528 = vpop.f32.mrf.mxu0
    %v2529 = vadd.f32 %v2515, %v2528
    %v2530 = vpop.f32.mrf.mxu0
    %v2531 = vadd.f32 %v2517, %v2530
    %2532 = vdwg.mxu0
    %2533 = vmatpush.bf16.msra.mxu0 0
    %2534 = vmatpush.bf16.msra.mxu0 %v2283
    %2535 = vmatpush.bf16.msra.mxu0 %v2279
    %2536 = vmatpush.bf16.msra.mxu0 %v2275
    %2537 = vmatpush.bf16.msra.mxu0 %v2271
    %2538 = vmatpush.bf16.msra.mxu0 %v2267
    %2539 = vmatpush.bf16.msra.mxu0 %v2263
    %2540 = vmatpush.bf16.msra.mxu0 %v2259
    %2541 = vmatmul.bf16.gmra.mxu0 %v2377
    %v2542 = vpop.f32.mrf.mxu0
    %v2543 = vadd.f32 %v2529, %v2542
    %v2544 = vpop.f32.mrf.mxu0
    %v2545 = vadd.f32 %v2531, %v2544
    %2546 = vdwg.mxu0
    %v2551 = vunpack.c.l.b16 %v1656
    %v2552 = vunpack.c.h.b16 %v1656
    %v2553 = vunpack.c.l.b16 %v1657
    %v2554 = vunpack.c.l.b16 %v1658
    %v2555 = vunpack.c.h.b16 %v1658
    %v2556 = vunpack.c.l.b16 %v1659
    %v2557 = vpack.c.b16 %v2554, %v2551
    %v2558 = vpack.c.b16 %v2555, %v2552
    %v2559 = vpack.c.b16 %v2556, %v2553
    %v2654 = vunpack.c.l.b16 %v1660
    %v2655 = vunpack.c.h.b16 %v1660
    %v2656 = vunpack.c.l.b16 %v1661
    %v2657 = vunpack.c.h.b16 %v1661
    %v2658 = vunpack.c.l.b16 %v1662
    %v2659 = vunpack.c.h.b16 %v1662
    %v2660 = vunpack.c.l.b16 %v1663
    %v2661 = vunpack.c.h.b16 %v1663
    %v2662 = vunpack.c.l.b16 %v1664
    %v2663 = vunpack.c.h.b16 %v1664
    %v2664 = vunpack.c.l.b16 %v1665
    %v2665 = vunpack.c.h.b16 %v1665
    %v2666 = vunpack.c.l.b16 %v1666
    %v2667 = vunpack.c.h.b16 %v1666
    %v2668 = vunpack.c.l.b16 %v1667
    %v2669 = vunpack.c.h.b16 %v1667
    %v2670 = vunpack.c.l.b16 %v1668
    %v2671 = vunpack.c.h.b16 %v1668
    %v2672 = vunpack.c.l.b16 %v1669
    %v2673 = vunpack.c.h.b16 %v1669
    %v2674 = vunpack.c.l.b16 %v1670
    %v2675 = vunpack.c.h.b16 %v1670
    %v2676 = vunpack.c.l.b16 %v1671
    %v2677 = vunpack.c.h.b16 %v1671
    %v2678 = vunpack.c.l.b16 %v1672
    %v2679 = vunpack.c.h.b16 %v1672
    %v2680 = vunpack.c.l.b16 %v1673
    %v2681 = vunpack.c.h.b16 %v1673
    %v2682 = vunpack.c.l.b16 %v1674
    %v2683 = vunpack.c.h.b16 %v1674
    %v2684 = vunpack.c.l.b16 %v1675
    %v2685 = vunpack.c.h.b16 %v1675
    %v2686 = vunpack.c.l.b16 %v1676
    %v2687 = vunpack.c.h.b16 %v1676
    %v2688 = vunpack.c.l.b16 %v1677
    %v2689 = vunpack.c.h.b16 %v1677
    %v2690 = vunpack.c.l.b16 %v1678
    %v2691 = vunpack.c.h.b16 %v1678
    %v2692 = vunpack.c.l.b16 %v1679
    %v2693 = vunpack.c.h.b16 %v1679
    %v2694 = vunpack.c.l.b16 %v1680
    %v2695 = vunpack.c.h.b16 %v1680
    %v2696 = vunpack.c.l.b16 %v1681
    %v2697 = vunpack.c.h.b16 %v1681
    %v2698 = vunpack.c.l.b16 %v1682
    %v2699 = vunpack.c.h.b16 %v1682
    %v2700 = vunpack.c.l.b16 %v1683
    %v2701 = vunpack.c.h.b16 %v1683
    %v2702 = vunpack.c.l.b16 %v1684
    %v2703 = vunpack.c.h.b16 %v1684
    %v2704 = vunpack.c.l.b16 %v1685
    %v2705 = vunpack.c.h.b16 %v1685
    %v2706 = vunpack.c.l.b16 %v1686
    %v2707 = vunpack.c.h.b16 %v1686
    %v2708 = vunpack.c.l.b16 %v1687
    %v2709 = vunpack.c.h.b16 %v1687
    %v2710 = vunpack.c.l.b16 %v1688
    %v2711 = vunpack.c.h.b16 %v1688
    %v2712 = vunpack.c.l.b16 %v1689
    %v2713 = vunpack.c.h.b16 %v1689
    %v2714 = vunpack.c.l.b16 %v1690
    %v2715 = vunpack.c.h.b16 %v1690
    %v2716 = vunpack.c.l.b16 %v1691
    %v2717 = vunpack.c.h.b16 %v1691
    %v2718 = vunpack.c.l.b16 %v1692
    %v2719 = vunpack.c.h.b16 %v1692
    %v2720 = vunpack.c.l.b16 %v1693
    %v2721 = vunpack.c.h.b16 %v1693
    %v2722 = vunpack.c.l.b16 %v1694
    %v2723 = vunpack.c.h.b16 %v1694
    %v2724 = vunpack.c.l.b16 %v1695
    %v2725 = vunpack.c.h.b16 %v1695
    %v2726 = vunpack.c.l.b16 %v1696
    %v2727 = vunpack.c.h.b16 %v1696
    %v2728 = vunpack.c.l.b16 %v1697
    %v2729 = vunpack.c.h.b16 %v1697
    %v2730 = vunpack.c.l.b16 %v1698
    %v2731 = vunpack.c.h.b16 %v1698
    %v2732 = vunpack.c.l.b16 %v1699
    %v2733 = vunpack.c.h.b16 %v1699
    %v2734 = vunpack.c.l.b16 %v1700
    %v2735 = vunpack.c.h.b16 %v1700
    %v2736 = vunpack.c.l.b16 %v1701
    %v2737 = vunpack.c.h.b16 %v1701
    %v2738 = vunpack.c.l.b16 %v1702
    %v2739 = vunpack.c.h.b16 %v1702
    %v2740 = vunpack.c.l.b16 %v1703
    %v2741 = vunpack.c.h.b16 %v1703
    %v2742 = vunpack.c.l.b16 %v1704
    %v2743 = vunpack.c.h.b16 %v1704
    %v2744 = vunpack.c.l.b16 %v1705
    %v2745 = vunpack.c.h.b16 %v1705
    %v2746 = vunpack.c.l.b16 %v1706
    %v2747 = vunpack.c.h.b16 %v1706
    %v2748 = vunpack.c.l.b16 %v1707
    %v2749 = vunpack.c.h.b16 %v1707
    %v2750 = vunpack.c.l.b16 %v1708
    %v2751 = vunpack.c.h.b16 %v1708
    %v2752 = vunpack.c.l.b16 %v1709
    %v2753 = vunpack.c.h.b16 %v1709
    %v2754 = vunpack.c.l.b16 %v1710
    %v2755 = vunpack.c.h.b16 %v1710
    %v2756 = vunpack.c.l.b16 %v1711
    %v2757 = vunpack.c.h.b16 %v1711
    %v2758 = vunpack.c.l.b16 %v1712
    %v2759 = vunpack.c.h.b16 %v1712
    %v2760 = vunpack.c.l.b16 %v1713
    %v2761 = vunpack.c.h.b16 %v1713
    %v2762 = vunpack.c.l.b16 %v1714
    %v2763 = vunpack.c.h.b16 %v1714
    %v2764 = vunpack.c.l.b16 %v1715
    %v2765 = vunpack.c.h.b16 %v1715
    %v2766 = vunpack.c.l.b16 %v1716
    %v2767 = vunpack.c.h.b16 %v1716
    %v2768 = vunpack.c.l.b16 %v1717
    %v2769 = vunpack.c.h.b16 %v1717
    %v2770 = vunpack.c.l.b16 %v1718
    %v2771 = vunpack.c.h.b16 %v1718
    %v2772 = vunpack.c.l.b16 %v1719
    %v2773 = vunpack.c.h.b16 %v1719
    %v2774 = vunpack.c.l.b16 %v1720
    %v2775 = vunpack.c.h.b16 %v1720
    %v2776 = vunpack.c.l.b16 %v1721
    %v2777 = vunpack.c.h.b16 %v1721
    %v2778 = vunpack.c.l.b16 %v1722
    %v2779 = vunpack.c.h.b16 %v1722
    %v2780 = vunpack.c.l.b16 %v1723
    %v2781 = vunpack.c.h.b16 %v1723
    %v2782 = vunpack.c.l.b16 %v1724
    %v2783 = vunpack.c.h.b16 %v1724
    %v2784 = vunpack.c.l.b16 %v1725
    %v2785 = vunpack.c.h.b16 %v1725
    %v2786 = vunpack.c.l.b16 %v1726
    %v2787 = vunpack.c.h.b16 %v1726
    %v2788 = vunpack.c.l.b16 %v1727
    %v2789 = vunpack.c.h.b16 %v1727
    %v2790 = vunpack.c.l.b16 %v1728
    %v2791 = vunpack.c.h.b16 %v1728
    %v2792 = vunpack.c.l.b16 %v1729
    %v2793 = vunpack.c.h.b16 %v1729
    %v2794 = vunpack.c.l.b16 %v1730
    %v2795 = vunpack.c.h.b16 %v1730
    %v2796 = vunpack.c.l.b16 %v1731
    %v2797 = vunpack.c.h.b16 %v1731
    %v2798 = vunpack.c.l.b16 %v1732
    %v2799 = vunpack.c.h.b16 %v1732
    %v2800 = vunpack.c.l.b16 %v1733
    %v2801 = vunpack.c.h.b16 %v1733
    %v2802 = vunpack.c.l.b16 %v1734
    %v2803 = vunpack.c.h.b16 %v1734
    %v2804 = vunpack.c.l.b16 %v1735
    %v2805 = vunpack.c.h.b16 %v1735
    %v2806 = vunpack.c.l.b16 %v1736
    %v2807 = vunpack.c.h.b16 %v1736
    %v2808 = vunpack.c.l.b16 %v1737
    %v2809 = vunpack.c.h.b16 %v1737
    %v2810 = vunpack.c.l.b16 %v1738
    %v2811 = vunpack.c.h.b16 %v1738
    %v2812 = vunpack.c.l.b16 %v1739
    %v2813 = vunpack.c.h.b16 %v1739
    %v2814 = vunpack.c.l.b16 %v1740
    %v2815 = vunpack.c.h.b16 %v1740
    %v2816 = vunpack.c.l.b16 %v1741
    %v2817 = vunpack.c.h.b16 %v1741
    %v2818 = vunpack.c.l.b16 %v1742
    %v2819 = vunpack.c.h.b16 %v1742
    %v2820 = vunpack.c.l.b16 %v1743
    %v2821 = vunpack.c.h.b16 %v1743
    %v2822 = vunpack.c.l.b16 %v1744
    %v2823 = vunpack.c.h.b16 %v1744
    %v2824 = vunpack.c.l.b16 %v1745
    %v2825 = vunpack.c.h.b16 %v1745
    %v2826 = vunpack.c.l.b16 %v1746
    %v2827 = vunpack.c.h.b16 %v1746
    %v2828 = vunpack.c.l.b16 %v1747
    %v2829 = vunpack.c.h.b16 %v1747
    %v2830 = vunpack.c.l.b16 %v1748
    %v2831 = vunpack.c.h.b16 %v1748
    %v2832 = vunpack.c.l.b16 %v1749
    %v2833 = vunpack.c.h.b16 %v1749
    %v2834 = vunpack.c.l.b16 %v1750
    %v2835 = vunpack.c.h.b16 %v1750
    %v2836 = vunpack.c.l.b16 %v1751
    %v2837 = vunpack.c.h.b16 %v1751
    %v2838 = vpack.c.b16 %v2658, %v2654
    %v2839 = vpack.c.b16 %v2659, %v2655
    %v2840 = vpack.c.b16 %v2660, %v2656
    %v2841 = vpack.c.b16 %v2661, %v2657
    %v2842 = vpack.c.b16 %v2666, %v2662
    %v2843 = vpack.c.b16 %v2667, %v2663
    %v2844 = vpack.c.b16 %v2668, %v2664
    %v2845 = vpack.c.b16 %v2669, %v2665
    %v2846 = vpack.c.b16 %v2674, %v2670
    %v2847 = vpack.c.b16 %v2675, %v2671
    %v2848 = vpack.c.b16 %v2676, %v2672
    %v2849 = vpack.c.b16 %v2677, %v2673
    %v2850 = vpack.c.b16 %v2682, %v2678
    %v2851 = vpack.c.b16 %v2683, %v2679
    %v2852 = vpack.c.b16 %v2684, %v2680
    %v2853 = vpack.c.b16 %v2685, %v2681
    %v2854 = vpack.c.b16 %v2690, %v2686
    %v2855 = vpack.c.b16 %v2691, %v2687
    %v2856 = vpack.c.b16 %v2692, %v2688
    %v2857 = vpack.c.b16 %v2693, %v2689
    %v2858 = vpack.c.b16 %v2698, %v2694
    %v2859 = vpack.c.b16 %v2699, %v2695
    %v2860 = vpack.c.b16 %v2700, %v2696
    %v2861 = vpack.c.b16 %v2701, %v2697
    %v2862 = vpack.c.b16 %v2706, %v2702
    %v2863 = vpack.c.b16 %v2707, %v2703
    %v2864 = vpack.c.b16 %v2708, %v2704
    %v2865 = vpack.c.b16 %v2709, %v2705
    %v2866 = vpack.c.b16 %v2714, %v2710
    %v2867 = vpack.c.b16 %v2715, %v2711
    %v2868 = vpack.c.b16 %v2716, %v2712
    %v2869 = vpack.c.b16 %v2717, %v2713
    %v2870 = vpack.c.b16 %v2722, %v2718
    %v2871 = vpack.c.b16 %v2723, %v2719
    %v2872 = vpack.c.b16 %v2724, %v2720
    %v2873 = vpack.c.b16 %v2725, %v2721
    %v2874 = vpack.c.b16 %v2730, %v2726
    %v2875 = vpack.c.b16 %v2731, %v2727
    %v2876 = vpack.c.b16 %v2732, %v2728
    %v2877 = vpack.c.b16 %v2733, %v2729
    %v2878 = vpack.c.b16 %v2738, %v2734
    %v2879 = vpack.c.b16 %v2739, %v2735
    %v2880 = vpack.c.b16 %v2740, %v2736
    %v2881 = vpack.c.b16 %v2741, %v2737
    %v2882 = vpack.c.b16 %v2746, %v2742
    %v2883 = vpack.c.b16 %v2747, %v2743
    %v2884 = vpack.c.b16 %v2748, %v2744
    %v2885 = vpack.c.b16 %v2749, %v2745
    %v2886 = vpack.c.b16 %v2754, %v2750
    %v2887 = vpack.c.b16 %v2755, %v2751
    %v2888 = vpack.c.b16 %v2756, %v2752
    %v2889 = vpack.c.b16 %v2757, %v2753
    %v2890 = vpack.c.b16 %v2762, %v2758
    %v2891 = vpack.c.b16 %v2763, %v2759
    %v2892 = vpack.c.b16 %v2764, %v2760
    %v2893 = vpack.c.b16 %v2765, %v2761
    %v2894 = vpack.c.b16 %v2770, %v2766
    %v2895 = vpack.c.b16 %v2771, %v2767
    %v2896 = vpack.c.b16 %v2772, %v2768
    %v2897 = vpack.c.b16 %v2773, %v2769
    %v2898 = vpack.c.b16 %v2778, %v2774
    %v2899 = vpack.c.b16 %v2779, %v2775
    %v2900 = vpack.c.b16 %v2780, %v2776
    %v2901 = vpack.c.b16 %v2781, %v2777
    %v2902 = vpack.c.b16 %v2786, %v2782
    %v2903 = vpack.c.b16 %v2787, %v2783
    %v2904 = vpack.c.b16 %v2788, %v2784
    %v2905 = vpack.c.b16 %v2789, %v2785
    %v2906 = vpack.c.b16 %v2794, %v2790
    %v2907 = vpack.c.b16 %v2795, %v2791
    %v2908 = vpack.c.b16 %v2796, %v2792
    %v2909 = vpack.c.b16 %v2797, %v2793
    %v2910 = vpack.c.b16 %v2802, %v2798
    %v2911 = vpack.c.b16 %v2803, %v2799
    %v2912 = vpack.c.b16 %v2804, %v2800
    %v2913 = vpack.c.b16 %v2805, %v2801
    %v2914 = vpack.c.b16 %v2810, %v2806
    %v2915 = vpack.c.b16 %v2811, %v2807
    %v2916 = vpack.c.b16 %v2812, %v2808
    %v2917 = vpack.c.b16 %v2813, %v2809
    %v2918 = vpack.c.b16 %v2818, %v2814
    %v2919 = vpack.c.b16 %v2819, %v2815
    %v2920 = vpack.c.b16 %v2820, %v2816
    %v2921 = vpack.c.b16 %v2821, %v2817
    %v2922 = vpack.c.b16 %v2826, %v2822
    %v2923 = vpack.c.b16 %v2827, %v2823
    %v2924 = vpack.c.b16 %v2828, %v2824
    %v2925 = vpack.c.b16 %v2829, %v2825
    %v2926 = vpack.c.b16 %v2834, %v2830
    %v2927 = vpack.c.b16 %v2835, %v2831
    %v2928 = vpack.c.b16 %v2836, %v2832
    %v2929 = vpack.c.b16 %v2837, %v2833
    %v3023 = vsel %vm1173, %v2559, 0
    %3025 = vmatpush.bf16.msra.mxu0 %v2866
    %3026 = vmatpush.bf16.msra.mxu0 %v2862
    %3027 = vmatpush.bf16.msra.mxu0 %v2858
    %3028 = vmatpush.bf16.msra.mxu0 %v2854
    %3029 = vmatpush.bf16.msra.mxu0 %v2850
    %3030 = vmatpush.bf16.msra.mxu0 %v2846
    %3031 = vmatpush.bf16.msra.mxu0 %v2842
    %3032 = vmatpush.bf16.msra.mxu0 %v2838
    %3033 = vmatmul.bf16.gmra.mxu0 %v2557
    %v3034 = vpop.f32.mrf.mxu0
    %v3035 = vadd.f32 %v2417, %v3034
    %v3036 = vpop.f32.mrf.mxu0
    %v3037 = vadd.f32 %v2419, %v3036
    %3038 = vdwg.mxu0
    %3039 = vmatpush.bf16.msra.mxu0 %v2898
    %3040 = vmatpush.bf16.msra.mxu0 %v2894
    %3041 = vmatpush.bf16.msra.mxu0 %v2890
    %3042 = vmatpush.bf16.msra.mxu0 %v2886
    %3043 = vmatpush.bf16.msra.mxu0 %v2882
    %3044 = vmatpush.bf16.msra.mxu0 %v2878
    %3045 = vmatpush.bf16.msra.mxu0 %v2874
    %3046 = vmatpush.bf16.msra.mxu0 %v2870
    %3047 = vmatmul.bf16.gmra.mxu0 %v2558
    %v3048 = vpop.f32.mrf.mxu0
    %v3049 = vadd.f32 %v3035, %v3048
    %v3050 = vpop.f32.mrf.mxu0
    %v3051 = vadd.f32 %v3037, %v3050
    %3052 = vdwg.mxu0
    %3053 = vmatpush.bf16.msra.mxu0 0
    %3054 = vmatpush.bf16.msra.mxu0 %v2926
    %3055 = vmatpush.bf16.msra.mxu0 %v2922
    %3056 = vmatpush.bf16.msra.mxu0 %v2918
    %3057 = vmatpush.bf16.msra.mxu0 %v2914
    %3058 = vmatpush.bf16.msra.mxu0 %v2910
    %3059 = vmatpush.bf16.msra.mxu0 %v2906
    %3060 = vmatpush.bf16.msra.mxu0 %v2902
    %3061 = vmatmul.bf16.gmra.mxu0 %v3023
    %v3062 = vpop.f32.mrf.mxu0
    %v3063 = vadd.f32 %v3049, %v3062
    %v3064 = vpop.f32.mrf.mxu0
    %v3065 = vadd.f32 %v3051, %v3064
    %3066 = vdwg.mxu0
    %3067 = vmatpush.bf16.msra.mxu0 %v2867
    %3068 = vmatpush.bf16.msra.mxu0 %v2863
    %3069 = vmatpush.bf16.msra.mxu0 %v2859
    %3070 = vmatpush.bf16.msra.mxu0 %v2855
    %3071 = vmatpush.bf16.msra.mxu0 %v2851
    %3072 = vmatpush.bf16.msra.mxu0 %v2847
    %3073 = vmatpush.bf16.msra.mxu0 %v2843
    %3074 = vmatpush.bf16.msra.mxu0 %v2839
    %3075 = vmatmul.bf16.gmra.mxu0 %v2557
    %v3076 = vpop.f32.mrf.mxu0
    %v3077 = vadd.f32 %v2459, %v3076
    %v3078 = vpop.f32.mrf.mxu0
    %v3079 = vadd.f32 %v2461, %v3078
    %3080 = vdwg.mxu0
    %3081 = vmatpush.bf16.msra.mxu0 %v2899
    %3082 = vmatpush.bf16.msra.mxu0 %v2895
    %3083 = vmatpush.bf16.msra.mxu0 %v2891
    %3084 = vmatpush.bf16.msra.mxu0 %v2887
    %3085 = vmatpush.bf16.msra.mxu0 %v2883
    %3086 = vmatpush.bf16.msra.mxu0 %v2879
    %3087 = vmatpush.bf16.msra.mxu0 %v2875
    %3088 = vmatpush.bf16.msra.mxu0 %v2871
    %3089 = vmatmul.bf16.gmra.mxu0 %v2558
    %v3090 = vpop.f32.mrf.mxu0
    %v3091 = vadd.f32 %v3077, %v3090
    %v3092 = vpop.f32.mrf.mxu0
    %v3093 = vadd.f32 %v3079, %v3092
    %3094 = vdwg.mxu0
    %3095 = vmatpush.bf16.msra.mxu0 0
    %3096 = vmatpush.bf16.msra.mxu0 %v2927
    %3097 = vmatpush.bf16.msra.mxu0 %v2923
    %3098 = vmatpush.bf16.msra.mxu0 %v2919
    %3099 = vmatpush.bf16.msra.mxu0 %v2915
    %3100 = vmatpush.bf16.msra.mxu0 %v2911
    %3101 = vmatpush.bf16.msra.mxu0 %v2907
    %3102 = vmatpush.bf16.msra.mxu0 %v2903
    %3103 = vmatmul.bf16.gmra.mxu0 %v3023
    %v3104 = vpop.f32.mrf.mxu0
    %v3105 = vadd.f32 %v3091, %v3104
    %v3106 = vpop.f32.mrf.mxu0
    %v3107 = vadd.f32 %v3093, %v3106
    %3108 = vdwg.mxu0
    %3109 = vmatpush.bf16.msra.mxu0 %v2868
    %3110 = vmatpush.bf16.msra.mxu0 %v2864
    %3111 = vmatpush.bf16.msra.mxu0 %v2860
    %3112 = vmatpush.bf16.msra.mxu0 %v2856
    %3113 = vmatpush.bf16.msra.mxu0 %v2852
    %3114 = vmatpush.bf16.msra.mxu0 %v2848
    %3115 = vmatpush.bf16.msra.mxu0 %v2844
    %3116 = vmatpush.bf16.msra.mxu0 %v2840
    %3117 = vmatmul.bf16.gmra.mxu0 %v2557
    %v3118 = vpop.f32.mrf.mxu0
    %v3119 = vadd.f32 %v2501, %v3118
    %v3120 = vpop.f32.mrf.mxu0
    %v3121 = vadd.f32 %v2503, %v3120
    %3122 = vdwg.mxu0
    %3123 = vmatpush.bf16.msra.mxu0 %v2900
    %3124 = vmatpush.bf16.msra.mxu0 %v2896
    %3125 = vmatpush.bf16.msra.mxu0 %v2892
    %3126 = vmatpush.bf16.msra.mxu0 %v2888
    %3127 = vmatpush.bf16.msra.mxu0 %v2884
    %3128 = vmatpush.bf16.msra.mxu0 %v2880
    %3129 = vmatpush.bf16.msra.mxu0 %v2876
    %3130 = vmatpush.bf16.msra.mxu0 %v2872
    %3131 = vmatmul.bf16.gmra.mxu0 %v2558
    %v3132 = vpop.f32.mrf.mxu0
    %v3133 = vadd.f32 %v3119, %v3132
    %v3134 = vpop.f32.mrf.mxu0
    %v3135 = vadd.f32 %v3121, %v3134
    %3136 = vdwg.mxu0
    %3137 = vmatpush.bf16.msra.mxu0 0
    %3138 = vmatpush.bf16.msra.mxu0 %v2928
    %3139 = vmatpush.bf16.msra.mxu0 %v2924
    %3140 = vmatpush.bf16.msra.mxu0 %v2920
    %3141 = vmatpush.bf16.msra.mxu0 %v2916
    %3142 = vmatpush.bf16.msra.mxu0 %v2912
    %3143 = vmatpush.bf16.msra.mxu0 %v2908
    %3144 = vmatpush.bf16.msra.mxu0 %v2904
    %3145 = vmatmul.bf16.gmra.mxu0 %v3023
    %v3146 = vpop.f32.mrf.mxu0
    %v3147 = vadd.f32 %v3133, %v3146
    %v3148 = vpop.f32.mrf.mxu0
    %v3149 = vadd.f32 %v3135, %v3148
    %3150 = vdwg.mxu0
    %3151 = vmatpush.bf16.msra.mxu0 %v2869
    %3152 = vmatpush.bf16.msra.mxu0 %v2865
    %3153 = vmatpush.bf16.msra.mxu0 %v2861
    %3154 = vmatpush.bf16.msra.mxu0 %v2857
    %3155 = vmatpush.bf16.msra.mxu0 %v2853
    %3156 = vmatpush.bf16.msra.mxu0 %v2849
    %3157 = vmatpush.bf16.msra.mxu0 %v2845
    %3158 = vmatpush.bf16.msra.mxu0 %v2841
    %3159 = vmatmul.bf16.gmra.mxu0 %v2557
    %v3160 = vpop.f32.mrf.mxu0
    %v3161 = vadd.f32 %v2543, %v3160
    %v3162 = vpop.f32.mrf.mxu0
    %v3163 = vadd.f32 %v2545, %v3162
    %3164 = vdwg.mxu0
    %3165 = vmatpush.bf16.msra.mxu0 %v2901
    %3166 = vmatpush.bf16.msra.mxu0 %v2897
    %3167 = vmatpush.bf16.msra.mxu0 %v2893
    %3168 = vmatpush.bf16.msra.mxu0 %v2889
    %3169 = vmatpush.bf16.msra.mxu0 %v2885
    %3170 = vmatpush.bf16.msra.mxu0 %v2881
    %3171 = vmatpush.bf16.msra.mxu0 %v2877
    %3172 = vmatpush.bf16.msra.mxu0 %v2873
    %3173 = vmatmul.bf16.gmra.mxu0 %v2558
    %v3174 = vpop.f32.mrf.mxu0
    %v3175 = vadd.f32 %v3161, %v3174
    %v3176 = vpop.f32.mrf.mxu0
    %v3177 = vadd.f32 %v3163, %v3176
    %3178 = vdwg.mxu0
    %3179 = vmatpush.bf16.msra.mxu0 0
    %3180 = vmatpush.bf16.msra.mxu0 %v2929
    %3181 = vmatpush.bf16.msra.mxu0 %v2925
    %3182 = vmatpush.bf16.msra.mxu0 %v2921
    %3183 = vmatpush.bf16.msra.mxu0 %v2917
    %3184 = vmatpush.bf16.msra.mxu0 %v2913
    %3185 = vmatpush.bf16.msra.mxu0 %v2909
    %3186 = vmatpush.bf16.msra.mxu0 %v2905
    %3187 = vmatmul.bf16.gmra.mxu0 %v3023
    %v3188 = vpop.f32.mrf.mxu0
    %v3189 = vadd.f32 %v3175, %v3188
    %v3190 = vpop.f32.mrf.mxu0
    %v3191 = vadd.f32 %v3177, %v3190
    %3192 = vdwg.mxu0
    %v3193 = vld [vmem:[#allocation2] sm:$0xee]
    %v3194 = vld [vmem:[#allocation2 + $0x8] sm:$0xe]
    %v3195 = vld [vmem:[#allocation2 + $0x18] sm:$0xee]
    %v3196 = vld [vmem:[#allocation2 + $0x20] sm:$0xe]
    %v3205 = vrot.slane %v3193, 5
    %v3206 = vrot.slane %v3205, 4
    %v3207 = vrot.slane %v1752, 5
    %v3208 = vsel %vm523, %v3206, %v3207
    %v3209 = vrot.slane %v3194, 5
    %v3210 = vrot.slane %v3209, 4
    %v3211 = vrot.slane %v1753, 5
    %v3212 = vsel %vm523, %v3210, %v3211
    %v3213 = vrot.slane %v3195, 5
    %v3214 = vrot.slane %v3213, 4
    %v3215 = vrot.slane %v1754, 5
    %v3216 = vsel %vm523, %v3214, %v3215
    %v3217 = vrot.slane %v3196, 5
    %v3218 = vrot.slane %v3217, 4
    %v3219 = vrot.slane %v1755, 5
    %v3220 = vsel %vm523, %v3218, %v3219
    %s3221 = scalar_lea.vmem [#allocation8], 1472
    %v3222 = vld [vmem:[%s3221] sm:$0xff]
    %v3223 = vld [vmem:[%s3221 + $0x8] sm:$0xff]
    %v3224 = vld [vmem:[%s3221 + $0x10] sm:$0xff]
    %v3225 = vld [vmem:[%s3221 + $0x18] sm:$0xff]
    %v3226 = vld [vmem:[%s3221 + $0x20] sm:$0xff]
    %v3227 = vld [vmem:[%s3221 + $0x28] sm:$0xff]
    %v3228 = vld [vmem:[%s3221 + $0x30] sm:$0xff]
    %v3229 = vld [vmem:[%s3221 + $0x38] sm:$0xff]
    %v3230 = vld [vmem:[%s3221 + $0x40] sm:$0xff]
    %v3231 = vld [vmem:[%s3221 + $0x48] sm:$0xff]
    %v3232 = vld [vmem:[%s3221 + $0x50] sm:$0xff]
    %v3233 = vld [vmem:[%s3221 + $0x58] sm:$0xff]
    %v3234 = vld [vmem:[%s3221 + $0x60] sm:$0xff]
    %v3235 = vld [vmem:[%s3221 + $0x68] sm:$0xff]
    %v3236 = vld [vmem:[%s3221 + $0x70] sm:$0xff]
    %v3237 = vld [vmem:[%s3221 + $0x78] sm:$0xff]
    %v3238 = vld [vmem:[%s3221 + $0x80] sm:$0xff]
    %v3239 = vld [vmem:[%s3221 + $0x88] sm:$0xff]
    %v3240 = vld [vmem:[%s3221 + $0x90] sm:$0xff]
    %v3241 = vld [vmem:[%s3221 + $0x98] sm:$0xff]
    %v3242 = vld [vmem:[%s3221 + $0xa0] sm:$0xff]
    %v3243 = vld [vmem:[%s3221 + $0xa8] sm:$0xff]
    %v3244 = vld [vmem:[%s3221 + $0xb0] sm:$0xff]
    %v3245 = vld [vmem:[%s3221 + $0xb8] sm:$0xff]
    %v3246 = vld [vmem:[%s3221 + $0xc0] sm:$0xff]
    %v3247 = vld [vmem:[%s3221 + $0xc8] sm:$0xff]
    %v3248 = vld [vmem:[%s3221 + $0xd0] sm:$0xff]
    %v3249 = vld [vmem:[%s3221 + $0xd8] sm:$0xff]
    %v3250 = vld [vmem:[%s3221 + $0xe0] sm:$0xff]
    %v3251 = vld [vmem:[%s3221 + $0xe8] sm:$0xff]
    %v3252 = vld [vmem:[%s3221 + $0xf0] sm:$0xff]
    %v3253 = vld [vmem:[%s3221 + $0xf8] sm:$0xff]
    %v3254 = vld [vmem:[%s3221 + $0x100] sm:$0xff]
    %v3255 = vld [vmem:[%s3221 + $0x108] sm:$0xff]
    %v3256 = vld [vmem:[%s3221 + $0x110] sm:$0xff]
    %v3257 = vld [vmem:[%s3221 + $0x118] sm:$0xff]
    %v3258 = vld [vmem:[%s3221 + $0x120] sm:$0xff]
    %v3259 = vld [vmem:[%s3221 + $0x128] sm:$0xff]
    %v3260 = vld [vmem:[%s3221 + $0x130] sm:$0xff]
    %v3261 = vld [vmem:[%s3221 + $0x138] sm:$0xff]
    %v3262 = vld [vmem:[%s3221 + $0x140] sm:$0xff]
    %v3263 = vld [vmem:[%s3221 + $0x148] sm:$0xff]
    %v3264 = vld [vmem:[%s3221 + $0x150] sm:$0xff]
    %v3265 = vld [vmem:[%s3221 + $0x158] sm:$0xff]
    %v3266 = vld [vmem:[%s3221 + $0x160] sm:$0xff]
    %v3267 = vld [vmem:[%s3221 + $0x168] sm:$0xff]
    %v3268 = vld [vmem:[%s3221 + $0x170] sm:$0xff]
    %v3269 = vld [vmem:[%s3221 + $0x178] sm:$0xff]
    %v3270 = vld [vmem:[%s3221 + $0x180] sm:$0xff]
    %v3271 = vld [vmem:[%s3221 + $0x188] sm:$0xff]
    %v3272 = vld [vmem:[%s3221 + $0x190] sm:$0xff]
    %v3273 = vld [vmem:[%s3221 + $0x198] sm:$0xff]
    %v3274 = vld [vmem:[%s3221 + $0x1a0] sm:$0xff]
    %v3275 = vld [vmem:[%s3221 + $0x1a8] sm:$0xff]
    %v3276 = vld [vmem:[%s3221 + $0x1b0] sm:$0xff]
    %v3277 = vld [vmem:[%s3221 + $0x1b8] sm:$0xff]
    %v3278 = vld [vmem:[%s3221 + $0x1c0] sm:$0xff]
    %v3279 = vld [vmem:[%s3221 + $0x1c8] sm:$0xff]
    %v3280 = vld [vmem:[%s3221 + $0x1d0] sm:$0xff]
    %v3281 = vld [vmem:[%s3221 + $0x1d8] sm:$0xff]
    %v3282 = vld [vmem:[%s3221 + $0x1e0] sm:$0xff]
    %v3283 = vld [vmem:[%s3221 + $0x1e8] sm:$0xff]
    %v3284 = vld [vmem:[%s3221 + $0x1f0] sm:$0xff]
    %v3285 = vld [vmem:[%s3221 + $0x1f8] sm:$0xff]
    %v3286 = vld [vmem:[%s3221 + $0x200] sm:$0xff]
    %v3287 = vld [vmem:[%s3221 + $0x208] sm:$0xff]
    %v3288 = vld [vmem:[%s3221 + $0x210] sm:$0xff]
    %v3289 = vld [vmem:[%s3221 + $0x218] sm:$0xff]
    %v3290 = vld [vmem:[%s3221 + $0x220] sm:$0xff]
    %v3291 = vld [vmem:[%s3221 + $0x228] sm:$0xff]
    %v3292 = vld [vmem:[%s3221 + $0x230] sm:$0xff]
    %v3293 = vld [vmem:[%s3221 + $0x238] sm:$0xff]
    %v3294 = vld [vmem:[%s3221 + $0x240] sm:$0xff]
    %v3295 = vld [vmem:[%s3221 + $0x248] sm:$0xff]
    %v3296 = vld [vmem:[%s3221 + $0x250] sm:$0xff]
    %v3297 = vld [vmem:[%s3221 + $0x258] sm:$0xff]
    %v3298 = vld [vmem:[%s3221 + $0x260] sm:$0xff]
    %v3299 = vld [vmem:[%s3221 + $0x268] sm:$0xff]
    %v3300 = vld [vmem:[%s3221 + $0x270] sm:$0xff]
    %v3301 = vld [vmem:[%s3221 + $0x278] sm:$0xff]
    %v3302 = vld [vmem:[%s3221 + $0x280] sm:$0xff]
    %v3303 = vld [vmem:[%s3221 + $0x288] sm:$0xff]
    %v3304 = vld [vmem:[%s3221 + $0x290] sm:$0xff]
    %v3305 = vld [vmem:[%s3221 + $0x298] sm:$0xff]
    %v3306 = vld [vmem:[%s3221 + $0x2a0] sm:$0xff]
    %v3307 = vld [vmem:[%s3221 + $0x2a8] sm:$0xff]
    %v3308 = vld [vmem:[%s3221 + $0x2b0] sm:$0xff]
    %v3309 = vld [vmem:[%s3221 + $0x2b8] sm:$0xff]
    %v3310 = vld [vmem:[%s3221 + $0x2c0] sm:$0xff]
    %v3311 = vld [vmem:[%s3221 + $0x2c8] sm:$0xff]
    %v3312 = vld [vmem:[%s3221 + $0x2d0] sm:$0xff]
    %v3313 = vld [vmem:[%s3221 + $0x2d8] sm:$0xff]
    %v3314 = vunpack.c.l.b16 %v3208
    %v3315 = vunpack.c.h.b16 %v3208
    %v3316 = vunpack.c.l.b16 %v3212
    %v3317 = vunpack.c.l.b16 %v3216
    %v3318 = vunpack.c.h.b16 %v3216
    %v3319 = vunpack.c.l.b16 %v3220
    %v3320 = vpack.c.b16 %v3317, %v3314
    %v3321 = vpack.c.b16 %v3318, %v3315
    %v3322 = vpack.c.b16 %v3319, %v3316
    %v3417 = vunpack.c.l.b16 %v3222
    %v3418 = vunpack.c.h.b16 %v3222
    %v3419 = vunpack.c.l.b16 %v3223
    %v3420 = vunpack.c.h.b16 %v3223
    %v3421 = vunpack.c.l.b16 %v3224
    %v3422 = vunpack.c.h.b16 %v3224
    %v3423 = vunpack.c.l.b16 %v3225
    %v3424 = vunpack.c.h.b16 %v3225
    %v3425 = vunpack.c.l.b16 %v3226
    %v3426 = vunpack.c.h.b16 %v3226
    %v3427 = vunpack.c.l.b16 %v3227
    %v3428 = vunpack.c.h.b16 %v3227
    %v3429 = vunpack.c.l.b16 %v3228
    %v3430 = vunpack.c.h.b16 %v3228
    %v3431 = vunpack.c.l.b16 %v3229
    %v3432 = vunpack.c.h.b16 %v3229
    %v3433 = vunpack.c.l.b16 %v3230
    %v3434 = vunpack.c.h.b16 %v3230
    %v3435 = vunpack.c.l.b16 %v3231
    %v3436 = vunpack.c.h.b16 %v3231
    %v3437 = vunpack.c.l.b16 %v3232
    %v3438 = vunpack.c.h.b16 %v3232
    %v3439 = vunpack.c.l.b16 %v3233
    %v3440 = vunpack.c.h.b16 %v3233
    %v3441 = vunpack.c.l.b16 %v3234
    %v3442 = vunpack.c.h.b16 %v3234
    %v3443 = vunpack.c.l.b16 %v3235
    %v3444 = vunpack.c.h.b16 %v3235
    %v3445 = vunpack.c.l.b16 %v3236
    %v3446 = vunpack.c.h.b16 %v3236
    %v3447 = vunpack.c.l.b16 %v3237
    %v3448 = vunpack.c.h.b16 %v3237
    %v3449 = vunpack.c.l.b16 %v3238
    %v3450 = vunpack.c.h.b16 %v3238
    %v3451 = vunpack.c.l.b16 %v3239
    %v3452 = vunpack.c.h.b16 %v3239
    %v3453 = vunpack.c.l.b16 %v3240
    %v3454 = vunpack.c.h.b16 %v3240
    %v3455 = vunpack.c.l.b16 %v3241
    %v3456 = vunpack.c.h.b16 %v3241
    %v3457 = vunpack.c.l.b16 %v3242
    %v3458 = vunpack.c.h.b16 %v3242
    %v3459 = vunpack.c.l.b16 %v3243
    %v3460 = vunpack.c.h.b16 %v3243
    %v3461 = vunpack.c.l.b16 %v3244
    %v3462 = vunpack.c.h.b16 %v3244
    %v3463 = vunpack.c.l.b16 %v3245
    %v3464 = vunpack.c.h.b16 %v3245
    %v3465 = vunpack.c.l.b16 %v3246
    %v3466 = vunpack.c.h.b16 %v3246
    %v3467 = vunpack.c.l.b16 %v3247
    %v3468 = vunpack.c.h.b16 %v3247
    %v3469 = vunpack.c.l.b16 %v3248
    %v3470 = vunpack.c.h.b16 %v3248
    %v3471 = vunpack.c.l.b16 %v3249
    %v3472 = vunpack.c.h.b16 %v3249
    %v3473 = vunpack.c.l.b16 %v3250
    %v3474 = vunpack.c.h.b16 %v3250
    %v3475 = vunpack.c.l.b16 %v3251
    %v3476 = vunpack.c.h.b16 %v3251
    %v3477 = vunpack.c.l.b16 %v3252
    %v3478 = vunpack.c.h.b16 %v3252
    %v3479 = vunpack.c.l.b16 %v3253
    %v3480 = vunpack.c.h.b16 %v3253
    %v3481 = vunpack.c.l.b16 %v3254
    %v3482 = vunpack.c.h.b16 %v3254
    %v3483 = vunpack.c.l.b16 %v3255
    %v3484 = vunpack.c.h.b16 %v3255
    %v3485 = vunpack.c.l.b16 %v3256
    %v3486 = vunpack.c.h.b16 %v3256
    %v3487 = vunpack.c.l.b16 %v3257
    %v3488 = vunpack.c.h.b16 %v3257
    %v3489 = vunpack.c.l.b16 %v3258
    %v3490 = vunpack.c.h.b16 %v3258
    %v3491 = vunpack.c.l.b16 %v3259
    %v3492 = vunpack.c.h.b16 %v3259
    %v3493 = vunpack.c.l.b16 %v3260
    %v3494 = vunpack.c.h.b16 %v3260
    %v3495 = vunpack.c.l.b16 %v3261
    %v3496 = vunpack.c.h.b16 %v3261
    %v3497 = vunpack.c.l.b16 %v3262
    %v3498 = vunpack.c.h.b16 %v3262
    %v3499 = vunpack.c.l.b16 %v3263
    %v3500 = vunpack.c.h.b16 %v3263
    %v3501 = vunpack.c.l.b16 %v3264
    %v3502 = vunpack.c.h.b16 %v3264
    %v3503 = vunpack.c.l.b16 %v3265
    %v3504 = vunpack.c.h.b16 %v3265
    %v3505 = vunpack.c.l.b16 %v3266
    %v3506 = vunpack.c.h.b16 %v3266
    %v3507 = vunpack.c.l.b16 %v3267
    %v3508 = vunpack.c.h.b16 %v3267
    %v3509 = vunpack.c.l.b16 %v3268
    %v3510 = vunpack.c.h.b16 %v3268
    %v3511 = vunpack.c.l.b16 %v3269
    %v3512 = vunpack.c.h.b16 %v3269
    %v3513 = vunpack.c.l.b16 %v3270
    %v3514 = vunpack.c.h.b16 %v3270
    %v3515 = vunpack.c.l.b16 %v3271
    %v3516 = vunpack.c.h.b16 %v3271
    %v3517 = vunpack.c.l.b16 %v3272
    %v3518 = vunpack.c.h.b16 %v3272
    %v3519 = vunpack.c.l.b16 %v3273
    %v3520 = vunpack.c.h.b16 %v3273
    %v3521 = vunpack.c.l.b16 %v3274
    %v3522 = vunpack.c.h.b16 %v3274
    %v3523 = vunpack.c.l.b16 %v3275
    %v3524 = vunpack.c.h.b16 %v3275
    %v3525 = vunpack.c.l.b16 %v3276
    %v3526 = vunpack.c.h.b16 %v3276
    %v3527 = vunpack.c.l.b16 %v3277
    %v3528 = vunpack.c.h.b16 %v3277
    %v3529 = vunpack.c.l.b16 %v3278
    %v3530 = vunpack.c.h.b16 %v3278
    %v3531 = vunpack.c.l.b16 %v3279
    %v3532 = vunpack.c.h.b16 %v3279
    %v3533 = vunpack.c.l.b16 %v3280
    %v3534 = vunpack.c.h.b16 %v3280
    %v3535 = vunpack.c.l.b16 %v3281
    %v3536 = vunpack.c.h.b16 %v3281
    %v3537 = vunpack.c.l.b16 %v3282
    %v3538 = vunpack.c.h.b16 %v3282
    %v3539 = vunpack.c.l.b16 %v3283
    %v3540 = vunpack.c.h.b16 %v3283
    %v3541 = vunpack.c.l.b16 %v3284
    %v3542 = vunpack.c.h.b16 %v3284
    %v3543 = vunpack.c.l.b16 %v3285
    %v3544 = vunpack.c.h.b16 %v3285
    %v3545 = vunpack.c.l.b16 %v3286
    %v3546 = vunpack.c.h.b16 %v3286
    %v3547 = vunpack.c.l.b16 %v3287
    %v3548 = vunpack.c.h.b16 %v3287
    %v3549 = vunpack.c.l.b16 %v3288
    %v3550 = vunpack.c.h.b16 %v3288
    %v3551 = vunpack.c.l.b16 %v3289
    %v3552 = vunpack.c.h.b16 %v3289
    %v3553 = vunpack.c.l.b16 %v3290
    %v3554 = vunpack.c.h.b16 %v3290
    %v3555 = vunpack.c.l.b16 %v3291
    %v3556 = vunpack.c.h.b16 %v3291
    %v3557 = vunpack.c.l.b16 %v3292
    %v3558 = vunpack.c.h.b16 %v3292
    %v3559 = vunpack.c.l.b16 %v3293
    %v3560 = vunpack.c.h.b16 %v3293
    %v3561 = vunpack.c.l.b16 %v3294
    %v3562 = vunpack.c.h.b16 %v3294
    %v3563 = vunpack.c.l.b16 %v3295
    %v3564 = vunpack.c.h.b16 %v3295
    %v3565 = vunpack.c.l.b16 %v3296
    %v3566 = vunpack.c.h.b16 %v3296
    %v3567 = vunpack.c.l.b16 %v3297
    %v3568 = vunpack.c.h.b16 %v3297
    %v3569 = vunpack.c.l.b16 %v3298
    %v3570 = vunpack.c.h.b16 %v3298
    %v3571 = vunpack.c.l.b16 %v3299
    %v3572 = vunpack.c.h.b16 %v3299
    %v3573 = vunpack.c.l.b16 %v3300
    %v3574 = vunpack.c.h.b16 %v3300
    %v3575 = vunpack.c.l.b16 %v3301
    %v3576 = vunpack.c.h.b16 %v3301
    %v3577 = vunpack.c.l.b16 %v3302
    %v3578 = vunpack.c.h.b16 %v3302
    %v3579 = vunpack.c.l.b16 %v3303
    %v3580 = vunpack.c.h.b16 %v3303
    %v3581 = vunpack.c.l.b16 %v3304
    %v3582 = vunpack.c.h.b16 %v3304
    %v3583 = vunpack.c.l.b16 %v3305
    %v3584 = vunpack.c.h.b16 %v3305
    %v3585 = vunpack.c.l.b16 %v3306
    %v3586 = vunpack.c.h.b16 %v3306
    %v3587 = vunpack.c.l.b16 %v3307
    %v3588 = vunpack.c.h.b16 %v3307
    %v3589 = vunpack.c.l.b16 %v3308
    %v3590 = vunpack.c.h.b16 %v3308
    %v3591 = vunpack.c.l.b16 %v3309
    %v3592 = vunpack.c.h.b16 %v3309
    %v3593 = vunpack.c.l.b16 %v3310
    %v3594 = vunpack.c.h.b16 %v3310
    %v3595 = vunpack.c.l.b16 %v3311
    %v3596 = vunpack.c.h.b16 %v3311
    %v3597 = vunpack.c.l.b16 %v3312
    %v3598 = vunpack.c.h.b16 %v3312
    %v3599 = vunpack.c.l.b16 %v3313
    %v3600 = vunpack.c.h.b16 %v3313
    %v3601 = vpack.c.b16 %v3421, %v3417
    %v3602 = vpack.c.b16 %v3422, %v3418
    %v3603 = vpack.c.b16 %v3423, %v3419
    %v3604 = vpack.c.b16 %v3424, %v3420
    %v3605 = vpack.c.b16 %v3429, %v3425
    %v3606 = vpack.c.b16 %v3430, %v3426
    %v3607 = vpack.c.b16 %v3431, %v3427
    %v3608 = vpack.c.b16 %v3432, %v3428
    %v3609 = vpack.c.b16 %v3437, %v3433
    %v3610 = vpack.c.b16 %v3438, %v3434
    %v3611 = vpack.c.b16 %v3439, %v3435
    %v3612 = vpack.c.b16 %v3440, %v3436
    %v3613 = vpack.c.b16 %v3445, %v3441
    %v3614 = vpack.c.b16 %v3446, %v3442
    %v3615 = vpack.c.b16 %v3447, %v3443
    %v3616 = vpack.c.b16 %v3448, %v3444
    %v3617 = vpack.c.b16 %v3453, %v3449
    %v3618 = vpack.c.b16 %v3454, %v3450
    %v3619 = vpack.c.b16 %v3455, %v3451
    %v3620 = vpack.c.b16 %v3456, %v3452
    %v3621 = vpack.c.b16 %v3461, %v3457
    %v3622 = vpack.c.b16 %v3462, %v3458
    %v3623 = vpack.c.b16 %v3463, %v3459
    %v3624 = vpack.c.b16 %v3464, %v3460
    %v3625 = vpack.c.b16 %v3469, %v3465
    %v3626 = vpack.c.b16 %v3470, %v3466
    %v3627 = vpack.c.b16 %v3471, %v3467
    %v3628 = vpack.c.b16 %v3472, %v3468
    %v3629 = vpack.c.b16 %v3477, %v3473
    %v3630 = vpack.c.b16 %v3478, %v3474
    %v3631 = vpack.c.b16 %v3479, %v3475
    %v3632 = vpack.c.b16 %v3480, %v3476
    %v3633 = vpack.c.b16 %v3485, %v3481
    %v3634 = vpack.c.b16 %v3486, %v3482
    %v3635 = vpack.c.b16 %v3487, %v3483
    %v3636 = vpack.c.b16 %v3488, %v3484
    %v3637 = vpack.c.b16 %v3493, %v3489
    %v3638 = vpack.c.b16 %v3494, %v3490
    %v3639 = vpack.c.b16 %v3495, %v3491
    %v3640 = vpack.c.b16 %v3496, %v3492
    %v3641 = vpack.c.b16 %v3501, %v3497
    %v3642 = vpack.c.b16 %v3502, %v3498
    %v3643 = vpack.c.b16 %v3503, %v3499
    %v3644 = vpack.c.b16 %v3504, %v3500
    %v3645 = vpack.c.b16 %v3509, %v3505
    %v3646 = vpack.c.b16 %v3510, %v3506
    %v3647 = vpack.c.b16 %v3511, %v3507
    %v3648 = vpack.c.b16 %v3512, %v3508
    %v3649 = vpack.c.b16 %v3517, %v3513
    %v3650 = vpack.c.b16 %v3518, %v3514
    %v3651 = vpack.c.b16 %v3519, %v3515
    %v3652 = vpack.c.b16 %v3520, %v3516
    %v3653 = vpack.c.b16 %v3525, %v3521
    %v3654 = vpack.c.b16 %v3526, %v3522
    %v3655 = vpack.c.b16 %v3527, %v3523
    %v3656 = vpack.c.b16 %v3528, %v3524
    %v3657 = vpack.c.b16 %v3533, %v3529
    %v3658 = vpack.c.b16 %v3534, %v3530
    %v3659 = vpack.c.b16 %v3535, %v3531
    %v3660 = vpack.c.b16 %v3536, %v3532
    %v3661 = vpack.c.b16 %v3541, %v3537
    %v3662 = vpack.c.b16 %v3542, %v3538
    %v3663 = vpack.c.b16 %v3543, %v3539
    %v3664 = vpack.c.b16 %v3544, %v3540
    %v3665 = vpack.c.b16 %v3549, %v3545
    %v3666 = vpack.c.b16 %v3550, %v3546
    %v3667 = vpack.c.b16 %v3551, %v3547
    %v3668 = vpack.c.b16 %v3552, %v3548
    %v3669 = vpack.c.b16 %v3557, %v3553
    %v3670 = vpack.c.b16 %v3558, %v3554
    %v3671 = vpack.c.b16 %v3559, %v3555
    %v3672 = vpack.c.b16 %v3560, %v3556
    %v3673 = vpack.c.b16 %v3565, %v3561
    %v3674 = vpack.c.b16 %v3566, %v3562
    %v3675 = vpack.c.b16 %v3567, %v3563
    %v3676 = vpack.c.b16 %v3568, %v3564
    %v3677 = vpack.c.b16 %v3573, %v3569
    %v3678 = vpack.c.b16 %v3574, %v3570
    %v3679 = vpack.c.b16 %v3575, %v3571
    %v3680 = vpack.c.b16 %v3576, %v3572
    %v3681 = vpack.c.b16 %v3581, %v3577
    %v3682 = vpack.c.b16 %v3582, %v3578
    %v3683 = vpack.c.b16 %v3583, %v3579
    %v3684 = vpack.c.b16 %v3584, %v3580
    %v3685 = vpack.c.b16 %v3589, %v3585
    %v3686 = vpack.c.b16 %v3590, %v3586
    %v3687 = vpack.c.b16 %v3591, %v3587
    %v3688 = vpack.c.b16 %v3592, %v3588
    %v3689 = vpack.c.b16 %v3597, %v3593
    %v3690 = vpack.c.b16 %v3598, %v3594
    %v3691 = vpack.c.b16 %v3599, %v3595
    %v3692 = vpack.c.b16 %v3600, %v3596
    %v3786 = vsel %vm1173, %v3322, 0
    %3788 = vmatpush.bf16.msra.mxu0 %v3629
    %3789 = vmatpush.bf16.msra.mxu0 %v3625
    %3790 = vmatpush.bf16.msra.mxu0 %v3621
    %3791 = vmatpush.bf16.msra.mxu0 %v3617
    %3792 = vmatpush.bf16.msra.mxu0 %v3613
    %3793 = vmatpush.bf16.msra.mxu0 %v3609
    %3794 = vmatpush.bf16.msra.mxu0 %v3605
    %3795 = vmatpush.bf16.msra.mxu0 %v3601
    %3796 = vmatmul.bf16.gmra.mxu0 %v3320
    %v3797 = vpop.f32.mrf.mxu0
    %v3798 = vadd.f32 0.0, %v3797
    %v3799 = vpop.f32.mrf.mxu0
    %v3800 = vadd.f32 0.0, %v3799
    %3801 = vdwg.mxu0
    %3802 = vmatpush.bf16.msra.mxu0 %v3661
    %3803 = vmatpush.bf16.msra.mxu0 %v3657
    %3804 = vmatpush.bf16.msra.mxu0 %v3653
    %3805 = vmatpush.bf16.msra.mxu0 %v3649
    %3806 = vmatpush.bf16.msra.mxu0 %v3645
    %3807 = vmatpush.bf16.msra.mxu0 %v3641
    %3808 = vmatpush.bf16.msra.mxu0 %v3637
    %3809 = vmatpush.bf16.msra.mxu0 %v3633
    %3810 = vmatmul.bf16.gmra.mxu0 %v3321
    %v3811 = vpop.f32.mrf.mxu0
    %v3812 = vadd.f32 %v3798, %v3811
    %v3813 = vpop.f32.mrf.mxu0
    %v3814 = vadd.f32 %v3800, %v3813
    %3815 = vdwg.mxu0
    %3816 = vmatpush.bf16.msra.mxu0 0
    %3817 = vmatpush.bf16.msra.mxu0 %v3689
    %3818 = vmatpush.bf16.msra.mxu0 %v3685
    %3819 = vmatpush.bf16.msra.mxu0 %v3681
    %3820 = vmatpush.bf16.msra.mxu0 %v3677
    %3821 = vmatpush.bf16.msra.mxu0 %v3673
    %3822 = vmatpush.bf16.msra.mxu0 %v3669
    %3823 = vmatpush.bf16.msra.mxu0 %v3665
    %3824 = vmatmul.bf16.gmra.mxu0 %v3786
    %v3825 = vpop.f32.mrf.mxu0
    %v3826 = vadd.f32 %v3812, %v3825
    %v3827 = vpop.f32.mrf.mxu0
    %v3828 = vadd.f32 %v3814, %v3827
    %3829 = vdwg.mxu0
    %3830 = vmatpush.bf16.msra.mxu0 %v3630
    %3831 = vmatpush.bf16.msra.mxu0 %v3626
    %3832 = vmatpush.bf16.msra.mxu0 %v3622
    %3833 = vmatpush.bf16.msra.mxu0 %v3618
    %3834 = vmatpush.bf16.msra.mxu0 %v3614
    %3835 = vmatpush.bf16.msra.mxu0 %v3610
    %3836 = vmatpush.bf16.msra.mxu0 %v3606
    %3837 = vmatpush.bf16.msra.mxu0 %v3602
    %3838 = vmatmul.bf16.gmra.mxu0 %v3320
    %v3839 = vpop.f32.mrf.mxu0
    %v3840 = vadd.f32 0.0, %v3839
    %v3841 = vpop.f32.mrf.mxu0
    %v3842 = vadd.f32 0.0, %v3841
    %3843 = vdwg.mxu0
    %3844 = vmatpush.bf16.msra.mxu0 %v3662
    %3845 = vmatpush.bf16.msra.mxu0 %v3658
    %3846 = vmatpush.bf16.msra.mxu0 %v3654
    %3847 = vmatpush.bf16.msra.mxu0 %v3650
    %3848 = vmatpush.bf16.msra.mxu0 %v3646
    %3849 = vmatpush.bf16.msra.mxu0 %v3642
    %3850 = vmatpush.bf16.msra.mxu0 %v3638
    %3851 = vmatpush.bf16.msra.mxu0 %v3634
    %3852 = vmatmul.bf16.gmra.mxu0 %v3321
    %v3853 = vpop.f32.mrf.mxu0
    %v3854 = vadd.f32 %v3840, %v3853
    %v3855 = vpop.f32.mrf.mxu0
    %v3856 = vadd.f32 %v3842, %v3855
    %3857 = vdwg.mxu0
    %3858 = vmatpush.bf16.msra.mxu0 0
    %3859 = vmatpush.bf16.msra.mxu0 %v3690
    %3860 = vmatpush.bf16.msra.mxu0 %v3686
    %3861 = vmatpush.bf16.msra.mxu0 %v3682
    %3862 = vmatpush.bf16.msra.mxu0 %v3678
    %3863 = vmatpush.bf16.msra.mxu0 %v3674
    %3864 = vmatpush.bf16.msra.mxu0 %v3670
    %3865 = vmatpush.bf16.msra.mxu0 %v3666
    %3866 = vmatmul.bf16.gmra.mxu0 %v3786
    %v3867 = vpop.f32.mrf.mxu0
    %v3868 = vadd.f32 %v3854, %v3867
    %v3869 = vpop.f32.mrf.mxu0
    %v3870 = vadd.f32 %v3856, %v3869
    %3871 = vdwg.mxu0
    %3872 = vmatpush.bf16.msra.mxu0 %v3631
    %3873 = vmatpush.bf16.msra.mxu0 %v3627
    %3874 = vmatpush.bf16.msra.mxu0 %v3623
    %3875 = vmatpush.bf16.msra.mxu0 %v3619
    %3876 = vmatpush.bf16.msra.mxu0 %v3615
    %3877 = vmatpush.bf16.msra.mxu0 %v3611
    %3878 = vmatpush.bf16.msra.mxu0 %v3607
    %3879 = vmatpush.bf16.msra.mxu0 %v3603
    %3880 = vmatmul.bf16.gmra.mxu0 %v3320
    %v3881 = vpop.f32.mrf.mxu0
    %v3882 = vadd.f32 0.0, %v3881
    %v3883 = vpop.f32.mrf.mxu0
    %v3884 = vadd.f32 0.0, %v3883
    %3885 = vdwg.mxu0
    %3886 = vmatpush.bf16.msra.mxu0 %v3663
    %3887 = vmatpush.bf16.msra.mxu0 %v3659
    %3888 = vmatpush.bf16.msra.mxu0 %v3655
    %3889 = vmatpush.bf16.msra.mxu0 %v3651
    %3890 = vmatpush.bf16.msra.mxu0 %v3647
    %3891 = vmatpush.bf16.msra.mxu0 %v3643
    %3892 = vmatpush.bf16.msra.mxu0 %v3639
    %3893 = vmatpush.bf16.msra.mxu0 %v3635
    %3894 = vmatmul.bf16.gmra.mxu0 %v3321
    %v3895 = vpop.f32.mrf.mxu0
    %v3896 = vadd.f32 %v3882, %v3895
    %v3897 = vpop.f32.mrf.mxu0
    %v3898 = vadd.f32 %v3884, %v3897
    %3899 = vdwg.mxu0
    %3900 = vmatpush.bf16.msra.mxu0 0
    %3901 = vmatpush.bf16.msra.mxu0 %v3691
    %3902 = vmatpush.bf16.msra.mxu0 %v3687
    %3903 = vmatpush.bf16.msra.mxu0 %v3683
    %3904 = vmatpush.bf16.msra.mxu0 %v3679
    %3905 = vmatpush.bf16.msra.mxu0 %v3675
    %3906 = vmatpush.bf16.msra.mxu0 %v3671
    %3907 = vmatpush.bf16.msra.mxu0 %v3667
    %3908 = vmatmul.bf16.gmra.mxu0 %v3786
    %v3909 = vpop.f32.mrf.mxu0
    %v3910 = vadd.f32 %v3896, %v3909
    %v3911 = vpop.f32.mrf.mxu0
    %v3912 = vadd.f32 %v3898, %v3911
    %3913 = vdwg.mxu0
    %3914 = vmatpush.bf16.msra.mxu0 %v3632
    %3915 = vmatpush.bf16.msra.mxu0 %v3628
    %3916 = vmatpush.bf16.msra.mxu0 %v3624
    %3917 = vmatpush.bf16.msra.mxu0 %v3620
    %3918 = vmatpush.bf16.msra.mxu0 %v3616
    %3919 = vmatpush.bf16.msra.mxu0 %v3612
    %3920 = vmatpush.bf16.msra.mxu0 %v3608
    %3921 = vmatpush.bf16.msra.mxu0 %v3604
    %3922 = vmatmul.bf16.gmra.mxu0 %v3320
    %v3923 = vpop.f32.mrf.mxu0
    %v3924 = vadd.f32 0.0, %v3923
    %v3925 = vpop.f32.mrf.mxu0
    %v3926 = vadd.f32 0.0, %v3925
    %3927 = vdwg.mxu0
    %3928 = vmatpush.bf16.msra.mxu0 %v3664
    %3929 = vmatpush.bf16.msra.mxu0 %v3660
    %3930 = vmatpush.bf16.msra.mxu0 %v3656
    %3931 = vmatpush.bf16.msra.mxu0 %v3652
    %3932 = vmatpush.bf16.msra.mxu0 %v3648
    %3933 = vmatpush.bf16.msra.mxu0 %v3644
    %3934 = vmatpush.bf16.msra.mxu0 %v3640
    %3935 = vmatpush.bf16.msra.mxu0 %v3636
    %3936 = vmatmul.bf16.gmra.mxu0 %v3321
    %v3937 = vpop.f32.mrf.mxu0
    %v3938 = vadd.f32 %v3924, %v3937
    %v3939 = vpop.f32.mrf.mxu0
    %v3940 = vadd.f32 %v3926, %v3939
    %3941 = vdwg.mxu0
    %3942 = vmatpush.bf16.msra.mxu0 0
    %3943 = vmatpush.bf16.msra.mxu0 %v3692
    %3944 = vmatpush.bf16.msra.mxu0 %v3688
    %3945 = vmatpush.bf16.msra.mxu0 %v3684
    %3946 = vmatpush.bf16.msra.mxu0 %v3680
    %3947 = vmatpush.bf16.msra.mxu0 %v3676
    %3948 = vmatpush.bf16.msra.mxu0 %v3672
    %3949 = vmatpush.bf16.msra.mxu0 %v3668
    %3950 = vmatmul.bf16.gmra.mxu0 %v3786
    %v3951 = vpop.f32.mrf.mxu0
    %v3952 = vadd.f32 %v3938, %v3951
    %v3953 = vpop.f32.mrf.mxu0
    %v3954 = vadd.f32 %v3940, %v3953
    %3955 = vdwg.mxu0
    %v3956 = vadd.f32 %v3063, %v3826
    %v3957 = vadd.f32 %v3105, %v3868
    %v3958 = vadd.f32 %v3147, %v3910
    %v3959 = vadd.f32 %v3189, %v3952
    %v3960 = vadd.f32 %v3065, %v3828
    %v3961 = vadd.f32 %v3107, %v3870
    %v3962 = vadd.f32 %v3149, %v3912
    %v3963 = vadd.f32 %v3191, %v3954
    %v3964 = vld [vmem:[#allocation2 + $0xc] sm:$0x33]
    %v3965 = vld [vmem:[#allocation2 + $0x14] sm:$0x3]
    %v3966 = vld [vmem:[#allocation2 + $0x24] sm:$0x33]
    %v3967 = vld [vmem:[#allocation2 + $0x2c] sm:$0x3]
    %v3969 = vshrl.u32 %v3193, 16
    %v3971 = vrot.slane %v3969, 5
    %v3972 = vshll.u32 %v3193, 16
    %v3974 = vrot.slane %v3972, 6
    %v3975 = vor.u32 %v3971, %v3974
    %v3976 = vrot.slane %v3975, 4
    %v3978 = vshrl.u32 %v3964, 16
    %v3980 = vrot.slane %v3978, 5
    %v3981 = vshll.u32 %v3964, 16
    %v3983 = vrot.slane %v3981, 6
    %v3984 = vor.u32 %v3980, %v3983
    %v3985 = vsel %vm701, %v3976, %v3984
    %v3987 = vshrl.u32 %v3194, 16
    %v3989 = vrot.slane %v3987, 5
    %v3990 = vshll.u32 %v3194, 16
    %v3992 = vrot.slane %v3990, 6
    %v3993 = vor.u32 %v3989, %v3992
    %v3994 = vrot.slane %v3993, 4
    %v3996 = vshrl.u32 %v3965, 16
    %v3998 = vrot.slane %v3996, 5
    %v3999 = vshll.u32 %v3965, 16
    %v4001 = vrot.slane %v3999, 6
    %v4002 = vor.u32 %v3998, %v4001
    %v4003 = vsel %vm701, %v3994, %v4002
    %v4005 = vshrl.u32 %v3195, 16
    %v4007 = vrot.slane %v4005, 5
    %v4008 = vshll.u32 %v3195, 16
    %v4010 = vrot.slane %v4008, 6
    %v4011 = vor.u32 %v4007, %v4010
    %v4012 = vrot.slane %v4011, 4
    %v4014 = vshrl.u32 %v3966, 16
    %v4016 = vrot.slane %v4014, 5
    %v4017 = vshll.u32 %v3966, 16
    %v4019 = vrot.slane %v4017, 6
    %v4020 = vor.u32 %v4016, %v4019
    %v4021 = vsel %vm701, %v4012, %v4020
    %v4023 = vshrl.u32 %v3196, 16
    %v4025 = vrot.slane %v4023, 5
    %v4026 = vshll.u32 %v3196, 16
    %v4028 = vrot.slane %v4026, 6
    %v4029 = vor.u32 %v4025, %v4028
    %v4030 = vrot.slane %v4029, 4
    %v4032 = vshrl.u32 %v3967, 16
    %v4034 = vrot.slane %v4032, 5
    %v4035 = vshll.u32 %v3967, 16
    %v4037 = vrot.slane %v4035, 6
    %v4038 = vor.u32 %v4034, %v4037
    %v4039 = vsel %vm701, %v4030, %v4038
    %s4040 = scalar_lea.vmem [#allocation8], 2208
    %v4041 = vld [vmem:[%s4040] sm:$0xff]
    %v4042 = vld [vmem:[%s4040 + $0x8] sm:$0xff]
    %v4043 = vld [vmem:[%s4040 + $0x10] sm:$0xff]
    %v4044 = vld [vmem:[%s4040 + $0x18] sm:$0xff]
    %v4045 = vld [vmem:[%s4040 + $0x20] sm:$0xff]
    %v4046 = vld [vmem:[%s4040 + $0x28] sm:$0xff]
    %v4047 = vld [vmem:[%s4040 + $0x30] sm:$0xff]
    %v4048 = vld [vmem:[%s4040 + $0x38] sm:$0xff]
    %v4049 = vld [vmem:[%s4040 + $0x40] sm:$0xff]
    %v4050 = vld [vmem:[%s4040 + $0x48] sm:$0xff]
    %v4051 = vld [vmem:[%s4040 + $0x50] sm:$0xff]
    %v4052 = vld [vmem:[%s4040 + $0x58] sm:$0xff]
    %v4053 = vld [vmem:[%s4040 + $0x60] sm:$0xff]
    %v4054 = vld [vmem:[%s4040 + $0x68] sm:$0xff]
    %v4055 = vld [vmem:[%s4040 + $0x70] sm:$0xff]
    %v4056 = vld [vmem:[%s4040 + $0x78] sm:$0xff]
    %v4057 = vld [vmem:[%s4040 + $0x80] sm:$0xff]
    %v4058 = vld [vmem:[%s4040 + $0x88] sm:$0xff]
    %v4059 = vld [vmem:[%s4040 + $0x90] sm:$0xff]
    %v4060 = vld [vmem:[%s4040 + $0x98] sm:$0xff]
    %v4061 = vld [vmem:[%s4040 + $0xa0] sm:$0xff]
    %v4062 = vld [vmem:[%s4040 + $0xa8] sm:$0xff]
    %v4063 = vld [vmem:[%s4040 + $0xb0] sm:$0xff]
    %v4064 = vld [vmem:[%s4040 + $0xb8] sm:$0xff]
    %v4065 = vld [vmem:[%s4040 + $0xc0] sm:$0xff]
    %v4066 = vld [vmem:[%s4040 + $0xc8] sm:$0xff]
    %v4067 = vld [vmem:[%s4040 + $0xd0] sm:$0xff]
    %v4068 = vld [vmem:[%s4040 + $0xd8] sm:$0xff]
    %v4069 = vld [vmem:[%s4040 + $0xe0] sm:$0xff]
    %v4070 = vld [vmem:[%s4040 + $0xe8] sm:$0xff]
    %v4071 = vld [vmem:[%s4040 + $0xf0] sm:$0xff]
    %v4072 = vld [vmem:[%s4040 + $0xf8] sm:$0xff]
    %v4073 = vld [vmem:[%s4040 + $0x100] sm:$0xff]
    %v4074 = vld [vmem:[%s4040 + $0x108] sm:$0xff]
    %v4075 = vld [vmem:[%s4040 + $0x110] sm:$0xff]
    %v4076 = vld [vmem:[%s4040 + $0x118] sm:$0xff]
    %v4077 = vld [vmem:[%s4040 + $0x120] sm:$0xff]
    %v4078 = vld [vmem:[%s4040 + $0x128] sm:$0xff]
    %v4079 = vld [vmem:[%s4040 + $0x130] sm:$0xff]
    %v4080 = vld [vmem:[%s4040 + $0x138] sm:$0xff]
    %v4081 = vld [vmem:[%s4040 + $0x140] sm:$0xff]
    %v4082 = vld [vmem:[%s4040 + $0x148] sm:$0xff]
    %v4083 = vld [vmem:[%s4040 + $0x150] sm:$0xff]
    %v4084 = vld [vmem:[%s4040 + $0x158] sm:$0xff]
    %v4085 = vld [vmem:[%s4040 + $0x160] sm:$0xff]
    %v4086 = vld [vmem:[%s4040 + $0x168] sm:$0xff]
    %v4087 = vld [vmem:[%s4040 + $0x170] sm:$0xff]
    %v4088 = vld [vmem:[%s4040 + $0x178] sm:$0xff]
    %v4089 = vld [vmem:[%s4040 + $0x180] sm:$0xff]
    %v4090 = vld [vmem:[%s4040 + $0x188] sm:$0xff]
    %v4091 = vld [vmem:[%s4040 + $0x190] sm:$0xff]
    %v4092 = vld [vmem:[%s4040 + $0x198] sm:$0xff]
    %v4093 = vld [vmem:[%s4040 + $0x1a0] sm:$0xff]
    %v4094 = vld [vmem:[%s4040 + $0x1a8] sm:$0xff]
    %v4095 = vld [vmem:[%s4040 + $0x1b0] sm:$0xff]
    %v4096 = vld [vmem:[%s4040 + $0x1b8] sm:$0xff]
    %v4097 = vld [vmem:[%s4040 + $0x1c0] sm:$0xff]
    %v4098 = vld [vmem:[%s4040 + $0x1c8] sm:$0xff]
    %v4099 = vld [vmem:[%s4040 + $0x1d0] sm:$0xff]
    %v4100 = vld [vmem:[%s4040 + $0x1d8] sm:$0xff]
    %v4101 = vld [vmem:[%s4040 + $0x1e0] sm:$0xff]
    %v4102 = vld [vmem:[%s4040 + $0x1e8] sm:$0xff]
    %v4103 = vld [vmem:[%s4040 + $0x1f0] sm:$0xff]
    %v4104 = vld [vmem:[%s4040 + $0x1f8] sm:$0xff]
    %v4105 = vld [vmem:[%s4040 + $0x200] sm:$0xff]
    %v4106 = vld [vmem:[%s4040 + $0x208] sm:$0xff]
    %v4107 = vld [vmem:[%s4040 + $0x210] sm:$0xff]
    %v4108 = vld [vmem:[%s4040 + $0x218] sm:$0xff]
    %v4109 = vld [vmem:[%s4040 + $0x220] sm:$0xff]
    %v4110 = vld [vmem:[%s4040 + $0x228] sm:$0xff]
    %v4111 = vld [vmem:[%s4040 + $0x230] sm:$0xff]
    %v4112 = vld [vmem:[%s4040 + $0x238] sm:$0xff]
    %v4113 = vld [vmem:[%s4040 + $0x240] sm:$0xff]
    %v4114 = vld [vmem:[%s4040 + $0x248] sm:$0xff]
    %v4115 = vld [vmem:[%s4040 + $0x250] sm:$0xff]
    %v4116 = vld [vmem:[%s4040 + $0x258] sm:$0xff]
    %v4117 = vld [vmem:[%s4040 + $0x260] sm:$0xff]
    %v4118 = vld [vmem:[%s4040 + $0x268] sm:$0xff]
    %v4119 = vld [vmem:[%s4040 + $0x270] sm:$0xff]
    %v4120 = vld [vmem:[%s4040 + $0x278] sm:$0xff]
    %v4121 = vld [vmem:[%s4040 + $0x280] sm:$0xff]
    %v4122 = vld [vmem:[%s4040 + $0x288] sm:$0xff]
    %v4123 = vld [vmem:[%s4040 + $0x290] sm:$0xff]
    %v4124 = vld [vmem:[%s4040 + $0x298] sm:$0xff]
    %v4125 = vld [vmem:[%s4040 + $0x2a0] sm:$0xff]
    %v4126 = vld [vmem:[%s4040 + $0x2a8] sm:$0xff]
    %v4127 = vld [vmem:[%s4040 + $0x2b0] sm:$0xff]
    %v4128 = vld [vmem:[%s4040 + $0x2b8] sm:$0xff]
    %v4129 = vld [vmem:[%s4040 + $0x2c0] sm:$0xff]
    %v4130 = vld [vmem:[%s4040 + $0x2c8] sm:$0xff]
    %v4131 = vld [vmem:[%s4040 + $0x2d0] sm:$0xff]
    %v4132 = vld [vmem:[%s4040 + $0x2d8] sm:$0xff]
    %v4133 = vunpack.c.l.b16 %v3985
    %v4134 = vunpack.c.h.b16 %v3985
    %v4135 = vunpack.c.l.b16 %v4003
    %v4136 = vunpack.c.l.b16 %v4021
    %v4137 = vunpack.c.h.b16 %v4021
    %v4138 = vunpack.c.l.b16 %v4039
    %v4139 = vpack.c.b16 %v4136, %v4133
    %v4140 = vpack.c.b16 %v4137, %v4134
    %v4141 = vpack.c.b16 %v4138, %v4135
    %v4236 = vunpack.c.l.b16 %v4041
    %v4237 = vunpack.c.h.b16 %v4041
    %v4238 = vunpack.c.l.b16 %v4042
    %v4239 = vunpack.c.h.b16 %v4042
    %v4240 = vunpack.c.l.b16 %v4043
    %v4241 = vunpack.c.h.b16 %v4043
    %v4242 = vunpack.c.l.b16 %v4044
    %v4243 = vunpack.c.h.b16 %v4044
    %v4244 = vunpack.c.l.b16 %v4045
    %v4245 = vunpack.c.h.b16 %v4045
    %v4246 = vunpack.c.l.b16 %v4046
    %v4247 = vunpack.c.h.b16 %v4046
    %v4248 = vunpack.c.l.b16 %v4047
    %v4249 = vunpack.c.h.b16 %v4047
    %v4250 = vunpack.c.l.b16 %v4048
    %v4251 = vunpack.c.h.b16 %v4048
    %v4252 = vunpack.c.l.b16 %v4049
    %v4253 = vunpack.c.h.b16 %v4049
    %v4254 = vunpack.c.l.b16 %v4050
    %v4255 = vunpack.c.h.b16 %v4050
    %v4256 = vunpack.c.l.b16 %v4051
    %v4257 = vunpack.c.h.b16 %v4051
    %v4258 = vunpack.c.l.b16 %v4052
    %v4259 = vunpack.c.h.b16 %v4052
    %v4260 = vunpack.c.l.b16 %v4053
    %v4261 = vunpack.c.h.b16 %v4053
    %v4262 = vunpack.c.l.b16 %v4054
    %v4263 = vunpack.c.h.b16 %v4054
    %v4264 = vunpack.c.l.b16 %v4055
    %v4265 = vunpack.c.h.b16 %v4055
    %v4266 = vunpack.c.l.b16 %v4056
    %v4267 = vunpack.c.h.b16 %v4056
    %v4268 = vunpack.c.l.b16 %v4057
    %v4269 = vunpack.c.h.b16 %v4057
    %v4270 = vunpack.c.l.b16 %v4058
    %v4271 = vunpack.c.h.b16 %v4058
    %v4272 = vunpack.c.l.b16 %v4059
    %v4273 = vunpack.c.h.b16 %v4059
    %v4274 = vunpack.c.l.b16 %v4060
    %v4275 = vunpack.c.h.b16 %v4060
    %v4276 = vunpack.c.l.b16 %v4061
    %v4277 = vunpack.c.h.b16 %v4061
    %v4278 = vunpack.c.l.b16 %v4062
    %v4279 = vunpack.c.h.b16 %v4062
    %v4280 = vunpack.c.l.b16 %v4063
    %v4281 = vunpack.c.h.b16 %v4063
    %v4282 = vunpack.c.l.b16 %v4064
    %v4283 = vunpack.c.h.b16 %v4064
    %v4284 = vunpack.c.l.b16 %v4065
    %v4285 = vunpack.c.h.b16 %v4065
    %v4286 = vunpack.c.l.b16 %v4066
    %v4287 = vunpack.c.h.b16 %v4066
    %v4288 = vunpack.c.l.b16 %v4067
    %v4289 = vunpack.c.h.b16 %v4067
    %v4290 = vunpack.c.l.b16 %v4068
    %v4291 = vunpack.c.h.b16 %v4068
    %v4292 = vunpack.c.l.b16 %v4069
    %v4293 = vunpack.c.h.b16 %v4069
    %v4294 = vunpack.c.l.b16 %v4070
    %v4295 = vunpack.c.h.b16 %v4070
    %v4296 = vunpack.c.l.b16 %v4071
    %v4297 = vunpack.c.h.b16 %v4071
    %v4298 = vunpack.c.l.b16 %v4072
    %v4299 = vunpack.c.h.b16 %v4072
    %v4300 = vunpack.c.l.b16 %v4073
    %v4301 = vunpack.c.h.b16 %v4073
    %v4302 = vunpack.c.l.b16 %v4074
    %v4303 = vunpack.c.h.b16 %v4074
    %v4304 = vunpack.c.l.b16 %v4075
    %v4305 = vunpack.c.h.b16 %v4075
    %v4306 = vunpack.c.l.b16 %v4076
    %v4307 = vunpack.c.h.b16 %v4076
    %v4308 = vunpack.c.l.b16 %v4077
    %v4309 = vunpack.c.h.b16 %v4077
    %v4310 = vunpack.c.l.b16 %v4078
    %v4311 = vunpack.c.h.b16 %v4078
    %v4312 = vunpack.c.l.b16 %v4079
    %v4313 = vunpack.c.h.b16 %v4079
    %v4314 = vunpack.c.l.b16 %v4080
    %v4315 = vunpack.c.h.b16 %v4080
    %v4316 = vunpack.c.l.b16 %v4081
    %v4317 = vunpack.c.h.b16 %v4081
    %v4318 = vunpack.c.l.b16 %v4082
    %v4319 = vunpack.c.h.b16 %v4082
    %v4320 = vunpack.c.l.b16 %v4083
    %v4321 = vunpack.c.h.b16 %v4083
    %v4322 = vunpack.c.l.b16 %v4084
    %v4323 = vunpack.c.h.b16 %v4084
    %v4324 = vunpack.c.l.b16 %v4085
    %v4325 = vunpack.c.h.b16 %v4085
    %v4326 = vunpack.c.l.b16 %v4086
    %v4327 = vunpack.c.h.b16 %v4086
    %v4328 = vunpack.c.l.b16 %v4087
    %v4329 = vunpack.c.h.b16 %v4087
    %v4330 = vunpack.c.l.b16 %v4088
    %v4331 = vunpack.c.h.b16 %v4088
    %v4332 = vunpack.c.l.b16 %v4089
    %v4333 = vunpack.c.h.b16 %v4089
    %v4334 = vunpack.c.l.b16 %v4090
    %v4335 = vunpack.c.h.b16 %v4090
    %v4336 = vunpack.c.l.b16 %v4091
    %v4337 = vunpack.c.h.b16 %v4091
    %v4338 = vunpack.c.l.b16 %v4092
    %v4339 = vunpack.c.h.b16 %v4092
    %v4340 = vunpack.c.l.b16 %v4093
    %v4341 = vunpack.c.h.b16 %v4093
    %v4342 = vunpack.c.l.b16 %v4094
    %v4343 = vunpack.c.h.b16 %v4094
    %v4344 = vunpack.c.l.b16 %v4095
    %v4345 = vunpack.c.h.b16 %v4095
    %v4346 = vunpack.c.l.b16 %v4096
    %v4347 = vunpack.c.h.b16 %v4096
    %v4348 = vunpack.c.l.b16 %v4097
    %v4349 = vunpack.c.h.b16 %v4097
    %v4350 = vunpack.c.l.b16 %v4098
    %v4351 = vunpack.c.h.b16 %v4098
    %v4352 = vunpack.c.l.b16 %v4099
    %v4353 = vunpack.c.h.b16 %v4099
    %v4354 = vunpack.c.l.b16 %v4100
    %v4355 = vunpack.c.h.b16 %v4100
    %v4356 = vunpack.c.l.b16 %v4101
    %v4357 = vunpack.c.h.b16 %v4101
    %v4358 = vunpack.c.l.b16 %v4102
    %v4359 = vunpack.c.h.b16 %v4102
    %v4360 = vunpack.c.l.b16 %v4103
    %v4361 = vunpack.c.h.b16 %v4103
    %v4362 = vunpack.c.l.b16 %v4104
    %v4363 = vunpack.c.h.b16 %v4104
    %v4364 = vunpack.c.l.b16 %v4105
    %v4365 = vunpack.c.h.b16 %v4105
    %v4366 = vunpack.c.l.b16 %v4106
    %v4367 = vunpack.c.h.b16 %v4106
    %v4368 = vunpack.c.l.b16 %v4107
    %v4369 = vunpack.c.h.b16 %v4107
    %v4370 = vunpack.c.l.b16 %v4108
    %v4371 = vunpack.c.h.b16 %v4108
    %v4372 = vunpack.c.l.b16 %v4109
    %v4373 = vunpack.c.h.b16 %v4109
    %v4374 = vunpack.c.l.b16 %v4110
    %v4375 = vunpack.c.h.b16 %v4110
    %v4376 = vunpack.c.l.b16 %v4111
    %v4377 = vunpack.c.h.b16 %v4111
    %v4378 = vunpack.c.l.b16 %v4112
    %v4379 = vunpack.c.h.b16 %v4112
    %v4380 = vunpack.c.l.b16 %v4113
    %v4381 = vunpack.c.h.b16 %v4113
    %v4382 = vunpack.c.l.b16 %v4114
    %v4383 = vunpack.c.h.b16 %v4114
    %v4384 = vunpack.c.l.b16 %v4115
    %v4385 = vunpack.c.h.b16 %v4115
    %v4386 = vunpack.c.l.b16 %v4116
    %v4387 = vunpack.c.h.b16 %v4116
    %v4388 = vunpack.c.l.b16 %v4117
    %v4389 = vunpack.c.h.b16 %v4117
    %v4390 = vunpack.c.l.b16 %v4118
    %v4391 = vunpack.c.h.b16 %v4118
    %v4392 = vunpack.c.l.b16 %v4119
    %v4393 = vunpack.c.h.b16 %v4119
    %v4394 = vunpack.c.l.b16 %v4120
    %v4395 = vunpack.c.h.b16 %v4120
    %v4396 = vunpack.c.l.b16 %v4121
    %v4397 = vunpack.c.h.b16 %v4121
    %v4398 = vunpack.c.l.b16 %v4122
    %v4399 = vunpack.c.h.b16 %v4122
    %v4400 = vunpack.c.l.b16 %v4123
    %v4401 = vunpack.c.h.b16 %v4123
    %v4402 = vunpack.c.l.b16 %v4124
    %v4403 = vunpack.c.h.b16 %v4124
    %v4404 = vunpack.c.l.b16 %v4125
    %v4405 = vunpack.c.h.b16 %v4125
    %v4406 = vunpack.c.l.b16 %v4126
    %v4407 = vunpack.c.h.b16 %v4126
    %v4408 = vunpack.c.l.b16 %v4127
    %v4409 = vunpack.c.h.b16 %v4127
    %v4410 = vunpack.c.l.b16 %v4128
    %v4411 = vunpack.c.h.b16 %v4128
    %v4412 = vunpack.c.l.b16 %v4129
    %v4413 = vunpack.c.h.b16 %v4129
    %v4414 = vunpack.c.l.b16 %v4130
    %v4415 = vunpack.c.h.b16 %v4130
    %v4416 = vunpack.c.l.b16 %v4131
    %v4417 = vunpack.c.h.b16 %v4131
    %v4418 = vunpack.c.l.b16 %v4132
    %v4419 = vunpack.c.h.b16 %v4132
    %v4420 = vpack.c.b16 %v4240, %v4236
    %v4421 = vpack.c.b16 %v4241, %v4237
    %v4422 = vpack.c.b16 %v4242, %v4238
    %v4423 = vpack.c.b16 %v4243, %v4239
    %v4424 = vpack.c.b16 %v4248, %v4244
    %v4425 = vpack.c.b16 %v4249, %v4245
    %v4426 = vpack.c.b16 %v4250, %v4246
    %v4427 = vpack.c.b16 %v4251, %v4247
    %v4428 = vpack.c.b16 %v4256, %v4252
    %v4429 = vpack.c.b16 %v4257, %v4253
    %v4430 = vpack.c.b16 %v4258, %v4254
    %v4431 = vpack.c.b16 %v4259, %v4255
    %v4432 = vpack.c.b16 %v4264, %v4260
    %v4433 = vpack.c.b16 %v4265, %v4261
    %v4434 = vpack.c.b16 %v4266, %v4262
    %v4435 = vpack.c.b16 %v4267, %v4263
    %v4436 = vpack.c.b16 %v4272, %v4268
    %v4437 = vpack.c.b16 %v4273, %v4269
    %v4438 = vpack.c.b16 %v4274, %v4270
    %v4439 = vpack.c.b16 %v4275, %v4271
    %v4440 = vpack.c.b16 %v4280, %v4276
    %v4441 = vpack.c.b16 %v4281, %v4277
    %v4442 = vpack.c.b16 %v4282, %v4278
    %v4443 = vpack.c.b16 %v4283, %v4279
    %v4444 = vpack.c.b16 %v4288, %v4284
    %v4445 = vpack.c.b16 %v4289, %v4285
    %v4446 = vpack.c.b16 %v4290, %v4286
    %v4447 = vpack.c.b16 %v4291, %v4287
    %v4448 = vpack.c.b16 %v4296, %v4292
    %v4449 = vpack.c.b16 %v4297, %v4293
    %v4450 = vpack.c.b16 %v4298, %v4294
    %v4451 = vpack.c.b16 %v4299, %v4295
    %v4452 = vpack.c.b16 %v4304, %v4300
    %v4453 = vpack.c.b16 %v4305, %v4301
    %v4454 = vpack.c.b16 %v4306, %v4302
    %v4455 = vpack.c.b16 %v4307, %v4303
    %v4456 = vpack.c.b16 %v4312, %v4308
    %v4457 = vpack.c.b16 %v4313, %v4309
    %v4458 = vpack.c.b16 %v4314, %v4310
    %v4459 = vpack.c.b16 %v4315, %v4311
    %v4460 = vpack.c.b16 %v4320, %v4316
    %v4461 = vpack.c.b16 %v4321, %v4317
    %v4462 = vpack.c.b16 %v4322, %v4318
    %v4463 = vpack.c.b16 %v4323, %v4319
    %v4464 = vpack.c.b16 %v4328, %v4324
    %v4465 = vpack.c.b16 %v4329, %v4325
    %v4466 = vpack.c.b16 %v4330, %v4326
    %v4467 = vpack.c.b16 %v4331, %v4327
    %v4468 = vpack.c.b16 %v4336, %v4332
    %v4469 = vpack.c.b16 %v4337, %v4333
    %v4470 = vpack.c.b16 %v4338, %v4334
    %v4471 = vpack.c.b16 %v4339, %v4335
    %v4472 = vpack.c.b16 %v4344, %v4340
    %v4473 = vpack.c.b16 %v4345, %v4341
    %v4474 = vpack.c.b16 %v4346, %v4342
    %v4475 = vpack.c.b16 %v4347, %v4343
    %v4476 = vpack.c.b16 %v4352, %v4348
    %v4477 = vpack.c.b16 %v4353, %v4349
    %v4478 = vpack.c.b16 %v4354, %v4350
    %v4479 = vpack.c.b16 %v4355, %v4351
    %v4480 = vpack.c.b16 %v4360, %v4356
    %v4481 = vpack.c.b16 %v4361, %v4357
    %v4482 = vpack.c.b16 %v4362, %v4358
    %v4483 = vpack.c.b16 %v4363, %v4359
    %v4484 = vpack.c.b16 %v4368, %v4364
    %v4485 = vpack.c.b16 %v4369, %v4365
    %v4486 = vpack.c.b16 %v4370, %v4366
    %v4487 = vpack.c.b16 %v4371, %v4367
    %v4488 = vpack.c.b16 %v4376, %v4372
    %v4489 = vpack.c.b16 %v4377, %v4373
    %v4490 = vpack.c.b16 %v4378, %v4374
    %v4491 = vpack.c.b16 %v4379, %v4375
    %v4492 = vpack.c.b16 %v4384, %v4380
    %v4493 = vpack.c.b16 %v4385, %v4381
    %v4494 = vpack.c.b16 %v4386, %v4382
    %v4495 = vpack.c.b16 %v4387, %v4383
    %v4496 = vpack.c.b16 %v4392, %v4388
    %v4497 = vpack.c.b16 %v4393, %v4389
    %v4498 = vpack.c.b16 %v4394, %v4390
    %v4499 = vpack.c.b16 %v4395, %v4391
    %v4500 = vpack.c.b16 %v4400, %v4396
    %v4501 = vpack.c.b16 %v4401, %v4397
    %v4502 = vpack.c.b16 %v4402, %v4398
    %v4503 = vpack.c.b16 %v4403, %v4399
    %v4504 = vpack.c.b16 %v4408, %v4404
    %v4505 = vpack.c.b16 %v4409, %v4405
    %v4506 = vpack.c.b16 %v4410, %v4406
    %v4507 = vpack.c.b16 %v4411, %v4407
    %v4508 = vpack.c.b16 %v4416, %v4412
    %v4509 = vpack.c.b16 %v4417, %v4413
    %v4510 = vpack.c.b16 %v4418, %v4414
    %v4511 = vpack.c.b16 %v4419, %v4415
    %v4605 = vsel %vm1173, %v4141, 0
    %4607 = vmatpush.bf16.msra.mxu0 %v4448
    %4608 = vmatpush.bf16.msra.mxu0 %v4444
    %4609 = vmatpush.bf16.msra.mxu0 %v4440
    %4610 = vmatpush.bf16.msra.mxu0 %v4436
    %4611 = vmatpush.bf16.msra.mxu0 %v4432
    %4612 = vmatpush.bf16.msra.mxu0 %v4428
    %4613 = vmatpush.bf16.msra.mxu0 %v4424
    %4614 = vmatpush.bf16.msra.mxu0 %v4420
    %4615 = vmatmul.bf16.gmra.mxu0 %v4139
    %v4616 = vpop.f32.mrf.mxu0
    %v4617 = vadd.f32 0.0, %v4616
    %v4618 = vpop.f32.mrf.mxu0
    %v4619 = vadd.f32 0.0, %v4618
    %4620 = vdwg.mxu0
    %4621 = vmatpush.bf16.msra.mxu0 %v4480
    %4622 = vmatpush.bf16.msra.mxu0 %v4476
    %4623 = vmatpush.bf16.msra.mxu0 %v4472
    %4624 = vmatpush.bf16.msra.mxu0 %v4468
    %4625 = vmatpush.bf16.msra.mxu0 %v4464
    %4626 = vmatpush.bf16.msra.mxu0 %v4460
    %4627 = vmatpush.bf16.msra.mxu0 %v4456
    %4628 = vmatpush.bf16.msra.mxu0 %v4452
    %4629 = vmatmul.bf16.gmra.mxu0 %v4140
    %v4630 = vpop.f32.mrf.mxu0
    %v4631 = vadd.f32 %v4617, %v4630
    %v4632 = vpop.f32.mrf.mxu0
    %v4633 = vadd.f32 %v4619, %v4632
    %4634 = vdwg.mxu0
    %4635 = vmatpush.bf16.msra.mxu0 0
    %4636 = vmatpush.bf16.msra.mxu0 %v4508
    %4637 = vmatpush.bf16.msra.mxu0 %v4504
    %4638 = vmatpush.bf16.msra.mxu0 %v4500
    %4639 = vmatpush.bf16.msra.mxu0 %v4496
    %4640 = vmatpush.bf16.msra.mxu0 %v4492
    %4641 = vmatpush.bf16.msra.mxu0 %v4488
    %4642 = vmatpush.bf16.msra.mxu0 %v4484
    %4643 = vmatmul.bf16.gmra.mxu0 %v4605
    %v4644 = vpop.f32.mrf.mxu0
    %v4645 = vadd.f32 %v4631, %v4644
    %v4646 = vpop.f32.mrf.mxu0
    %v4647 = vadd.f32 %v4633, %v4646
    %4648 = vdwg.mxu0
    %4649 = vmatpush.bf16.msra.mxu0 %v4449
    %4650 = vmatpush.bf16.msra.mxu0 %v4445
    %4651 = vmatpush.bf16.msra.mxu0 %v4441
    %4652 = vmatpush.bf16.msra.mxu0 %v4437
    %4653 = vmatpush.bf16.msra.mxu0 %v4433
    %4654 = vmatpush.bf16.msra.mxu0 %v4429
    %4655 = vmatpush.bf16.msra.mxu0 %v4425
    %4656 = vmatpush.bf16.msra.mxu0 %v4421
    %4657 = vmatmul.bf16.gmra.mxu0 %v4139
    %v4658 = vpop.f32.mrf.mxu0
    %v4659 = vadd.f32 0.0, %v4658
    %v4660 = vpop.f32.mrf.mxu0
    %v4661 = vadd.f32 0.0, %v4660
    %4662 = vdwg.mxu0
    %4663 = vmatpush.bf16.msra.mxu0 %v4481
    %4664 = vmatpush.bf16.msra.mxu0 %v4477
    %4665 = vmatpush.bf16.msra.mxu0 %v4473
    %4666 = vmatpush.bf16.msra.mxu0 %v4469
    %4667 = vmatpush.bf16.msra.mxu0 %v4465
    %4668 = vmatpush.bf16.msra.mxu0 %v4461
    %4669 = vmatpush.bf16.msra.mxu0 %v4457
    %4670 = vmatpush.bf16.msra.mxu0 %v4453
    %4671 = vmatmul.bf16.gmra.mxu0 %v4140
    %v4672 = vpop.f32.mrf.mxu0
    %v4673 = vadd.f32 %v4659, %v4672
    %v4674 = vpop.f32.mrf.mxu0
    %v4675 = vadd.f32 %v4661, %v4674
    %4676 = vdwg.mxu0
    %4677 = vmatpush.bf16.msra.mxu0 0
    %4678 = vmatpush.bf16.msra.mxu0 %v4509
    %4679 = vmatpush.bf16.msra.mxu0 %v4505
    %4680 = vmatpush.bf16.msra.mxu0 %v4501
    %4681 = vmatpush.bf16.msra.mxu0 %v4497
    %4682 = vmatpush.bf16.msra.mxu0 %v4493
    %4683 = vmatpush.bf16.msra.mxu0 %v4489
    %4684 = vmatpush.bf16.msra.mxu0 %v4485
    %4685 = vmatmul.bf16.gmra.mxu0 %v4605
    %v4686 = vpop.f32.mrf.mxu0
    %v4687 = vadd.f32 %v4673, %v4686
    %v4688 = vpop.f32.mrf.mxu0
    %v4689 = vadd.f32 %v4675, %v4688
    %4690 = vdwg.mxu0
    %4691 = vmatpush.bf16.msra.mxu0 %v4450
    %4692 = vmatpush.bf16.msra.mxu0 %v4446
    %4693 = vmatpush.bf16.msra.mxu0 %v4442
    %4694 = vmatpush.bf16.msra.mxu0 %v4438
    %4695 = vmatpush.bf16.msra.mxu0 %v4434
    %4696 = vmatpush.bf16.msra.mxu0 %v4430
    %4697 = vmatpush.bf16.msra.mxu0 %v4426
    %4698 = vmatpush.bf16.msra.mxu0 %v4422
    %4699 = vmatmul.bf16.gmra.mxu0 %v4139
    %v4700 = vpop.f32.mrf.mxu0
    %v4701 = vadd.f32 0.0, %v4700
    %v4702 = vpop.f32.mrf.mxu0
    %v4703 = vadd.f32 0.0, %v4702
    %4704 = vdwg.mxu0
    %4705 = vmatpush.bf16.msra.mxu0 %v4482
    %4706 = vmatpush.bf16.msra.mxu0 %v4478
    %4707 = vmatpush.bf16.msra.mxu0 %v4474
    %4708 = vmatpush.bf16.msra.mxu0 %v4470
    %4709 = vmatpush.bf16.msra.mxu0 %v4466
    %4710 = vmatpush.bf16.msra.mxu0 %v4462
    %4711 = vmatpush.bf16.msra.mxu0 %v4458
    %4712 = vmatpush.bf16.msra.mxu0 %v4454
    %4713 = vmatmul.bf16.gmra.mxu0 %v4140
    %v4714 = vpop.f32.mrf.mxu0
    %v4715 = vadd.f32 %v4701, %v4714
    %v4716 = vpop.f32.mrf.mxu0
    %v4717 = vadd.f32 %v4703, %v4716
    %4718 = vdwg.mxu0
    %4719 = vmatpush.bf16.msra.mxu0 0
    %4720 = vmatpush.bf16.msra.mxu0 %v4510
    %4721 = vmatpush.bf16.msra.mxu0 %v4506
    %4722 = vmatpush.bf16.msra.mxu0 %v4502
    %4723 = vmatpush.bf16.msra.mxu0 %v4498
    %4724 = vmatpush.bf16.msra.mxu0 %v4494
    %4725 = vmatpush.bf16.msra.mxu0 %v4490
    %4726 = vmatpush.bf16.msra.mxu0 %v4486
    %4727 = vmatmul.bf16.gmra.mxu0 %v4605
    %v4728 = vpop.f32.mrf.mxu0
    %v4729 = vadd.f32 %v4715, %v4728
    %v4730 = vpop.f32.mrf.mxu0
    %v4731 = vadd.f32 %v4717, %v4730
    %4732 = vdwg.mxu0
    %4733 = vmatpush.bf16.msra.mxu0 %v4451
    %4734 = vmatpush.bf16.msra.mxu0 %v4447
    %4735 = vmatpush.bf16.msra.mxu0 %v4443
    %4736 = vmatpush.bf16.msra.mxu0 %v4439
    %4737 = vmatpush.bf16.msra.mxu0 %v4435
    %4738 = vmatpush.bf16.msra.mxu0 %v4431
    %4739 = vmatpush.bf16.msra.mxu0 %v4427
    %4740 = vmatpush.bf16.msra.mxu0 %v4423
    %4741 = vmatmul.bf16.gmra.mxu0 %v4139
    %v4742 = vpop.f32.mrf.mxu0
    %v4743 = vadd.f32 0.0, %v4742
    %v4744 = vpop.f32.mrf.mxu0
    %v4745 = vadd.f32 0.0, %v4744
    %4746 = vdwg.mxu0
    %4747 = vmatpush.bf16.msra.mxu0 %v4483
    %4748 = vmatpush.bf16.msra.mxu0 %v4479
    %4749 = vmatpush.bf16.msra.mxu0 %v4475
    %4750 = vmatpush.bf16.msra.mxu0 %v4471
    %4751 = vmatpush.bf16.msra.mxu0 %v4467
    %4752 = vmatpush.bf16.msra.mxu0 %v4463
    %4753 = vmatpush.bf16.msra.mxu0 %v4459
    %4754 = vmatpush.bf16.msra.mxu0 %v4455
    %4755 = vmatmul.bf16.gmra.mxu0 %v4140
    %v4756 = vpop.f32.mrf.mxu0
    %v4757 = vadd.f32 %v4743, %v4756
    %v4758 = vpop.f32.mrf.mxu0
    %v4759 = vadd.f32 %v4745, %v4758
    %4760 = vdwg.mxu0
    %4761 = vmatpush.bf16.msra.mxu0 0
    %4762 = vmatpush.bf16.msra.mxu0 %v4511
    %4763 = vmatpush.bf16.msra.mxu0 %v4507
    %4764 = vmatpush.bf16.msra.mxu0 %v4503
    %4765 = vmatpush.bf16.msra.mxu0 %v4499
    %4766 = vmatpush.bf16.msra.mxu0 %v4495
    %4767 = vmatpush.bf16.msra.mxu0 %v4491
    %4768 = vmatpush.bf16.msra.mxu0 %v4487
    %4769 = vmatmul.bf16.gmra.mxu0 %v4605
    %v4770 = vpop.f32.mrf.mxu0
    %v4771 = vadd.f32 %v4757, %v4770
    %v4772 = vpop.f32.mrf.mxu0
    %v4773 = vadd.f32 %v4759, %v4772
    %4774 = vdwg.mxu0
    %v4775 = vadd.f32 %v3956, %v4645
    %v4776 = vadd.f32 %v3957, %v4687
    %v4777 = vadd.f32 %v3958, %v4729
    %v4778 = vadd.f32 %v3959, %v4771
    %v4779 = vadd.f32 %v3960, %v4647
    %v4780 = vadd.f32 %v3961, %v4689
    %v4781 = vadd.f32 %v3962, %v4731
    %v4782 = vadd.f32 %v3963, %v4773
    %v4783 = vld [vmem:[#allocation2] sm:$0xcc]
    %v4784 = vld [vmem:[#allocation2 + $0x8] sm:$0xc]
    %v4785 = vld [vmem:[#allocation2 + $0x18] sm:$0xcc]
    %v4786 = vld [vmem:[#allocation2 + $0x20] sm:$0xc]
    %v4795 = vrot.slane %v4783, 6
    %v4796 = vrot.slane %v4795, 4
    %v4797 = vrot.slane %v3964, 6
    %v4798 = vsel %vm899, %v4796, %v4797
    %v4799 = vrot.slane %v4784, 6
    %v4800 = vrot.slane %v4799, 4
    %v4801 = vrot.slane %v3965, 6
    %v4802 = vsel %vm899, %v4800, %v4801
    %v4803 = vrot.slane %v4785, 6
    %v4804 = vrot.slane %v4803, 4
    %v4805 = vrot.slane %v3966, 6
    %v4806 = vsel %vm899, %v4804, %v4805
    %v4807 = vrot.slane %v4786, 6
    %v4808 = vrot.slane %v4807, 4
    %v4809 = vrot.slane %v3967, 6
    %v4810 = vsel %vm899, %v4808, %v4809
    %s4811 = scalar_lea.vmem [#allocation8], 2944
    %v4812 = vld [vmem:[%s4811] sm:$0xff]
    %v4813 = vld [vmem:[%s4811 + $0x8] sm:$0xff]
    %v4814 = vld [vmem:[%s4811 + $0x10] sm:$0xff]
    %v4815 = vld [vmem:[%s4811 + $0x18] sm:$0xff]
    %v4816 = vld [vmem:[%s4811 + $0x20] sm:$0xff]
    %v4817 = vld [vmem:[%s4811 + $0x28] sm:$0xff]
    %v4818 = vld [vmem:[%s4811 + $0x30] sm:$0xff]
    %v4819 = vld [vmem:[%s4811 + $0x38] sm:$0xff]
    %v4820 = vld [vmem:[%s4811 + $0x40] sm:$0xff]
    %v4821 = vld [vmem:[%s4811 + $0x48] sm:$0xff]
    %v4822 = vld [vmem:[%s4811 + $0x50] sm:$0xff]
    %v4823 = vld [vmem:[%s4811 + $0x58] sm:$0xff]
    %v4824 = vld [vmem:[%s4811 + $0x60] sm:$0xff]
    %v4825 = vld [vmem:[%s4811 + $0x68] sm:$0xff]
    %v4826 = vld [vmem:[%s4811 + $0x70] sm:$0xff]
    %v4827 = vld [vmem:[%s4811 + $0x78] sm:$0xff]
    %v4828 = vld [vmem:[%s4811 + $0x80] sm:$0xff]
    %v4829 = vld [vmem:[%s4811 + $0x88] sm:$0xff]
    %v4830 = vld [vmem:[%s4811 + $0x90] sm:$0xff]
    %v4831 = vld [vmem:[%s4811 + $0x98] sm:$0xff]
    %v4832 = vld [vmem:[%s4811 + $0xa0] sm:$0xff]
    %v4833 = vld [vmem:[%s4811 + $0xa8] sm:$0xff]
    %v4834 = vld [vmem:[%s4811 + $0xb0] sm:$0xff]
    %v4835 = vld [vmem:[%s4811 + $0xb8] sm:$0xff]
    %v4836 = vld [vmem:[%s4811 + $0xc0] sm:$0xff]
    %v4837 = vld [vmem:[%s4811 + $0xc8] sm:$0xff]
    %v4838 = vld [vmem:[%s4811 + $0xd0] sm:$0xff]
    %v4839 = vld [vmem:[%s4811 + $0xd8] sm:$0xff]
    %v4840 = vld [vmem:[%s4811 + $0xe0] sm:$0xff]
    %v4841 = vld [vmem:[%s4811 + $0xe8] sm:$0xff]
    %v4842 = vld [vmem:[%s4811 + $0xf0] sm:$0xff]
    %v4843 = vld [vmem:[%s4811 + $0xf8] sm:$0xff]
    %v4844 = vld [vmem:[%s4811 + $0x100] sm:$0xff]
    %v4845 = vld [vmem:[%s4811 + $0x108] sm:$0xff]
    %v4846 = vld [vmem:[%s4811 + $0x110] sm:$0xff]
    %v4847 = vld [vmem:[%s4811 + $0x118] sm:$0xff]
    %v4848 = vld [vmem:[%s4811 + $0x120] sm:$0xff]
    %v4849 = vld [vmem:[%s4811 + $0x128] sm:$0xff]
    %v4850 = vld [vmem:[%s4811 + $0x130] sm:$0xff]
    %v4851 = vld [vmem:[%s4811 + $0x138] sm:$0xff]
    %v4852 = vld [vmem:[%s4811 + $0x140] sm:$0xff]
    %v4853 = vld [vmem:[%s4811 + $0x148] sm:$0xff]
    %v4854 = vld [vmem:[%s4811 + $0x150] sm:$0xff]
    %v4855 = vld [vmem:[%s4811 + $0x158] sm:$0xff]
    %v4856 = vld [vmem:[%s4811 + $0x160] sm:$0xff]
    %v4857 = vld [vmem:[%s4811 + $0x168] sm:$0xff]
    %v4858 = vld [vmem:[%s4811 + $0x170] sm:$0xff]
    %v4859 = vld [vmem:[%s4811 + $0x178] sm:$0xff]
    %v4860 = vld [vmem:[%s4811 + $0x180] sm:$0xff]
    %v4861 = vld [vmem:[%s4811 + $0x188] sm:$0xff]
    %v4862 = vld [vmem:[%s4811 + $0x190] sm:$0xff]
    %v4863 = vld [vmem:[%s4811 + $0x198] sm:$0xff]
    %v4864 = vld [vmem:[%s4811 + $0x1a0] sm:$0xff]
    %v4865 = vld [vmem:[%s4811 + $0x1a8] sm:$0xff]
    %v4866 = vld [vmem:[%s4811 + $0x1b0] sm:$0xff]
    %v4867 = vld [vmem:[%s4811 + $0x1b8] sm:$0xff]
    %v4868 = vld [vmem:[%s4811 + $0x1c0] sm:$0xff]
    %v4869 = vld [vmem:[%s4811 + $0x1c8] sm:$0xff]
    %v4870 = vld [vmem:[%s4811 + $0x1d0] sm:$0xff]
    %v4871 = vld [vmem:[%s4811 + $0x1d8] sm:$0xff]
    %v4872 = vld [vmem:[%s4811 + $0x1e0] sm:$0xff]
    %v4873 = vld [vmem:[%s4811 + $0x1e8] sm:$0xff]
    %v4874 = vld [vmem:[%s4811 + $0x1f0] sm:$0xff]
    %v4875 = vld [vmem:[%s4811 + $0x1f8] sm:$0xff]
    %v4876 = vld [vmem:[%s4811 + $0x200] sm:$0xff]
    %v4877 = vld [vmem:[%s4811 + $0x208] sm:$0xff]
    %v4878 = vld [vmem:[%s4811 + $0x210] sm:$0xff]
    %v4879 = vld [vmem:[%s4811 + $0x218] sm:$0xff]
    %v4880 = vld [vmem:[%s4811 + $0x220] sm:$0xff]
    %v4881 = vld [vmem:[%s4811 + $0x228] sm:$0xff]
    %v4882 = vld [vmem:[%s4811 + $0x230] sm:$0xff]
    %v4883 = vld [vmem:[%s4811 + $0x238] sm:$0xff]
    %v4884 = vld [vmem:[%s4811 + $0x240] sm:$0xff]
    %v4885 = vld [vmem:[%s4811 + $0x248] sm:$0xff]
    %v4886 = vld [vmem:[%s4811 + $0x250] sm:$0xff]
    %v4887 = vld [vmem:[%s4811 + $0x258] sm:$0xff]
    %v4888 = vld [vmem:[%s4811 + $0x260] sm:$0xff]
    %v4889 = vld [vmem:[%s4811 + $0x268] sm:$0xff]
    %v4890 = vld [vmem:[%s4811 + $0x270] sm:$0xff]
    %v4891 = vld [vmem:[%s4811 + $0x278] sm:$0xff]
    %v4892 = vld [vmem:[%s4811 + $0x280] sm:$0xff]
    %v4893 = vld [vmem:[%s4811 + $0x288] sm:$0xff]
    %v4894 = vld [vmem:[%s4811 + $0x290] sm:$0xff]
    %v4895 = vld [vmem:[%s4811 + $0x298] sm:$0xff]
    %v4896 = vld [vmem:[%s4811 + $0x2a0] sm:$0xff]
    %v4897 = vld [vmem:[%s4811 + $0x2a8] sm:$0xff]
    %v4898 = vld [vmem:[%s4811 + $0x2b0] sm:$0xff]
    %v4899 = vld [vmem:[%s4811 + $0x2b8] sm:$0xff]
    %v4900 = vld [vmem:[%s4811 + $0x2c0] sm:$0xff]
    %v4901 = vld [vmem:[%s4811 + $0x2c8] sm:$0xff]
    %v4902 = vld [vmem:[%s4811 + $0x2d0] sm:$0xff]
    %v4903 = vld [vmem:[%s4811 + $0x2d8] sm:$0xff]
    %v4904 = vunpack.c.l.b16 %v4798
    %v4905 = vunpack.c.h.b16 %v4798
    %v4906 = vunpack.c.l.b16 %v4802
    %v4907 = vunpack.c.l.b16 %v4806
    %v4908 = vunpack.c.h.b16 %v4806
    %v4909 = vunpack.c.l.b16 %v4810
    %v4910 = vpack.c.b16 %v4907, %v4904
    %v4911 = vpack.c.b16 %v4908, %v4905
    %v4912 = vpack.c.b16 %v4909, %v4906
    %v5007 = vunpack.c.l.b16 %v4812
    %v5008 = vunpack.c.h.b16 %v4812
    %v5009 = vunpack.c.l.b16 %v4813
    %v5010 = vunpack.c.h.b16 %v4813
    %v5011 = vunpack.c.l.b16 %v4814
    %v5012 = vunpack.c.h.b16 %v4814
    %v5013 = vunpack.c.l.b16 %v4815
    %v5014 = vunpack.c.h.b16 %v4815
    %v5015 = vunpack.c.l.b16 %v4816
    %v5016 = vunpack.c.h.b16 %v4816
    %v5017 = vunpack.c.l.b16 %v4817
    %v5018 = vunpack.c.h.b16 %v4817
    %v5019 = vunpack.c.l.b16 %v4818
    %v5020 = vunpack.c.h.b16 %v4818
    %v5021 = vunpack.c.l.b16 %v4819
    %v5022 = vunpack.c.h.b16 %v4819
    %v5023 = vunpack.c.l.b16 %v4820
    %v5024 = vunpack.c.h.b16 %v4820
    %v5025 = vunpack.c.l.b16 %v4821
    %v5026 = vunpack.c.h.b16 %v4821
    %v5027 = vunpack.c.l.b16 %v4822
    %v5028 = vunpack.c.h.b16 %v4822
    %v5029 = vunpack.c.l.b16 %v4823
    %v5030 = vunpack.c.h.b16 %v4823
    %v5031 = vunpack.c.l.b16 %v4824
    %v5032 = vunpack.c.h.b16 %v4824
    %v5033 = vunpack.c.l.b16 %v4825
    %v5034 = vunpack.c.h.b16 %v4825
    %v5035 = vunpack.c.l.b16 %v4826
    %v5036 = vunpack.c.h.b16 %v4826
    %v5037 = vunpack.c.l.b16 %v4827
    %v5038 = vunpack.c.h.b16 %v4827
    %v5039 = vunpack.c.l.b16 %v4828
    %v5040 = vunpack.c.h.b16 %v4828
    %v5041 = vunpack.c.l.b16 %v4829
    %v5042 = vunpack.c.h.b16 %v4829
    %v5043 = vunpack.c.l.b16 %v4830
    %v5044 = vunpack.c.h.b16 %v4830
    %v5045 = vunpack.c.l.b16 %v4831
    %v5046 = vunpack.c.h.b16 %v4831
    %v5047 = vunpack.c.l.b16 %v4832
    %v5048 = vunpack.c.h.b16 %v4832
    %v5049 = vunpack.c.l.b16 %v4833
    %v5050 = vunpack.c.h.b16 %v4833
    %v5051 = vunpack.c.l.b16 %v4834
    %v5052 = vunpack.c.h.b16 %v4834
    %v5053 = vunpack.c.l.b16 %v4835
    %v5054 = vunpack.c.h.b16 %v4835
    %v5055 = vunpack.c.l.b16 %v4836
    %v5056 = vunpack.c.h.b16 %v4836
    %v5057 = vunpack.c.l.b16 %v4837
    %v5058 = vunpack.c.h.b16 %v4837
    %v5059 = vunpack.c.l.b16 %v4838
    %v5060 = vunpack.c.h.b16 %v4838
    %v5061 = vunpack.c.l.b16 %v4839
    %v5062 = vunpack.c.h.b16 %v4839
    %v5063 = vunpack.c.l.b16 %v4840
    %v5064 = vunpack.c.h.b16 %v4840
    %v5065 = vunpack.c.l.b16 %v4841
    %v5066 = vunpack.c.h.b16 %v4841
    %v5067 = vunpack.c.l.b16 %v4842
    %v5068 = vunpack.c.h.b16 %v4842
    %v5069 = vunpack.c.l.b16 %v4843
    %v5070 = vunpack.c.h.b16 %v4843
    %v5071 = vunpack.c.l.b16 %v4844
    %v5072 = vunpack.c.h.b16 %v4844
    %v5073 = vunpack.c.l.b16 %v4845
    %v5074 = vunpack.c.h.b16 %v4845
    %v5075 = vunpack.c.l.b16 %v4846
    %v5076 = vunpack.c.h.b16 %v4846
    %v5077 = vunpack.c.l.b16 %v4847
    %v5078 = vunpack.c.h.b16 %v4847
    %v5079 = vunpack.c.l.b16 %v4848
    %v5080 = vunpack.c.h.b16 %v4848
    %v5081 = vunpack.c.l.b16 %v4849
    %v5082 = vunpack.c.h.b16 %v4849
    %v5083 = vunpack.c.l.b16 %v4850
    %v5084 = vunpack.c.h.b16 %v4850
    %v5085 = vunpack.c.l.b16 %v4851
    %v5086 = vunpack.c.h.b16 %v4851
    %v5087 = vunpack.c.l.b16 %v4852
    %v5088 = vunpack.c.h.b16 %v4852
    %v5089 = vunpack.c.l.b16 %v4853
    %v5090 = vunpack.c.h.b16 %v4853
    %v5091 = vunpack.c.l.b16 %v4854
    %v5092 = vunpack.c.h.b16 %v4854
    %v5093 = vunpack.c.l.b16 %v4855
    %v5094 = vunpack.c.h.b16 %v4855
    %v5095 = vunpack.c.l.b16 %v4856
    %v5096 = vunpack.c.h.b16 %v4856
    %v5097 = vunpack.c.l.b16 %v4857
    %v5098 = vunpack.c.h.b16 %v4857
    %v5099 = vunpack.c.l.b16 %v4858
    %v5100 = vunpack.c.h.b16 %v4858
    %v5101 = vunpack.c.l.b16 %v4859
    %v5102 = vunpack.c.h.b16 %v4859
    %v5103 = vunpack.c.l.b16 %v4860
    %v5104 = vunpack.c.h.b16 %v4860
    %v5105 = vunpack.c.l.b16 %v4861
    %v5106 = vunpack.c.h.b16 %v4861
    %v5107 = vunpack.c.l.b16 %v4862
    %v5108 = vunpack.c.h.b16 %v4862
    %v5109 = vunpack.c.l.b16 %v4863
    %v5110 = vunpack.c.h.b16 %v4863
    %v5111 = vunpack.c.l.b16 %v4864
    %v5112 = vunpack.c.h.b16 %v4864
    %v5113 = vunpack.c.l.b16 %v4865
    %v5114 = vunpack.c.h.b16 %v4865
    %v5115 = vunpack.c.l.b16 %v4866
    %v5116 = vunpack.c.h.b16 %v4866
    %v5117 = vunpack.c.l.b16 %v4867
    %v5118 = vunpack.c.h.b16 %v4867
    %v5119 = vunpack.c.l.b16 %v4868
    %v5120 = vunpack.c.h.b16 %v4868
    %v5121 = vunpack.c.l.b16 %v4869
    %v5122 = vunpack.c.h.b16 %v4869
    %v5123 = vunpack.c.l.b16 %v4870
    %v5124 = vunpack.c.h.b16 %v4870
    %v5125 = vunpack.c.l.b16 %v4871
    %v5126 = vunpack.c.h.b16 %v4871
    %v5127 = vunpack.c.l.b16 %v4872
    %v5128 = vunpack.c.h.b16 %v4872
    %v5129 = vunpack.c.l.b16 %v4873
    %v5130 = vunpack.c.h.b16 %v4873
    %v5131 = vunpack.c.l.b16 %v4874
    %v5132 = vunpack.c.h.b16 %v4874
    %v5133 = vunpack.c.l.b16 %v4875
    %v5134 = vunpack.c.h.b16 %v4875
    %v5135 = vunpack.c.l.b16 %v4876
    %v5136 = vunpack.c.h.b16 %v4876
    %v5137 = vunpack.c.l.b16 %v4877
    %v5138 = vunpack.c.h.b16 %v4877
    %v5139 = vunpack.c.l.b16 %v4878
    %v5140 = vunpack.c.h.b16 %v4878
    %v5141 = vunpack.c.l.b16 %v4879
    %v5142 = vunpack.c.h.b16 %v4879
    %v5143 = vunpack.c.l.b16 %v4880
    %v5144 = vunpack.c.h.b16 %v4880
    %v5145 = vunpack.c.l.b16 %v4881
    %v5146 = vunpack.c.h.b16 %v4881
    %v5147 = vunpack.c.l.b16 %v4882
    %v5148 = vunpack.c.h.b16 %v4882
    %v5149 = vunpack.c.l.b16 %v4883
    %v5150 = vunpack.c.h.b16 %v4883
    %v5151 = vunpack.c.l.b16 %v4884
    %v5152 = vunpack.c.h.b16 %v4884
    %v5153 = vunpack.c.l.b16 %v4885
    %v5154 = vunpack.c.h.b16 %v4885
    %v5155 = vunpack.c.l.b16 %v4886
    %v5156 = vunpack.c.h.b16 %v4886
    %v5157 = vunpack.c.l.b16 %v4887
    %v5158 = vunpack.c.h.b16 %v4887
    %v5159 = vunpack.c.l.b16 %v4888
    %v5160 = vunpack.c.h.b16 %v4888
    %v5161 = vunpack.c.l.b16 %v4889
    %v5162 = vunpack.c.h.b16 %v4889
    %v5163 = vunpack.c.l.b16 %v4890
    %v5164 = vunpack.c.h.b16 %v4890
    %v5165 = vunpack.c.l.b16 %v4891
    %v5166 = vunpack.c.h.b16 %v4891
    %v5167 = vunpack.c.l.b16 %v4892
    %v5168 = vunpack.c.h.b16 %v4892
    %v5169 = vunpack.c.l.b16 %v4893
    %v5170 = vunpack.c.h.b16 %v4893
    %v5171 = vunpack.c.l.b16 %v4894
    %v5172 = vunpack.c.h.b16 %v4894
    %v5173 = vunpack.c.l.b16 %v4895
    %v5174 = vunpack.c.h.b16 %v4895
    %v5175 = vunpack.c.l.b16 %v4896
    %v5176 = vunpack.c.h.b16 %v4896
    %v5177 = vunpack.c.l.b16 %v4897
    %v5178 = vunpack.c.h.b16 %v4897
    %v5179 = vunpack.c.l.b16 %v4898
    %v5180 = vunpack.c.h.b16 %v4898
    %v5181 = vunpack.c.l.b16 %v4899
    %v5182 = vunpack.c.h.b16 %v4899
    %v5183 = vunpack.c.l.b16 %v4900
    %v5184 = vunpack.c.h.b16 %v4900
    %v5185 = vunpack.c.l.b16 %v4901
    %v5186 = vunpack.c.h.b16 %v4901
    %v5187 = vunpack.c.l.b16 %v4902
    %v5188 = vunpack.c.h.b16 %v4902
    %v5189 = vunpack.c.l.b16 %v4903
    %v5190 = vunpack.c.h.b16 %v4903
    %v5191 = vpack.c.b16 %v5011, %v5007
    %v5192 = vpack.c.b16 %v5012, %v5008
    %v5193 = vpack.c.b16 %v5013, %v5009
    %v5194 = vpack.c.b16 %v5014, %v5010
    %v5195 = vpack.c.b16 %v5019, %v5015
    %v5196 = vpack.c.b16 %v5020, %v5016
    %v5197 = vpack.c.b16 %v5021, %v5017
    %v5198 = vpack.c.b16 %v5022, %v5018
    %v5199 = vpack.c.b16 %v5027, %v5023
    %v5200 = vpack.c.b16 %v5028, %v5024
    %v5201 = vpack.c.b16 %v5029, %v5025
    %v5202 = vpack.c.b16 %v5030, %v5026
    %v5203 = vpack.c.b16 %v5035, %v5031
    %v5204 = vpack.c.b16 %v5036, %v5032
    %v5205 = vpack.c.b16 %v5037, %v5033
    %v5206 = vpack.c.b16 %v5038, %v5034
    %v5207 = vpack.c.b16 %v5043, %v5039
    %v5208 = vpack.c.b16 %v5044, %v5040
    %v5209 = vpack.c.b16 %v5045, %v5041
    %v5210 = vpack.c.b16 %v5046, %v5042
    %v5211 = vpack.c.b16 %v5051, %v5047
    %v5212 = vpack.c.b16 %v5052, %v5048
    %v5213 = vpack.c.b16 %v5053, %v5049
    %v5214 = vpack.c.b16 %v5054, %v5050
    %v5215 = vpack.c.b16 %v5059, %v5055
    %v5216 = vpack.c.b16 %v5060, %v5056
    %v5217 = vpack.c.b16 %v5061, %v5057
    %v5218 = vpack.c.b16 %v5062, %v5058
    %v5219 = vpack.c.b16 %v5067, %v5063
    %v5220 = vpack.c.b16 %v5068, %v5064
    %v5221 = vpack.c.b16 %v5069, %v5065
    %v5222 = vpack.c.b16 %v5070, %v5066
    %v5223 = vpack.c.b16 %v5075, %v5071
    %v5224 = vpack.c.b16 %v5076, %v5072
    %v5225 = vpack.c.b16 %v5077, %v5073
    %v5226 = vpack.c.b16 %v5078, %v5074
    %v5227 = vpack.c.b16 %v5083, %v5079
    %v5228 = vpack.c.b16 %v5084, %v5080
    %v5229 = vpack.c.b16 %v5085, %v5081
    %v5230 = vpack.c.b16 %v5086, %v5082
    %v5231 = vpack.c.b16 %v5091, %v5087
    %v5232 = vpack.c.b16 %v5092, %v5088
    %v5233 = vpack.c.b16 %v5093, %v5089
    %v5234 = vpack.c.b16 %v5094, %v5090
    %v5235 = vpack.c.b16 %v5099, %v5095
    %v5236 = vpack.c.b16 %v5100, %v5096
    %v5237 = vpack.c.b16 %v5101, %v5097
    %v5238 = vpack.c.b16 %v5102, %v5098
    %v5239 = vpack.c.b16 %v5107, %v5103
    %v5240 = vpack.c.b16 %v5108, %v5104
    %v5241 = vpack.c.b16 %v5109, %v5105
    %v5242 = vpack.c.b16 %v5110, %v5106
    %v5243 = vpack.c.b16 %v5115, %v5111
    %v5244 = vpack.c.b16 %v5116, %v5112
    %v5245 = vpack.c.b16 %v5117, %v5113
    %v5246 = vpack.c.b16 %v5118, %v5114
    %v5247 = vpack.c.b16 %v5123, %v5119
    %v5248 = vpack.c.b16 %v5124, %v5120
    %v5249 = vpack.c.b16 %v5125, %v5121
    %v5250 = vpack.c.b16 %v5126, %v5122
    %v5251 = vpack.c.b16 %v5131, %v5127
    %v5252 = vpack.c.b16 %v5132, %v5128
    %v5253 = vpack.c.b16 %v5133, %v5129
    %v5254 = vpack.c.b16 %v5134, %v5130
    %v5255 = vpack.c.b16 %v5139, %v5135
    %v5256 = vpack.c.b16 %v5140, %v5136
    %v5257 = vpack.c.b16 %v5141, %v5137
    %v5258 = vpack.c.b16 %v5142, %v5138
    %v5259 = vpack.c.b16 %v5147, %v5143
    %v5260 = vpack.c.b16 %v5148, %v5144
    %v5261 = vpack.c.b16 %v5149, %v5145
    %v5262 = vpack.c.b16 %v5150, %v5146
    %v5263 = vpack.c.b16 %v5155, %v5151
    %v5264 = vpack.c.b16 %v5156, %v5152
    %v5265 = vpack.c.b16 %v5157, %v5153
    %v5266 = vpack.c.b16 %v5158, %v5154
    %v5267 = vpack.c.b16 %v5163, %v5159
    %v5268 = vpack.c.b16 %v5164, %v5160
    %v5269 = vpack.c.b16 %v5165, %v5161
    %v5270 = vpack.c.b16 %v5166, %v5162
    %v5271 = vpack.c.b16 %v5171, %v5167
    %v5272 = vpack.c.b16 %v5172, %v5168
    %v5273 = vpack.c.b16 %v5173, %v5169
    %v5274 = vpack.c.b16 %v5174, %v5170
    %v5275 = vpack.c.b16 %v5179, %v5175
    %v5276 = vpack.c.b16 %v5180, %v5176
    %v5277 = vpack.c.b16 %v5181, %v5177
    %v5278 = vpack.c.b16 %v5182, %v5178
    %v5279 = vpack.c.b16 %v5187, %v5183
    %v5280 = vpack.c.b16 %v5188, %v5184
    %v5281 = vpack.c.b16 %v5189, %v5185
    %v5282 = vpack.c.b16 %v5190, %v5186
    %v5376 = vsel %vm1173, %v4912, 0
    %5378 = vmatpush.bf16.msra.mxu0 %v5219
    %5379 = vmatpush.bf16.msra.mxu0 %v5215
    %5380 = vmatpush.bf16.msra.mxu0 %v5211
    %5381 = vmatpush.bf16.msra.mxu0 %v5207
    %5382 = vmatpush.bf16.msra.mxu0 %v5203
    %5383 = vmatpush.bf16.msra.mxu0 %v5199
    %5384 = vmatpush.bf16.msra.mxu0 %v5195
    %5385 = vmatpush.bf16.msra.mxu0 %v5191
    %5386 = vmatmul.bf16.gmra.mxu0 %v4910
    %v5387 = vpop.f32.mrf.mxu0
    %v5388 = vadd.f32 0.0, %v5387
    %v5389 = vpop.f32.mrf.mxu0
    %v5390 = vadd.f32 0.0, %v5389
    %5391 = vdwg.mxu0
    %5392 = vmatpush.bf16.msra.mxu0 %v5251
    %5393 = vmatpush.bf16.msra.mxu0 %v5247
    %5394 = vmatpush.bf16.msra.mxu0 %v5243
    %5395 = vmatpush.bf16.msra.mxu0 %v5239
    %5396 = vmatpush.bf16.msra.mxu0 %v5235
    %5397 = vmatpush.bf16.msra.mxu0 %v5231
    %5398 = vmatpush.bf16.msra.mxu0 %v5227
    %5399 = vmatpush.bf16.msra.mxu0 %v5223
    %5400 = vmatmul.bf16.gmra.mxu0 %v4911
    %v5401 = vpop.f32.mrf.mxu0
    %v5402 = vadd.f32 %v5388, %v5401
    %v5403 = vpop.f32.mrf.mxu0
    %v5404 = vadd.f32 %v5390, %v5403
    %5405 = vdwg.mxu0
    %5406 = vmatpush.bf16.msra.mxu0 0
    %5407 = vmatpush.bf16.msra.mxu0 %v5279
    %5408 = vmatpush.bf16.msra.mxu0 %v5275
    %5409 = vmatpush.bf16.msra.mxu0 %v5271
    %5410 = vmatpush.bf16.msra.mxu0 %v5267
    %5411 = vmatpush.bf16.msra.mxu0 %v5263
    %5412 = vmatpush.bf16.msra.mxu0 %v5259
    %5413 = vmatpush.bf16.msra.mxu0 %v5255
    %5414 = vmatmul.bf16.gmra.mxu0 %v5376
    %v5415 = vpop.f32.mrf.mxu0
    %v5416 = vadd.f32 %v5402, %v5415
    %v5417 = vpop.f32.mrf.mxu0
    %v5418 = vadd.f32 %v5404, %v5417
    %5419 = vdwg.mxu0
    %5420 = vmatpush.bf16.msra.mxu0 %v5220
    %5421 = vmatpush.bf16.msra.mxu0 %v5216
    %5422 = vmatpush.bf16.msra.mxu0 %v5212
    %5423 = vmatpush.bf16.msra.mxu0 %v5208
    %5424 = vmatpush.bf16.msra.mxu0 %v5204
    %5425 = vmatpush.bf16.msra.mxu0 %v5200
    %5426 = vmatpush.bf16.msra.mxu0 %v5196
    %5427 = vmatpush.bf16.msra.mxu0 %v5192
    %5428 = vmatmul.bf16.gmra.mxu0 %v4910
    %v5429 = vpop.f32.mrf.mxu0
    %v5430 = vadd.f32 0.0, %v5429
    %v5431 = vpop.f32.mrf.mxu0
    %v5432 = vadd.f32 0.0, %v5431
    %5433 = vdwg.mxu0
    %5434 = vmatpush.bf16.msra.mxu0 %v5252
    %5435 = vmatpush.bf16.msra.mxu0 %v5248
    %5436 = vmatpush.bf16.msra.mxu0 %v5244
    %5437 = vmatpush.bf16.msra.mxu0 %v5240
    %5438 = vmatpush.bf16.msra.mxu0 %v5236
    %5439 = vmatpush.bf16.msra.mxu0 %v5232
    %5440 = vmatpush.bf16.msra.mxu0 %v5228
    %5441 = vmatpush.bf16.msra.mxu0 %v5224
    %5442 = vmatmul.bf16.gmra.mxu0 %v4911
    %v5443 = vpop.f32.mrf.mxu0
    %v5444 = vadd.f32 %v5430, %v5443
    %v5445 = vpop.f32.mrf.mxu0
    %v5446 = vadd.f32 %v5432, %v5445
    %5447 = vdwg.mxu0
    %5448 = vmatpush.bf16.msra.mxu0 0
    %5449 = vmatpush.bf16.msra.mxu0 %v5280
    %5450 = vmatpush.bf16.msra.mxu0 %v5276
    %5451 = vmatpush.bf16.msra.mxu0 %v5272
    %5452 = vmatpush.bf16.msra.mxu0 %v5268
    %5453 = vmatpush.bf16.msra.mxu0 %v5264
    %5454 = vmatpush.bf16.msra.mxu0 %v5260
    %5455 = vmatpush.bf16.msra.mxu0 %v5256
    %5456 = vmatmul.bf16.gmra.mxu0 %v5376
    %v5457 = vpop.f32.mrf.mxu0
    %v5458 = vadd.f32 %v5444, %v5457
    %v5459 = vpop.f32.mrf.mxu0
    %v5460 = vadd.f32 %v5446, %v5459
    %5461 = vdwg.mxu0
    %5462 = vmatpush.bf16.msra.mxu0 %v5221
    %5463 = vmatpush.bf16.msra.mxu0 %v5217
    %5464 = vmatpush.bf16.msra.mxu0 %v5213
    %5465 = vmatpush.bf16.msra.mxu0 %v5209
    %5466 = vmatpush.bf16.msra.mxu0 %v5205
    %5467 = vmatpush.bf16.msra.mxu0 %v5201
    %5468 = vmatpush.bf16.msra.mxu0 %v5197
    %5469 = vmatpush.bf16.msra.mxu0 %v5193
    %5470 = vmatmul.bf16.gmra.mxu0 %v4910
    %v5471 = vpop.f32.mrf.mxu0
    %v5472 = vadd.f32 0.0, %v5471
    %v5473 = vpop.f32.mrf.mxu0
    %v5474 = vadd.f32 0.0, %v5473
    %5475 = vdwg.mxu0
    %5476 = vmatpush.bf16.msra.mxu0 %v5253
    %5477 = vmatpush.bf16.msra.mxu0 %v5249
    %5478 = vmatpush.bf16.msra.mxu0 %v5245
    %5479 = vmatpush.bf16.msra.mxu0 %v5241
    %5480 = vmatpush.bf16.msra.mxu0 %v5237
    %5481 = vmatpush.bf16.msra.mxu0 %v5233
    %5482 = vmatpush.bf16.msra.mxu0 %v5229
    %5483 = vmatpush.bf16.msra.mxu0 %v5225
    %5484 = vmatmul.bf16.gmra.mxu0 %v4911
    %v5485 = vpop.f32.mrf.mxu0
    %v5486 = vadd.f32 %v5472, %v5485
    %v5487 = vpop.f32.mrf.mxu0
    %v5488 = vadd.f32 %v5474, %v5487
    %5489 = vdwg.mxu0
    %5490 = vmatpush.bf16.msra.mxu0 0
    %5491 = vmatpush.bf16.msra.mxu0 %v5281
    %5492 = vmatpush.bf16.msra.mxu0 %v5277
    %5493 = vmatpush.bf16.msra.mxu0 %v5273
    %5494 = vmatpush.bf16.msra.mxu0 %v5269
    %5495 = vmatpush.bf16.msra.mxu0 %v5265
    %5496 = vmatpush.bf16.msra.mxu0 %v5261
    %5497 = vmatpush.bf16.msra.mxu0 %v5257
    %5498 = vmatmul.bf16.gmra.mxu0 %v5376
    %v5499 = vpop.f32.mrf.mxu0
    %v5500 = vadd.f32 %v5486, %v5499
    %v5501 = vpop.f32.mrf.mxu0
    %v5502 = vadd.f32 %v5488, %v5501
    %5503 = vdwg.mxu0
    %5504 = vmatpush.bf16.msra.mxu0 %v5222
    %5505 = vmatpush.bf16.msra.mxu0 %v5218
    %5506 = vmatpush.bf16.msra.mxu0 %v5214
    %5507 = vmatpush.bf16.msra.mxu0 %v5210
    %5508 = vmatpush.bf16.msra.mxu0 %v5206
    %5509 = vmatpush.bf16.msra.mxu0 %v5202
    %5510 = vmatpush.bf16.msra.mxu0 %v5198
    %5511 = vmatpush.bf16.msra.mxu0 %v5194
    %5512 = vmatmul.bf16.gmra.mxu0 %v4910
    %v5513 = vpop.f32.mrf.mxu0
    %v5514 = vadd.f32 0.0, %v5513
    %v5515 = vpop.f32.mrf.mxu0
    %v5516 = vadd.f32 0.0, %v5515
    %5517 = vdwg.mxu0
    %5518 = vmatpush.bf16.msra.mxu0 %v5254
    %5519 = vmatpush.bf16.msra.mxu0 %v5250
    %5520 = vmatpush.bf16.msra.mxu0 %v5246
    %5521 = vmatpush.bf16.msra.mxu0 %v5242
    %5522 = vmatpush.bf16.msra.mxu0 %v5238
    %5523 = vmatpush.bf16.msra.mxu0 %v5234
    %5524 = vmatpush.bf16.msra.mxu0 %v5230
    %5525 = vmatpush.bf16.msra.mxu0 %v5226
    %5526 = vmatmul.bf16.gmra.mxu0 %v4911
    %v5527 = vpop.f32.mrf.mxu0
    %v5528 = vadd.f32 %v5514, %v5527
    %v5529 = vpop.f32.mrf.mxu0
    %v5530 = vadd.f32 %v5516, %v5529
    %5531 = vdwg.mxu0
    %5532 = vmatpush.bf16.msra.mxu0 0
    %5533 = vmatpush.bf16.msra.mxu0 %v5282
    %5534 = vmatpush.bf16.msra.mxu0 %v5278
    %5535 = vmatpush.bf16.msra.mxu0 %v5274
    %5536 = vmatpush.bf16.msra.mxu0 %v5270
    %5537 = vmatpush.bf16.msra.mxu0 %v5266
    %5538 = vmatpush.bf16.msra.mxu0 %v5262
    %5539 = vmatpush.bf16.msra.mxu0 %v5258
    %5540 = vmatmul.bf16.gmra.mxu0 %v5376
    %v5541 = vpop.f32.mrf.mxu0
    %v5542 = vadd.f32 %v5528, %v5541
    %v5543 = vpop.f32.mrf.mxu0
    %v5544 = vadd.f32 %v5530, %v5543
    %5545 = vdwg.mxu0
    %v5546 = vadd.f32 %v4775, %v5416
    %v5547 = vadd.f32 %v4776, %v5458
    %v5548 = vadd.f32 %v4777, %v5500
    %v5549 = vadd.f32 %v4778, %v5542
    %v5550 = vadd.f32 %v4779, %v5418
    %v5551 = vadd.f32 %v4780, %v5460
    %v5552 = vadd.f32 %v4781, %v5502
    %v5553 = vadd.f32 %v4782, %v5544
    %5562 = vrot.lane.b32.xlu0 %v5546, 64
    %v5563 = vpop.permute.xlu0 %5562
    %5564 = vrot.lane.b32.xlu0 %v5547, 64
    %v5565 = vpop.permute.xlu0 %5564
    %5566 = vrot.lane.b32.xlu0 %v5548, 64
    %v5567 = vpop.permute.xlu0 %5566
    %5568 = vrot.lane.b32.xlu0 %v5549, 64
    %v5569 = vpop.permute.xlu0 %5568
    %5570 = vrot.lane.b32.xlu0 %v5550, 64
    %v5571 = vpop.permute.xlu0 %5570
    %5572 = vrot.lane.b32.xlu0 %v5551, 64
    %v5573 = vpop.permute.xlu0 %5572
    %5574 = vrot.lane.b32.xlu0 %v5552, 64
    %v5575 = vpop.permute.xlu0 %5574
    %5576 = vrot.lane.b32.xlu0 %v5553, 64
    %v5577 = vpop.permute.xlu0 %5576
    %vm5578 = vcmask 523264
    %v5579 = vsel %vm5578, %v5563, %v5565
    %v5580 = vsel %vm5578, %v5565, %v5567
    %v5581 = vsel %vm5578, %v5567, %v5569
    %v5582 = vsel %vm5578, %v5571, %v5573
    %v5583 = vsel %vm5578, %v5573, %v5575
    %v5584 = vsel %vm5578, %v5575, %v5577
    %v5593 = vmax.f32 %v5546, %v5579
    %v5594 = vmax.f32 %v5547, %v5580
    %v5595 = vmax.f32 %v5548, %v5581
    %v5596 = vmax.f32 %v5549, %v5569
    %v5597 = vmax.f32 %v5550, %v5582
    %v5598 = vmax.f32 %v5551, %v5583
    %v5599 = vmax.f32 %v5552, %v5584
    %v5600 = vmax.f32 %v5553, %v5577
    %v5609 = vrot.slane %v5593, 1
    %v5610 = vrot.slane %v5594, 1
    %v5611 = vrot.slane %v5595, 1
    %v5612 = vrot.slane %v5596, 1
    %v5613 = vrot.slane %v5597, 1
    %v5614 = vrot.slane %v5598, 1
    %v5615 = vrot.slane %v5599, 1
    %v5616 = vrot.slane %v5600, 1
    %v5625 = vmax.f32 %v5593, %v5609
    %v5626 = vmax.f32 %v5594, %v5610
    %v5627 = vmax.f32 %v5595, %v5611
    %v5628 = vmax.f32 %v5596, %v5612
    %v5629 = vmax.f32 %v5597, %v5613
    %v5630 = vmax.f32 %v5598, %v5614
    %v5631 = vmax.f32 %v5599, %v5615
    %v5632 = vmax.f32 %v5600, %v5616
    %v5633 = vld [vmem:[#allocation9] sm:$0xf]
    %v5635 = vperm.slane %v5633, 0
    %v5636 = vperm.slane %v5633, 1
    %v5637 = vperm.slane %v5633, 2
    %v5638 = vperm.slane %v5633, 3
    %v5643 = vadd.f32 %v5625, %v5635
    %v5644 = vadd.f32 %v5626, %v5636
    %v5645 = vadd.f32 %v5627, %v5637
    %v5646 = vadd.f32 %v5628, %v5638
    %v5647 = vadd.f32 %v5629, %v5635
    %v5648 = vadd.f32 %v5630, %v5636
    %v5649 = vadd.f32 %v5631, %v5637
    %v5650 = vadd.f32 %v5632, %v5638
    %v5651 = vmax.f32 %v5643, 0.0
    %v5652 = vmax.f32 %v5644, 0.0
    %v5653 = vmax.f32 %v5645, 0.0
    %v5654 = vmax.f32 %v5646, 0.0
    %v5655 = vmax.f32 %v5647, 0.0
    %v5656 = vmax.f32 %v5648, 0.0
    %v5657 = vmax.f32 %v5649, 0.0
    %v5658 = vmax.f32 %v5650, 0.0
    %v5659 = vpack.c.bf16 %v5651, %v5651
    %v5660 = vpack.c.bf16 %v5652, %v5652
    %v5661 = vpack.c.bf16 %v5653, %v5653
    %v5662 = vpack.c.bf16 %v5654, %v5654
    %v5663 = vpack.c.bf16 %v5655, %v5655
    %v5664 = vpack.c.bf16 %v5656, %v5656
    %v5665 = vpack.c.bf16 %v5657, %v5657
    %v5666 = vpack.c.bf16 %v5658, %v5658
    %v5667 = vld [vmem:[#allocation11] sm:$0xff]
    %v5668 = vld [vmem:[#allocation11 + $0x8] sm:$0xff]
    %v5669 = vld [vmem:[#allocation11 + $0x10] sm:$0xff]
    %v5670 = vld [vmem:[#allocation11 + $0x18] sm:$0xff]
    %v5671 = vld [vmem:[#allocation11 + $0x20] sm:$0xff]
    %v5672 = vld [vmem:[#allocation11 + $0x28] sm:$0xff]
    %v5673 = vld [vmem:[#allocation11 + $0x30] sm:$0xff]
    %v5674 = vld [vmem:[#allocation11 + $0x38] sm:$0xff]
    %v5675 = vld [vmem:[#allocation11 + $0x40] sm:$0xff]
    %v5676 = vld [vmem:[#allocation11 + $0x48] sm:$0xff]
    %v5677 = vld [vmem:[#allocation11 + $0x50] sm:$0xff]
    %v5678 = vld [vmem:[#allocation11 + $0x58] sm:$0xff]
    %v5679 = vld [vmem:[#allocation11 + $0x60] sm:$0xff]
    %v5680 = vld [vmem:[#allocation11 + $0x68] sm:$0xff]
    %v5681 = vld [vmem:[#allocation11 + $0x70] sm:$0xff]
    %v5682 = vld [vmem:[#allocation11 + $0x78] sm:$0xff]
    %v5683 = vld [vmem:[#allocation11 + $0x80] sm:$0xff]
    %v5684 = vld [vmem:[#allocation11 + $0x88] sm:$0xff]
    %v5685 = vld [vmem:[#allocation11 + $0x90] sm:$0xff]
    %v5686 = vld [vmem:[#allocation11 + $0x98] sm:$0xff]
    %v5687 = vld [vmem:[#allocation11 + $0xa0] sm:$0xff]
    %v5688 = vld [vmem:[#allocation11 + $0xa8] sm:$0xff]
    %v5689 = vld [vmem:[#allocation11 + $0xb0] sm:$0xff]
    %v5690 = vld [vmem:[#allocation11 + $0xb8] sm:$0xff]
    %v5691 = vld [vmem:[#allocation11 + $0xc0] sm:$0xff]
    %v5692 = vld [vmem:[#allocation11 + $0xc8] sm:$0xff]
    %v5693 = vld [vmem:[#allocation11 + $0xd0] sm:$0xff]
    %v5694 = vld [vmem:[#allocation11 + $0xd8] sm:$0xff]
    %v5695 = vld [vmem:[#allocation11 + $0xe0] sm:$0xff]
    %v5696 = vld [vmem:[#allocation11 + $0xe8] sm:$0xff]
    %v5697 = vld [vmem:[#allocation11 + $0xf0] sm:$0xff]
    %v5698 = vld [vmem:[#allocation11 + $0xf8] sm:$0xff]
    %v5699 = vld [vmem:[#allocation11 + $0x100] sm:$0xff]
    %v5700 = vld [vmem:[#allocation11 + $0x108] sm:$0xff]
    %v5701 = vld [vmem:[#allocation11 + $0x110] sm:$0xff]
    %v5702 = vld [vmem:[#allocation11 + $0x118] sm:$0xff]
    %v5703 = vld [vmem:[#allocation11 + $0x120] sm:$0xff]
    %v5704 = vld [vmem:[#allocation11 + $0x128] sm:$0xff]
    %v5705 = vld [vmem:[#allocation11 + $0x130] sm:$0xff]
    %v5706 = vld [vmem:[#allocation11 + $0x138] sm:$0xff]
    %v5707 = vld [vmem:[#allocation11 + $0x140] sm:$0xff]
    %v5708 = vld [vmem:[#allocation11 + $0x148] sm:$0xff]
    %v5709 = vld [vmem:[#allocation11 + $0x150] sm:$0xff]
    %v5710 = vld [vmem:[#allocation11 + $0x158] sm:$0xff]
    %v5711 = vld [vmem:[#allocation11 + $0x160] sm:$0xff]
    %v5712 = vld [vmem:[#allocation11 + $0x168] sm:$0xff]
    %v5713 = vld [vmem:[#allocation11 + $0x170] sm:$0xff]
    %v5714 = vld [vmem:[#allocation11 + $0x178] sm:$0xff]
    %v5715 = vld [vmem:[#allocation11 + $0x180] sm:$0xff]
    %v5716 = vld [vmem:[#allocation11 + $0x188] sm:$0xff]
    %v5717 = vld [vmem:[#allocation11 + $0x190] sm:$0xff]
    %v5718 = vld [vmem:[#allocation11 + $0x198] sm:$0xff]
    %v5719 = vld [vmem:[#allocation11 + $0x1a0] sm:$0xff]
    %v5720 = vld [vmem:[#allocation11 + $0x1a8] sm:$0xff]
    %v5721 = vld [vmem:[#allocation11 + $0x1b0] sm:$0xff]
    %v5722 = vld [vmem:[#allocation11 + $0x1b8] sm:$0xff]
    %s5723 = scalar_lea.vmem [#allocation11], 448
    %v5724 = vld [vmem:[%s5723] sm:$0xff]
    %v5725 = vld [vmem:[%s5723 + $0x8] sm:$0xff]
    %v5726 = vld [vmem:[%s5723 + $0x10] sm:$0xff]
    %v5727 = vld [vmem:[%s5723 + $0x18] sm:$0xff]
    %v5728 = vld [vmem:[%s5723 + $0x20] sm:$0xff]
    %v5729 = vld [vmem:[%s5723 + $0x28] sm:$0xff]
    %v5730 = vld [vmem:[%s5723 + $0x30] sm:$0xff]
    %v5731 = vld [vmem:[%s5723 + $0x38] sm:$0xff]
    %v5732 = vld [vmem:[%s5723 + $0x40] sm:$0xff]
    %v5733 = vld [vmem:[%s5723 + $0x48] sm:$0xff]
    %v5734 = vld [vmem:[%s5723 + $0x50] sm:$0xff]
    %v5735 = vld [vmem:[%s5723 + $0x58] sm:$0xff]
    %v5736 = vld [vmem:[%s5723 + $0x60] sm:$0xff]
    %v5737 = vld [vmem:[%s5723 + $0x68] sm:$0xff]
    %v5738 = vld [vmem:[%s5723 + $0x70] sm:$0xff]
    %v5739 = vld [vmem:[%s5723 + $0x78] sm:$0xff]
    %v5740 = vld [vmem:[%s5723 + $0x80] sm:$0xff]
    %v5741 = vld [vmem:[%s5723 + $0x88] sm:$0xff]
    %v5742 = vld [vmem:[%s5723 + $0x90] sm:$0xff]
    %v5743 = vld [vmem:[%s5723 + $0x98] sm:$0xff]
    %v5744 = vld [vmem:[%s5723 + $0xa0] sm:$0xff]
    %v5745 = vld [vmem:[%s5723 + $0xa8] sm:$0xff]
    %v5746 = vld [vmem:[%s5723 + $0xb0] sm:$0xff]
    %v5747 = vld [vmem:[%s5723 + $0xb8] sm:$0xff]
    %v5748 = vld [vmem:[%s5723 + $0xc0] sm:$0xff]
    %v5749 = vld [vmem:[%s5723 + $0xc8] sm:$0xff]
    %v5750 = vld [vmem:[%s5723 + $0xd0] sm:$0xff]
    %v5751 = vld [vmem:[%s5723 + $0xd8] sm:$0xff]
    %v5752 = vld [vmem:[%s5723 + $0xe0] sm:$0xff]
    %v5753 = vld [vmem:[%s5723 + $0xe8] sm:$0xff]
    %v5754 = vld [vmem:[%s5723 + $0xf0] sm:$0xff]
    %v5755 = vld [vmem:[%s5723 + $0xf8] sm:$0xff]
    %v5756 = vld [vmem:[%s5723 + $0x100] sm:$0xff]
    %v5757 = vld [vmem:[%s5723 + $0x108] sm:$0xff]
    %v5758 = vld [vmem:[%s5723 + $0x110] sm:$0xff]
    %v5759 = vld [vmem:[%s5723 + $0x118] sm:$0xff]
    %v5760 = vld [vmem:[%s5723 + $0x120] sm:$0xff]
    %v5761 = vld [vmem:[%s5723 + $0x128] sm:$0xff]
    %v5762 = vld [vmem:[%s5723 + $0x130] sm:$0xff]
    %v5763 = vld [vmem:[%s5723 + $0x138] sm:$0xff]
    %v5764 = vld [vmem:[%s5723 + $0x140] sm:$0xff]
    %v5765 = vld [vmem:[%s5723 + $0x148] sm:$0xff]
    %v5766 = vld [vmem:[%s5723 + $0x150] sm:$0xff]
    %v5767 = vld [vmem:[%s5723 + $0x158] sm:$0xff]
    %v5768 = vld [vmem:[%s5723 + $0x160] sm:$0xff]
    %v5769 = vld [vmem:[%s5723 + $0x168] sm:$0xff]
    %v5770 = vld [vmem:[%s5723 + $0x170] sm:$0xff]
    %v5771 = vld [vmem:[%s5723 + $0x178] sm:$0xff]
    %v5772 = vld [vmem:[%s5723 + $0x180] sm:$0xff]
    %v5773 = vld [vmem:[%s5723 + $0x188] sm:$0xff]
    %v5774 = vld [vmem:[%s5723 + $0x190] sm:$0xff]
    %v5775 = vld [vmem:[%s5723 + $0x198] sm:$0xff]
    %v5776 = vld [vmem:[%s5723 + $0x1a0] sm:$0xff]
    %v5777 = vld [vmem:[%s5723 + $0x1a8] sm:$0xff]
    %v5778 = vld [vmem:[%s5723 + $0x1b0] sm:$0xff]
    %v5779 = vld [vmem:[%s5723 + $0x1b8] sm:$0xff]
    %v5788 = vunpack.c.l.b16 %v5659
    %v5789 = vunpack.c.l.b16 %v5660
    %v5790 = vunpack.c.l.b16 %v5661
    %v5791 = vunpack.c.l.b16 %v5662
    %v5792 = vunpack.c.l.b16 %v5663
    %v5793 = vunpack.c.l.b16 %v5664
    %v5794 = vunpack.c.l.b16 %v5665
    %v5795 = vunpack.c.l.b16 %v5666
    %v5796 = vrot.slane %v5788, 2
    %v5797 = vrot.slane %v5792, 1
    %vm5798 = vcmask 1041409
    %v5799 = vsel %vm5798, %v5797, %v5796
    %v5800 = vrot.slane %v5789, 2
    %v5801 = vrot.slane %v5793, 1
    %v5802 = vsel %vm5798, %v5801, %v5800
    %v5803 = vrot.slane %v5790, 2
    %v5804 = vrot.slane %v5794, 1
    %v5805 = vsel %vm5798, %v5804, %v5803
    %v5806 = vrot.slane %v5791, 2
    %v5807 = vrot.slane %v5795, 1
    %v5808 = vsel %vm5798, %v5807, %v5806
    %v5809 = vpack.c.b16 %v5799, %v5799
    %v5810 = vpack.c.b16 %v5802, %v5802
    %v5811 = vpack.c.b16 %v5805, %v5805
    %v5812 = vpack.c.b16 %v5808, %v5808
    %v5872 = vunpack.c.l.b16 %v5724
    %v5873 = vunpack.c.h.b16 %v5724
    %v5874 = vunpack.c.l.b16 %v5725
    %v5875 = vunpack.c.h.b16 %v5725
    %v5876 = vunpack.c.l.b16 %v5726
    %v5877 = vunpack.c.h.b16 %v5726
    %v5878 = vunpack.c.l.b16 %v5727
    %v5879 = vunpack.c.h.b16 %v5727
    %v5880 = vunpack.c.l.b16 %v5728
    %v5881 = vunpack.c.h.b16 %v5728
    %v5882 = vunpack.c.l.b16 %v5729
    %v5883 = vunpack.c.h.b16 %v5729
    %v5884 = vunpack.c.l.b16 %v5730
    %v5885 = vunpack.c.h.b16 %v5730
    %v5886 = vunpack.c.l.b16 %v5731
    %v5887 = vunpack.c.h.b16 %v5731
    %v5888 = vunpack.c.l.b16 %v5732
    %v5889 = vunpack.c.h.b16 %v5732
    %v5890 = vunpack.c.l.b16 %v5733
    %v5891 = vunpack.c.h.b16 %v5733
    %v5892 = vunpack.c.l.b16 %v5734
    %v5893 = vunpack.c.h.b16 %v5734
    %v5894 = vunpack.c.l.b16 %v5735
    %v5895 = vunpack.c.h.b16 %v5735
    %v5896 = vunpack.c.l.b16 %v5736
    %v5897 = vunpack.c.h.b16 %v5736
    %v5898 = vunpack.c.l.b16 %v5737
    %v5899 = vunpack.c.h.b16 %v5737
    %v5900 = vunpack.c.l.b16 %v5738
    %v5901 = vunpack.c.h.b16 %v5738
    %v5902 = vunpack.c.l.b16 %v5739
    %v5903 = vunpack.c.h.b16 %v5739
    %v5904 = vunpack.c.l.b16 %v5740
    %v5905 = vunpack.c.h.b16 %v5740
    %v5906 = vunpack.c.l.b16 %v5741
    %v5907 = vunpack.c.h.b16 %v5741
    %v5908 = vunpack.c.l.b16 %v5742
    %v5909 = vunpack.c.h.b16 %v5742
    %v5910 = vunpack.c.l.b16 %v5743
    %v5911 = vunpack.c.h.b16 %v5743
    %v5912 = vunpack.c.l.b16 %v5744
    %v5913 = vunpack.c.h.b16 %v5744
    %v5914 = vunpack.c.l.b16 %v5745
    %v5915 = vunpack.c.h.b16 %v5745
    %v5916 = vunpack.c.l.b16 %v5746
    %v5917 = vunpack.c.h.b16 %v5746
    %v5918 = vunpack.c.l.b16 %v5747
    %v5919 = vunpack.c.h.b16 %v5747
    %v5920 = vunpack.c.l.b16 %v5748
    %v5921 = vunpack.c.h.b16 %v5748
    %v5922 = vunpack.c.l.b16 %v5749
    %v5923 = vunpack.c.h.b16 %v5749
    %v5924 = vunpack.c.l.b16 %v5750
    %v5925 = vunpack.c.h.b16 %v5750
    %v5926 = vunpack.c.l.b16 %v5751
    %v5927 = vunpack.c.h.b16 %v5751
    %v5928 = vunpack.c.l.b16 %v5752
    %v5929 = vunpack.c.h.b16 %v5752
    %v5930 = vunpack.c.l.b16 %v5753
    %v5931 = vunpack.c.h.b16 %v5753
    %v5932 = vunpack.c.l.b16 %v5754
    %v5933 = vunpack.c.h.b16 %v5754
    %v5934 = vunpack.c.l.b16 %v5755
    %v5935 = vunpack.c.h.b16 %v5755
    %v5936 = vunpack.c.l.b16 %v5756
    %v5937 = vunpack.c.h.b16 %v5756
    %v5938 = vunpack.c.l.b16 %v5757
    %v5939 = vunpack.c.h.b16 %v5757
    %v5940 = vunpack.c.l.b16 %v5758
    %v5941 = vunpack.c.h.b16 %v5758
    %v5942 = vunpack.c.l.b16 %v5759
    %v5943 = vunpack.c.h.b16 %v5759
    %v5944 = vunpack.c.l.b16 %v5760
    %v5945 = vunpack.c.h.b16 %v5760
    %v5946 = vunpack.c.l.b16 %v5761
    %v5947 = vunpack.c.h.b16 %v5761
    %v5948 = vunpack.c.l.b16 %v5762
    %v5949 = vunpack.c.h.b16 %v5762
    %v5950 = vunpack.c.l.b16 %v5763
    %v5951 = vunpack.c.h.b16 %v5763
    %v5952 = vunpack.c.l.b16 %v5764
    %v5953 = vunpack.c.h.b16 %v5764
    %v5954 = vunpack.c.l.b16 %v5765
    %v5955 = vunpack.c.h.b16 %v5765
    %v5956 = vunpack.c.l.b16 %v5766
    %v5957 = vunpack.c.h.b16 %v5766
    %v5958 = vunpack.c.l.b16 %v5767
    %v5959 = vunpack.c.h.b16 %v5767
    %v5960 = vunpack.c.l.b16 %v5768
    %v5961 = vunpack.c.h.b16 %v5768
    %v5962 = vunpack.c.l.b16 %v5769
    %v5963 = vunpack.c.h.b16 %v5769
    %v5964 = vunpack.c.l.b16 %v5770
    %v5965 = vunpack.c.h.b16 %v5770
    %v5966 = vunpack.c.l.b16 %v5771
    %v5967 = vunpack.c.h.b16 %v5771
    %v5968 = vunpack.c.l.b16 %v5772
    %v5969 = vunpack.c.h.b16 %v5772
    %v5970 = vunpack.c.l.b16 %v5773
    %v5971 = vunpack.c.h.b16 %v5773
    %v5972 = vunpack.c.l.b16 %v5774
    %v5973 = vunpack.c.h.b16 %v5774
    %v5974 = vunpack.c.l.b16 %v5775
    %v5975 = vunpack.c.h.b16 %v5775
    %v5976 = vunpack.c.l.b16 %v5776
    %v5977 = vunpack.c.h.b16 %v5776
    %v5978 = vunpack.c.l.b16 %v5777
    %v5979 = vunpack.c.h.b16 %v5777
    %v5980 = vunpack.c.l.b16 %v5778
    %v5981 = vunpack.c.h.b16 %v5778
    %v5982 = vunpack.c.l.b16 %v5779
    %v5983 = vunpack.c.h.b16 %v5779
    %v5984 = vpack.c.b16 %v5874, %v5872
    %v5985 = vpack.c.b16 %v5875, %v5873
    %v5986 = vpack.c.b16 %v5878, %v5876
    %v5987 = vpack.c.b16 %v5879, %v5877
    %v5988 = vpack.c.b16 %v5882, %v5880
    %v5989 = vpack.c.b16 %v5883, %v5881
    %v5990 = vpack.c.b16 %v5886, %v5884
    %v5991 = vpack.c.b16 %v5887, %v5885
    %v5992 = vpack.c.b16 %v5890, %v5888
    %v5993 = vpack.c.b16 %v5891, %v5889
    %v5994 = vpack.c.b16 %v5894, %v5892
    %v5995 = vpack.c.b16 %v5895, %v5893
    %v5996 = vpack.c.b16 %v5898, %v5896
    %v5997 = vpack.c.b16 %v5899, %v5897
    %v5998 = vpack.c.b16 %v5902, %v5900
    %v5999 = vpack.c.b16 %v5903, %v5901
    %v6000 = vpack.c.b16 %v5906, %v5904
    %v6001 = vpack.c.b16 %v5907, %v5905
    %v6002 = vpack.c.b16 %v5910, %v5908
    %v6003 = vpack.c.b16 %v5911, %v5909
    %v6004 = vpack.c.b16 %v5914, %v5912
    %v6005 = vpack.c.b16 %v5915, %v5913
    %v6006 = vpack.c.b16 %v5918, %v5916
    %v6007 = vpack.c.b16 %v5919, %v5917
    %v6008 = vpack.c.b16 %v5922, %v5920
    %v6009 = vpack.c.b16 %v5923, %v5921
    %v6010 = vpack.c.b16 %v5926, %v5924
    %v6011 = vpack.c.b16 %v5927, %v5925
    %v6012 = vpack.c.b16 %v5930, %v5928
    %v6013 = vpack.c.b16 %v5931, %v5929
    %v6014 = vpack.c.b16 %v5934, %v5932
    %v6015 = vpack.c.b16 %v5935, %v5933
    %v6016 = vpack.c.b16 %v5938, %v5936
    %v6017 = vpack.c.b16 %v5939, %v5937
    %v6018 = vpack.c.b16 %v5942, %v5940
    %v6019 = vpack.c.b16 %v5943, %v5941
    %v6020 = vpack.c.b16 %v5946, %v5944
    %v6021 = vpack.c.b16 %v5947, %v5945
    %v6022 = vpack.c.b16 %v5950, %v5948
    %v6023 = vpack.c.b16 %v5951, %v5949
    %v6024 = vpack.c.b16 %v5954, %v5952
    %v6025 = vpack.c.b16 %v5955, %v5953
    %v6026 = vpack.c.b16 %v5958, %v5956
    %v6027 = vpack.c.b16 %v5959, %v5957
    %v6028 = vpack.c.b16 %v5962, %v5960
    %v6029 = vpack.c.b16 %v5963, %v5961
    %v6030 = vpack.c.b16 %v5966, %v5964
    %v6031 = vpack.c.b16 %v5967, %v5965
    %v6032 = vpack.c.b16 %v5970, %v5968
    %v6033 = vpack.c.b16 %v5971, %v5969
    %v6034 = vpack.c.b16 %v5974, %v5972
    %v6035 = vpack.c.b16 %v5975, %v5973
    %v6036 = vpack.c.b16 %v5978, %v5976
    %v6037 = vpack.c.b16 %v5979, %v5977
    %v6038 = vpack.c.b16 %v5982, %v5980
    %v6039 = vpack.c.b16 %v5983, %v5981
    %v6097 = vsel %vm5578, %v5812, 0
    %6099 = vmatpush.bf16.msra.mxu0 %v5998
    %6100 = vmatpush.bf16.msra.mxu0 %v5996
    %6101 = vmatpush.bf16.msra.mxu0 %v5994
    %6102 = vmatpush.bf16.msra.mxu0 %v5992
    %6103 = vmatpush.bf16.msra.mxu0 %v5990
    %6104 = vmatpush.bf16.msra.mxu0 %v5988
    %6105 = vmatpush.bf16.msra.mxu0 %v5986
    %6106 = vmatpush.bf16.msra.mxu0 %v5984
    %6107 = vmatmul.bf16.gmra.mxu0 %v5809
    %v6108 = vpop.f32.mrf.mxu0
    %v6109 = vadd.f32 0.0, %v6108
    %v6110 = vpop.f32.mrf.mxu0
    %6111 = vdwg.mxu0
    %6112 = vmatpush.bf16.msra.mxu0 %v6014
    %6113 = vmatpush.bf16.msra.mxu0 %v6012
    %6114 = vmatpush.bf16.msra.mxu0 %v6010
    %6115 = vmatpush.bf16.msra.mxu0 %v6008
    %6116 = vmatpush.bf16.msra.mxu0 %v6006
    %6117 = vmatpush.bf16.msra.mxu0 %v6004
    %6118 = vmatpush.bf16.msra.mxu0 %v6002
    %6119 = vmatpush.bf16.msra.mxu0 %v6000
    %6120 = vmatmul.bf16.gmra.mxu0 %v5810
    %v6121 = vpop.f32.mrf.mxu0
    %v6122 = vadd.f32 %v6109, %v6121
    %v6123 = vpop.f32.mrf.mxu0
    %6124 = vdwg.mxu0
    %6125 = vmatpush.bf16.msra.mxu0 %v6030
    %6126 = vmatpush.bf16.msra.mxu0 %v6028
    %6127 = vmatpush.bf16.msra.mxu0 %v6026
    %6128 = vmatpush.bf16.msra.mxu0 %v6024
    %6129 = vmatpush.bf16.msra.mxu0 %v6022
    %6130 = vmatpush.bf16.msra.mxu0 %v6020
    %6131 = vmatpush.bf16.msra.mxu0 %v6018
    %6132 = vmatpush.bf16.msra.mxu0 %v6016
    %6133 = vmatmul.bf16.gmra.mxu0 %v5811
    %v6134 = vpop.f32.mrf.mxu0
    %v6135 = vadd.f32 %v6122, %v6134
    %v6136 = vpop.f32.mrf.mxu0
    %6137 = vdwg.mxu0
    %6138 = vmatpush.bf16.msra.mxu0 0
    %6139 = vmatpush.bf16.msra.mxu0 0
    %6140 = vmatpush.bf16.msra.mxu0 0
    %6141 = vmatpush.bf16.msra.mxu0 0
    %6142 = vmatpush.bf16.msra.mxu0 %v6038
    %6143 = vmatpush.bf16.msra.mxu0 %v6036
    %6144 = vmatpush.bf16.msra.mxu0 %v6034
    %6145 = vmatpush.bf16.msra.mxu0 %v6032
    %6146 = vmatmul.bf16.gmra.mxu0 %v6097
    %v6147 = vpop.f32.mrf.mxu0
    %v6148 = vadd.f32 %v6135, %v6147
    %v6149 = vpop.f32.mrf.mxu0
    %6150 = vdwg.mxu0
    %6151 = vmatpush.bf16.msra.mxu0 %v5999
    %6152 = vmatpush.bf16.msra.mxu0 %v5997
    %6153 = vmatpush.bf16.msra.mxu0 %v5995
    %6154 = vmatpush.bf16.msra.mxu0 %v5993
    %6155 = vmatpush.bf16.msra.mxu0 %v5991
    %6156 = vmatpush.bf16.msra.mxu0 %v5989
    %6157 = vmatpush.bf16.msra.mxu0 %v5987
    %6158 = vmatpush.bf16.msra.mxu0 %v5985
    %6159 = vmatmul.bf16.gmra.mxu0 %v5809
    %v6160 = vpop.f32.mrf.mxu0
    %v6161 = vadd.f32 0.0, %v6160
    %v6162 = vpop.f32.mrf.mxu0
    %6163 = vdwg.mxu0
    %6164 = vmatpush.bf16.msra.mxu0 %v6015
    %6165 = vmatpush.bf16.msra.mxu0 %v6013
    %6166 = vmatpush.bf16.msra.mxu0 %v6011
    %6167 = vmatpush.bf16.msra.mxu0 %v6009
    %6168 = vmatpush.bf16.msra.mxu0 %v6007
    %6169 = vmatpush.bf16.msra.mxu0 %v6005
    %6170 = vmatpush.bf16.msra.mxu0 %v6003
    %6171 = vmatpush.bf16.msra.mxu0 %v6001
    %6172 = vmatmul.bf16.gmra.mxu0 %v5810
    %v6173 = vpop.f32.mrf.mxu0
    %v6174 = vadd.f32 %v6161, %v6173
    %v6175 = vpop.f32.mrf.mxu0
    %6176 = vdwg.mxu0
    %6177 = vmatpush.bf16.msra.mxu0 %v6031
    %6178 = vmatpush.bf16.msra.mxu0 %v6029
    %6179 = vmatpush.bf16.msra.mxu0 %v6027
    %6180 = vmatpush.bf16.msra.mxu0 %v6025
    %6181 = vmatpush.bf16.msra.mxu0 %v6023
    %6182 = vmatpush.bf16.msra.mxu0 %v6021
    %6183 = vmatpush.bf16.msra.mxu0 %v6019
    %6184 = vmatpush.bf16.msra.mxu0 %v6017
    %6185 = vmatmul.bf16.gmra.mxu0 %v5811
    %v6186 = vpop.f32.mrf.mxu0
    %v6187 = vadd.f32 %v6174, %v6186
    %v6188 = vpop.f32.mrf.mxu0
    %6189 = vdwg.mxu0
    %6190 = vmatpush.bf16.msra.mxu0 0
    %6191 = vmatpush.bf16.msra.mxu0 0
    %6192 = vmatpush.bf16.msra.mxu0 0
    %6193 = vmatpush.bf16.msra.mxu0 0
    %6194 = vmatpush.bf16.msra.mxu0 %v6039
    %6195 = vmatpush.bf16.msra.mxu0 %v6037
    %6196 = vmatpush.bf16.msra.mxu0 %v6035
    %6197 = vmatpush.bf16.msra.mxu0 %v6033
    %6198 = vmatmul.bf16.gmra.mxu0 %v6097
    %v6199 = vpop.f32.mrf.mxu0
    %v6200 = vadd.f32 %v6187, %v6199
    %v6201 = vpop.f32.mrf.mxu0
    %6202 = vdwg.mxu0
    %v6203 = vrot.slane %v5792, 7
    %v6204 = vsel %vm5798, %v6203, %v5788
    %v6205 = vrot.slane %v5793, 7
    %v6206 = vsel %vm5798, %v6205, %v5789
    %v6207 = vrot.slane %v5794, 7
    %v6208 = vsel %vm5798, %v6207, %v5790
    %v6209 = vrot.slane %v5795, 7
    %v6210 = vsel %vm5798, %v6209, %v5791
    %v6211 = vpack.c.b16 %v6204, %v6204
    %v6212 = vpack.c.b16 %v6206, %v6206
    %v6213 = vpack.c.b16 %v6208, %v6208
    %v6214 = vpack.c.b16 %v6210, %v6210
    %v6274 = vunpack.c.l.b16 %v5667
    %v6275 = vunpack.c.h.b16 %v5667
    %v6276 = vunpack.c.l.b16 %v5668
    %v6277 = vunpack.c.h.b16 %v5668
    %v6278 = vunpack.c.l.b16 %v5669
    %v6279 = vunpack.c.h.b16 %v5669
    %v6280 = vunpack.c.l.b16 %v5670
    %v6281 = vunpack.c.h.b16 %v5670
    %v6282 = vunpack.c.l.b16 %v5671
    %v6283 = vunpack.c.h.b16 %v5671
    %v6284 = vunpack.c.l.b16 %v5672
    %v6285 = vunpack.c.h.b16 %v5672
    %v6286 = vunpack.c.l.b16 %v5673
    %v6287 = vunpack.c.h.b16 %v5673
    %v6288 = vunpack.c.l.b16 %v5674
    %v6289 = vunpack.c.h.b16 %v5674
    %v6290 = vunpack.c.l.b16 %v5675
    %v6291 = vunpack.c.h.b16 %v5675
    %v6292 = vunpack.c.l.b16 %v5676
    %v6293 = vunpack.c.h.b16 %v5676
    %v6294 = vunpack.c.l.b16 %v5677
    %v6295 = vunpack.c.h.b16 %v5677
    %v6296 = vunpack.c.l.b16 %v5678
    %v6297 = vunpack.c.h.b16 %v5678
    %v6298 = vunpack.c.l.b16 %v5679
    %v6299 = vunpack.c.h.b16 %v5679
    %v6300 = vunpack.c.l.b16 %v5680
    %v6301 = vunpack.c.h.b16 %v5680
    %v6302 = vunpack.c.l.b16 %v5681
    %v6303 = vunpack.c.h.b16 %v5681
    %v6304 = vunpack.c.l.b16 %v5682
    %v6305 = vunpack.c.h.b16 %v5682
    %v6306 = vunpack.c.l.b16 %v5683
    %v6307 = vunpack.c.h.b16 %v5683
    %v6308 = vunpack.c.l.b16 %v5684
    %v6309 = vunpack.c.h.b16 %v5684
    %v6310 = vunpack.c.l.b16 %v5685
    %v6311 = vunpack.c.h.b16 %v5685
    %v6312 = vunpack.c.l.b16 %v5686
    %v6313 = vunpack.c.h.b16 %v5686
    %v6314 = vunpack.c.l.b16 %v5687
    %v6315 = vunpack.c.h.b16 %v5687
    %v6316 = vunpack.c.l.b16 %v5688
    %v6317 = vunpack.c.h.b16 %v5688
    %v6318 = vunpack.c.l.b16 %v5689
    %v6319 = vunpack.c.h.b16 %v5689
    %v6320 = vunpack.c.l.b16 %v5690
    %v6321 = vunpack.c.h.b16 %v5690
    %v6322 = vunpack.c.l.b16 %v5691
    %v6323 = vunpack.c.h.b16 %v5691
    %v6324 = vunpack.c.l.b16 %v5692
    %v6325 = vunpack.c.h.b16 %v5692
    %v6326 = vunpack.c.l.b16 %v5693
    %v6327 = vunpack.c.h.b16 %v5693
    %v6328 = vunpack.c.l.b16 %v5694
    %v6329 = vunpack.c.h.b16 %v5694
    %v6330 = vunpack.c.l.b16 %v5695
    %v6331 = vunpack.c.h.b16 %v5695
    %v6332 = vunpack.c.l.b16 %v5696
    %v6333 = vunpack.c.h.b16 %v5696
    %v6334 = vunpack.c.l.b16 %v5697
    %v6335 = vunpack.c.h.b16 %v5697
    %v6336 = vunpack.c.l.b16 %v5698
    %v6337 = vunpack.c.h.b16 %v5698
    %v6338 = vunpack.c.l.b16 %v5699
    %v6339 = vunpack.c.h.b16 %v5699
    %v6340 = vunpack.c.l.b16 %v5700
    %v6341 = vunpack.c.h.b16 %v5700
    %v6342 = vunpack.c.l.b16 %v5701
    %v6343 = vunpack.c.h.b16 %v5701
    %v6344 = vunpack.c.l.b16 %v5702
    %v6345 = vunpack.c.h.b16 %v5702
    %v6346 = vunpack.c.l.b16 %v5703
    %v6347 = vunpack.c.h.b16 %v5703
    %v6348 = vunpack.c.l.b16 %v5704
    %v6349 = vunpack.c.h.b16 %v5704
    %v6350 = vunpack.c.l.b16 %v5705
    %v6351 = vunpack.c.h.b16 %v5705
    %v6352 = vunpack.c.l.b16 %v5706
    %v6353 = vunpack.c.h.b16 %v5706
    %v6354 = vunpack.c.l.b16 %v5707
    %v6355 = vunpack.c.h.b16 %v5707
    %v6356 = vunpack.c.l.b16 %v5708
    %v6357 = vunpack.c.h.b16 %v5708
    %v6358 = vunpack.c.l.b16 %v5709
    %v6359 = vunpack.c.h.b16 %v5709
    %v6360 = vunpack.c.l.b16 %v5710
    %v6361 = vunpack.c.h.b16 %v5710
    %v6362 = vunpack.c.l.b16 %v5711
    %v6363 = vunpack.c.h.b16 %v5711
    %v6364 = vunpack.c.l.b16 %v5712
    %v6365 = vunpack.c.h.b16 %v5712
    %v6366 = vunpack.c.l.b16 %v5713
    %v6367 = vunpack.c.h.b16 %v5713
    %v6368 = vunpack.c.l.b16 %v5714
    %v6369 = vunpack.c.h.b16 %v5714
    %v6370 = vunpack.c.l.b16 %v5715
    %v6371 = vunpack.c.h.b16 %v5715
    %v6372 = vunpack.c.l.b16 %v5716
    %v6373 = vunpack.c.h.b16 %v5716
    %v6374 = vunpack.c.l.b16 %v5717
    %v6375 = vunpack.c.h.b16 %v5717
    %v6376 = vunpack.c.l.b16 %v5718
    %v6377 = vunpack.c.h.b16 %v5718
    %v6378 = vunpack.c.l.b16 %v5719
    %v6379 = vunpack.c.h.b16 %v5719
    %v6380 = vunpack.c.l.b16 %v5720
    %v6381 = vunpack.c.h.b16 %v5720
    %v6382 = vunpack.c.l.b16 %v5721
    %v6383 = vunpack.c.h.b16 %v5721
    %v6384 = vunpack.c.l.b16 %v5722
    %v6385 = vunpack.c.h.b16 %v5722
    %v6386 = vpack.c.b16 %v6276, %v6274
    %v6387 = vpack.c.b16 %v6277, %v6275
    %v6388 = vpack.c.b16 %v6280, %v6278
    %v6389 = vpack.c.b16 %v6281, %v6279
    %v6390 = vpack.c.b16 %v6284, %v6282
    %v6391 = vpack.c.b16 %v6285, %v6283
    %v6392 = vpack.c.b16 %v6288, %v6286
    %v6393 = vpack.c.b16 %v6289, %v6287
    %v6394 = vpack.c.b16 %v6292, %v6290
    %v6395 = vpack.c.b16 %v6293, %v6291
    %v6396 = vpack.c.b16 %v6296, %v6294
    %v6397 = vpack.c.b16 %v6297, %v6295
    %v6398 = vpack.c.b16 %v6300, %v6298
    %v6399 = vpack.c.b16 %v6301, %v6299
    %v6400 = vpack.c.b16 %v6304, %v6302
    %v6401 = vpack.c.b16 %v6305, %v6303
    %v6402 = vpack.c.b16 %v6308, %v6306
    %v6403 = vpack.c.b16 %v6309, %v6307
    %v6404 = vpack.c.b16 %v6312, %v6310
    %v6405 = vpack.c.b16 %v6313, %v6311
    %v6406 = vpack.c.b16 %v6316, %v6314
    %v6407 = vpack.c.b16 %v6317, %v6315
    %v6408 = vpack.c.b16 %v6320, %v6318
    %v6409 = vpack.c.b16 %v6321, %v6319
    %v6410 = vpack.c.b16 %v6324, %v6322
    %v6411 = vpack.c.b16 %v6325, %v6323
    %v6412 = vpack.c.b16 %v6328, %v6326
    %v6413 = vpack.c.b16 %v6329, %v6327
    %v6414 = vpack.c.b16 %v6332, %v6330
    %v6415 = vpack.c.b16 %v6333, %v6331
    %v6416 = vpack.c.b16 %v6336, %v6334
    %v6417 = vpack.c.b16 %v6337, %v6335
    %v6418 = vpack.c.b16 %v6340, %v6338
    %v6419 = vpack.c.b16 %v6341, %v6339
    %v6420 = vpack.c.b16 %v6344, %v6342
    %v6421 = vpack.c.b16 %v6345, %v6343
    %v6422 = vpack.c.b16 %v6348, %v6346
    %v6423 = vpack.c.b16 %v6349, %v6347
    %v6424 = vpack.c.b16 %v6352, %v6350
    %v6425 = vpack.c.b16 %v6353, %v6351
    %v6426 = vpack.c.b16 %v6356, %v6354
    %v6427 = vpack.c.b16 %v6357, %v6355
    %v6428 = vpack.c.b16 %v6360, %v6358
    %v6429 = vpack.c.b16 %v6361, %v6359
    %v6430 = vpack.c.b16 %v6364, %v6362
    %v6431 = vpack.c.b16 %v6365, %v6363
    %v6432 = vpack.c.b16 %v6368, %v6366
    %v6433 = vpack.c.b16 %v6369, %v6367
    %v6434 = vpack.c.b16 %v6372, %v6370
    %v6435 = vpack.c.b16 %v6373, %v6371
    %v6436 = vpack.c.b16 %v6376, %v6374
    %v6437 = vpack.c.b16 %v6377, %v6375
    %v6438 = vpack.c.b16 %v6380, %v6378
    %v6439 = vpack.c.b16 %v6381, %v6379
    %v6440 = vpack.c.b16 %v6384, %v6382
    %v6441 = vpack.c.b16 %v6385, %v6383
    %v6499 = vsel %vm5578, %v6214, 0
    %6501 = vmatpush.bf16.msra.mxu0 %v6400
    %6502 = vmatpush.bf16.msra.mxu0 %v6398
    %6503 = vmatpush.bf16.msra.mxu0 %v6396
    %6504 = vmatpush.bf16.msra.mxu0 %v6394
    %6505 = vmatpush.bf16.msra.mxu0 %v6392
    %6506 = vmatpush.bf16.msra.mxu0 %v6390
    %6507 = vmatpush.bf16.msra.mxu0 %v6388
    %6508 = vmatpush.bf16.msra.mxu0 %v6386
    %6509 = vmatmul.bf16.gmra.mxu0 %v6211
    %v6510 = vpop.f32.mrf.mxu0
    %v6511 = vadd.f32 %v6148, %v6510
    %v6512 = vpop.f32.mrf.mxu0
    %6513 = vdwg.mxu0
    %6514 = vmatpush.bf16.msra.mxu0 %v6416
    %6515 = vmatpush.bf16.msra.mxu0 %v6414
    %6516 = vmatpush.bf16.msra.mxu0 %v6412
    %6517 = vmatpush.bf16.msra.mxu0 %v6410
    %6518 = vmatpush.bf16.msra.mxu0 %v6408
    %6519 = vmatpush.bf16.msra.mxu0 %v6406
    %6520 = vmatpush.bf16.msra.mxu0 %v6404
    %6521 = vmatpush.bf16.msra.mxu0 %v6402
    %6522 = vmatmul.bf16.gmra.mxu0 %v6212
    %v6523 = vpop.f32.mrf.mxu0
    %v6524 = vadd.f32 %v6511, %v6523
    %v6525 = vpop.f32.mrf.mxu0
    %6526 = vdwg.mxu0
    %6527 = vmatpush.bf16.msra.mxu0 %v6432
    %6528 = vmatpush.bf16.msra.mxu0 %v6430
    %6529 = vmatpush.bf16.msra.mxu0 %v6428
    %6530 = vmatpush.bf16.msra.mxu0 %v6426
    %6531 = vmatpush.bf16.msra.mxu0 %v6424
    %6532 = vmatpush.bf16.msra.mxu0 %v6422
    %6533 = vmatpush.bf16.msra.mxu0 %v6420
    %6534 = vmatpush.bf16.msra.mxu0 %v6418
    %6535 = vmatmul.bf16.gmra.mxu0 %v6213
    %v6536 = vpop.f32.mrf.mxu0
    %v6537 = vadd.f32 %v6524, %v6536
    %v6538 = vpop.f32.mrf.mxu0
    %6539 = vdwg.mxu0
    %6540 = vmatpush.bf16.msra.mxu0 0
    %6541 = vmatpush.bf16.msra.mxu0 0
    %6542 = vmatpush.bf16.msra.mxu0 0
    %6543 = vmatpush.bf16.msra.mxu0 0
    %6544 = vmatpush.bf16.msra.mxu0 %v6440
    %6545 = vmatpush.bf16.msra.mxu0 %v6438
    %6546 = vmatpush.bf16.msra.mxu0 %v6436
    %6547 = vmatpush.bf16.msra.mxu0 %v6434
    %6548 = vmatmul.bf16.gmra.mxu0 %v6499
    %v6549 = vpop.f32.mrf.mxu0
    %v6550 = vadd.f32 %v6537, %v6549
    %v6551 = vpop.f32.mrf.mxu0
    %6552 = vdwg.mxu0
    %6553 = vmatpush.bf16.msra.mxu0 %v6401
    %6554 = vmatpush.bf16.msra.mxu0 %v6399
    %6555 = vmatpush.bf16.msra.mxu0 %v6397
    %6556 = vmatpush.bf16.msra.mxu0 %v6395
    %6557 = vmatpush.bf16.msra.mxu0 %v6393
    %6558 = vmatpush.bf16.msra.mxu0 %v6391
    %6559 = vmatpush.bf16.msra.mxu0 %v6389
    %6560 = vmatpush.bf16.msra.mxu0 %v6387
    %6561 = vmatmul.bf16.gmra.mxu0 %v6211
    %v6562 = vpop.f32.mrf.mxu0
    %v6563 = vadd.f32 %v6200, %v6562
    %v6564 = vpop.f32.mrf.mxu0
    %6565 = vdwg.mxu0
    %6566 = vmatpush.bf16.msra.mxu0 %v6417
    %6567 = vmatpush.bf16.msra.mxu0 %v6415
    %6568 = vmatpush.bf16.msra.mxu0 %v6413
    %6569 = vmatpush.bf16.msra.mxu0 %v6411
    %6570 = vmatpush.bf16.msra.mxu0 %v6409
    %6571 = vmatpush.bf16.msra.mxu0 %v6407
    %6572 = vmatpush.bf16.msra.mxu0 %v6405
    %6573 = vmatpush.bf16.msra.mxu0 %v6403
    %6574 = vmatmul.bf16.gmra.mxu0 %v6212
    %v6575 = vpop.f32.mrf.mxu0
    %v6576 = vadd.f32 %v6563, %v6575
    %v6577 = vpop.f32.mrf.mxu0
    %6578 = vdwg.mxu0
    %6579 = vmatpush.bf16.msra.mxu0 %v6433
    %6580 = vmatpush.bf16.msra.mxu0 %v6431
    %6581 = vmatpush.bf16.msra.mxu0 %v6429
    %6582 = vmatpush.bf16.msra.mxu0 %v6427
    %6583 = vmatpush.bf16.msra.mxu0 %v6425
    %6584 = vmatpush.bf16.msra.mxu0 %v6423
    %6585 = vmatpush.bf16.msra.mxu0 %v6421
    %6586 = vmatpush.bf16.msra.mxu0 %v6419
    %6587 = vmatmul.bf16.gmra.mxu0 %v6213
    %v6588 = vpop.f32.mrf.mxu0
    %v6589 = vadd.f32 %v6576, %v6588
    %v6590 = vpop.f32.mrf.mxu0
    %6591 = vdwg.mxu0
    %6592 = vmatpush.bf16.msra.mxu0 0
    %6593 = vmatpush.bf16.msra.mxu0 0
    %6594 = vmatpush.bf16.msra.mxu0 0
    %6595 = vmatpush.bf16.msra.mxu0 0
    %6596 = vmatpush.bf16.msra.mxu0 %v6441
    %6597 = vmatpush.bf16.msra.mxu0 %v6439
    %6598 = vmatpush.bf16.msra.mxu0 %v6437
    %6599 = vmatpush.bf16.msra.mxu0 %v6435
    %6600 = vmatmul.bf16.gmra.mxu0 %v6499
    %v6601 = vpop.f32.mrf.mxu0
    %v6602 = vadd.f32 %v6589, %v6601
    %v6603 = vpop.f32.mrf.mxu0
    %6604 = vdwg.mxu0
    %s6605 = scalar_lea.vmem [#allocation11], 896
    %v6606 = vld [vmem:[%s6605] sm:$0xff]
    %v6607 = vld [vmem:[%s6605 + $0x8] sm:$0xff]
    %v6608 = vld [vmem:[%s6605 + $0x10] sm:$0xff]
    %v6609 = vld [vmem:[%s6605 + $0x18] sm:$0xff]
    %v6610 = vld [vmem:[%s6605 + $0x20] sm:$0xff]
    %v6611 = vld [vmem:[%s6605 + $0x28] sm:$0xff]
    %v6612 = vld [vmem:[%s6605 + $0x30] sm:$0xff]
    %v6613 = vld [vmem:[%s6605 + $0x38] sm:$0xff]
    %v6614 = vld [vmem:[%s6605 + $0x40] sm:$0xff]
    %v6615 = vld [vmem:[%s6605 + $0x48] sm:$0xff]
    %v6616 = vld [vmem:[%s6605 + $0x50] sm:$0xff]
    %v6617 = vld [vmem:[%s6605 + $0x58] sm:$0xff]
    %v6618 = vld [vmem:[%s6605 + $0x60] sm:$0xff]
    %v6619 = vld [vmem:[%s6605 + $0x68] sm:$0xff]
    %v6620 = vld [vmem:[%s6605 + $0x70] sm:$0xff]
    %v6621 = vld [vmem:[%s6605 + $0x78] sm:$0xff]
    %v6622 = vld [vmem:[%s6605 + $0x80] sm:$0xff]
    %v6623 = vld [vmem:[%s6605 + $0x88] sm:$0xff]
    %v6624 = vld [vmem:[%s6605 + $0x90] sm:$0xff]
    %v6625 = vld [vmem:[%s6605 + $0x98] sm:$0xff]
    %v6626 = vld [vmem:[%s6605 + $0xa0] sm:$0xff]
    %v6627 = vld [vmem:[%s6605 + $0xa8] sm:$0xff]
    %v6628 = vld [vmem:[%s6605 + $0xb0] sm:$0xff]
    %v6629 = vld [vmem:[%s6605 + $0xb8] sm:$0xff]
    %v6630 = vld [vmem:[%s6605 + $0xc0] sm:$0xff]
    %v6631 = vld [vmem:[%s6605 + $0xc8] sm:$0xff]
    %v6632 = vld [vmem:[%s6605 + $0xd0] sm:$0xff]
    %v6633 = vld [vmem:[%s6605 + $0xd8] sm:$0xff]
    %v6634 = vld [vmem:[%s6605 + $0xe0] sm:$0xff]
    %v6635 = vld [vmem:[%s6605 + $0xe8] sm:$0xff]
    %v6636 = vld [vmem:[%s6605 + $0xf0] sm:$0xff]
    %v6637 = vld [vmem:[%s6605 + $0xf8] sm:$0xff]
    %v6638 = vld [vmem:[%s6605 + $0x100] sm:$0xff]
    %v6639 = vld [vmem:[%s6605 + $0x108] sm:$0xff]
    %v6640 = vld [vmem:[%s6605 + $0x110] sm:$0xff]
    %v6641 = vld [vmem:[%s6605 + $0x118] sm:$0xff]
    %v6642 = vld [vmem:[%s6605 + $0x120] sm:$0xff]
    %v6643 = vld [vmem:[%s6605 + $0x128] sm:$0xff]
    %v6644 = vld [vmem:[%s6605 + $0x130] sm:$0xff]
    %v6645 = vld [vmem:[%s6605 + $0x138] sm:$0xff]
    %v6646 = vld [vmem:[%s6605 + $0x140] sm:$0xff]
    %v6647 = vld [vmem:[%s6605 + $0x148] sm:$0xff]
    %v6648 = vld [vmem:[%s6605 + $0x150] sm:$0xff]
    %v6649 = vld [vmem:[%s6605 + $0x158] sm:$0xff]
    %v6650 = vld [vmem:[%s6605 + $0x160] sm:$0xff]
    %v6651 = vld [vmem:[%s6605 + $0x168] sm:$0xff]
    %v6652 = vld [vmem:[%s6605 + $0x170] sm:$0xff]
    %v6653 = vld [vmem:[%s6605 + $0x178] sm:$0xff]
    %v6654 = vld [vmem:[%s6605 + $0x180] sm:$0xff]
    %v6655 = vld [vmem:[%s6605 + $0x188] sm:$0xff]
    %v6656 = vld [vmem:[%s6605 + $0x190] sm:$0xff]
    %v6657 = vld [vmem:[%s6605 + $0x198] sm:$0xff]
    %v6658 = vld [vmem:[%s6605 + $0x1a0] sm:$0xff]
    %v6659 = vld [vmem:[%s6605 + $0x1a8] sm:$0xff]
    %v6660 = vld [vmem:[%s6605 + $0x1b0] sm:$0xff]
    %v6661 = vld [vmem:[%s6605 + $0x1b8] sm:$0xff]
    %v6662 = vrot.slane %v5788, 4
    %v6663 = vrot.slane %v5792, 3
    %v6664 = vsel %vm5798, %v6663, %v6662
    %v6665 = vrot.slane %v5789, 4
    %v6666 = vrot.slane %v5793, 3
    %v6667 = vsel %vm5798, %v6666, %v6665
    %v6668 = vrot.slane %v5790, 4
    %v6669 = vrot.slane %v5794, 3
    %v6670 = vsel %vm5798, %v6669, %v6668
    %v6671 = vrot.slane %v5791, 4
    %v6672 = vrot.slane %v5795, 3
    %v6673 = vsel %vm5798, %v6672, %v6671
    %v6674 = vpack.c.b16 %v6664, %v6664
    %v6675 = vpack.c.b16 %v6667, %v6667
    %v6676 = vpack.c.b16 %v6670, %v6670
    %v6677 = vpack.c.b16 %v6673, %v6673
    %v6737 = vunpack.c.l.b16 %v6606
    %v6738 = vunpack.c.h.b16 %v6606
    %v6739 = vunpack.c.l.b16 %v6607
    %v6740 = vunpack.c.h.b16 %v6607
    %v6741 = vunpack.c.l.b16 %v6608
    %v6742 = vunpack.c.h.b16 %v6608
    %v6743 = vunpack.c.l.b16 %v6609
    %v6744 = vunpack.c.h.b16 %v6609
    %v6745 = vunpack.c.l.b16 %v6610
    %v6746 = vunpack.c.h.b16 %v6610
    %v6747 = vunpack.c.l.b16 %v6611
    %v6748 = vunpack.c.h.b16 %v6611
    %v6749 = vunpack.c.l.b16 %v6612
    %v6750 = vunpack.c.h.b16 %v6612
    %v6751 = vunpack.c.l.b16 %v6613
    %v6752 = vunpack.c.h.b16 %v6613
    %v6753 = vunpack.c.l.b16 %v6614
    %v6754 = vunpack.c.h.b16 %v6614
    %v6755 = vunpack.c.l.b16 %v6615
    %v6756 = vunpack.c.h.b16 %v6615
    %v6757 = vunpack.c.l.b16 %v6616
    %v6758 = vunpack.c.h.b16 %v6616
    %v6759 = vunpack.c.l.b16 %v6617
    %v6760 = vunpack.c.h.b16 %v6617
    %v6761 = vunpack.c.l.b16 %v6618
    %v6762 = vunpack.c.h.b16 %v6618
    %v6763 = vunpack.c.l.b16 %v6619
    %v6764 = vunpack.c.h.b16 %v6619
    %v6765 = vunpack.c.l.b16 %v6620
    %v6766 = vunpack.c.h.b16 %v6620
    %v6767 = vunpack.c.l.b16 %v6621
    %v6768 = vunpack.c.h.b16 %v6621
    %v6769 = vunpack.c.l.b16 %v6622
    %v6770 = vunpack.c.h.b16 %v6622
    %v6771 = vunpack.c.l.b16 %v6623
    %v6772 = vunpack.c.h.b16 %v6623
    %v6773 = vunpack.c.l.b16 %v6624
    %v6774 = vunpack.c.h.b16 %v6624
    %v6775 = vunpack.c.l.b16 %v6625
    %v6776 = vunpack.c.h.b16 %v6625
    %v6777 = vunpack.c.l.b16 %v6626
    %v6778 = vunpack.c.h.b16 %v6626
    %v6779 = vunpack.c.l.b16 %v6627
    %v6780 = vunpack.c.h.b16 %v6627
    %v6781 = vunpack.c.l.b16 %v6628
    %v6782 = vunpack.c.h.b16 %v6628
    %v6783 = vunpack.c.l.b16 %v6629
    %v6784 = vunpack.c.h.b16 %v6629
    %v6785 = vunpack.c.l.b16 %v6630
    %v6786 = vunpack.c.h.b16 %v6630
    %v6787 = vunpack.c.l.b16 %v6631
    %v6788 = vunpack.c.h.b16 %v6631
    %v6789 = vunpack.c.l.b16 %v6632
    %v6790 = vunpack.c.h.b16 %v6632
    %v6791 = vunpack.c.l.b16 %v6633
    %v6792 = vunpack.c.h.b16 %v6633
    %v6793 = vunpack.c.l.b16 %v6634
    %v6794 = vunpack.c.h.b16 %v6634
    %v6795 = vunpack.c.l.b16 %v6635
    %v6796 = vunpack.c.h.b16 %v6635
    %v6797 = vunpack.c.l.b16 %v6636
    %v6798 = vunpack.c.h.b16 %v6636
    %v6799 = vunpack.c.l.b16 %v6637
    %v6800 = vunpack.c.h.b16 %v6637
    %v6801 = vunpack.c.l.b16 %v6638
    %v6802 = vunpack.c.h.b16 %v6638
    %v6803 = vunpack.c.l.b16 %v6639
    %v6804 = vunpack.c.h.b16 %v6639
    %v6805 = vunpack.c.l.b16 %v6640
    %v6806 = vunpack.c.h.b16 %v6640
    %v6807 = vunpack.c.l.b16 %v6641
    %v6808 = vunpack.c.h.b16 %v6641
    %v6809 = vunpack.c.l.b16 %v6642
    %v6810 = vunpack.c.h.b16 %v6642
    %v6811 = vunpack.c.l.b16 %v6643
    %v6812 = vunpack.c.h.b16 %v6643
    %v6813 = vunpack.c.l.b16 %v6644
    %v6814 = vunpack.c.h.b16 %v6644
    %v6815 = vunpack.c.l.b16 %v6645
    %v6816 = vunpack.c.h.b16 %v6645
    %v6817 = vunpack.c.l.b16 %v6646
    %v6818 = vunpack.c.h.b16 %v6646
    %v6819 = vunpack.c.l.b16 %v6647
    %v6820 = vunpack.c.h.b16 %v6647
    %v6821 = vunpack.c.l.b16 %v6648
    %v6822 = vunpack.c.h.b16 %v6648
    %v6823 = vunpack.c.l.b16 %v6649
    %v6824 = vunpack.c.h.b16 %v6649
    %v6825 = vunpack.c.l.b16 %v6650
    %v6826 = vunpack.c.h.b16 %v6650
    %v6827 = vunpack.c.l.b16 %v6651
    %v6828 = vunpack.c.h.b16 %v6651
    %v6829 = vunpack.c.l.b16 %v6652
    %v6830 = vunpack.c.h.b16 %v6652
    %v6831 = vunpack.c.l.b16 %v6653
    %v6832 = vunpack.c.h.b16 %v6653
    %v6833 = vunpack.c.l.b16 %v6654
    %v6834 = vunpack.c.h.b16 %v6654
    %v6835 = vunpack.c.l.b16 %v6655
    %v6836 = vunpack.c.h.b16 %v6655
    %v6837 = vunpack.c.l.b16 %v6656
    %v6838 = vunpack.c.h.b16 %v6656
    %v6839 = vunpack.c.l.b16 %v6657
    %v6840 = vunpack.c.h.b16 %v6657
    %v6841 = vunpack.c.l.b16 %v6658
    %v6842 = vunpack.c.h.b16 %v6658
    %v6843 = vunpack.c.l.b16 %v6659
    %v6844 = vunpack.c.h.b16 %v6659
    %v6845 = vunpack.c.l.b16 %v6660
    %v6846 = vunpack.c.h.b16 %v6660
    %v6847 = vunpack.c.l.b16 %v6661
    %v6848 = vunpack.c.h.b16 %v6661
    %v6849 = vpack.c.b16 %v6739, %v6737
    %v6850 = vpack.c.b16 %v6740, %v6738
    %v6851 = vpack.c.b16 %v6743, %v6741
    %v6852 = vpack.c.b16 %v6744, %v6742
    %v6853 = vpack.c.b16 %v6747, %v6745
    %v6854 = vpack.c.b16 %v6748, %v6746
    %v6855 = vpack.c.b16 %v6751, %v6749
    %v6856 = vpack.c.b16 %v6752, %v6750
    %v6857 = vpack.c.b16 %v6755, %v6753
    %v6858 = vpack.c.b16 %v6756, %v6754
    %v6859 = vpack.c.b16 %v6759, %v6757
    %v6860 = vpack.c.b16 %v6760, %v6758
    %v6861 = vpack.c.b16 %v6763, %v6761
    %v6862 = vpack.c.b16 %v6764, %v6762
    %v6863 = vpack.c.b16 %v6767, %v6765
    %v6864 = vpack.c.b16 %v6768, %v6766
    %v6865 = vpack.c.b16 %v6771, %v6769
    %v6866 = vpack.c.b16 %v6772, %v6770
    %v6867 = vpack.c.b16 %v6775, %v6773
    %v6868 = vpack.c.b16 %v6776, %v6774
    %v6869 = vpack.c.b16 %v6779, %v6777
    %v6870 = vpack.c.b16 %v6780, %v6778
    %v6871 = vpack.c.b16 %v6783, %v6781
    %v6872 = vpack.c.b16 %v6784, %v6782
    %v6873 = vpack.c.b16 %v6787, %v6785
    %v6874 = vpack.c.b16 %v6788, %v6786
    %v6875 = vpack.c.b16 %v6791, %v6789
    %v6876 = vpack.c.b16 %v6792, %v6790
    %v6877 = vpack.c.b16 %v6795, %v6793
    %v6878 = vpack.c.b16 %v6796, %v6794
    %v6879 = vpack.c.b16 %v6799, %v6797
    %v6880 = vpack.c.b16 %v6800, %v6798
    %v6881 = vpack.c.b16 %v6803, %v6801
    %v6882 = vpack.c.b16 %v6804, %v6802
    %v6883 = vpack.c.b16 %v6807, %v6805
    %v6884 = vpack.c.b16 %v6808, %v6806
    %v6885 = vpack.c.b16 %v6811, %v6809
    %v6886 = vpack.c.b16 %v6812, %v6810
    %v6887 = vpack.c.b16 %v6815, %v6813
    %v6888 = vpack.c.b16 %v6816, %v6814
    %v6889 = vpack.c.b16 %v6819, %v6817
    %v6890 = vpack.c.b16 %v6820, %v6818
    %v6891 = vpack.c.b16 %v6823, %v6821
    %v6892 = vpack.c.b16 %v6824, %v6822
    %v6893 = vpack.c.b16 %v6827, %v6825
    %v6894 = vpack.c.b16 %v6828, %v6826
    %v6895 = vpack.c.b16 %v6831, %v6829
    %v6896 = vpack.c.b16 %v6832, %v6830
    %v6897 = vpack.c.b16 %v6835, %v6833
    %v6898 = vpack.c.b16 %v6836, %v6834
    %v6899 = vpack.c.b16 %v6839, %v6837
    %v6900 = vpack.c.b16 %v6840, %v6838
    %v6901 = vpack.c.b16 %v6843, %v6841
    %v6902 = vpack.c.b16 %v6844, %v6842
    %v6903 = vpack.c.b16 %v6847, %v6845
    %v6904 = vpack.c.b16 %v6848, %v6846
    %v6962 = vsel %vm5578, %v6677, 0
    %6964 = vmatpush.bf16.msra.mxu0 %v6863
    %6965 = vmatpush.bf16.msra.mxu0 %v6861
    %6966 = vmatpush.bf16.msra.mxu0 %v6859
    %6967 = vmatpush.bf16.msra.mxu0 %v6857
    %6968 = vmatpush.bf16.msra.mxu0 %v6855
    %6969 = vmatpush.bf16.msra.mxu0 %v6853
    %6970 = vmatpush.bf16.msra.mxu0 %v6851
    %6971 = vmatpush.bf16.msra.mxu0 %v6849
    %6972 = vmatmul.bf16.gmra.mxu0 %v6674
    %v6973 = vpop.f32.mrf.mxu0
    %v6974 = vadd.f32 0.0, %v6973
    %v6975 = vpop.f32.mrf.mxu0
    %6976 = vdwg.mxu0
    %6977 = vmatpush.bf16.msra.mxu0 %v6879
    %6978 = vmatpush.bf16.msra.mxu0 %v6877
    %6979 = vmatpush.bf16.msra.mxu0 %v6875
    %6980 = vmatpush.bf16.msra.mxu0 %v6873
    %6981 = vmatpush.bf16.msra.mxu0 %v6871
    %6982 = vmatpush.bf16.msra.mxu0 %v6869
    %6983 = vmatpush.bf16.msra.mxu0 %v6867
    %6984 = vmatpush.bf16.msra.mxu0 %v6865
    %6985 = vmatmul.bf16.gmra.mxu0 %v6675
    %v6986 = vpop.f32.mrf.mxu0
    %v6987 = vadd.f32 %v6974, %v6986
    %v6988 = vpop.f32.mrf.mxu0
    %6989 = vdwg.mxu0
    %6990 = vmatpush.bf16.msra.mxu0 %v6895
    %6991 = vmatpush.bf16.msra.mxu0 %v6893
    %6992 = vmatpush.bf16.msra.mxu0 %v6891
    %6993 = vmatpush.bf16.msra.mxu0 %v6889
    %6994 = vmatpush.bf16.msra.mxu0 %v6887
    %6995 = vmatpush.bf16.msra.mxu0 %v6885
    %6996 = vmatpush.bf16.msra.mxu0 %v6883
    %6997 = vmatpush.bf16.msra.mxu0 %v6881
    %6998 = vmatmul.bf16.gmra.mxu0 %v6676
    %v6999 = vpop.f32.mrf.mxu0
    %v7000 = vadd.f32 %v6987, %v6999
    %v7001 = vpop.f32.mrf.mxu0
    %7002 = vdwg.mxu0
    %7003 = vmatpush.bf16.msra.mxu0 0
    %7004 = vmatpush.bf16.msra.mxu0 0
    %7005 = vmatpush.bf16.msra.mxu0 0
    %7006 = vmatpush.bf16.msra.mxu0 0
    %7007 = vmatpush.bf16.msra.mxu0 %v6903
    %7008 = vmatpush.bf16.msra.mxu0 %v6901
    %7009 = vmatpush.bf16.msra.mxu0 %v6899
    %7010 = vmatpush.bf16.msra.mxu0 %v6897
    %7011 = vmatmul.bf16.gmra.mxu0 %v6962
    %v7012 = vpop.f32.mrf.mxu0
    %v7013 = vadd.f32 %v7000, %v7012
    %v7014 = vpop.f32.mrf.mxu0
    %7015 = vdwg.mxu0
    %7016 = vmatpush.bf16.msra.mxu0 %v6864
    %7017 = vmatpush.bf16.msra.mxu0 %v6862
    %7018 = vmatpush.bf16.msra.mxu0 %v6860
    %7019 = vmatpush.bf16.msra.mxu0 %v6858
    %7020 = vmatpush.bf16.msra.mxu0 %v6856
    %7021 = vmatpush.bf16.msra.mxu0 %v6854
    %7022 = vmatpush.bf16.msra.mxu0 %v6852
    %7023 = vmatpush.bf16.msra.mxu0 %v6850
    %7024 = vmatmul.bf16.gmra.mxu0 %v6674
    %v7025 = vpop.f32.mrf.mxu0
    %v7026 = vadd.f32 0.0, %v7025
    %v7027 = vpop.f32.mrf.mxu0
    %7028 = vdwg.mxu0
    %7029 = vmatpush.bf16.msra.mxu0 %v6880
    %7030 = vmatpush.bf16.msra.mxu0 %v6878
    %7031 = vmatpush.bf16.msra.mxu0 %v6876
    %7032 = vmatpush.bf16.msra.mxu0 %v6874
    %7033 = vmatpush.bf16.msra.mxu0 %v6872
    %7034 = vmatpush.bf16.msra.mxu0 %v6870
    %7035 = vmatpush.bf16.msra.mxu0 %v6868
    %7036 = vmatpush.bf16.msra.mxu0 %v6866
    %7037 = vmatmul.bf16.gmra.mxu0 %v6675
    %v7038 = vpop.f32.mrf.mxu0
    %v7039 = vadd.f32 %v7026, %v7038
    %v7040 = vpop.f32.mrf.mxu0
    %7041 = vdwg.mxu0
    %7042 = vmatpush.bf16.msra.mxu0 %v6896
    %7043 = vmatpush.bf16.msra.mxu0 %v6894
    %7044 = vmatpush.bf16.msra.mxu0 %v6892
    %7045 = vmatpush.bf16.msra.mxu0 %v6890
    %7046 = vmatpush.bf16.msra.mxu0 %v6888
    %7047 = vmatpush.bf16.msra.mxu0 %v6886
    %7048 = vmatpush.bf16.msra.mxu0 %v6884
    %7049 = vmatpush.bf16.msra.mxu0 %v6882
    %7050 = vmatmul.bf16.gmra.mxu0 %v6676
    %v7051 = vpop.f32.mrf.mxu0
    %v7052 = vadd.f32 %v7039, %v7051
    %v7053 = vpop.f32.mrf.mxu0
    %7054 = vdwg.mxu0
    %7055 = vmatpush.bf16.msra.mxu0 0
    %7056 = vmatpush.bf16.msra.mxu0 0
    %7057 = vmatpush.bf16.msra.mxu0 0
    %7058 = vmatpush.bf16.msra.mxu0 0
    %7059 = vmatpush.bf16.msra.mxu0 %v6904
    %7060 = vmatpush.bf16.msra.mxu0 %v6902
    %7061 = vmatpush.bf16.msra.mxu0 %v6900
    %7062 = vmatpush.bf16.msra.mxu0 %v6898
    %7063 = vmatmul.bf16.gmra.mxu0 %v6962
    %v7064 = vpop.f32.mrf.mxu0
    %v7065 = vadd.f32 %v7052, %v7064
    %v7066 = vpop.f32.mrf.mxu0
    %7067 = vdwg.mxu0
    %v7068 = vadd.f32 %v6550, %v7013
    %v7069 = vadd.f32 %v6602, %v7065
    %s7070 = scalar_lea.vmem [#allocation11], 1344
    %v7071 = vld [vmem:[%s7070] sm:$0xff]
    %v7072 = vld [vmem:[%s7070 + $0x8] sm:$0xff]
    %v7073 = vld [vmem:[%s7070 + $0x10] sm:$0xff]
    %v7074 = vld [vmem:[%s7070 + $0x18] sm:$0xff]
    %v7075 = vld [vmem:[%s7070 + $0x20] sm:$0xff]
    %v7076 = vld [vmem:[%s7070 + $0x28] sm:$0xff]
    %v7077 = vld [vmem:[%s7070 + $0x30] sm:$0xff]
    %v7078 = vld [vmem:[%s7070 + $0x38] sm:$0xff]
    %v7079 = vld [vmem:[%s7070 + $0x40] sm:$0xff]
    %v7080 = vld [vmem:[%s7070 + $0x48] sm:$0xff]
    %v7081 = vld [vmem:[%s7070 + $0x50] sm:$0xff]
    %v7082 = vld [vmem:[%s7070 + $0x58] sm:$0xff]
    %v7083 = vld [vmem:[%s7070 + $0x60] sm:$0xff]
    %v7084 = vld [vmem:[%s7070 + $0x68] sm:$0xff]
    %v7085 = vld [vmem:[%s7070 + $0x70] sm:$0xff]
    %v7086 = vld [vmem:[%s7070 + $0x78] sm:$0xff]
    %v7087 = vld [vmem:[%s7070 + $0x80] sm:$0xff]
    %v7088 = vld [vmem:[%s7070 + $0x88] sm:$0xff]
    %v7089 = vld [vmem:[%s7070 + $0x90] sm:$0xff]
    %v7090 = vld [vmem:[%s7070 + $0x98] sm:$0xff]
    %v7091 = vld [vmem:[%s7070 + $0xa0] sm:$0xff]
    %v7092 = vld [vmem:[%s7070 + $0xa8] sm:$0xff]
    %v7093 = vld [vmem:[%s7070 + $0xb0] sm:$0xff]
    %v7094 = vld [vmem:[%s7070 + $0xb8] sm:$0xff]
    %v7095 = vld [vmem:[%s7070 + $0xc0] sm:$0xff]
    %v7096 = vld [vmem:[%s7070 + $0xc8] sm:$0xff]
    %v7097 = vld [vmem:[%s7070 + $0xd0] sm:$0xff]
    %v7098 = vld [vmem:[%s7070 + $0xd8] sm:$0xff]
    %v7099 = vld [vmem:[%s7070 + $0xe0] sm:$0xff]
    %v7100 = vld [vmem:[%s7070 + $0xe8] sm:$0xff]
    %v7101 = vld [vmem:[%s7070 + $0xf0] sm:$0xff]
    %v7102 = vld [vmem:[%s7070 + $0xf8] sm:$0xff]
    %v7103 = vld [vmem:[%s7070 + $0x100] sm:$0xff]
    %v7104 = vld [vmem:[%s7070 + $0x108] sm:$0xff]
    %v7105 = vld [vmem:[%s7070 + $0x110] sm:$0xff]
    %v7106 = vld [vmem:[%s7070 + $0x118] sm:$0xff]
    %v7107 = vld [vmem:[%s7070 + $0x120] sm:$0xff]
    %v7108 = vld [vmem:[%s7070 + $0x128] sm:$0xff]
    %v7109 = vld [vmem:[%s7070 + $0x130] sm:$0xff]
    %v7110 = vld [vmem:[%s7070 + $0x138] sm:$0xff]
    %v7111 = vld [vmem:[%s7070 + $0x140] sm:$0xff]
    %v7112 = vld [vmem:[%s7070 + $0x148] sm:$0xff]
    %v7113 = vld [vmem:[%s7070 + $0x150] sm:$0xff]
    %v7114 = vld [vmem:[%s7070 + $0x158] sm:$0xff]
    %v7115 = vld [vmem:[%s7070 + $0x160] sm:$0xff]
    %v7116 = vld [vmem:[%s7070 + $0x168] sm:$0xff]
    %v7117 = vld [vmem:[%s7070 + $0x170] sm:$0xff]
    %v7118 = vld [vmem:[%s7070 + $0x178] sm:$0xff]
    %v7119 = vld [vmem:[%s7070 + $0x180] sm:$0xff]
    %v7120 = vld [vmem:[%s7070 + $0x188] sm:$0xff]
    %v7121 = vld [vmem:[%s7070 + $0x190] sm:$0xff]
    %v7122 = vld [vmem:[%s7070 + $0x198] sm:$0xff]
    %v7123 = vld [vmem:[%s7070 + $0x1a0] sm:$0xff]
    %v7124 = vld [vmem:[%s7070 + $0x1a8] sm:$0xff]
    %v7125 = vld [vmem:[%s7070 + $0x1b0] sm:$0xff]
    %v7126 = vld [vmem:[%s7070 + $0x1b8] sm:$0xff]
    %v7127 = vrot.slane %v5788, 6
    %v7128 = vrot.slane %v5792, 5
    %v7129 = vsel %vm5798, %v7128, %v7127
    %v7130 = vrot.slane %v5789, 6
    %v7131 = vrot.slane %v5793, 5
    %v7132 = vsel %vm5798, %v7131, %v7130
    %v7133 = vrot.slane %v5790, 6
    %v7134 = vrot.slane %v5794, 5
    %v7135 = vsel %vm5798, %v7134, %v7133
    %v7136 = vrot.slane %v5791, 6
    %v7137 = vrot.slane %v5795, 5
    %v7138 = vsel %vm5798, %v7137, %v7136
    %v7139 = vpack.c.b16 %v7129, %v7129
    %v7140 = vpack.c.b16 %v7132, %v7132
    %v7141 = vpack.c.b16 %v7135, %v7135
    %v7142 = vpack.c.b16 %v7138, %v7138
    %v7202 = vunpack.c.l.b16 %v7071
    %v7203 = vunpack.c.h.b16 %v7071
    %v7204 = vunpack.c.l.b16 %v7072
    %v7205 = vunpack.c.h.b16 %v7072
    %v7206 = vunpack.c.l.b16 %v7073
    %v7207 = vunpack.c.h.b16 %v7073
    %v7208 = vunpack.c.l.b16 %v7074
    %v7209 = vunpack.c.h.b16 %v7074
    %v7210 = vunpack.c.l.b16 %v7075
    %v7211 = vunpack.c.h.b16 %v7075
    %v7212 = vunpack.c.l.b16 %v7076
    %v7213 = vunpack.c.h.b16 %v7076
    %v7214 = vunpack.c.l.b16 %v7077
    %v7215 = vunpack.c.h.b16 %v7077
    %v7216 = vunpack.c.l.b16 %v7078
    %v7217 = vunpack.c.h.b16 %v7078
    %v7218 = vunpack.c.l.b16 %v7079
    %v7219 = vunpack.c.h.b16 %v7079
    %v7220 = vunpack.c.l.b16 %v7080
    %v7221 = vunpack.c.h.b16 %v7080
    %v7222 = vunpack.c.l.b16 %v7081
    %v7223 = vunpack.c.h.b16 %v7081
    %v7224 = vunpack.c.l.b16 %v7082
    %v7225 = vunpack.c.h.b16 %v7082
    %v7226 = vunpack.c.l.b16 %v7083
    %v7227 = vunpack.c.h.b16 %v7083
    %v7228 = vunpack.c.l.b16 %v7084
    %v7229 = vunpack.c.h.b16 %v7084
    %v7230 = vunpack.c.l.b16 %v7085
    %v7231 = vunpack.c.h.b16 %v7085
    %v7232 = vunpack.c.l.b16 %v7086
    %v7233 = vunpack.c.h.b16 %v7086
    %v7234 = vunpack.c.l.b16 %v7087
    %v7235 = vunpack.c.h.b16 %v7087
    %v7236 = vunpack.c.l.b16 %v7088
    %v7237 = vunpack.c.h.b16 %v7088
    %v7238 = vunpack.c.l.b16 %v7089
    %v7239 = vunpack.c.h.b16 %v7089
    %v7240 = vunpack.c.l.b16 %v7090
    %v7241 = vunpack.c.h.b16 %v7090
    %v7242 = vunpack.c.l.b16 %v7091
    %v7243 = vunpack.c.h.b16 %v7091
    %v7244 = vunpack.c.l.b16 %v7092
    %v7245 = vunpack.c.h.b16 %v7092
    %v7246 = vunpack.c.l.b16 %v7093
    %v7247 = vunpack.c.h.b16 %v7093
    %v7248 = vunpack.c.l.b16 %v7094
    %v7249 = vunpack.c.h.b16 %v7094
    %v7250 = vunpack.c.l.b16 %v7095
    %v7251 = vunpack.c.h.b16 %v7095
    %v7252 = vunpack.c.l.b16 %v7096
    %v7253 = vunpack.c.h.b16 %v7096
    %v7254 = vunpack.c.l.b16 %v7097
    %v7255 = vunpack.c.h.b16 %v7097
    %v7256 = vunpack.c.l.b16 %v7098
    %v7257 = vunpack.c.h.b16 %v7098
    %v7258 = vunpack.c.l.b16 %v7099
    %v7259 = vunpack.c.h.b16 %v7099
    %v7260 = vunpack.c.l.b16 %v7100
    %v7261 = vunpack.c.h.b16 %v7100
    %v7262 = vunpack.c.l.b16 %v7101
    %v7263 = vunpack.c.h.b16 %v7101
    %v7264 = vunpack.c.l.b16 %v7102
    %v7265 = vunpack.c.h.b16 %v7102
    %v7266 = vunpack.c.l.b16 %v7103
    %v7267 = vunpack.c.h.b16 %v7103
    %v7268 = vunpack.c.l.b16 %v7104
    %v7269 = vunpack.c.h.b16 %v7104
    %v7270 = vunpack.c.l.b16 %v7105
    %v7271 = vunpack.c.h.b16 %v7105
    %v7272 = vunpack.c.l.b16 %v7106
    %v7273 = vunpack.c.h.b16 %v7106
    %v7274 = vunpack.c.l.b16 %v7107
    %v7275 = vunpack.c.h.b16 %v7107
    %v7276 = vunpack.c.l.b16 %v7108
    %v7277 = vunpack.c.h.b16 %v7108
    %v7278 = vunpack.c.l.b16 %v7109
    %v7279 = vunpack.c.h.b16 %v7109
    %v7280 = vunpack.c.l.b16 %v7110
    %v7281 = vunpack.c.h.b16 %v7110
    %v7282 = vunpack.c.l.b16 %v7111
    %v7283 = vunpack.c.h.b16 %v7111
    %v7284 = vunpack.c.l.b16 %v7112
    %v7285 = vunpack.c.h.b16 %v7112
    %v7286 = vunpack.c.l.b16 %v7113
    %v7287 = vunpack.c.h.b16 %v7113
    %v7288 = vunpack.c.l.b16 %v7114
    %v7289 = vunpack.c.h.b16 %v7114
    %v7290 = vunpack.c.l.b16 %v7115
    %v7291 = vunpack.c.h.b16 %v7115
    %v7292 = vunpack.c.l.b16 %v7116
    %v7293 = vunpack.c.h.b16 %v7116
    %v7294 = vunpack.c.l.b16 %v7117
    %v7295 = vunpack.c.h.b16 %v7117
    %v7296 = vunpack.c.l.b16 %v7118
    %v7297 = vunpack.c.h.b16 %v7118
    %v7298 = vunpack.c.l.b16 %v7119
    %v7299 = vunpack.c.h.b16 %v7119
    %v7300 = vunpack.c.l.b16 %v7120
    %v7301 = vunpack.c.h.b16 %v7120
    %v7302 = vunpack.c.l.b16 %v7121
    %v7303 = vunpack.c.h.b16 %v7121
    %v7304 = vunpack.c.l.b16 %v7122
    %v7305 = vunpack.c.h.b16 %v7122
    %v7306 = vunpack.c.l.b16 %v7123
    %v7307 = vunpack.c.h.b16 %v7123
    %v7308 = vunpack.c.l.b16 %v7124
    %v7309 = vunpack.c.h.b16 %v7124
    %v7310 = vunpack.c.l.b16 %v7125
    %v7311 = vunpack.c.h.b16 %v7125
    %v7312 = vunpack.c.l.b16 %v7126
    %v7313 = vunpack.c.h.b16 %v7126
    %v7314 = vpack.c.b16 %v7204, %v7202
    %v7315 = vpack.c.b16 %v7205, %v7203
    %v7316 = vpack.c.b16 %v7208, %v7206
    %v7317 = vpack.c.b16 %v7209, %v7207
    %v7318 = vpack.c.b16 %v7212, %v7210
    %v7319 = vpack.c.b16 %v7213, %v7211
    %v7320 = vpack.c.b16 %v7216, %v7214
    %v7321 = vpack.c.b16 %v7217, %v7215
    %v7322 = vpack.c.b16 %v7220, %v7218
    %v7323 = vpack.c.b16 %v7221, %v7219
    %v7324 = vpack.c.b16 %v7224, %v7222
    %v7325 = vpack.c.b16 %v7225, %v7223
    %v7326 = vpack.c.b16 %v7228, %v7226
    %v7327 = vpack.c.b16 %v7229, %v7227
    %v7328 = vpack.c.b16 %v7232, %v7230
    %v7329 = vpack.c.b16 %v7233, %v7231
    %v7330 = vpack.c.b16 %v7236, %v7234
    %v7331 = vpack.c.b16 %v7237, %v7235
    %v7332 = vpack.c.b16 %v7240, %v7238
    %v7333 = vpack.c.b16 %v7241, %v7239
    %v7334 = vpack.c.b16 %v7244, %v7242
    %v7335 = vpack.c.b16 %v7245, %v7243
    %v7336 = vpack.c.b16 %v7248, %v7246
    %v7337 = vpack.c.b16 %v7249, %v7247
    %v7338 = vpack.c.b16 %v7252, %v7250
    %v7339 = vpack.c.b16 %v7253, %v7251
    %v7340 = vpack.c.b16 %v7256, %v7254
    %v7341 = vpack.c.b16 %v7257, %v7255
    %v7342 = vpack.c.b16 %v7260, %v7258
    %v7343 = vpack.c.b16 %v7261, %v7259
    %v7344 = vpack.c.b16 %v7264, %v7262
    %v7345 = vpack.c.b16 %v7265, %v7263
    %v7346 = vpack.c.b16 %v7268, %v7266
    %v7347 = vpack.c.b16 %v7269, %v7267
    %v7348 = vpack.c.b16 %v7272, %v7270
    %v7349 = vpack.c.b16 %v7273, %v7271
    %v7350 = vpack.c.b16 %v7276, %v7274
    %v7351 = vpack.c.b16 %v7277, %v7275
    %v7352 = vpack.c.b16 %v7280, %v7278
    %v7353 = vpack.c.b16 %v7281, %v7279
    %v7354 = vpack.c.b16 %v7284, %v7282
    %v7355 = vpack.c.b16 %v7285, %v7283
    %v7356 = vpack.c.b16 %v7288, %v7286
    %v7357 = vpack.c.b16 %v7289, %v7287
    %v7358 = vpack.c.b16 %v7292, %v7290
    %v7359 = vpack.c.b16 %v7293, %v7291
    %v7360 = vpack.c.b16 %v7296, %v7294
    %v7361 = vpack.c.b16 %v7297, %v7295
    %v7362 = vpack.c.b16 %v7300, %v7298
    %v7363 = vpack.c.b16 %v7301, %v7299
    %v7364 = vpack.c.b16 %v7304, %v7302
    %v7365 = vpack.c.b16 %v7305, %v7303
    %v7366 = vpack.c.b16 %v7308, %v7306
    %v7367 = vpack.c.b16 %v7309, %v7307
    %v7368 = vpack.c.b16 %v7312, %v7310
    %v7369 = vpack.c.b16 %v7313, %v7311
    %v7427 = vsel %vm5578, %v7142, 0
    %7429 = vmatpush.bf16.msra.mxu0 %v7328
    %7430 = vmatpush.bf16.msra.mxu0 %v7326
    %7431 = vmatpush.bf16.msra.mxu0 %v7324
    %7432 = vmatpush.bf16.msra.mxu0 %v7322
    %7433 = vmatpush.bf16.msra.mxu0 %v7320
    %7434 = vmatpush.bf16.msra.mxu0 %v7318
    %7435 = vmatpush.bf16.msra.mxu0 %v7316
    %7436 = vmatpush.bf16.msra.mxu0 %v7314
    %7437 = vmatmul.bf16.gmra.mxu0 %v7139
    %v7438 = vpop.f32.mrf.mxu0
    %v7439 = vadd.f32 0.0, %v7438
    %v7440 = vpop.f32.mrf.mxu0
    %7441 = vdwg.mxu0
    %7442 = vmatpush.bf16.msra.mxu0 %v7344
    %7443 = vmatpush.bf16.msra.mxu0 %v7342
    %7444 = vmatpush.bf16.msra.mxu0 %v7340
    %7445 = vmatpush.bf16.msra.mxu0 %v7338
    %7446 = vmatpush.bf16.msra.mxu0 %v7336
    %7447 = vmatpush.bf16.msra.mxu0 %v7334
    %7448 = vmatpush.bf16.msra.mxu0 %v7332
    %7449 = vmatpush.bf16.msra.mxu0 %v7330
    %7450 = vmatmul.bf16.gmra.mxu0 %v7140
    %v7451 = vpop.f32.mrf.mxu0
    %v7452 = vadd.f32 %v7439, %v7451
    %v7453 = vpop.f32.mrf.mxu0
    %7454 = vdwg.mxu0
    %7455 = vmatpush.bf16.msra.mxu0 %v7360
    %7456 = vmatpush.bf16.msra.mxu0 %v7358
    %7457 = vmatpush.bf16.msra.mxu0 %v7356
    %7458 = vmatpush.bf16.msra.mxu0 %v7354
    %7459 = vmatpush.bf16.msra.mxu0 %v7352
    %7460 = vmatpush.bf16.msra.mxu0 %v7350
    %7461 = vmatpush.bf16.msra.mxu0 %v7348
    %7462 = vmatpush.bf16.msra.mxu0 %v7346
    %7463 = vmatmul.bf16.gmra.mxu0 %v7141
    %v7464 = vpop.f32.mrf.mxu0
    %v7465 = vadd.f32 %v7452, %v7464
    %v7466 = vpop.f32.mrf.mxu0
    %7467 = vdwg.mxu0
    %7468 = vmatpush.bf16.msra.mxu0 0
    %7469 = vmatpush.bf16.msra.mxu0 0
    %7470 = vmatpush.bf16.msra.mxu0 0
    %7471 = vmatpush.bf16.msra.mxu0 0
    %7472 = vmatpush.bf16.msra.mxu0 %v7368
    %7473 = vmatpush.bf16.msra.mxu0 %v7366
    %7474 = vmatpush.bf16.msra.mxu0 %v7364
    %7475 = vmatpush.bf16.msra.mxu0 %v7362
    %7476 = vmatmul.bf16.gmra.mxu0 %v7427
    %v7477 = vpop.f32.mrf.mxu0
    %v7478 = vadd.f32 %v7465, %v7477
    %v7479 = vpop.f32.mrf.mxu0
    %7480 = vdwg.mxu0
    %7481 = vmatpush.bf16.msra.mxu0 %v7329
    %7482 = vmatpush.bf16.msra.mxu0 %v7327
    %7483 = vmatpush.bf16.msra.mxu0 %v7325
    %7484 = vmatpush.bf16.msra.mxu0 %v7323
    %7485 = vmatpush.bf16.msra.mxu0 %v7321
    %7486 = vmatpush.bf16.msra.mxu0 %v7319
    %7487 = vmatpush.bf16.msra.mxu0 %v7317
    %7488 = vmatpush.bf16.msra.mxu0 %v7315
    %7489 = vmatmul.bf16.gmra.mxu0 %v7139
    %v7490 = vpop.f32.mrf.mxu0
    %v7491 = vadd.f32 0.0, %v7490
    %v7492 = vpop.f32.mrf.mxu0
    %7493 = vdwg.mxu0
    %7494 = vmatpush.bf16.msra.mxu0 %v7345
    %7495 = vmatpush.bf16.msra.mxu0 %v7343
    %7496 = vmatpush.bf16.msra.mxu0 %v7341
    %7497 = vmatpush.bf16.msra.mxu0 %v7339
    %7498 = vmatpush.bf16.msra.mxu0 %v7337
    %7499 = vmatpush.bf16.msra.mxu0 %v7335
    %7500 = vmatpush.bf16.msra.mxu0 %v7333
    %7501 = vmatpush.bf16.msra.mxu0 %v7331
    %7502 = vmatmul.bf16.gmra.mxu0 %v7140
    %v7503 = vpop.f32.mrf.mxu0
    %v7504 = vadd.f32 %v7491, %v7503
    %v7505 = vpop.f32.mrf.mxu0
    %7506 = vdwg.mxu0
    %7507 = vmatpush.bf16.msra.mxu0 %v7361
    %7508 = vmatpush.bf16.msra.mxu0 %v7359
    %7509 = vmatpush.bf16.msra.mxu0 %v7357
    %7510 = vmatpush.bf16.msra.mxu0 %v7355
    %7511 = vmatpush.bf16.msra.mxu0 %v7353
    %7512 = vmatpush.bf16.msra.mxu0 %v7351
    %7513 = vmatpush.bf16.msra.mxu0 %v7349
    %7514 = vmatpush.bf16.msra.mxu0 %v7347
    %7515 = vmatmul.bf16.gmra.mxu0 %v7141
    %v7516 = vpop.f32.mrf.mxu0
    %v7517 = vadd.f32 %v7504, %v7516
    %v7518 = vpop.f32.mrf.mxu0
    %7519 = vdwg.mxu0
    %7520 = vmatpush.bf16.msra.mxu0 0
    %7521 = vmatpush.bf16.msra.mxu0 0
    %7522 = vmatpush.bf16.msra.mxu0 0
    %7523 = vmatpush.bf16.msra.mxu0 0
    %7524 = vmatpush.bf16.msra.mxu0 %v7369
    %7525 = vmatpush.bf16.msra.mxu0 %v7367
    %7526 = vmatpush.bf16.msra.mxu0 %v7365
    %7527 = vmatpush.bf16.msra.mxu0 %v7363
    %7528 = vmatmul.bf16.gmra.mxu0 %v7427
    %v7529 = vpop.f32.mrf.mxu0
    %v7530 = vadd.f32 %v7517, %v7529
    %v7531 = vpop.f32.mrf.mxu0
    %7532 = vdwg.mxu0
    %v7533 = vadd.f32 %v7068, %v7478
    %v7534 = vadd.f32 %v7069, %v7530
    %v7535 = vld [vmem:[#allocation12] sm:$0x3]
    %v7537 = vperm.slane %v7535, 0
    %v7538 = vperm.slane %v7535, 1
    %v7541 = vadd.f32 %v7533, %v7537
    %v7542 = vadd.f32 %v7534, %v7538
    %v7543 = vmax.f32 %v7541, 0.0
    %v7544 = vmax.f32 %v7542, 0.0
    %v7545 = vpack.c.bf16 %v7543, %v7543
    %v7546 = vpack.c.bf16 %v7544, %v7544
    %v7547 = vld [vmem:[#allocation14] sm:$0xf]
    %v7548 = vld [vmem:[#allocation14 + $0x4] sm:$0xf]
    %v7549 = vld [vmem:[#allocation14 + $0x8] sm:$0xf]
    %v7550 = vld [vmem:[#allocation14 + $0xc] sm:$0xf]
    %v7551 = vld [vmem:[#allocation14 + $0x10] sm:$0xf]
    %v7552 = vld [vmem:[#allocation14 + $0x14] sm:$0xf]
    %v7553 = vld [vmem:[#allocation14 + $0x18] sm:$0xf]
    %v7554 = vld [vmem:[#allocation14 + $0x1c] sm:$0xf]
    %v7555 = vld [vmem:[#allocation14 + $0x20] sm:$0xf]
    %v7556 = vld [vmem:[#allocation14 + $0x24] sm:$0xf]
    %v7557 = vld [vmem:[#allocation14 + $0x28] sm:$0xf]
    %v7558 = vld [vmem:[#allocation14 + $0x2c] sm:$0xf]
    %v7559 = vld [vmem:[#allocation14 + $0x30] sm:$0xf]
    %v7560 = vld [vmem:[#allocation14 + $0x34] sm:$0xf]
    %v7561 = vld [vmem:[#allocation14 + $0x38] sm:$0xf]
    %v7562 = vld [vmem:[#allocation14 + $0x3c] sm:$0xf]
    %v7563 = vld [vmem:[#allocation14 + $0x40] sm:$0xf]
    %v7564 = vld [vmem:[#allocation14 + $0x44] sm:$0xf]
    %v7565 = vld [vmem:[#allocation14 + $0x48] sm:$0xf]
    %v7566 = vld [vmem:[#allocation14 + $0x4c] sm:$0xf]
    %v7567 = vld [vmem:[#allocation14 + $0x50] sm:$0xf]
    %v7568 = vld [vmem:[#allocation14 + $0x54] sm:$0xf]
    %v7569 = vld [vmem:[#allocation14 + $0x58] sm:$0xf]
    %v7570 = vld [vmem:[#allocation14 + $0x5c] sm:$0xf]
    %v7571 = vld [vmem:[#allocation14 + $0x60] sm:$0xf]
    %v7572 = vld [vmem:[#allocation14 + $0x64] sm:$0xf]
    %v7573 = vld [vmem:[#allocation14 + $0x68] sm:$0xf]
    %v7574 = vld [vmem:[#allocation14 + $0x6c] sm:$0xf]
    %v7575 = vld [vmem:[#allocation14 + $0x70] sm:$0xf]
    %v7576 = vld [vmem:[#allocation14 + $0x74] sm:$0xf]
    %v7577 = vld [vmem:[#allocation14 + $0x78] sm:$0xf]
    %v7578 = vld [vmem:[#allocation14 + $0x7c] sm:$0xf]
    %v7579 = vld [vmem:[#allocation15] sm:$0x1]
    %v7581 = vperm.slane %v7579, 0
    %v7615 = vunpack.c.l.b16 %v7547
    %v7616 = vunpack.c.l.b16 %v7548
    %v7617 = vunpack.c.l.b16 %v7549
    %v7618 = vunpack.c.l.b16 %v7550
    %v7619 = vunpack.c.l.b16 %v7551
    %v7620 = vunpack.c.l.b16 %v7552
    %v7621 = vunpack.c.l.b16 %v7553
    %v7622 = vunpack.c.l.b16 %v7554
    %v7623 = vunpack.c.l.b16 %v7555
    %v7624 = vunpack.c.l.b16 %v7556
    %v7625 = vunpack.c.l.b16 %v7557
    %v7626 = vunpack.c.l.b16 %v7558
    %v7627 = vunpack.c.l.b16 %v7559
    %v7628 = vunpack.c.l.b16 %v7560
    %v7629 = vunpack.c.l.b16 %v7561
    %v7630 = vunpack.c.l.b16 %v7562
    %v7631 = vunpack.c.l.b16 %v7563
    %v7632 = vunpack.c.l.b16 %v7564
    %v7633 = vunpack.c.l.b16 %v7565
    %v7634 = vunpack.c.l.b16 %v7566
    %v7635 = vunpack.c.l.b16 %v7567
    %v7636 = vunpack.c.l.b16 %v7568
    %v7637 = vunpack.c.l.b16 %v7569
    %v7638 = vunpack.c.l.b16 %v7570
    %v7639 = vunpack.c.l.b16 %v7571
    %v7640 = vunpack.c.l.b16 %v7572
    %v7641 = vunpack.c.l.b16 %v7573
    %v7642 = vunpack.c.l.b16 %v7574
    %v7643 = vunpack.c.l.b16 %v7575
    %v7644 = vunpack.c.l.b16 %v7576
    %v7645 = vunpack.c.l.b16 %v7577
    %v7646 = vunpack.c.l.b16 %v7578
    %v7647 = vpack.c.b16 %v7616, %v7615
    %v7648 = vpack.c.b16 %v7618, %v7617
    %v7649 = vpack.c.b16 %v7620, %v7619
    %v7650 = vpack.c.b16 %v7622, %v7621
    %v7651 = vpack.c.b16 %v7624, %v7623
    %v7652 = vpack.c.b16 %v7626, %v7625
    %v7653 = vpack.c.b16 %v7628, %v7627
    %v7654 = vpack.c.b16 %v7630, %v7629
    %v7655 = vpack.c.b16 %v7632, %v7631
    %v7656 = vpack.c.b16 %v7634, %v7633
    %v7657 = vpack.c.b16 %v7636, %v7635
    %v7658 = vpack.c.b16 %v7638, %v7637
    %v7659 = vpack.c.b16 %v7640, %v7639
    %v7660 = vpack.c.b16 %v7642, %v7641
    %v7661 = vpack.c.b16 %v7644, %v7643
    %v7662 = vpack.c.b16 %v7646, %v7645
    %7679 = vmatpush.bf16.msra.mxu0 %v7654
    %7680 = vmatpush.bf16.msra.mxu0 %v7653
    %7681 = vmatpush.bf16.msra.mxu0 %v7652
    %7682 = vmatpush.bf16.msra.mxu0 %v7651
    %7683 = vmatpush.bf16.msra.mxu0 %v7650
    %7684 = vmatpush.bf16.msra.mxu0 %v7649
    %7685 = vmatpush.bf16.msra.mxu0 %v7648
    %7686 = vmatpush.bf16.msra.mxu0 %v7647
    %7687 = vmatmul.bf16.gmra.mxu0 %v7545
    %v7688 = vpop.f32.mrf.mxu0
    %v7689 = vadd.f32 %v7581, %v7688
    %v7690 = vpop.f32.mrf.mxu0
    %7691 = vdwg.mxu0
    %7692 = vmatpush.bf16.msra.mxu0 %v7662
    %7693 = vmatpush.bf16.msra.mxu0 %v7661
    %7694 = vmatpush.bf16.msra.mxu0 %v7660
    %7695 = vmatpush.bf16.msra.mxu0 %v7659
    %7696 = vmatpush.bf16.msra.mxu0 %v7658
    %7697 = vmatpush.bf16.msra.mxu0 %v7657
    %7698 = vmatpush.bf16.msra.mxu0 %v7656
    %7699 = vmatpush.bf16.msra.mxu0 %v7655
    %7700 = vmatmul.bf16.gmra.mxu0 %v7546
    %v7701 = vpop.f32.mrf.mxu0
    %v7702 = vadd.f32 %v7689, %v7701
    %v7703 = vpop.f32.mrf.mxu0
    %7704 = vdwg.mxu0
    %7705 = vst [vmem:[#allocation17] sm:$0x3] %v7702
    // Predicated region
    $region70: #{convnet_forward_impl.1} parent=1 // pred_check
      _
    $region71: #{convnet_forward_impl.1} parent=1 // pred_check_branch
      %7707 = sbr.rel (0) target = $region73
    $region72: #{convnet_forward_impl.1} parent=1 // pred_region
      %7709 = vsyncadd [#allocation5], 0
      %s7711 = sshll.u32 [#allocation17], 4
      %s7712 = int_to_ptr.vmem [resolvable:$true] %s7711
      %s7713 = sshll.u32 %s9, 4
      %s7714 = int_to_ptr.hbm [resolvable:$true] %s7713
      %7716 = dma.vmem_to_hbm [thread:$0]  %s7712, 32, %s7714, [#allocation5]
    $region73: #{convnet_forward_impl.1} parent=1 // pred_fallthru
      _
    // Predicated region
    $region74: #{convnet_forward_impl.1} parent=1 // pred_check
      _
    $region75: #{convnet_forward_impl.1} parent=1 // pred_check_branch
      %7718 = sbr.rel (0) target = $region77
    $region76: #{convnet_forward_impl.1} parent=1 // pred_region
      %7720 = dma.done [#allocation5], 32
    $region77: #{convnet_forward_impl.1} parent=1 // pred_fallthru
      _
    %7721 = vsyncpa [#allocation4], 1
    %7722 = vsyncpa [#allocation7], 1
    %7723 = vsyncpa [#allocation10], 1
    %7724 = vsyncpa [#allocation13], 1
    %7725 = vsyncpa [#allocation16], 1
    %7726 = vsyncpa [#allocation5], 1

</llo_original>
